<compile_context>
chip_gen: v6e
topology: v6e:2x2x1
jax: 0.10.0
libtpu: 0.0.40
codegen_flags: <defaults>
</compile_context>

<pallas_src>
import functools

import jax
import jax.numpy as jnp
from jax.experimental import pallas as pl
from jax.experimental.pallas import tpu as pltpu


# ----------------------------- fused forward kernel -----------------------------

def _traj_kernel(x_ref, mean_ref,
                 w0f_ih_ref, w0f_hh_ref, b0f_ref,
                 w0b_ih_ref, w0b_hh_ref, b0b_ref,
                 w1f_ih_ref, w1f_hh_ref, b1f_ref,
                 w1b_ih_ref, w1b_hh_ref, b1b_ref,
                 fw1_ref, fb1_ref, fw2_ref, fb2_ref,
                 o_ref,
                 gxf_sc, gxb_sc, h0_sc,
                 *, S, BN, H):
    f32 = jnp.float32
    bf16 = jnp.bfloat16

    def cell(gates, c):
        # PyTorch gate order [i, f, g, o]; all gate math in f32.
        i = jax.nn.sigmoid(gates[:, 0 * H:1 * H])
        f = jax.nn.sigmoid(gates[:, 1 * H:2 * H])
        g = jnp.tanh(gates[:, 2 * H:3 * H])
        o = jax.nn.sigmoid(gates[:, 3 * H:4 * H])
        c_new = f * c + i * g
        h_new = o * jnp.tanh(c_new)
        return h_new, c_new

    # ---------------- layer 0: hoisted input projections (fwd + bwd) ----------------
    x = x_ref[...]                                                       # (S*BN, Din) f32
    gxf_sc[...] = jnp.dot(x, w0f_ih_ref[...], preferred_element_type=f32) + b0f_ref[...]
    gxb_sc[...] = jnp.dot(x, w0b_ih_ref[...], preferred_element_type=f32) + b0b_ref[...]

    zero = jnp.zeros((BN, H), f32)
    hf, cf, hb, cb = zero, zero, zero, zero
    for t in range(S):                 # statically unrolled; fwd & bwd fused per iteration
        tb = S - 1 - t
        gf = gxf_sc[t * BN:(t + 1) * BN, :] + jnp.dot(
            hf.astype(bf16), w0f_hh_ref[...], preferred_element_type=f32)
        hf, cf = cell(gf, cf)
        h0_sc[t * BN:(t + 1) * BN, 0:H] = hf

        gb = gxb_sc[tb * BN:(tb + 1) * BN, :] + jnp.dot(
            hb.astype(bf16), w0b_hh_ref[...], preferred_element_type=f32)
        hb, cb = cell(gb, cb)
        h0_sc[tb * BN:(tb + 1) * BN, H:2 * H] = hb

    # ---------------- layer 1: hoisted input projections over full layer-0 seq ----------------
    h0 = h0_sc[...].astype(bf16)                                         # (S*BN, 2H)
    gxf_sc[...] = jnp.dot(h0, w1f_ih_ref[...], preferred_element_type=f32) + b1f_ref[...]
    gxb_sc[...] = jnp.dot(h0, w1b_ih_ref[...], preferred_element_type=f32) + b1b_ref[...]

    hf, cf, hb, cb = zero, zero, zero, zero
    for t in range(S):                 # only final hidden states needed -> no sequence output
        tb = S - 1 - t
        gf = gxf_sc[t * BN:(t + 1) * BN, :] + jnp.dot(
            hf.astype(bf16), w1f_hh_ref[...], preferred_element_type=f32)
        hf, cf = cell(gf, cf)
        gb = gxb_sc[tb * BN:(tb + 1) * BN, :] + jnp.dot(
            hb.astype(bf16), w1b_hh_ref[...], preferred_element_type=f32)
        hb, cb = cell(gb, cb)

    # ---------------- epilogue: agent mean + MLP head (f32) ----------------
    hidden = jnp.concatenate([hf, hb], axis=1)                           # (BN, 2H)
    feat = jnp.dot(mean_ref[...], hidden, preferred_element_type=f32)    # (B, 2H)  agent mean
    z = jnp.maximum(
        jnp.dot(feat, fw1_ref[...], preferred_element_type=f32) + fb1_ref[...], 0.0)
    y = jnp.dot(z, fw2_ref[...], preferred_element_type=f32) + fb2_ref[...]
    o_ref[...] = jax.nn.sigmoid(y)                                       # (B, 1)


# ----------------------------- parameters -----------------------------

def init_params(key, input_dim=2, hidden_dim=128):
    H = hidden_dim
    stdv = 1.0 / (H ** 0.5)
    keys = iter(jax.random.split(key, 24))

    def u(shape, scale=stdv):
        return jax.random.uniform(next(keys), shape, jnp.float32, -scale, scale)

    params = {"hidden_dim": H}
    layer_in = [input_dim, 2 * H]
    for layer in range(2):
        for suf in ("f", "b"):
            din = layer_in[layer]
            wih = u((4 * H, din))
            whh = u((4 * H, H))
            bih = u((4 * H,))
            bhh = u((4 * H,))
            # Layer-0 Wih has K=2 -> keep f32 (one-off tiny matmul); large matmul operands bf16.
            ih_dtype = jnp.float32 if layer == 0 else jnp.bfloat16
            params[f"l{layer}{suf}"] = dict(
                wih=wih, whh=whh, bih=bih, bhh=bhh,
                wih_t=jnp.transpose(wih).astype(ih_dtype),
                whh_t=jnp.transpose(whh).astype(jnp.bfloat16),
                b=(bih + bhh).reshape(1, 4 * H))
    s1 = 1.0 / ((2 * H) ** 0.5)
    w1 = u((64, 2 * H), s1)
    b1 = u((64,), s1)
    s2 = 1.0 / (64 ** 0.5)
    w2 = u((1, 64), s2)
    b2 = u((1,), s2)
    params["fc"] = dict(w1=w1, b1=b1, w2=w2, b2=b2,
                        w1_t=jnp.transpose(w1), b1_r=b1.reshape(1, 64),
                        w2_t=jnp.transpose(w2), b2_r=b2.reshape(1, 1))
    return params


# ----------------------------- forward pass -----------------------------

def trajectory_classifier_forward(x, params):
    """x: (B, N, S, 2) f32  ->  (B, 1) f32  (sigmoid probability)."""
    B, N, S, D = x.shape
    BN = B * N
    H = params["hidden_dim"]

    # time-major, flattened: row t*BN + bn  (bn = b*N + n)
    x2d = jnp.transpose(x.reshape(BN, S, D), (1, 0, 2)).reshape(S * BN, D)
    # (B, BN) averaging matrix: mean over the N agents of each batch element
    mean_mat = jnp.repeat(jnp.eye(B, dtype=jnp.float32), N, axis=1) / N

    l0f, l0b = params["l0f"], params["l0b"]
    l1f, l1b = params["l1f"], params["l1b"]
    fc = params["fc"]

    kernel = functools.partial(_traj_kernel, S=S, BN=BN, H=H)
    return pl.pallas_call(
        kernel,
        out_shape=jax.ShapeDtypeStruct((B, 1), jnp.float32),
        scratch_shapes=[
            pltpu.VMEM((S * BN, 4 * H), jnp.float32),   # hoisted gates, fwd dir (reused L0/L1)
            pltpu.VMEM((S * BN, 4 * H), jnp.float32),   # hoisted gates, bwd dir (reused L0/L1)
            pltpu.VMEM((S * BN, 2 * H), jnp.float32),   # layer-0 hidden sequence (fwd | bwd)
        ],
    )(x2d, mean_mat,
      l0f["wih_t"], l0f["whh_t"], l0f["b"],
      l0b["wih_t"], l0b["whh_t"], l0b["b"],
      l1f["wih_t"], l1f["whh_t"], l1f["b"],
      l1b["wih_t"], l1b["whh_t"], l1b["b"],
      fc["w1_t"], fc["b1_r"], fc["w2_t"], fc["b2_r"])


# ----------------------------- pure-JAX f32 reference -----------------------------

def _ref_lstm_dir(x_seq, wih, whh, bih, bhh, reverse):
    S, BN, _ = x_seq.shape
    H = whh.shape[1]

    def step(carry, xt):
        h, c = carry
        g = xt @ wih.T + h @ whh.T + bih + bhh
        i = jax.nn.sigmoid(g[:, :H])
        f = jax.nn.sigmoid(g[:, H:2 * H])
        gg = jnp.tanh(g[:, 2 * H:3 * H])
        o = jax.nn.sigmoid(g[:, 3 * H:])
        c = f * c + i * gg
        h = o * jnp.tanh(c)
        return (h, c), h

    xs = x_seq[::-1] if reverse else x_seq
    init = (jnp.zeros((BN, H), jnp.float32), jnp.zeros((BN, H), jnp.float32))
    (h_last, _), hs = jax.lax.scan(step, init, xs)
    if reverse:
        hs = hs[::-1]
    return hs, h_last


def ref_forward(x, params):
    B, N, S, D = x.shape
    BN = B * N
    H = params["hidden_dim"]
    x_seq = jnp.transpose(x.reshape(BN, S, D), (1, 0, 2))

    p = params["l0f"]
    h0f, _ = _ref_lstm_dir(x_seq, p["wih"], p["whh"], p["bih"], p["bhh"], False)
    p = params["l0b"]
    h0b, _ = _ref_lstm_dir(x_seq, p["wih"], p["whh"], p["bih"], p["bhh"], True)
    x1 = jnp.concatenate([h0f, h0b], axis=-1)

    p = params["l1f"]
    _, h1f = _ref_lstm_dir(x1, p["wih"], p["whh"], p["bih"], p["bhh"], False)
    p = params["l1b"]
    _, h1b = _ref_lstm_dir(x1, p["wih"], p["whh"], p["bih"], p["bhh"], True)

    hidden = jnp.concatenate([h1f, h1b], axis=-1)
    feat = hidden.reshape(B, N, 2 * H).mean(axis=1)
    fc = params["fc"]
    h = jnp.maximum(feat @ fc["w1"].T + fc["b1"], 0.0)
    return jax.nn.sigmoid(h @ fc["w2"].T + fc["b2"])


# ----------------------------- main -----------------------------

if __name__ == "__main__":
    B, N, S, D, H = 2, 4, 8, 2, 128   # batch, agents, seq len, (x,y), hidden_dim

    key = jax.random.PRNGKey(0)
    x = jax.random.normal(key, (B, N, S, D), jnp.float32)
    params = init_params(jax.random.PRNGKey(42), input_dim=D, hidden_dim=H)

    out = jax.block_until_ready(trajectory_classifier_forward(x, params))
    ref = jax.block_until_ready(ref_forward(x, params))

    assert out.shape == (B, 1), out.shape
    # bf16 MXU operands with f32 accumulation -> tolerance relaxed vs. pure-f32.
    assert jnp.allclose(out, ref, atol=2e-2, rtol=2e-2), (out, ref)

    print("KERNEL_OK")
</pallas_src>

<mosaic_0001>
module attributes {stable_mosaic.version = 11 : i64} {
  func.func @_traj_kernel(%arg0: memref<64x2xf32, #tpu.memory_space<vmem>>, %arg1: memref<2x8xf32, #tpu.memory_space<vmem>>, %arg2: memref<2x512xf32, #tpu.memory_space<vmem>>, %arg3: memref<128x512xbf16, #tpu.memory_space<vmem>>, %arg4: memref<1x512xf32, #tpu.memory_space<vmem>>, %arg5: memref<2x512xf32, #tpu.memory_space<vmem>>, %arg6: memref<128x512xbf16, #tpu.memory_space<vmem>>, %arg7: memref<1x512xf32, #tpu.memory_space<vmem>>, %arg8: memref<256x512xbf16, #tpu.memory_space<vmem>>, %arg9: memref<128x512xbf16, #tpu.memory_space<vmem>>, %arg10: memref<1x512xf32, #tpu.memory_space<vmem>>, %arg11: memref<256x512xbf16, #tpu.memory_space<vmem>>, %arg12: memref<128x512xbf16, #tpu.memory_space<vmem>>, %arg13: memref<1x512xf32, #tpu.memory_space<vmem>>, %arg14: memref<256x64xf32, #tpu.memory_space<vmem>>, %arg15: memref<1x64xf32, #tpu.memory_space<vmem>>, %arg16: memref<64x1xf32, #tpu.memory_space<vmem>>, %arg17: memref<1x1xf32, #tpu.memory_space<vmem>>, %arg18: memref<2x1xf32, #tpu.memory_space<vmem>>, %arg19: memref<64x512xf32, #tpu.memory_space<vmem>>, %arg20: memref<64x512xf32, #tpu.memory_space<vmem>>, %arg21: memref<64x256xf32, #tpu.memory_space<vmem>>) attributes {dimension_semantics = [], scalar_prefetch = 0 : i64, scratch_operands = 3 : i64, tpu.core_type = #tpu.core_type<tc>} {
    %c0 = arith.constant 0 : index
    %c0_0 = arith.constant 0 : index
    %0 = vector.load %arg0[%c0, %c0_0] : memref<64x2xf32, #tpu.memory_space<vmem>>, vector<64x2xf32>
    %c0_1 = arith.constant 0 : index
    %c0_2 = arith.constant 0 : index
    %1 = vector.load %arg2[%c0_1, %c0_2] : memref<2x512xf32, #tpu.memory_space<vmem>>, vector<2x512xf32>
    %cst = arith.constant dense<0.000000e+00> : vector<64x512xf32>
    %2 = tpu.matmul %0, %1, %cst {dimension_numbers = #tpu.dot_dimension_numbers<[1], [0], [0], [1], [0, 0, 1, 1], [], []>} : vector<64x2xf32>, vector<2x512xf32>, vector<64x512xf32> -> vector<64x512xf32>
    %c0_3 = arith.constant 0 : index
    %c0_4 = arith.constant 0 : index
    %3 = vector.load %arg4[%c0_3, %c0_4] : memref<1x512xf32, #tpu.memory_space<vmem>>, vector<1x512xf32>
    %4 = vector.broadcast %3 : vector<1x512xf32> to vector<64x512xf32>
    %5 = arith.addf %2, %4 : vector<64x512xf32>
    %c0_5 = arith.constant 0 : index
    %c0_6 = arith.constant 0 : index
    %6 = vector.load %arg19[%c0_5, %c0_6] : memref<64x512xf32, #tpu.memory_space<vmem>>, vector<64x512xf32>
    tpu.vector_store %arg19[%c0_5, %c0_6], %5 {strides = array<i32>} : memref<64x512xf32, #tpu.memory_space<vmem>>, vector<64x512xf32>,
    %c0_7 = arith.constant 0 : index
    %c0_8 = arith.constant 0 : index
    %7 = vector.load %arg5[%c0_7, %c0_8] : memref<2x512xf32, #tpu.memory_space<vmem>>, vector<2x512xf32>
    %cst_9 = arith.constant dense<0.000000e+00> : vector<64x512xf32>
    %8 = tpu.matmul %0, %7, %cst_9 {dimension_numbers = #tpu.dot_dimension_numbers<[1], [0], [0], [1], [0, 0, 1, 1], [], []>} : vector<64x2xf32>, vector<2x512xf32>, vector<64x512xf32> -> vector<64x512xf32>
    %c0_10 = arith.constant 0 : index
    %c0_11 = arith.constant 0 : index
    %9 = vector.load %arg7[%c0_10, %c0_11] : memref<1x512xf32, #tpu.memory_space<vmem>>, vector<1x512xf32>
    %10 = vector.broadcast %9 : vector<1x512xf32> to vector<64x512xf32>
    %11 = arith.addf %8, %10 : vector<64x512xf32>
    %c0_12 = arith.constant 0 : index
    %c0_13 = arith.constant 0 : index
    %12 = vector.load %arg20[%c0_12, %c0_13] : memref<64x512xf32, #tpu.memory_space<vmem>>, vector<64x512xf32>
    tpu.vector_store %arg20[%c0_12, %c0_13], %11 {strides = array<i32>} : memref<64x512xf32, #tpu.memory_space<vmem>>, vector<64x512xf32>,
    %cst_14 = arith.constant 0.000000e+00 : f32
    %13 = vector.broadcast %cst_14 : f32 to vector<8x128xf32>
    %c0_15 = arith.constant 0 : index
    %c0_16 = arith.constant 0 : index
    %14 = vector.load %arg19[%c0_15, %c0_16] : memref<64x512xf32, #tpu.memory_space<vmem>>, vector<8x512xf32>
    %15 = arith.truncf %13 : vector<8x128xf32> to vector<8x128xbf16>
    %c0_17 = arith.constant 0 : index
    %c0_18 = arith.constant 0 : index
    %16 = vector.load %arg3[%c0_17, %c0_18] : memref<128x512xbf16, #tpu.memory_space<vmem>>, vector<128x512xbf16>
    %cst_19 = arith.constant dense<0.000000e+00> : vector<8x512xf32>
    %17 = tpu.matmul %15, %16, %cst_19 {dimension_numbers = #tpu.dot_dimension_numbers<[1], [0], [0], [1], [0, 0, 1, 1], [], []>} : vector<8x128xbf16>, vector<128x512xbf16>, vector<8x512xf32> -> vector<8x512xf32>
    %18 = arith.addf %14, %17 : vector<8x512xf32>
    %19 = vector.extract_strided_slice %18 {offsets = [0, 0], sizes = [8, 128], strides = [1, 1]} : vector<8x512xf32> to vector<8x128xf32>
    %20 = arith.negf %19 : vector<8x128xf32>
    %21 = math.exp %20 : vector<8x128xf32>
    %cst_20 = arith.constant 1.000000e+00 : f32
    %22 = vector.broadcast %cst_20 : f32 to vector<8x128xf32>
    %23 = arith.addf %22, %21 : vector<8x128xf32>
    %24 = arith.divf %22, %23 : vector<8x128xf32>
    %25 = vector.extract_strided_slice %18 {offsets = [0, 128], sizes = [8, 128], strides = [1, 1]} : vector<8x512xf32> to vector<8x128xf32>
    %26 = arith.negf %25 : vector<8x128xf32>
    %27 = math.exp %26 : vector<8x128xf32>
    %cst_21 = arith.constant 1.000000e+00 : f32
    %28 = vector.broadcast %cst_21 : f32 to vector<8x128xf32>
    %29 = arith.addf %28, %27 : vector<8x128xf32>
    %30 = arith.divf %28, %29 : vector<8x128xf32>
    %31 = vector.extract_strided_slice %18 {offsets = [0, 256], sizes = [8, 128], strides = [1, 1]} : vector<8x512xf32> to vector<8x128xf32>
    %32 = math.tanh %31 : vector<8x128xf32>
    %33 = vector.extract_strided_slice %18 {offsets = [0, 384], sizes = [8, 128], strides = [1, 1]} : vector<8x512xf32> to vector<8x128xf32>
    %34 = arith.negf %33 : vector<8x128xf32>
    %35 = math.exp %34 : vector<8x128xf32>
    %cst_22 = arith.constant 1.000000e+00 : f32
    %36 = vector.broadcast %cst_22 : f32 to vector<8x128xf32>
    %37 = arith.addf %36, %35 : vector<8x128xf32>
    %38 = arith.divf %36, %37 : vector<8x128xf32>
    %39 = arith.mulf %30, %13 : vector<8x128xf32>
    %40 = arith.mulf %24, %32 : vector<8x128xf32>
    %41 = arith.addf %39, %40 : vector<8x128xf32>
    %42 = math.tanh %41 : vector<8x128xf32>
    %43 = arith.mulf %38, %42 : vector<8x128xf32>
    %c0_23 = arith.constant 0 : index
    %c0_24 = arith.constant 0 : index
    %44 = vector.load %arg21[%c0_23, %c0_24] : memref<64x256xf32, #tpu.memory_space<vmem>>, vector<8x128xf32>
    tpu.vector_store %arg21[%c0_23, %c0_24], %43 {strides = array<i32>} : memref<64x256xf32, #tpu.memory_space<vmem>>, vector<8x128xf32>,
    %c56 = arith.constant 56 : index
    %c0_25 = arith.constant 0 : index
    %45 = vector.load %arg20[%c56, %c0_25] : memref<64x512xf32, #tpu.memory_space<vmem>>, vector<8x512xf32>
    %46 = arith.truncf %13 : vector<8x128xf32> to vector<8x128xbf16>
    %c0_26 = arith.constant 0 : index
    %c0_27 = arith.constant 0 : index
    %47 = vector.load %arg6[%c0_26, %c0_27] : memref<128x512xbf16, #tpu.memory_space<vmem>>, vector<128x512xbf16>
    %cst_28 = arith.constant dense<0.000000e+00> : vector<8x512xf32>
    %48 = tpu.matmul %46, %47, %cst_28 {dimension_numbers = #tpu.dot_dimension_numbers<[1], [0], [0], [1], [0, 0, 1, 1], [], []>} : vector<8x128xbf16>, vector<128x512xbf16>, vector<8x512xf32> -> vector<8x512xf32>
    %49 = arith.addf %45, %48 : vector<8x512xf32>
    %50 = vector.extract_strided_slice %49 {offsets = [0, 0], sizes = [8, 128], strides = [1, 1]} : vector<8x512xf32> to vector<8x128xf32>
    %51 = arith.negf %50 : vector<8x128xf32>
    %52 = math.exp %51 : vector<8x128xf32>
    %cst_29 = arith.constant 1.000000e+00 : f32
    %53 = vector.broadcast %cst_29 : f32 to vector<8x128xf32>
    %54 = arith.addf %53, %52 : vector<8x128xf32>
    %55 = arith.divf %53, %54 : vector<8x128xf32>
    %56 = vector.extract_strided_slice %49 {offsets = [0, 128], sizes = [8, 128], strides = [1, 1]} : vector<8x512xf32> to vector<8x128xf32>
    %57 = arith.negf %56 : vector<8x128xf32>
    %58 = math.exp %57 : vector<8x128xf32>
    %cst_30 = arith.constant 1.000000e+00 : f32
    %59 = vector.broadcast %cst_30 : f32 to vector<8x128xf32>
    %60 = arith.addf %59, %58 : vector<8x128xf32>
    %61 = arith.divf %59, %60 : vector<8x128xf32>
    %62 = vector.extract_strided_slice %49 {offsets = [0, 256], sizes = [8, 128], strides = [1, 1]} : vector<8x512xf32> to vector<8x128xf32>
    %63 = math.tanh %62 : vector<8x128xf32>
    %64 = vector.extract_strided_slice %49 {offsets = [0, 384], sizes = [8, 128], strides = [1, 1]} : vector<8x512xf32> to vector<8x128xf32>
    %65 = arith.negf %64 : vector<8x128xf32>
    %66 = math.exp %65 : vector<8x128xf32>
    %cst_31 = arith.constant 1.000000e+00 : f32
    %67 = vector.broadcast %cst_31 : f32 to vector<8x128xf32>
    %68 = arith.addf %67, %66 : vector<8x128xf32>
    %69 = arith.divf %67, %68 : vector<8x128xf32>
    %70 = arith.mulf %61, %13 : vector<8x128xf32>
    %71 = arith.mulf %55, %63 : vector<8x128xf32>
    %72 = arith.addf %70, %71 : vector<8x128xf32>
    %73 = math.tanh %72 : vector<8x128xf32>
    %74 = arith.mulf %69, %73 : vector<8x128xf32>
    %c56_32 = arith.constant 56 : index
    %c128 = arith.constant 128 : index
    %75 = vector.load %arg21[%c56_32, %c128] : memref<64x256xf32, #tpu.memory_space<vmem>>, vector<8x128xf32>
    tpu.vector_store %arg21[%c56_32, %c128], %74 {strides = array<i32>} : memref<64x256xf32, #tpu.memory_space<vmem>>, vector<8x128xf32>,
    %c8 = arith.constant 8 : index
    %c0_33 = arith.constant 0 : index
    %76 = vector.load %arg19[%c8, %c0_33] : memref<64x512xf32, #tpu.memory_space<vmem>>, vector<8x512xf32>
    %77 = arith.truncf %43 : vector<8x128xf32> to vector<8x128xbf16>
    %c0_34 = arith.constant 0 : index
    %c0_35 = arith.constant 0 : index
    %78 = vector.load %arg3[%c0_34, %c0_35] : memref<128x512xbf16, #tpu.memory_space<vmem>>, vector<128x512xbf16>
    %cst_36 = arith.constant dense<0.000000e+00> : vector<8x512xf32>
    %79 = tpu.matmul %77, %78, %cst_36 {dimension_numbers = #tpu.dot_dimension_numbers<[1], [0], [0], [1], [0, 0, 1, 1], [], []>} : vector<8x128xbf16>, vector<128x512xbf16>, vector<8x512xf32> -> vector<8x512xf32>
    %80 = arith.addf %76, %79 : vector<8x512xf32>
    %81 = vector.extract_strided_slice %80 {offsets = [0, 0], sizes = [8, 128], strides = [1, 1]} : vector<8x512xf32> to vector<8x128xf32>
    %82 = arith.negf %81 : vector<8x128xf32>
    %83 = math.exp %82 : vector<8x128xf32>
    %cst_37 = arith.constant 1.000000e+00 : f32
    %84 = vector.broadcast %cst_37 : f32 to vector<8x128xf32>
    %85 = arith.addf %84, %83 : vector<8x128xf32>
    %86 = arith.divf %84, %85 : vector<8x128xf32>
    %87 = vector.extract_strided_slice %80 {offsets = [0, 128], sizes = [8, 128], strides = [1, 1]} : vector<8x512xf32> to vector<8x128xf32>
    %88 = arith.negf %87 : vector<8x128xf32>
    %89 = math.exp %88 : vector<8x128xf32>
    %cst_38 = arith.constant 1.000000e+00 : f32
    %90 = vector.broadcast %cst_38 : f32 to vector<8x128xf32>
    %91 = arith.addf %90, %89 : vector<8x128xf32>
    %92 = arith.divf %90, %91 : vector<8x128xf32>
    %93 = vector.extract_strided_slice %80 {offsets = [0, 256], sizes = [8, 128], strides = [1, 1]} : vector<8x512xf32> to vector<8x128xf32>
    %94 = math.tanh %93 : vector<8x128xf32>
    %95 = vector.extract_strided_slice %80 {offsets = [0, 384], sizes = [8, 128], strides = [1, 1]} : vector<8x512xf32> to vector<8x128xf32>
    %96 = arith.negf %95 : vector<8x128xf32>
    %97 = math.exp %96 : vector<8x128xf32>
    %cst_39 = arith.constant 1.000000e+00 : f32
    %98 = vector.broadcast %cst_39 : f32 to vector<8x128xf32>
    %99 = arith.addf %98, %97 : vector<8x128xf32>
    %100 = arith.divf %98, %99 : vector<8x128xf32>
    %101 = arith.mulf %92, %41 : vector<8x128xf32>
    %102 = arith.mulf %86, %94 : vector<8x128xf32>
    %103 = arith.addf %101, %102 : vector<8x128xf32>
    %104 = math.tanh %103 : vector<8x128xf32>
    %105 = arith.mulf %100, %104 : vector<8x128xf32>
    %c8_40 = arith.constant 8 : index
    %c0_41 = arith.constant 0 : index
    %106 = vector.load %arg21[%c8_40, %c0_41] : memref<64x256xf32, #tpu.memory_space<vmem>>, vector<8x128xf32>
    tpu.vector_store %arg21[%c8_40, %c0_41], %105 {strides = array<i32>} : memref<64x256xf32, #tpu.memory_space<vmem>>, vector<8x128xf32>,
    %c48 = arith.constant 48 : index
    %c0_42 = arith.constant 0 : index
    %107 = vector.load %arg20[%c48, %c0_42] : memref<64x512xf32, #tpu.memory_space<vmem>>, vector<8x512xf32>
    %108 = arith.truncf %74 : vector<8x128xf32> to vector<8x128xbf16>
    %c0_43 = arith.constant 0 : index
    %c0_44 = arith.constant 0 : index
    %109 = vector.load %arg6[%c0_43, %c0_44] : memref<128x512xbf16, #tpu.memory_space<vmem>>, vector<128x512xbf16>
    %cst_45 = arith.constant dense<0.000000e+00> : vector<8x512xf32>
    %110 = tpu.matmul %108, %109, %cst_45 {dimension_numbers = #tpu.dot_dimension_numbers<[1], [0], [0], [1], [0, 0, 1, 1], [], []>} : vector<8x128xbf16>, vector<128x512xbf16>, vector<8x512xf32> -> vector<8x512xf32>
    %111 = arith.addf %107, %110 : vector<8x512xf32>
    %112 = vector.extract_strided_slice %111 {offsets = [0, 0], sizes = [8, 128], strides = [1, 1]} : vector<8x512xf32> to vector<8x128xf32>
    %113 = arith.negf %112 : vector<8x128xf32>
    %114 = math.exp %113 : vector<8x128xf32>
    %cst_46 = arith.constant 1.000000e+00 : f32
    %115 = vector.broadcast %cst_46 : f32 to vector<8x128xf32>
    %116 = arith.addf %115, %114 : vector<8x128xf32>
    %117 = arith.divf %115, %116 : vector<8x128xf32>
    %118 = vector.extract_strided_slice %111 {offsets = [0, 128], sizes = [8, 128], strides = [1, 1]} : vector<8x512xf32> to vector<8x128xf32>
    %119 = arith.negf %118 : vector<8x128xf32>
    %120 = math.exp %119 : vector<8x128xf32>
    %cst_47 = arith.constant 1.000000e+00 : f32
    %121 = vector.broadcast %cst_47 : f32 to vector<8x128xf32>
    %122 = arith.addf %121, %120 : vector<8x128xf32>
    %123 = arith.divf %121, %122 : vector<8x128xf32>
    %124 = vector.extract_strided_slice %111 {offsets = [0, 256], sizes = [8, 128], strides = [1, 1]} : vector<8x512xf32> to vector<8x128xf32>
    %125 = math.tanh %124 : vector<8x128xf32>
    %126 = vector.extract_strided_slice %111 {offsets = [0, 384], sizes = [8, 128], strides = [1, 1]} : vector<8x512xf32> to vector<8x128xf32>
    %127 = arith.negf %126 : vector<8x128xf32>
    %128 = math.exp %127 : vector<8x128xf32>
    %cst_48 = arith.constant 1.000000e+00 : f32
    %129 = vector.broadcast %cst_48 : f32 to vector<8x128xf32>
    %130 = arith.addf %129, %128 : vector<8x128xf32>
    %131 = arith.divf %129, %130 : vector<8x128xf32>
    %132 = arith.mulf %123, %72 : vector<8x128xf32>
    %133 = arith.mulf %117, %125 : vector<8x128xf32>
    %134 = arith.addf %132, %133 : vector<8x128xf32>
    %135 = math.tanh %134 : vector<8x128xf32>
    %136 = arith.mulf %131, %135 : vector<8x128xf32>
    %c48_49 = arith.constant 48 : index
    %c128_50 = arith.constant 128 : index
    %137 = vector.load %arg21[%c48_49, %c128_50] : memref<64x256xf32, #tpu.memory_space<vmem>>, vector<8x128xf32>
    tpu.vector_store %arg21[%c48_49, %c128_50], %136 {strides = array<i32>} : memref<64x256xf32, #tpu.memory_space<vmem>>, vector<8x128xf32>,
    %c16 = arith.constant 16 : index
    %c0_51 = arith.constant 0 : index
    %138 = vector.load %arg19[%c16, %c0_51] : memref<64x512xf32, #tpu.memory_space<vmem>>, vector<8x512xf32>
    %139 = arith.truncf %105 : vector<8x128xf32> to vector<8x128xbf16>
    %c0_52 = arith.constant 0 : index
    %c0_53 = arith.constant 0 : index
    %140 = vector.load %arg3[%c0_52, %c0_53] : memref<128x512xbf16, #tpu.memory_space<vmem>>, vector<128x512xbf16>
    %cst_54 = arith.constant dense<0.000000e+00> : vector<8x512xf32>
    %141 = tpu.matmul %139, %140, %cst_54 {dimension_numbers = #tpu.dot_dimension_numbers<[1], [0], [0], [1], [0, 0, 1, 1], [], []>} : vector<8x128xbf16>, vector<128x512xbf16>, vector<8x512xf32> -> vector<8x512xf32>
    %142 = arith.addf %138, %141 : vector<8x512xf32>
    %143 = vector.extract_strided_slice %142 {offsets = [0, 0], sizes = [8, 128], strides = [1, 1]} : vector<8x512xf32> to vector<8x128xf32>
    %144 = arith.negf %143 : vector<8x128xf32>
    %145 = math.exp %144 : vector<8x128xf32>
    %cst_55 = arith.constant 1.000000e+00 : f32
    %146 = vector.broadcast %cst_55 : f32 to vector<8x128xf32>
    %147 = arith.addf %146, %145 : vector<8x128xf32>
    %148 = arith.divf %146, %147 : vector<8x128xf32>
    %149 = vector.extract_strided_slice %142 {offsets = [0, 128], sizes = [8, 128], strides = [1, 1]} : vector<8x512xf32> to vector<8x128xf32>
    %150 = arith.negf %149 : vector<8x128xf32>
    %151 = math.exp %150 : vector<8x128xf32>
    %cst_56 = arith.constant 1.000000e+00 : f32
    %152 = vector.broadcast %cst_56 : f32 to vector<8x128xf32>
    %153 = arith.addf %152, %151 : vector<8x128xf32>
    %154 = arith.divf %152, %153 : vector<8x128xf32>
    %155 = vector.extract_strided_slice %142 {offsets = [0, 256], sizes = [8, 128], strides = [1, 1]} : vector<8x512xf32> to vector<8x128xf32>
    %156 = math.tanh %155 : vector<8x128xf32>
    %157 = vector.extract_strided_slice %142 {offsets = [0, 384], sizes = [8, 128], strides = [1, 1]} : vector<8x512xf32> to vector<8x128xf32>
    %158 = arith.negf %157 : vector<8x128xf32>
    %159 = math.exp %158 : vector<8x128xf32>
    %cst_57 = arith.constant 1.000000e+00 : f32
    %160 = vector.broadcast %cst_57 : f32 to vector<8x128xf32>
    %161 = arith.addf %160, %159 : vector<8x128xf32>
    %162 = arith.divf %160, %161 : vector<8x128xf32>
    %163 = arith.mulf %154, %103 : vector<8x128xf32>
    %164 = arith.mulf %148, %156 : vector<8x128xf32>
    %165 = arith.addf %163, %164 : vector<8x128xf32>
    %166 = math.tanh %165 : vector<8x128xf32>
    %167 = arith.mulf %162, %166 : vector<8x128xf32>
    %c16_58 = arith.constant 16 : index
    %c0_59 = arith.constant 0 : index
    %168 = vector.load %arg21[%c16_58, %c0_59] : memref<64x256xf32, #tpu.memory_space<vmem>>, vector<8x128xf32>
    tpu.vector_store %arg21[%c16_58, %c0_59], %167 {strides = array<i32>} : memref<64x256xf32, #tpu.memory_space<vmem>>, vector<8x128xf32>,
    %c40 = arith.constant 40 : index
    %c0_60 = arith.constant 0 : index
    %169 = vector.load %arg20[%c40, %c0_60] : memref<64x512xf32, #tpu.memory_space<vmem>>, vector<8x512xf32>
    %170 = arith.truncf %136 : vector<8x128xf32> to vector<8x128xbf16>
    %c0_61 = arith.constant 0 : index
    %c0_62 = arith.constant 0 : index
    %171 = vector.load %arg6[%c0_61, %c0_62] : memref<128x512xbf16, #tpu.memory_space<vmem>>, vector<128x512xbf16>
    %cst_63 = arith.constant dense<0.000000e+00> : vector<8x512xf32>
    %172 = tpu.matmul %170, %171, %cst_63 {dimension_numbers = #tpu.dot_dimension_numbers<[1], [0], [0], [1], [0, 0, 1, 1], [], []>} : vector<8x128xbf16>, vector<128x512xbf16>, vector<8x512xf32> -> vector<8x512xf32>
    %173 = arith.addf %169, %172 : vector<8x512xf32>
    %174 = vector.extract_strided_slice %173 {offsets = [0, 0], sizes = [8, 128], strides = [1, 1]} : vector<8x512xf32> to vector<8x128xf32>
    %175 = arith.negf %174 : vector<8x128xf32>
    %176 = math.exp %175 : vector<8x128xf32>
    %cst_64 = arith.constant 1.000000e+00 : f32
    %177 = vector.broadcast %cst_64 : f32 to vector<8x128xf32>
    %178 = arith.addf %177, %176 : vector<8x128xf32>
    %179 = arith.divf %177, %178 : vector<8x128xf32>
    %180 = vector.extract_strided_slice %173 {offsets = [0, 128], sizes = [8, 128], strides = [1, 1]} : vector<8x512xf32> to vector<8x128xf32>
    %181 = arith.negf %180 : vector<8x128xf32>
    %182 = math.exp %181 : vector<8x128xf32>
    %cst_65 = arith.constant 1.000000e+00 : f32
    %183 = vector.broadcast %cst_65 : f32 to vector<8x128xf32>
    %184 = arith.addf %183, %182 : vector<8x128xf32>
    %185 = arith.divf %183, %184 : vector<8x128xf32>
    %186 = vector.extract_strided_slice %173 {offsets = [0, 256], sizes = [8, 128], strides = [1, 1]} : vector<8x512xf32> to vector<8x128xf32>
    %187 = math.tanh %186 : vector<8x128xf32>
    %188 = vector.extract_strided_slice %173 {offsets = [0, 384], sizes = [8, 128], strides = [1, 1]} : vector<8x512xf32> to vector<8x128xf32>
    %189 = arith.negf %188 : vector<8x128xf32>
    %190 = math.exp %189 : vector<8x128xf32>
    %cst_66 = arith.constant 1.000000e+00 : f32
    %191 = vector.broadcast %cst_66 : f32 to vector<8x128xf32>
    %192 = arith.addf %191, %190 : vector<8x128xf32>
    %193 = arith.divf %191, %192 : vector<8x128xf32>
    %194 = arith.mulf %185, %134 : vector<8x128xf32>
    %195 = arith.mulf %179, %187 : vector<8x128xf32>
    %196 = arith.addf %194, %195 : vector<8x128xf32>
    %197 = math.tanh %196 : vector<8x128xf32>
    %198 = arith.mulf %193, %197 : vector<8x128xf32>
    %c40_67 = arith.constant 40 : index
    %c128_68 = arith.constant 128 : index
    %199 = vector.load %arg21[%c40_67, %c128_68] : memref<64x256xf32, #tpu.memory_space<vmem>>, vector<8x128xf32>
    tpu.vector_store %arg21[%c40_67, %c128_68], %198 {strides = array<i32>} : memref<64x256xf32, #tpu.memory_space<vmem>>, vector<8x128xf32>,
    %c24 = arith.constant 24 : index
    %c0_69 = arith.constant 0 : index
    %200 = vector.load %arg19[%c24, %c0_69] : memref<64x512xf32, #tpu.memory_space<vmem>>, vector<8x512xf32>
    %201 = arith.truncf %167 : vector<8x128xf32> to vector<8x128xbf16>
    %c0_70 = arith.constant 0 : index
    %c0_71 = arith.constant 0 : index
    %202 = vector.load %arg3[%c0_70, %c0_71] : memref<128x512xbf16, #tpu.memory_space<vmem>>, vector<128x512xbf16>
    %cst_72 = arith.constant dense<0.000000e+00> : vector<8x512xf32>
    %203 = tpu.matmul %201, %202, %cst_72 {dimension_numbers = #tpu.dot_dimension_numbers<[1], [0], [0], [1], [0, 0, 1, 1], [], []>} : vector<8x128xbf16>, vector<128x512xbf16>, vector<8x512xf32> -> vector<8x512xf32>
    %204 = arith.addf %200, %203 : vector<8x512xf32>
    %205 = vector.extract_strided_slice %204 {offsets = [0, 0], sizes = [8, 128], strides = [1, 1]} : vector<8x512xf32> to vector<8x128xf32>
    %206 = arith.negf %205 : vector<8x128xf32>
    %207 = math.exp %206 : vector<8x128xf32>
    %cst_73 = arith.constant 1.000000e+00 : f32
    %208 = vector.broadcast %cst_73 : f32 to vector<8x128xf32>
    %209 = arith.addf %208, %207 : vector<8x128xf32>
    %210 = arith.divf %208, %209 : vector<8x128xf32>
    %211 = vector.extract_strided_slice %204 {offsets = [0, 128], sizes = [8, 128], strides = [1, 1]} : vector<8x512xf32> to vector<8x128xf32>
    %212 = arith.negf %211 : vector<8x128xf32>
    %213 = math.exp %212 : vector<8x128xf32>
    %cst_74 = arith.constant 1.000000e+00 : f32
    %214 = vector.broadcast %cst_74 : f32 to vector<8x128xf32>
    %215 = arith.addf %214, %213 : vector<8x128xf32>
    %216 = arith.divf %214, %215 : vector<8x128xf32>
    %217 = vector.extract_strided_slice %204 {offsets = [0, 256], sizes = [8, 128], strides = [1, 1]} : vector<8x512xf32> to vector<8x128xf32>
    %218 = math.tanh %217 : vector<8x128xf32>
    %219 = vector.extract_strided_slice %204 {offsets = [0, 384], sizes = [8, 128], strides = [1, 1]} : vector<8x512xf32> to vector<8x128xf32>
    %220 = arith.negf %219 : vector<8x128xf32>
    %221 = math.exp %220 : vector<8x128xf32>
    %cst_75 = arith.constant 1.000000e+00 : f32
    %222 = vector.broadcast %cst_75 : f32 to vector<8x128xf32>
    %223 = arith.addf %222, %221 : vector<8x128xf32>
    %224 = arith.divf %222, %223 : vector<8x128xf32>
    %225 = arith.mulf %216, %165 : vector<8x128xf32>
    %226 = arith.mulf %210, %218 : vector<8x128xf32>
    %227 = arith.addf %225, %226 : vector<8x128xf32>
    %228 = math.tanh %227 : vector<8x128xf32>
    %229 = arith.mulf %224, %228 : vector<8x128xf32>
    %c24_76 = arith.constant 24 : index
    %c0_77 = arith.constant 0 : index
    %230 = vector.load %arg21[%c24_76, %c0_77] : memref<64x256xf32, #tpu.memory_space<vmem>>, vector<8x128xf32>
    tpu.vector_store %arg21[%c24_76, %c0_77], %229 {strides = array<i32>} : memref<64x256xf32, #tpu.memory_space<vmem>>, vector<8x128xf32>,
    %c32 = arith.constant 32 : index
    %c0_78 = arith.constant 0 : index
    %231 = vector.load %arg20[%c32, %c0_78] : memref<64x512xf32, #tpu.memory_space<vmem>>, vector<8x512xf32>
    %232 = arith.truncf %198 : vector<8x128xf32> to vector<8x128xbf16>
    %c0_79 = arith.constant 0 : index
    %c0_80 = arith.constant 0 : index
    %233 = vector.load %arg6[%c0_79, %c0_80] : memref<128x512xbf16, #tpu.memory_space<vmem>>, vector<128x512xbf16>
    %cst_81 = arith.constant dense<0.000000e+00> : vector<8x512xf32>
    %234 = tpu.matmul %232, %233, %cst_81 {dimension_numbers = #tpu.dot_dimension_numbers<[1], [0], [0], [1], [0, 0, 1, 1], [], []>} : vector<8x128xbf16>, vector<128x512xbf16>, vector<8x512xf32> -> vector<8x512xf32>
    %235 = arith.addf %231, %234 : vector<8x512xf32>
    %236 = vector.extract_strided_slice %235 {offsets = [0, 0], sizes = [8, 128], strides = [1, 1]} : vector<8x512xf32> to vector<8x128xf32>
    %237 = arith.negf %236 : vector<8x128xf32>
    %238 = math.exp %237 : vector<8x128xf32>
    %cst_82 = arith.constant 1.000000e+00 : f32
    %239 = vector.broadcast %cst_82 : f32 to vector<8x128xf32>
    %240 = arith.addf %239, %238 : vector<8x128xf32>
    %241 = arith.divf %239, %240 : vector<8x128xf32>
    %242 = vector.extract_strided_slice %235 {offsets = [0, 128], sizes = [8, 128], strides = [1, 1]} : vector<8x512xf32> to vector<8x128xf32>
    %243 = arith.negf %242 : vector<8x128xf32>
    %244 = math.exp %243 : vector<8x128xf32>
    %cst_83 = arith.constant 1.000000e+00 : f32
    %245 = vector.broadcast %cst_83 : f32 to vector<8x128xf32>
    %246 = arith.addf %245, %244 : vector<8x128xf32>
    %247 = arith.divf %245, %246 : vector<8x128xf32>
    %248 = vector.extract_strided_slice %235 {offsets = [0, 256], sizes = [8, 128], strides = [1, 1]} : vector<8x512xf32> to vector<8x128xf32>
    %249 = math.tanh %248 : vector<8x128xf32>
    %250 = vector.extract_strided_slice %235 {offsets = [0, 384], sizes = [8, 128], strides = [1, 1]} : vector<8x512xf32> to vector<8x128xf32>
    %251 = arith.negf %250 : vector<8x128xf32>
    %252 = math.exp %251 : vector<8x128xf32>
    %cst_84 = arith.constant 1.000000e+00 : f32
    %253 = vector.broadcast %cst_84 : f32 to vector<8x128xf32>
    %254 = arith.addf %253, %252 : vector<8x128xf32>
    %255 = arith.divf %253, %254 : vector<8x128xf32>
    %256 = arith.mulf %247, %196 : vector<8x128xf32>
    %257 = arith.mulf %241, %249 : vector<8x128xf32>
    %258 = arith.addf %256, %257 : vector<8x128xf32>
    %259 = math.tanh %258 : vector<8x128xf32>
    %260 = arith.mulf %255, %259 : vector<8x128xf32>
    %c32_85 = arith.constant 32 : index
    %c128_86 = arith.constant 128 : index
    %261 = vector.load %arg21[%c32_85, %c128_86] : memref<64x256xf32, #tpu.memory_space<vmem>>, vector<8x128xf32>
    tpu.vector_store %arg21[%c32_85, %c128_86], %260 {strides = array<i32>} : memref<64x256xf32, #tpu.memory_space<vmem>>, vector<8x128xf32>,
    %c32_87 = arith.constant 32 : index
    %c0_88 = arith.constant 0 : index
    %262 = vector.load %arg19[%c32_87, %c0_88] : memref<64x512xf32, #tpu.memory_space<vmem>>, vector<8x512xf32>
    %263 = arith.truncf %229 : vector<8x128xf32> to vector<8x128xbf16>
    %c0_89 = arith.constant 0 : index
    %c0_90 = arith.constant 0 : index
    %264 = vector.load %arg3[%c0_89, %c0_90] : memref<128x512xbf16, #tpu.memory_space<vmem>>, vector<128x512xbf16>
    %cst_91 = arith.constant dense<0.000000e+00> : vector<8x512xf32>
    %265 = tpu.matmul %263, %264, %cst_91 {dimension_numbers = #tpu.dot_dimension_numbers<[1], [0], [0], [1], [0, 0, 1, 1], [], []>} : vector<8x128xbf16>, vector<128x512xbf16>, vector<8x512xf32> -> vector<8x512xf32>
    %266 = arith.addf %262, %265 : vector<8x512xf32>
    %267 = vector.extract_strided_slice %266 {offsets = [0, 0], sizes = [8, 128], strides = [1, 1]} : vector<8x512xf32> to vector<8x128xf32>
    %268 = arith.negf %267 : vector<8x128xf32>
    %269 = math.exp %268 : vector<8x128xf32>
    %cst_92 = arith.constant 1.000000e+00 : f32
    %270 = vector.broadcast %cst_92 : f32 to vector<8x128xf32>
    %271 = arith.addf %270, %269 : vector<8x128xf32>
    %272 = arith.divf %270, %271 : vector<8x128xf32>
    %273 = vector.extract_strided_slice %266 {offsets = [0, 128], sizes = [8, 128], strides = [1, 1]} : vector<8x512xf32> to vector<8x128xf32>
    %274 = arith.negf %273 : vector<8x128xf32>
    %275 = math.exp %274 : vector<8x128xf32>
    %cst_93 = arith.constant 1.000000e+00 : f32
    %276 = vector.broadcast %cst_93 : f32 to vector<8x128xf32>
    %277 = arith.addf %276, %275 : vector<8x128xf32>
    %278 = arith.divf %276, %277 : vector<8x128xf32>
    %279 = vector.extract_strided_slice %266 {offsets = [0, 256], sizes = [8, 128], strides = [1, 1]} : vector<8x512xf32> to vector<8x128xf32>
    %280 = math.tanh %279 : vector<8x128xf32>
    %281 = vector.extract_strided_slice %266 {offsets = [0, 384], sizes = [8, 128], strides = [1, 1]} : vector<8x512xf32> to vector<8x128xf32>
    %282 = arith.negf %281 : vector<8x128xf32>
    %283 = math.exp %282 : vector<8x128xf32>
    %cst_94 = arith.constant 1.000000e+00 : f32
    %284 = vector.broadcast %cst_94 : f32 to vector<8x128xf32>
    %285 = arith.addf %284, %283 : vector<8x128xf32>
    %286 = arith.divf %284, %285 : vector<8x128xf32>
    %287 = arith.mulf %278, %227 : vector<8x128xf32>
    %288 = arith.mulf %272, %280 : vector<8x128xf32>
    %289 = arith.addf %287, %288 : vector<8x128xf32>
    %290 = math.tanh %289 : vector<8x128xf32>
    %291 = arith.mulf %286, %290 : vector<8x128xf32>
    %c32_95 = arith.constant 32 : index
    %c0_96 = arith.constant 0 : index
    %292 = vector.load %arg21[%c32_95, %c0_96] : memref<64x256xf32, #tpu.memory_space<vmem>>, vector<8x128xf32>
    tpu.vector_store %arg21[%c32_95, %c0_96], %291 {strides = array<i32>} : memref<64x256xf32, #tpu.memory_space<vmem>>, vector<8x128xf32>,
    %c24_97 = arith.constant 24 : index
    %c0_98 = arith.constant 0 : index
    %293 = vector.load %arg20[%c24_97, %c0_98] : memref<64x512xf32, #tpu.memory_space<vmem>>, vector<8x512xf32>
    %294 = arith.truncf %260 : vector<8x128xf32> to vector<8x128xbf16>
    %c0_99 = arith.constant 0 : index
    %c0_100 = arith.constant 0 : index
    %295 = vector.load %arg6[%c0_99, %c0_100] : memref<128x512xbf16, #tpu.memory_space<vmem>>, vector<128x512xbf16>
    %cst_101 = arith.constant dense<0.000000e+00> : vector<8x512xf32>
    %296 = tpu.matmul %294, %295, %cst_101 {dimension_numbers = #tpu.dot_dimension_numbers<[1], [0], [0], [1], [0, 0, 1, 1], [], []>} : vector<8x128xbf16>, vector<128x512xbf16>, vector<8x512xf32> -> vector<8x512xf32>
    %297 = arith.addf %293, %296 : vector<8x512xf32>
    %298 = vector.extract_strided_slice %297 {offsets = [0, 0], sizes = [8, 128], strides = [1, 1]} : vector<8x512xf32> to vector<8x128xf32>
    %299 = arith.negf %298 : vector<8x128xf32>
    %300 = math.exp %299 : vector<8x128xf32>
    %cst_102 = arith.constant 1.000000e+00 : f32
    %301 = vector.broadcast %cst_102 : f32 to vector<8x128xf32>
    %302 = arith.addf %301, %300 : vector<8x128xf32>
    %303 = arith.divf %301, %302 : vector<8x128xf32>
    %304 = vector.extract_strided_slice %297 {offsets = [0, 128], sizes = [8, 128], strides = [1, 1]} : vector<8x512xf32> to vector<8x128xf32>
    %305 = arith.negf %304 : vector<8x128xf32>
    %306 = math.exp %305 : vector<8x128xf32>
    %cst_103 = arith.constant 1.000000e+00 : f32
    %307 = vector.broadcast %cst_103 : f32 to vector<8x128xf32>
    %308 = arith.addf %307, %306 : vector<8x128xf32>
    %309 = arith.divf %307, %308 : vector<8x128xf32>
    %310 = vector.extract_strided_slice %297 {offsets = [0, 256], sizes = [8, 128], strides = [1, 1]} : vector<8x512xf32> to vector<8x128xf32>
    %311 = math.tanh %310 : vector<8x128xf32>
    %312 = vector.extract_strided_slice %297 {offsets = [0, 384], sizes = [8, 128], strides = [1, 1]} : vector<8x512xf32> to vector<8x128xf32>
    %313 = arith.negf %312 : vector<8x128xf32>
    %314 = math.exp %313 : vector<8x128xf32>
    %cst_104 = arith.constant 1.000000e+00 : f32
    %315 = vector.broadcast %cst_104 : f32 to vector<8x128xf32>
    %316 = arith.addf %315, %314 : vector<8x128xf32>
    %317 = arith.divf %315, %316 : vector<8x128xf32>
    %318 = arith.mulf %309, %258 : vector<8x128xf32>
    %319 = arith.mulf %303, %311 : vector<8x128xf32>
    %320 = arith.addf %318, %319 : vector<8x128xf32>
    %321 = math.tanh %320 : vector<8x128xf32>
    %322 = arith.mulf %317, %321 : vector<8x128xf32>
    %c24_105 = arith.constant 24 : index
    %c128_106 = arith.constant 128 : index
    %323 = vector.load %arg21[%c24_105, %c128_106] : memref<64x256xf32, #tpu.memory_space<vmem>>, vector<8x128xf32>
    tpu.vector_store %arg21[%c24_105, %c128_106], %322 {strides = array<i32>} : memref<64x256xf32, #tpu.memory_space<vmem>>, vector<8x128xf32>,
    %c40_107 = arith.constant 40 : index
    %c0_108 = arith.constant 0 : index
    %324 = vector.load %arg19[%c40_107, %c0_108] : memref<64x512xf32, #tpu.memory_space<vmem>>, vector<8x512xf32>
    %325 = arith.truncf %291 : vector<8x128xf32> to vector<8x128xbf16>
    %c0_109 = arith.constant 0 : index
    %c0_110 = arith.constant 0 : index
    %326 = vector.load %arg3[%c0_109, %c0_110] : memref<128x512xbf16, #tpu.memory_space<vmem>>, vector<128x512xbf16>
    %cst_111 = arith.constant dense<0.000000e+00> : vector<8x512xf32>
    %327 = tpu.matmul %325, %326, %cst_111 {dimension_numbers = #tpu.dot_dimension_numbers<[1], [0], [0], [1], [0, 0, 1, 1], [], []>} : vector<8x128xbf16>, vector<128x512xbf16>, vector<8x512xf32> -> vector<8x512xf32>
    %328 = arith.addf %324, %327 : vector<8x512xf32>
    %329 = vector.extract_strided_slice %328 {offsets = [0, 0], sizes = [8, 128], strides = [1, 1]} : vector<8x512xf32> to vector<8x128xf32>
    %330 = arith.negf %329 : vector<8x128xf32>
    %331 = math.exp %330 : vector<8x128xf32>
    %cst_112 = arith.constant 1.000000e+00 : f32
    %332 = vector.broadcast %cst_112 : f32 to vector<8x128xf32>
    %333 = arith.addf %332, %331 : vector<8x128xf32>
    %334 = arith.divf %332, %333 : vector<8x128xf32>
    %335 = vector.extract_strided_slice %328 {offsets = [0, 128], sizes = [8, 128], strides = [1, 1]} : vector<8x512xf32> to vector<8x128xf32>
    %336 = arith.negf %335 : vector<8x128xf32>
    %337 = math.exp %336 : vector<8x128xf32>
    %cst_113 = arith.constant 1.000000e+00 : f32
    %338 = vector.broadcast %cst_113 : f32 to vector<8x128xf32>
    %339 = arith.addf %338, %337 : vector<8x128xf32>
    %340 = arith.divf %338, %339 : vector<8x128xf32>
    %341 = vector.extract_strided_slice %328 {offsets = [0, 256], sizes = [8, 128], strides = [1, 1]} : vector<8x512xf32> to vector<8x128xf32>
    %342 = math.tanh %341 : vector<8x128xf32>
    %343 = vector.extract_strided_slice %328 {offsets = [0, 384], sizes = [8, 128], strides = [1, 1]} : vector<8x512xf32> to vector<8x128xf32>
    %344 = arith.negf %343 : vector<8x128xf32>
    %345 = math.exp %344 : vector<8x128xf32>
    %cst_114 = arith.constant 1.000000e+00 : f32
    %346 = vector.broadcast %cst_114 : f32 to vector<8x128xf32>
    %347 = arith.addf %346, %345 : vector<8x128xf32>
    %348 = arith.divf %346, %347 : vector<8x128xf32>
    %349 = arith.mulf %340, %289 : vector<8x128xf32>
    %350 = arith.mulf %334, %342 : vector<8x128xf32>
    %351 = arith.addf %349, %350 : vector<8x128xf32>
    %352 = math.tanh %351 : vector<8x128xf32>
    %353 = arith.mulf %348, %352 : vector<8x128xf32>
    %c40_115 = arith.constant 40 : index
    %c0_116 = arith.constant 0 : index
    %354 = vector.load %arg21[%c40_115, %c0_116] : memref<64x256xf32, #tpu.memory_space<vmem>>, vector<8x128xf32>
    tpu.vector_store %arg21[%c40_115, %c0_116], %353 {strides = array<i32>} : memref<64x256xf32, #tpu.memory_space<vmem>>, vector<8x128xf32>,
    %c16_117 = arith.constant 16 : index
    %c0_118 = arith.constant 0 : index
    %355 = vector.load %arg20[%c16_117, %c0_118] : memref<64x512xf32, #tpu.memory_space<vmem>>, vector<8x512xf32>
    %356 = arith.truncf %322 : vector<8x128xf32> to vector<8x128xbf16>
    %c0_119 = arith.constant 0 : index
    %c0_120 = arith.constant 0 : index
    %357 = vector.load %arg6[%c0_119, %c0_120] : memref<128x512xbf16, #tpu.memory_space<vmem>>, vector<128x512xbf16>
    %cst_121 = arith.constant dense<0.000000e+00> : vector<8x512xf32>
    %358 = tpu.matmul %356, %357, %cst_121 {dimension_numbers = #tpu.dot_dimension_numbers<[1], [0], [0], [1], [0, 0, 1, 1], [], []>} : vector<8x128xbf16>, vector<128x512xbf16>, vector<8x512xf32> -> vector<8x512xf32>
    %359 = arith.addf %355, %358 : vector<8x512xf32>
    %360 = vector.extract_strided_slice %359 {offsets = [0, 0], sizes = [8, 128], strides = [1, 1]} : vector<8x512xf32> to vector<8x128xf32>
    %361 = arith.negf %360 : vector<8x128xf32>
    %362 = math.exp %361 : vector<8x128xf32>
    %cst_122 = arith.constant 1.000000e+00 : f32
    %363 = vector.broadcast %cst_122 : f32 to vector<8x128xf32>
    %364 = arith.addf %363, %362 : vector<8x128xf32>
    %365 = arith.divf %363, %364 : vector<8x128xf32>
    %366 = vector.extract_strided_slice %359 {offsets = [0, 128], sizes = [8, 128], strides = [1, 1]} : vector<8x512xf32> to vector<8x128xf32>
    %367 = arith.negf %366 : vector<8x128xf32>
    %368 = math.exp %367 : vector<8x128xf32>
    %cst_123 = arith.constant 1.000000e+00 : f32
    %369 = vector.broadcast %cst_123 : f32 to vector<8x128xf32>
    %370 = arith.addf %369, %368 : vector<8x128xf32>
    %371 = arith.divf %369, %370 : vector<8x128xf32>
    %372 = vector.extract_strided_slice %359 {offsets = [0, 256], sizes = [8, 128], strides = [1, 1]} : vector<8x512xf32> to vector<8x128xf32>
    %373 = math.tanh %372 : vector<8x128xf32>
    %374 = vector.extract_strided_slice %359 {offsets = [0, 384], sizes = [8, 128], strides = [1, 1]} : vector<8x512xf32> to vector<8x128xf32>
    %375 = arith.negf %374 : vector<8x128xf32>
    %376 = math.exp %375 : vector<8x128xf32>
    %cst_124 = arith.constant 1.000000e+00 : f32
    %377 = vector.broadcast %cst_124 : f32 to vector<8x128xf32>
    %378 = arith.addf %377, %376 : vector<8x128xf32>
    %379 = arith.divf %377, %378 : vector<8x128xf32>
    %380 = arith.mulf %371, %320 : vector<8x128xf32>
    %381 = arith.mulf %365, %373 : vector<8x128xf32>
    %382 = arith.addf %380, %381 : vector<8x128xf32>
    %383 = math.tanh %382 : vector<8x128xf32>
    %384 = arith.mulf %379, %383 : vector<8x128xf32>
    %c16_125 = arith.constant 16 : index
    %c128_126 = arith.constant 128 : index
    %385 = vector.load %arg21[%c16_125, %c128_126] : memref<64x256xf32, #tpu.memory_space<vmem>>, vector<8x128xf32>
    tpu.vector_store %arg21[%c16_125, %c128_126], %384 {strides = array<i32>} : memref<64x256xf32, #tpu.memory_space<vmem>>, vector<8x128xf32>,
    %c48_127 = arith.constant 48 : index
    %c0_128 = arith.constant 0 : index
    %386 = vector.load %arg19[%c48_127, %c0_128] : memref<64x512xf32, #tpu.memory_space<vmem>>, vector<8x512xf32>
    %387 = arith.truncf %353 : vector<8x128xf32> to vector<8x128xbf16>
    %c0_129 = arith.constant 0 : index
    %c0_130 = arith.constant 0 : index
    %388 = vector.load %arg3[%c0_129, %c0_130] : memref<128x512xbf16, #tpu.memory_space<vmem>>, vector<128x512xbf16>
    %cst_131 = arith.constant dense<0.000000e+00> : vector<8x512xf32>
    %389 = tpu.matmul %387, %388, %cst_131 {dimension_numbers = #tpu.dot_dimension_numbers<[1], [0], [0], [1], [0, 0, 1, 1], [], []>} : vector<8x128xbf16>, vector<128x512xbf16>, vector<8x512xf32> -> vector<8x512xf32>
    %390 = arith.addf %386, %389 : vector<8x512xf32>
    %391 = vector.extract_strided_slice %390 {offsets = [0, 0], sizes = [8, 128], strides = [1, 1]} : vector<8x512xf32> to vector<8x128xf32>
    %392 = arith.negf %391 : vector<8x128xf32>
    %393 = math.exp %392 : vector<8x128xf32>
    %cst_132 = arith.constant 1.000000e+00 : f32
    %394 = vector.broadcast %cst_132 : f32 to vector<8x128xf32>
    %395 = arith.addf %394, %393 : vector<8x128xf32>
    %396 = arith.divf %394, %395 : vector<8x128xf32>
    %397 = vector.extract_strided_slice %390 {offsets = [0, 128], sizes = [8, 128], strides = [1, 1]} : vector<8x512xf32> to vector<8x128xf32>
    %398 = arith.negf %397 : vector<8x128xf32>
    %399 = math.exp %398 : vector<8x128xf32>
    %cst_133 = arith.constant 1.000000e+00 : f32
    %400 = vector.broadcast %cst_133 : f32 to vector<8x128xf32>
    %401 = arith.addf %400, %399 : vector<8x128xf32>
    %402 = arith.divf %400, %401 : vector<8x128xf32>
    %403 = vector.extract_strided_slice %390 {offsets = [0, 256], sizes = [8, 128], strides = [1, 1]} : vector<8x512xf32> to vector<8x128xf32>
    %404 = math.tanh %403 : vector<8x128xf32>
    %405 = vector.extract_strided_slice %390 {offsets = [0, 384], sizes = [8, 128], strides = [1, 1]} : vector<8x512xf32> to vector<8x128xf32>
    %406 = arith.negf %405 : vector<8x128xf32>
    %407 = math.exp %406 : vector<8x128xf32>
    %cst_134 = arith.constant 1.000000e+00 : f32
    %408 = vector.broadcast %cst_134 : f32 to vector<8x128xf32>
    %409 = arith.addf %408, %407 : vector<8x128xf32>
    %410 = arith.divf %408, %409 : vector<8x128xf32>
    %411 = arith.mulf %402, %351 : vector<8x128xf32>
    %412 = arith.mulf %396, %404 : vector<8x128xf32>
    %413 = arith.addf %411, %412 : vector<8x128xf32>
    %414 = math.tanh %413 : vector<8x128xf32>
    %415 = arith.mulf %410, %414 : vector<8x128xf32>
    %c48_135 = arith.constant 48 : index
    %c0_136 = arith.constant 0 : index
    %416 = vector.load %arg21[%c48_135, %c0_136] : memref<64x256xf32, #tpu.memory_space<vmem>>, vector<8x128xf32>
    tpu.vector_store %arg21[%c48_135, %c0_136], %415 {strides = array<i32>} : memref<64x256xf32, #tpu.memory_space<vmem>>, vector<8x128xf32>,
    %c8_137 = arith.constant 8 : index
    %c0_138 = arith.constant 0 : index
    %417 = vector.load %arg20[%c8_137, %c0_138] : memref<64x512xf32, #tpu.memory_space<vmem>>, vector<8x512xf32>
    %418 = arith.truncf %384 : vector<8x128xf32> to vector<8x128xbf16>
    %c0_139 = arith.constant 0 : index
    %c0_140 = arith.constant 0 : index
    %419 = vector.load %arg6[%c0_139, %c0_140] : memref<128x512xbf16, #tpu.memory_space<vmem>>, vector<128x512xbf16>
    %cst_141 = arith.constant dense<0.000000e+00> : vector<8x512xf32>
    %420 = tpu.matmul %418, %419, %cst_141 {dimension_numbers = #tpu.dot_dimension_numbers<[1], [0], [0], [1], [0, 0, 1, 1], [], []>} : vector<8x128xbf16>, vector<128x512xbf16>, vector<8x512xf32> -> vector<8x512xf32>
    %421 = arith.addf %417, %420 : vector<8x512xf32>
    %422 = vector.extract_strided_slice %421 {offsets = [0, 0], sizes = [8, 128], strides = [1, 1]} : vector<8x512xf32> to vector<8x128xf32>
    %423 = arith.negf %422 : vector<8x128xf32>
    %424 = math.exp %423 : vector<8x128xf32>
    %cst_142 = arith.constant 1.000000e+00 : f32
    %425 = vector.broadcast %cst_142 : f32 to vector<8x128xf32>
    %426 = arith.addf %425, %424 : vector<8x128xf32>
    %427 = arith.divf %425, %426 : vector<8x128xf32>
    %428 = vector.extract_strided_slice %421 {offsets = [0, 128], sizes = [8, 128], strides = [1, 1]} : vector<8x512xf32> to vector<8x128xf32>
    %429 = arith.negf %428 : vector<8x128xf32>
    %430 = math.exp %429 : vector<8x128xf32>
    %cst_143 = arith.constant 1.000000e+00 : f32
    %431 = vector.broadcast %cst_143 : f32 to vector<8x128xf32>
    %432 = arith.addf %431, %430 : vector<8x128xf32>
    %433 = arith.divf %431, %432 : vector<8x128xf32>
    %434 = vector.extract_strided_slice %421 {offsets = [0, 256], sizes = [8, 128], strides = [1, 1]} : vector<8x512xf32> to vector<8x128xf32>
    %435 = math.tanh %434 : vector<8x128xf32>
    %436 = vector.extract_strided_slice %421 {offsets = [0, 384], sizes = [8, 128], strides = [1, 1]} : vector<8x512xf32> to vector<8x128xf32>
    %437 = arith.negf %436 : vector<8x128xf32>
    %438 = math.exp %437 : vector<8x128xf32>
    %cst_144 = arith.constant 1.000000e+00 : f32
    %439 = vector.broadcast %cst_144 : f32 to vector<8x128xf32>
    %440 = arith.addf %439, %438 : vector<8x128xf32>
    %441 = arith.divf %439, %440 : vector<8x128xf32>
    %442 = arith.mulf %433, %382 : vector<8x128xf32>
    %443 = arith.mulf %427, %435 : vector<8x128xf32>
    %444 = arith.addf %442, %443 : vector<8x128xf32>
    %445 = math.tanh %444 : vector<8x128xf32>
    %446 = arith.mulf %441, %445 : vector<8x128xf32>
    %c8_145 = arith.constant 8 : index
    %c128_146 = arith.constant 128 : index
    %447 = vector.load %arg21[%c8_145, %c128_146] : memref<64x256xf32, #tpu.memory_space<vmem>>, vector<8x128xf32>
    tpu.vector_store %arg21[%c8_145, %c128_146], %446 {strides = array<i32>} : memref<64x256xf32, #tpu.memory_space<vmem>>, vector<8x128xf32>,
    %c56_147 = arith.constant 56 : index
    %c0_148 = arith.constant 0 : index
    %448 = vector.load %arg19[%c56_147, %c0_148] : memref<64x512xf32, #tpu.memory_space<vmem>>, vector<8x512xf32>
    %449 = arith.truncf %415 : vector<8x128xf32> to vector<8x128xbf16>
    %c0_149 = arith.constant 0 : index
    %c0_150 = arith.constant 0 : index
    %450 = vector.load %arg3[%c0_149, %c0_150] : memref<128x512xbf16, #tpu.memory_space<vmem>>, vector<128x512xbf16>
    %cst_151 = arith.constant dense<0.000000e+00> : vector<8x512xf32>
    %451 = tpu.matmul %449, %450, %cst_151 {dimension_numbers = #tpu.dot_dimension_numbers<[1], [0], [0], [1], [0, 0, 1, 1], [], []>} : vector<8x128xbf16>, vector<128x512xbf16>, vector<8x512xf32> -> vector<8x512xf32>
    %452 = arith.addf %448, %451 : vector<8x512xf32>
    %453 = vector.extract_strided_slice %452 {offsets = [0, 0], sizes = [8, 128], strides = [1, 1]} : vector<8x512xf32> to vector<8x128xf32>
    %454 = arith.negf %453 : vector<8x128xf32>
    %455 = math.exp %454 : vector<8x128xf32>
    %cst_152 = arith.constant 1.000000e+00 : f32
    %456 = vector.broadcast %cst_152 : f32 to vector<8x128xf32>
    %457 = arith.addf %456, %455 : vector<8x128xf32>
    %458 = arith.divf %456, %457 : vector<8x128xf32>
    %459 = vector.extract_strided_slice %452 {offsets = [0, 128], sizes = [8, 128], strides = [1, 1]} : vector<8x512xf32> to vector<8x128xf32>
    %460 = arith.negf %459 : vector<8x128xf32>
    %461 = math.exp %460 : vector<8x128xf32>
    %cst_153 = arith.constant 1.000000e+00 : f32
    %462 = vector.broadcast %cst_153 : f32 to vector<8x128xf32>
    %463 = arith.addf %462, %461 : vector<8x128xf32>
    %464 = arith.divf %462, %463 : vector<8x128xf32>
    %465 = vector.extract_strided_slice %452 {offsets = [0, 256], sizes = [8, 128], strides = [1, 1]} : vector<8x512xf32> to vector<8x128xf32>
    %466 = math.tanh %465 : vector<8x128xf32>
    %467 = vector.extract_strided_slice %452 {offsets = [0, 384], sizes = [8, 128], strides = [1, 1]} : vector<8x512xf32> to vector<8x128xf32>
    %468 = arith.negf %467 : vector<8x128xf32>
    %469 = math.exp %468 : vector<8x128xf32>
    %cst_154 = arith.constant 1.000000e+00 : f32
    %470 = vector.broadcast %cst_154 : f32 to vector<8x128xf32>
    %471 = arith.addf %470, %469 : vector<8x128xf32>
    %472 = arith.divf %470, %471 : vector<8x128xf32>
    %473 = arith.mulf %464, %413 : vector<8x128xf32>
    %474 = arith.mulf %458, %466 : vector<8x128xf32>
    %475 = arith.addf %473, %474 : vector<8x128xf32>
    %476 = math.tanh %475 : vector<8x128xf32>
    %477 = arith.mulf %472, %476 : vector<8x128xf32>
    %c56_155 = arith.constant 56 : index
    %c0_156 = arith.constant 0 : index
    %478 = vector.load %arg21[%c56_155, %c0_156] : memref<64x256xf32, #tpu.memory_space<vmem>>, vector<8x128xf32>
    tpu.vector_store %arg21[%c56_155, %c0_156], %477 {strides = array<i32>} : memref<64x256xf32, #tpu.memory_space<vmem>>, vector<8x128xf32>,
    %c0_157 = arith.constant 0 : index
    %c0_158 = arith.constant 0 : index
    %479 = vector.load %arg20[%c0_157, %c0_158] : memref<64x512xf32, #tpu.memory_space<vmem>>, vector<8x512xf32>
    %480 = arith.truncf %446 : vector<8x128xf32> to vector<8x128xbf16>
    %c0_159 = arith.constant 0 : index
    %c0_160 = arith.constant 0 : index
    %481 = vector.load %arg6[%c0_159, %c0_160] : memref<128x512xbf16, #tpu.memory_space<vmem>>, vector<128x512xbf16>
    %cst_161 = arith.constant dense<0.000000e+00> : vector<8x512xf32>
    %482 = tpu.matmul %480, %481, %cst_161 {dimension_numbers = #tpu.dot_dimension_numbers<[1], [0], [0], [1], [0, 0, 1, 1], [], []>} : vector<8x128xbf16>, vector<128x512xbf16>, vector<8x512xf32> -> vector<8x512xf32>
    %483 = arith.addf %479, %482 : vector<8x512xf32>
    %484 = vector.extract_strided_slice %483 {offsets = [0, 0], sizes = [8, 128], strides = [1, 1]} : vector<8x512xf32> to vector<8x128xf32>
    %485 = arith.negf %484 : vector<8x128xf32>
    %486 = math.exp %485 : vector<8x128xf32>
    %cst_162 = arith.constant 1.000000e+00 : f32
    %487 = vector.broadcast %cst_162 : f32 to vector<8x128xf32>
    %488 = arith.addf %487, %486 : vector<8x128xf32>
    %489 = arith.divf %487, %488 : vector<8x128xf32>
    %490 = vector.extract_strided_slice %483 {offsets = [0, 128], sizes = [8, 128], strides = [1, 1]} : vector<8x512xf32> to vector<8x128xf32>
    %491 = arith.negf %490 : vector<8x128xf32>
    %492 = math.exp %491 : vector<8x128xf32>
    %cst_163 = arith.constant 1.000000e+00 : f32
    %493 = vector.broadcast %cst_163 : f32 to vector<8x128xf32>
    %494 = arith.addf %493, %492 : vector<8x128xf32>
    %495 = arith.divf %493, %494 : vector<8x128xf32>
    %496 = vector.extract_strided_slice %483 {offsets = [0, 256], sizes = [8, 128], strides = [1, 1]} : vector<8x512xf32> to vector<8x128xf32>
    %497 = math.tanh %496 : vector<8x128xf32>
    %498 = vector.extract_strided_slice %483 {offsets = [0, 384], sizes = [8, 128], strides = [1, 1]} : vector<8x512xf32> to vector<8x128xf32>
    %499 = arith.negf %498 : vector<8x128xf32>
    %500 = math.exp %499 : vector<8x128xf32>
    %cst_164 = arith.constant 1.000000e+00 : f32
    %501 = vector.broadcast %cst_164 : f32 to vector<8x128xf32>
    %502 = arith.addf %501, %500 : vector<8x128xf32>
    %503 = arith.divf %501, %502 : vector<8x128xf32>
    %504 = arith.mulf %495, %444 : vector<8x128xf32>
    %505 = arith.mulf %489, %497 : vector<8x128xf32>
    %506 = arith.addf %504, %505 : vector<8x128xf32>
    %507 = math.tanh %506 : vector<8x128xf32>
    %508 = arith.mulf %503, %507 : vector<8x128xf32>
    %c0_165 = arith.constant 0 : index
    %c128_166 = arith.constant 128 : index
    %509 = vector.load %arg21[%c0_165, %c128_166] : memref<64x256xf32, #tpu.memory_space<vmem>>, vector<8x128xf32>
    tpu.vector_store %arg21[%c0_165, %c128_166], %508 {strides = array<i32>} : memref<64x256xf32, #tpu.memory_space<vmem>>, vector<8x128xf32>,
    %c0_167 = arith.constant 0 : index
    %c0_168 = arith.constant 0 : index
    %510 = vector.load %arg21[%c0_167, %c0_168] : memref<64x256xf32, #tpu.memory_space<vmem>>, vector<64x256xf32>
    %511 = arith.truncf %510 : vector<64x256xf32> to vector<64x256xbf16>
    %c0_169 = arith.constant 0 : index
    %c0_170 = arith.constant 0 : index
    %512 = vector.load %arg8[%c0_169, %c0_170] : memref<256x512xbf16, #tpu.memory_space<vmem>>, vector<256x512xbf16>
    %cst_171 = arith.constant dense<0.000000e+00> : vector<64x512xf32>
    %513 = tpu.matmul %511, %512, %cst_171 {dimension_numbers = #tpu.dot_dimension_numbers<[1], [0], [0], [1], [0, 0, 1, 1], [], []>} : vector<64x256xbf16>, vector<256x512xbf16>, vector<64x512xf32> -> vector<64x512xf32>
    %c0_172 = arith.constant 0 : index
    %c0_173 = arith.constant 0 : index
    %514 = vector.load %arg10[%c0_172, %c0_173] : memref<1x512xf32, #tpu.memory_space<vmem>>, vector<1x512xf32>
    %515 = vector.broadcast %514 : vector<1x512xf32> to vector<64x512xf32>
    %516 = arith.addf %513, %515 : vector<64x512xf32>
    %c0_174 = arith.constant 0 : index
    %c0_175 = arith.constant 0 : index
    %517 = vector.load %arg19[%c0_174, %c0_175] : memref<64x512xf32, #tpu.memory_space<vmem>>, vector<64x512xf32>
    tpu.vector_store %arg19[%c0_174, %c0_175], %516 {strides = array<i32>} : memref<64x512xf32, #tpu.memory_space<vmem>>, vector<64x512xf32>,
    %c0_176 = arith.constant 0 : index
    %c0_177 = arith.constant 0 : index
    %518 = vector.load %arg11[%c0_176, %c0_177] : memref<256x512xbf16, #tpu.memory_space<vmem>>, vector<256x512xbf16>
    %cst_178 = arith.constant dense<0.000000e+00> : vector<64x512xf32>
    %519 = tpu.matmul %511, %518, %cst_178 {dimension_numbers = #tpu.dot_dimension_numbers<[1], [0], [0], [1], [0, 0, 1, 1], [], []>} : vector<64x256xbf16>, vector<256x512xbf16>, vector<64x512xf32> -> vector<64x512xf32>
    %c0_179 = arith.constant 0 : index
    %c0_180 = arith.constant 0 : index
    %520 = vector.load %arg13[%c0_179, %c0_180] : memref<1x512xf32, #tpu.memory_space<vmem>>, vector<1x512xf32>
    %521 = vector.broadcast %520 : vector<1x512xf32> to vector<64x512xf32>
    %522 = arith.addf %519, %521 : vector<64x512xf32>
    %c0_181 = arith.constant 0 : index
    %c0_182 = arith.constant 0 : index
    %523 = vector.load %arg20[%c0_181, %c0_182] : memref<64x512xf32, #tpu.memory_space<vmem>>, vector<64x512xf32>
    tpu.vector_store %arg20[%c0_181, %c0_182], %522 {strides = array<i32>} : memref<64x512xf32, #tpu.memory_space<vmem>>, vector<64x512xf32>,
    %c0_183 = arith.constant 0 : index
    %c0_184 = arith.constant 0 : index
    %524 = vector.load %arg19[%c0_183, %c0_184] : memref<64x512xf32, #tpu.memory_space<vmem>>, vector<8x512xf32>
    %525 = arith.truncf %13 : vector<8x128xf32> to vector<8x128xbf16>
    %c0_185 = arith.constant 0 : index
    %c0_186 = arith.constant 0 : index
    %526 = vector.load %arg9[%c0_185, %c0_186] : memref<128x512xbf16, #tpu.memory_space<vmem>>, vector<128x512xbf16>
    %cst_187 = arith.constant dense<0.000000e+00> : vector<8x512xf32>
    %527 = tpu.matmul %525, %526, %cst_187 {dimension_numbers = #tpu.dot_dimension_numbers<[1], [0], [0], [1], [0, 0, 1, 1], [], []>} : vector<8x128xbf16>, vector<128x512xbf16>, vector<8x512xf32> -> vector<8x512xf32>
    %528 = arith.addf %524, %527 : vector<8x512xf32>
    %529 = vector.extract_strided_slice %528 {offsets = [0, 0], sizes = [8, 128], strides = [1, 1]} : vector<8x512xf32> to vector<8x128xf32>
    %530 = arith.negf %529 : vector<8x128xf32>
    %531 = math.exp %530 : vector<8x128xf32>
    %cst_188 = arith.constant 1.000000e+00 : f32
    %532 = vector.broadcast %cst_188 : f32 to vector<8x128xf32>
    %533 = arith.addf %532, %531 : vector<8x128xf32>
    %534 = arith.divf %532, %533 : vector<8x128xf32>
    %535 = vector.extract_strided_slice %528 {offsets = [0, 128], sizes = [8, 128], strides = [1, 1]} : vector<8x512xf32> to vector<8x128xf32>
    %536 = arith.negf %535 : vector<8x128xf32>
    %537 = math.exp %536 : vector<8x128xf32>
    %cst_189 = arith.constant 1.000000e+00 : f32
    %538 = vector.broadcast %cst_189 : f32 to vector<8x128xf32>
    %539 = arith.addf %538, %537 : vector<8x128xf32>
    %540 = arith.divf %538, %539 : vector<8x128xf32>
    %541 = vector.extract_strided_slice %528 {offsets = [0, 256], sizes = [8, 128], strides = [1, 1]} : vector<8x512xf32> to vector<8x128xf32>
    %542 = math.tanh %541 : vector<8x128xf32>
    %543 = vector.extract_strided_slice %528 {offsets = [0, 384], sizes = [8, 128], strides = [1, 1]} : vector<8x512xf32> to vector<8x128xf32>
    %544 = arith.negf %543 : vector<8x128xf32>
    %545 = math.exp %544 : vector<8x128xf32>
    %cst_190 = arith.constant 1.000000e+00 : f32
    %546 = vector.broadcast %cst_190 : f32 to vector<8x128xf32>
    %547 = arith.addf %546, %545 : vector<8x128xf32>
    %548 = arith.divf %546, %547 : vector<8x128xf32>
    %549 = arith.mulf %540, %13 : vector<8x128xf32>
    %550 = arith.mulf %534, %542 : vector<8x128xf32>
    %551 = arith.addf %549, %550 : vector<8x128xf32>
    %552 = math.tanh %551 : vector<8x128xf32>
    %553 = arith.mulf %548, %552 : vector<8x128xf32>
    %c56_191 = arith.constant 56 : index
    %c0_192 = arith.constant 0 : index
    %554 = vector.load %arg20[%c56_191, %c0_192] : memref<64x512xf32, #tpu.memory_space<vmem>>, vector<8x512xf32>
    %555 = arith.truncf %13 : vector<8x128xf32> to vector<8x128xbf16>
    %c0_193 = arith.constant 0 : index
    %c0_194 = arith.constant 0 : index
    %556 = vector.load %arg12[%c0_193, %c0_194] : memref<128x512xbf16, #tpu.memory_space<vmem>>, vector<128x512xbf16>
    %cst_195 = arith.constant dense<0.000000e+00> : vector<8x512xf32>
    %557 = tpu.matmul %555, %556, %cst_195 {dimension_numbers = #tpu.dot_dimension_numbers<[1], [0], [0], [1], [0, 0, 1, 1], [], []>} : vector<8x128xbf16>, vector<128x512xbf16>, vector<8x512xf32> -> vector<8x512xf32>
    %558 = arith.addf %554, %557 : vector<8x512xf32>
    %559 = vector.extract_strided_slice %558 {offsets = [0, 0], sizes = [8, 128], strides = [1, 1]} : vector<8x512xf32> to vector<8x128xf32>
    %560 = arith.negf %559 : vector<8x128xf32>
    %561 = math.exp %560 : vector<8x128xf32>
    %cst_196 = arith.constant 1.000000e+00 : f32
    %562 = vector.broadcast %cst_196 : f32 to vector<8x128xf32>
    %563 = arith.addf %562, %561 : vector<8x128xf32>
    %564 = arith.divf %562, %563 : vector<8x128xf32>
    %565 = vector.extract_strided_slice %558 {offsets = [0, 128], sizes = [8, 128], strides = [1, 1]} : vector<8x512xf32> to vector<8x128xf32>
    %566 = arith.negf %565 : vector<8x128xf32>
    %567 = math.exp %566 : vector<8x128xf32>
    %cst_197 = arith.constant 1.000000e+00 : f32
    %568 = vector.broadcast %cst_197 : f32 to vector<8x128xf32>
    %569 = arith.addf %568, %567 : vector<8x128xf32>
    %570 = arith.divf %568, %569 : vector<8x128xf32>
    %571 = vector.extract_strided_slice %558 {offsets = [0, 256], sizes = [8, 128], strides = [1, 1]} : vector<8x512xf32> to vector<8x128xf32>
    %572 = math.tanh %571 : vector<8x128xf32>
    %573 = vector.extract_strided_slice %558 {offsets = [0, 384], sizes = [8, 128], strides = [1, 1]} : vector<8x512xf32> to vector<8x128xf32>
    %574 = arith.negf %573 : vector<8x128xf32>
    %575 = math.exp %574 : vector<8x128xf32>
    %cst_198 = arith.constant 1.000000e+00 : f32
    %576 = vector.broadcast %cst_198 : f32 to vector<8x128xf32>
    %577 = arith.addf %576, %575 : vector<8x128xf32>
    %578 = arith.divf %576, %577 : vector<8x128xf32>
    %579 = arith.mulf %570, %13 : vector<8x128xf32>
    %580 = arith.mulf %564, %572 : vector<8x128xf32>
    %581 = arith.addf %579, %580 : vector<8x128xf32>
    %582 = math.tanh %581 : vector<8x128xf32>
    %583 = arith.mulf %578, %582 : vector<8x128xf32>
    %c8_199 = arith.constant 8 : index
    %c0_200 = arith.constant 0 : index
    %584 = vector.load %arg19[%c8_199, %c0_200] : memref<64x512xf32, #tpu.memory_space<vmem>>, vector<8x512xf32>
    %585 = arith.truncf %553 : vector<8x128xf32> to vector<8x128xbf16>
    %c0_201 = arith.constant 0 : index
    %c0_202 = arith.constant 0 : index
    %586 = vector.load %arg9[%c0_201, %c0_202] : memref<128x512xbf16, #tpu.memory_space<vmem>>, vector<128x512xbf16>
    %cst_203 = arith.constant dense<0.000000e+00> : vector<8x512xf32>
    %587 = tpu.matmul %585, %586, %cst_203 {dimension_numbers = #tpu.dot_dimension_numbers<[1], [0], [0], [1], [0, 0, 1, 1], [], []>} : vector<8x128xbf16>, vector<128x512xbf16>, vector<8x512xf32> -> vector<8x512xf32>
    %588 = arith.addf %584, %587 : vector<8x512xf32>
    %589 = vector.extract_strided_slice %588 {offsets = [0, 0], sizes = [8, 128], strides = [1, 1]} : vector<8x512xf32> to vector<8x128xf32>
    %590 = arith.negf %589 : vector<8x128xf32>
    %591 = math.exp %590 : vector<8x128xf32>
    %cst_204 = arith.constant 1.000000e+00 : f32
    %592 = vector.broadcast %cst_204 : f32 to vector<8x128xf32>
    %593 = arith.addf %592, %591 : vector<8x128xf32>
    %594 = arith.divf %592, %593 : vector<8x128xf32>
    %595 = vector.extract_strided_slice %588 {offsets = [0, 128], sizes = [8, 128], strides = [1, 1]} : vector<8x512xf32> to vector<8x128xf32>
    %596 = arith.negf %595 : vector<8x128xf32>
    %597 = math.exp %596 : vector<8x128xf32>
    %cst_205 = arith.constant 1.000000e+00 : f32
    %598 = vector.broadcast %cst_205 : f32 to vector<8x128xf32>
    %599 = arith.addf %598, %597 : vector<8x128xf32>
    %600 = arith.divf %598, %599 : vector<8x128xf32>
    %601 = vector.extract_strided_slice %588 {offsets = [0, 256], sizes = [8, 128], strides = [1, 1]} : vector<8x512xf32> to vector<8x128xf32>
    %602 = math.tanh %601 : vector<8x128xf32>
    %603 = vector.extract_strided_slice %588 {offsets = [0, 384], sizes = [8, 128], strides = [1, 1]} : vector<8x512xf32> to vector<8x128xf32>
    %604 = arith.negf %603 : vector<8x128xf32>
    %605 = math.exp %604 : vector<8x128xf32>
    %cst_206 = arith.constant 1.000000e+00 : f32
    %606 = vector.broadcast %cst_206 : f32 to vector<8x128xf32>
    %607 = arith.addf %606, %605 : vector<8x128xf32>
    %608 = arith.divf %606, %607 : vector<8x128xf32>
    %609 = arith.mulf %600, %551 : vector<8x128xf32>
    %610 = arith.mulf %594, %602 : vector<8x128xf32>
    %611 = arith.addf %609, %610 : vector<8x128xf32>
    %612 = math.tanh %611 : vector<8x128xf32>
    %613 = arith.mulf %608, %612 : vector<8x128xf32>
    %c48_207 = arith.constant 48 : index
    %c0_208 = arith.constant 0 : index
    %614 = vector.load %arg20[%c48_207, %c0_208] : memref<64x512xf32, #tpu.memory_space<vmem>>, vector<8x512xf32>
    %615 = arith.truncf %583 : vector<8x128xf32> to vector<8x128xbf16>
    %c0_209 = arith.constant 0 : index
    %c0_210 = arith.constant 0 : index
    %616 = vector.load %arg12[%c0_209, %c0_210] : memref<128x512xbf16, #tpu.memory_space<vmem>>, vector<128x512xbf16>
    %cst_211 = arith.constant dense<0.000000e+00> : vector<8x512xf32>
    %617 = tpu.matmul %615, %616, %cst_211 {dimension_numbers = #tpu.dot_dimension_numbers<[1], [0], [0], [1], [0, 0, 1, 1], [], []>} : vector<8x128xbf16>, vector<128x512xbf16>, vector<8x512xf32> -> vector<8x512xf32>
    %618 = arith.addf %614, %617 : vector<8x512xf32>
    %619 = vector.extract_strided_slice %618 {offsets = [0, 0], sizes = [8, 128], strides = [1, 1]} : vector<8x512xf32> to vector<8x128xf32>
    %620 = arith.negf %619 : vector<8x128xf32>
    %621 = math.exp %620 : vector<8x128xf32>
    %cst_212 = arith.constant 1.000000e+00 : f32
    %622 = vector.broadcast %cst_212 : f32 to vector<8x128xf32>
    %623 = arith.addf %622, %621 : vector<8x128xf32>
    %624 = arith.divf %622, %623 : vector<8x128xf32>
    %625 = vector.extract_strided_slice %618 {offsets = [0, 128], sizes = [8, 128], strides = [1, 1]} : vector<8x512xf32> to vector<8x128xf32>
    %626 = arith.negf %625 : vector<8x128xf32>
    %627 = math.exp %626 : vector<8x128xf32>
    %cst_213 = arith.constant 1.000000e+00 : f32
    %628 = vector.broadcast %cst_213 : f32 to vector<8x128xf32>
    %629 = arith.addf %628, %627 : vector<8x128xf32>
    %630 = arith.divf %628, %629 : vector<8x128xf32>
    %631 = vector.extract_strided_slice %618 {offsets = [0, 256], sizes = [8, 128], strides = [1, 1]} : vector<8x512xf32> to vector<8x128xf32>
    %632 = math.tanh %631 : vector<8x128xf32>
    %633 = vector.extract_strided_slice %618 {offsets = [0, 384], sizes = [8, 128], strides = [1, 1]} : vector<8x512xf32> to vector<8x128xf32>
    %634 = arith.negf %633 : vector<8x128xf32>
    %635 = math.exp %634 : vector<8x128xf32>
    %cst_214 = arith.constant 1.000000e+00 : f32
    %636 = vector.broadcast %cst_214 : f32 to vector<8x128xf32>
    %637 = arith.addf %636, %635 : vector<8x128xf32>
    %638 = arith.divf %636, %637 : vector<8x128xf32>
    %639 = arith.mulf %630, %581 : vector<8x128xf32>
    %640 = arith.mulf %624, %632 : vector<8x128xf32>
    %641 = arith.addf %639, %640 : vector<8x128xf32>
    %642 = math.tanh %641 : vector<8x128xf32>
    %643 = arith.mulf %638, %642 : vector<8x128xf32>
    %c16_215 = arith.constant 16 : index
    %c0_216 = arith.constant 0 : index
    %644 = vector.load %arg19[%c16_215, %c0_216] : memref<64x512xf32, #tpu.memory_space<vmem>>, vector<8x512xf32>
    %645 = arith.truncf %613 : vector<8x128xf32> to vector<8x128xbf16>
    %c0_217 = arith.constant 0 : index
    %c0_218 = arith.constant 0 : index
    %646 = vector.load %arg9[%c0_217, %c0_218] : memref<128x512xbf16, #tpu.memory_space<vmem>>, vector<128x512xbf16>
    %cst_219 = arith.constant dense<0.000000e+00> : vector<8x512xf32>
    %647 = tpu.matmul %645, %646, %cst_219 {dimension_numbers = #tpu.dot_dimension_numbers<[1], [0], [0], [1], [0, 0, 1, 1], [], []>} : vector<8x128xbf16>, vector<128x512xbf16>, vector<8x512xf32> -> vector<8x512xf32>
    %648 = arith.addf %644, %647 : vector<8x512xf32>
    %649 = vector.extract_strided_slice %648 {offsets = [0, 0], sizes = [8, 128], strides = [1, 1]} : vector<8x512xf32> to vector<8x128xf32>
    %650 = arith.negf %649 : vector<8x128xf32>
    %651 = math.exp %650 : vector<8x128xf32>
    %cst_220 = arith.constant 1.000000e+00 : f32
    %652 = vector.broadcast %cst_220 : f32 to vector<8x128xf32>
    %653 = arith.addf %652, %651 : vector<8x128xf32>
    %654 = arith.divf %652, %653 : vector<8x128xf32>
    %655 = vector.extract_strided_slice %648 {offsets = [0, 128], sizes = [8, 128], strides = [1, 1]} : vector<8x512xf32> to vector<8x128xf32>
    %656 = arith.negf %655 : vector<8x128xf32>
    %657 = math.exp %656 : vector<8x128xf32>
    %cst_221 = arith.constant 1.000000e+00 : f32
    %658 = vector.broadcast %cst_221 : f32 to vector<8x128xf32>
    %659 = arith.addf %658, %657 : vector<8x128xf32>
    %660 = arith.divf %658, %659 : vector<8x128xf32>
    %661 = vector.extract_strided_slice %648 {offsets = [0, 256], sizes = [8, 128], strides = [1, 1]} : vector<8x512xf32> to vector<8x128xf32>
    %662 = math.tanh %661 : vector<8x128xf32>
    %663 = vector.extract_strided_slice %648 {offsets = [0, 384], sizes = [8, 128], strides = [1, 1]} : vector<8x512xf32> to vector<8x128xf32>
    %664 = arith.negf %663 : vector<8x128xf32>
    %665 = math.exp %664 : vector<8x128xf32>
    %cst_222 = arith.constant 1.000000e+00 : f32
    %666 = vector.broadcast %cst_222 : f32 to vector<8x128xf32>
    %667 = arith.addf %666, %665 : vector<8x128xf32>
    %668 = arith.divf %666, %667 : vector<8x128xf32>
    %669 = arith.mulf %660, %611 : vector<8x128xf32>
    %670 = arith.mulf %654, %662 : vector<8x128xf32>
    %671 = arith.addf %669, %670 : vector<8x128xf32>
    %672 = math.tanh %671 : vector<8x128xf32>
    %673 = arith.mulf %668, %672 : vector<8x128xf32>
    %c40_223 = arith.constant 40 : index
    %c0_224 = arith.constant 0 : index
    %674 = vector.load %arg20[%c40_223, %c0_224] : memref<64x512xf32, #tpu.memory_space<vmem>>, vector<8x512xf32>
    %675 = arith.truncf %643 : vector<8x128xf32> to vector<8x128xbf16>
    %c0_225 = arith.constant 0 : index
    %c0_226 = arith.constant 0 : index
    %676 = vector.load %arg12[%c0_225, %c0_226] : memref<128x512xbf16, #tpu.memory_space<vmem>>, vector<128x512xbf16>
    %cst_227 = arith.constant dense<0.000000e+00> : vector<8x512xf32>
    %677 = tpu.matmul %675, %676, %cst_227 {dimension_numbers = #tpu.dot_dimension_numbers<[1], [0], [0], [1], [0, 0, 1, 1], [], []>} : vector<8x128xbf16>, vector<128x512xbf16>, vector<8x512xf32> -> vector<8x512xf32>
    %678 = arith.addf %674, %677 : vector<8x512xf32>
    %679 = vector.extract_strided_slice %678 {offsets = [0, 0], sizes = [8, 128], strides = [1, 1]} : vector<8x512xf32> to vector<8x128xf32>
    %680 = arith.negf %679 : vector<8x128xf32>
    %681 = math.exp %680 : vector<8x128xf32>
    %cst_228 = arith.constant 1.000000e+00 : f32
    %682 = vector.broadcast %cst_228 : f32 to vector<8x128xf32>
    %683 = arith.addf %682, %681 : vector<8x128xf32>
    %684 = arith.divf %682, %683 : vector<8x128xf32>
    %685 = vector.extract_strided_slice %678 {offsets = [0, 128], sizes = [8, 128], strides = [1, 1]} : vector<8x512xf32> to vector<8x128xf32>
    %686 = arith.negf %685 : vector<8x128xf32>
    %687 = math.exp %686 : vector<8x128xf32>
    %cst_229 = arith.constant 1.000000e+00 : f32
    %688 = vector.broadcast %cst_229 : f32 to vector<8x128xf32>
    %689 = arith.addf %688, %687 : vector<8x128xf32>
    %690 = arith.divf %688, %689 : vector<8x128xf32>
    %691 = vector.extract_strided_slice %678 {offsets = [0, 256], sizes = [8, 128], strides = [1, 1]} : vector<8x512xf32> to vector<8x128xf32>
    %692 = math.tanh %691 : vector<8x128xf32>
    %693 = vector.extract_strided_slice %678 {offsets = [0, 384], sizes = [8, 128], strides = [1, 1]} : vector<8x512xf32> to vector<8x128xf32>
    %694 = arith.negf %693 : vector<8x128xf32>
    %695 = math.exp %694 : vector<8x128xf32>
    %cst_230 = arith.constant 1.000000e+00 : f32
    %696 = vector.broadcast %cst_230 : f32 to vector<8x128xf32>
    %697 = arith.addf %696, %695 : vector<8x128xf32>
    %698 = arith.divf %696, %697 : vector<8x128xf32>
    %699 = arith.mulf %690, %641 : vector<8x128xf32>
    %700 = arith.mulf %684, %692 : vector<8x128xf32>
    %701 = arith.addf %699, %700 : vector<8x128xf32>
    %702 = math.tanh %701 : vector<8x128xf32>
    %703 = arith.mulf %698, %702 : vector<8x128xf32>
    %c24_231 = arith.constant 24 : index
    %c0_232 = arith.constant 0 : index
    %704 = vector.load %arg19[%c24_231, %c0_232] : memref<64x512xf32, #tpu.memory_space<vmem>>, vector<8x512xf32>
    %705 = arith.truncf %673 : vector<8x128xf32> to vector<8x128xbf16>
    %c0_233 = arith.constant 0 : index
    %c0_234 = arith.constant 0 : index
    %706 = vector.load %arg9[%c0_233, %c0_234] : memref<128x512xbf16, #tpu.memory_space<vmem>>, vector<128x512xbf16>
    %cst_235 = arith.constant dense<0.000000e+00> : vector<8x512xf32>
    %707 = tpu.matmul %705, %706, %cst_235 {dimension_numbers = #tpu.dot_dimension_numbers<[1], [0], [0], [1], [0, 0, 1, 1], [], []>} : vector<8x128xbf16>, vector<128x512xbf16>, vector<8x512xf32> -> vector<8x512xf32>
    %708 = arith.addf %704, %707 : vector<8x512xf32>
    %709 = vector.extract_strided_slice %708 {offsets = [0, 0], sizes = [8, 128], strides = [1, 1]} : vector<8x512xf32> to vector<8x128xf32>
    %710 = arith.negf %709 : vector<8x128xf32>
    %711 = math.exp %710 : vector<8x128xf32>
    %cst_236 = arith.constant 1.000000e+00 : f32
    %712 = vector.broadcast %cst_236 : f32 to vector<8x128xf32>
    %713 = arith.addf %712, %711 : vector<8x128xf32>
    %714 = arith.divf %712, %713 : vector<8x128xf32>
    %715 = vector.extract_strided_slice %708 {offsets = [0, 128], sizes = [8, 128], strides = [1, 1]} : vector<8x512xf32> to vector<8x128xf32>
    %716 = arith.negf %715 : vector<8x128xf32>
    %717 = math.exp %716 : vector<8x128xf32>
    %cst_237 = arith.constant 1.000000e+00 : f32
    %718 = vector.broadcast %cst_237 : f32 to vector<8x128xf32>
    %719 = arith.addf %718, %717 : vector<8x128xf32>
    %720 = arith.divf %718, %719 : vector<8x128xf32>
    %721 = vector.extract_strided_slice %708 {offsets = [0, 256], sizes = [8, 128], strides = [1, 1]} : vector<8x512xf32> to vector<8x128xf32>
    %722 = math.tanh %721 : vector<8x128xf32>
    %723 = vector.extract_strided_slice %708 {offsets = [0, 384], sizes = [8, 128], strides = [1, 1]} : vector<8x512xf32> to vector<8x128xf32>
    %724 = arith.negf %723 : vector<8x128xf32>
    %725 = math.exp %724 : vector<8x128xf32>
    %cst_238 = arith.constant 1.000000e+00 : f32
    %726 = vector.broadcast %cst_238 : f32 to vector<8x128xf32>
    %727 = arith.addf %726, %725 : vector<8x128xf32>
    %728 = arith.divf %726, %727 : vector<8x128xf32>
    %729 = arith.mulf %720, %671 : vector<8x128xf32>
    %730 = arith.mulf %714, %722 : vector<8x128xf32>
    %731 = arith.addf %729, %730 : vector<8x128xf32>
    %732 = math.tanh %731 : vector<8x128xf32>
    %733 = arith.mulf %728, %732 : vector<8x128xf32>
    %c32_239 = arith.constant 32 : index
    %c0_240 = arith.constant 0 : index
    %734 = vector.load %arg20[%c32_239, %c0_240] : memref<64x512xf32, #tpu.memory_space<vmem>>, vector<8x512xf32>
    %735 = arith.truncf %703 : vector<8x128xf32> to vector<8x128xbf16>
    %c0_241 = arith.constant 0 : index
    %c0_242 = arith.constant 0 : index
    %736 = vector.load %arg12[%c0_241, %c0_242] : memref<128x512xbf16, #tpu.memory_space<vmem>>, vector<128x512xbf16>
    %cst_243 = arith.constant dense<0.000000e+00> : vector<8x512xf32>
    %737 = tpu.matmul %735, %736, %cst_243 {dimension_numbers = #tpu.dot_dimension_numbers<[1], [0], [0], [1], [0, 0, 1, 1], [], []>} : vector<8x128xbf16>, vector<128x512xbf16>, vector<8x512xf32> -> vector<8x512xf32>
    %738 = arith.addf %734, %737 : vector<8x512xf32>
    %739 = vector.extract_strided_slice %738 {offsets = [0, 0], sizes = [8, 128], strides = [1, 1]} : vector<8x512xf32> to vector<8x128xf32>
    %740 = arith.negf %739 : vector<8x128xf32>
    %741 = math.exp %740 : vector<8x128xf32>
    %cst_244 = arith.constant 1.000000e+00 : f32
    %742 = vector.broadcast %cst_244 : f32 to vector<8x128xf32>
    %743 = arith.addf %742, %741 : vector<8x128xf32>
    %744 = arith.divf %742, %743 : vector<8x128xf32>
    %745 = vector.extract_strided_slice %738 {offsets = [0, 128], sizes = [8, 128], strides = [1, 1]} : vector<8x512xf32> to vector<8x128xf32>
    %746 = arith.negf %745 : vector<8x128xf32>
    %747 = math.exp %746 : vector<8x128xf32>
    %cst_245 = arith.constant 1.000000e+00 : f32
    %748 = vector.broadcast %cst_245 : f32 to vector<8x128xf32>
    %749 = arith.addf %748, %747 : vector<8x128xf32>
    %750 = arith.divf %748, %749 : vector<8x128xf32>
    %751 = vector.extract_strided_slice %738 {offsets = [0, 256], sizes = [8, 128], strides = [1, 1]} : vector<8x512xf32> to vector<8x128xf32>
    %752 = math.tanh %751 : vector<8x128xf32>
    %753 = vector.extract_strided_slice %738 {offsets = [0, 384], sizes = [8, 128], strides = [1, 1]} : vector<8x512xf32> to vector<8x128xf32>
    %754 = arith.negf %753 : vector<8x128xf32>
    %755 = math.exp %754 : vector<8x128xf32>
    %cst_246 = arith.constant 1.000000e+00 : f32
    %756 = vector.broadcast %cst_246 : f32 to vector<8x128xf32>
    %757 = arith.addf %756, %755 : vector<8x128xf32>
    %758 = arith.divf %756, %757 : vector<8x128xf32>
    %759 = arith.mulf %750, %701 : vector<8x128xf32>
    %760 = arith.mulf %744, %752 : vector<8x128xf32>
    %761 = arith.addf %759, %760 : vector<8x128xf32>
    %762 = math.tanh %761 : vector<8x128xf32>
    %763 = arith.mulf %758, %762 : vector<8x128xf32>
    %c32_247 = arith.constant 32 : index
    %c0_248 = arith.constant 0 : index
    %764 = vector.load %arg19[%c32_247, %c0_248] : memref<64x512xf32, #tpu.memory_space<vmem>>, vector<8x512xf32>
    %765 = arith.truncf %733 : vector<8x128xf32> to vector<8x128xbf16>
    %c0_249 = arith.constant 0 : index
    %c0_250 = arith.constant 0 : index
    %766 = vector.load %arg9[%c0_249, %c0_250] : memref<128x512xbf16, #tpu.memory_space<vmem>>, vector<128x512xbf16>
    %cst_251 = arith.constant dense<0.000000e+00> : vector<8x512xf32>
    %767 = tpu.matmul %765, %766, %cst_251 {dimension_numbers = #tpu.dot_dimension_numbers<[1], [0], [0], [1], [0, 0, 1, 1], [], []>} : vector<8x128xbf16>, vector<128x512xbf16>, vector<8x512xf32> -> vector<8x512xf32>
    %768 = arith.addf %764, %767 : vector<8x512xf32>
    %769 = vector.extract_strided_slice %768 {offsets = [0, 0], sizes = [8, 128], strides = [1, 1]} : vector<8x512xf32> to vector<8x128xf32>
    %770 = arith.negf %769 : vector<8x128xf32>
    %771 = math.exp %770 : vector<8x128xf32>
    %cst_252 = arith.constant 1.000000e+00 : f32
    %772 = vector.broadcast %cst_252 : f32 to vector<8x128xf32>
    %773 = arith.addf %772, %771 : vector<8x128xf32>
    %774 = arith.divf %772, %773 : vector<8x128xf32>
    %775 = vector.extract_strided_slice %768 {offsets = [0, 128], sizes = [8, 128], strides = [1, 1]} : vector<8x512xf32> to vector<8x128xf32>
    %776 = arith.negf %775 : vector<8x128xf32>
    %777 = math.exp %776 : vector<8x128xf32>
    %cst_253 = arith.constant 1.000000e+00 : f32
    %778 = vector.broadcast %cst_253 : f32 to vector<8x128xf32>
    %779 = arith.addf %778, %777 : vector<8x128xf32>
    %780 = arith.divf %778, %779 : vector<8x128xf32>
    %781 = vector.extract_strided_slice %768 {offsets = [0, 256], sizes = [8, 128], strides = [1, 1]} : vector<8x512xf32> to vector<8x128xf32>
    %782 = math.tanh %781 : vector<8x128xf32>
    %783 = vector.extract_strided_slice %768 {offsets = [0, 384], sizes = [8, 128], strides = [1, 1]} : vector<8x512xf32> to vector<8x128xf32>
    %784 = arith.negf %783 : vector<8x128xf32>
    %785 = math.exp %784 : vector<8x128xf32>
    %cst_254 = arith.constant 1.000000e+00 : f32
    %786 = vector.broadcast %cst_254 : f32 to vector<8x128xf32>
    %787 = arith.addf %786, %785 : vector<8x128xf32>
    %788 = arith.divf %786, %787 : vector<8x128xf32>
    %789 = arith.mulf %780, %731 : vector<8x128xf32>
    %790 = arith.mulf %774, %782 : vector<8x128xf32>
    %791 = arith.addf %789, %790 : vector<8x128xf32>
    %792 = math.tanh %791 : vector<8x128xf32>
    %793 = arith.mulf %788, %792 : vector<8x128xf32>
    %c24_255 = arith.constant 24 : index
    %c0_256 = arith.constant 0 : index
    %794 = vector.load %arg20[%c24_255, %c0_256] : memref<64x512xf32, #tpu.memory_space<vmem>>, vector<8x512xf32>
    %795 = arith.truncf %763 : vector<8x128xf32> to vector<8x128xbf16>
    %c0_257 = arith.constant 0 : index
    %c0_258 = arith.constant 0 : index
    %796 = vector.load %arg12[%c0_257, %c0_258] : memref<128x512xbf16, #tpu.memory_space<vmem>>, vector<128x512xbf16>
    %cst_259 = arith.constant dense<0.000000e+00> : vector<8x512xf32>
    %797 = tpu.matmul %795, %796, %cst_259 {dimension_numbers = #tpu.dot_dimension_numbers<[1], [0], [0], [1], [0, 0, 1, 1], [], []>} : vector<8x128xbf16>, vector<128x512xbf16>, vector<8x512xf32> -> vector<8x512xf32>
    %798 = arith.addf %794, %797 : vector<8x512xf32>
    %799 = vector.extract_strided_slice %798 {offsets = [0, 0], sizes = [8, 128], strides = [1, 1]} : vector<8x512xf32> to vector<8x128xf32>
    %800 = arith.negf %799 : vector<8x128xf32>
    %801 = math.exp %800 : vector<8x128xf32>
    %cst_260 = arith.constant 1.000000e+00 : f32
    %802 = vector.broadcast %cst_260 : f32 to vector<8x128xf32>
    %803 = arith.addf %802, %801 : vector<8x128xf32>
    %804 = arith.divf %802, %803 : vector<8x128xf32>
    %805 = vector.extract_strided_slice %798 {offsets = [0, 128], sizes = [8, 128], strides = [1, 1]} : vector<8x512xf32> to vector<8x128xf32>
    %806 = arith.negf %805 : vector<8x128xf32>
    %807 = math.exp %806 : vector<8x128xf32>
    %cst_261 = arith.constant 1.000000e+00 : f32
    %808 = vector.broadcast %cst_261 : f32 to vector<8x128xf32>
    %809 = arith.addf %808, %807 : vector<8x128xf32>
    %810 = arith.divf %808, %809 : vector<8x128xf32>
    %811 = vector.extract_strided_slice %798 {offsets = [0, 256], sizes = [8, 128], strides = [1, 1]} : vector<8x512xf32> to vector<8x128xf32>
    %812 = math.tanh %811 : vector<8x128xf32>
    %813 = vector.extract_strided_slice %798 {offsets = [0, 384], sizes = [8, 128], strides = [1, 1]} : vector<8x512xf32> to vector<8x128xf32>
    %814 = arith.negf %813 : vector<8x128xf32>
    %815 = math.exp %814 : vector<8x128xf32>
    %cst_262 = arith.constant 1.000000e+00 : f32
    %816 = vector.broadcast %cst_262 : f32 to vector<8x128xf32>
    %817 = arith.addf %816, %815 : vector<8x128xf32>
    %818 = arith.divf %816, %817 : vector<8x128xf32>
    %819 = arith.mulf %810, %761 : vector<8x128xf32>
    %820 = arith.mulf %804, %812 : vector<8x128xf32>
    %821 = arith.addf %819, %820 : vector<8x128xf32>
    %822 = math.tanh %821 : vector<8x128xf32>
    %823 = arith.mulf %818, %822 : vector<8x128xf32>
    %c40_263 = arith.constant 40 : index
    %c0_264 = arith.constant 0 : index
    %824 = vector.load %arg19[%c40_263, %c0_264] : memref<64x512xf32, #tpu.memory_space<vmem>>, vector<8x512xf32>
    %825 = arith.truncf %793 : vector<8x128xf32> to vector<8x128xbf16>
    %c0_265 = arith.constant 0 : index
    %c0_266 = arith.constant 0 : index
    %826 = vector.load %arg9[%c0_265, %c0_266] : memref<128x512xbf16, #tpu.memory_space<vmem>>, vector<128x512xbf16>
    %cst_267 = arith.constant dense<0.000000e+00> : vector<8x512xf32>
    %827 = tpu.matmul %825, %826, %cst_267 {dimension_numbers = #tpu.dot_dimension_numbers<[1], [0], [0], [1], [0, 0, 1, 1], [], []>} : vector<8x128xbf16>, vector<128x512xbf16>, vector<8x512xf32> -> vector<8x512xf32>
    %828 = arith.addf %824, %827 : vector<8x512xf32>
    %829 = vector.extract_strided_slice %828 {offsets = [0, 0], sizes = [8, 128], strides = [1, 1]} : vector<8x512xf32> to vector<8x128xf32>
    %830 = arith.negf %829 : vector<8x128xf32>
    %831 = math.exp %830 : vector<8x128xf32>
    %cst_268 = arith.constant 1.000000e+00 : f32
    %832 = vector.broadcast %cst_268 : f32 to vector<8x128xf32>
    %833 = arith.addf %832, %831 : vector<8x128xf32>
    %834 = arith.divf %832, %833 : vector<8x128xf32>
    %835 = vector.extract_strided_slice %828 {offsets = [0, 128], sizes = [8, 128], strides = [1, 1]} : vector<8x512xf32> to vector<8x128xf32>
    %836 = arith.negf %835 : vector<8x128xf32>
    %837 = math.exp %836 : vector<8x128xf32>
    %cst_269 = arith.constant 1.000000e+00 : f32
    %838 = vector.broadcast %cst_269 : f32 to vector<8x128xf32>
    %839 = arith.addf %838, %837 : vector<8x128xf32>
    %840 = arith.divf %838, %839 : vector<8x128xf32>
    %841 = vector.extract_strided_slice %828 {offsets = [0, 256], sizes = [8, 128], strides = [1, 1]} : vector<8x512xf32> to vector<8x128xf32>
    %842 = math.tanh %841 : vector<8x128xf32>
    %843 = vector.extract_strided_slice %828 {offsets = [0, 384], sizes = [8, 128], strides = [1, 1]} : vector<8x512xf32> to vector<8x128xf32>
    %844 = arith.negf %843 : vector<8x128xf32>
    %845 = math.exp %844 : vector<8x128xf32>
    %cst_270 = arith.constant 1.000000e+00 : f32
    %846 = vector.broadcast %cst_270 : f32 to vector<8x128xf32>
    %847 = arith.addf %846, %845 : vector<8x128xf32>
    %848 = arith.divf %846, %847 : vector<8x128xf32>
    %849 = arith.mulf %840, %791 : vector<8x128xf32>
    %850 = arith.mulf %834, %842 : vector<8x128xf32>
    %851 = arith.addf %849, %850 : vector<8x128xf32>
    %852 = math.tanh %851 : vector<8x128xf32>
    %853 = arith.mulf %848, %852 : vector<8x128xf32>
    %c16_271 = arith.constant 16 : index
    %c0_272 = arith.constant 0 : index
    %854 = vector.load %arg20[%c16_271, %c0_272] : memref<64x512xf32, #tpu.memory_space<vmem>>, vector<8x512xf32>
    %855 = arith.truncf %823 : vector<8x128xf32> to vector<8x128xbf16>
    %c0_273 = arith.constant 0 : index
    %c0_274 = arith.constant 0 : index
    %856 = vector.load %arg12[%c0_273, %c0_274] : memref<128x512xbf16, #tpu.memory_space<vmem>>, vector<128x512xbf16>
    %cst_275 = arith.constant dense<0.000000e+00> : vector<8x512xf32>
    %857 = tpu.matmul %855, %856, %cst_275 {dimension_numbers = #tpu.dot_dimension_numbers<[1], [0], [0], [1], [0, 0, 1, 1], [], []>} : vector<8x128xbf16>, vector<128x512xbf16>, vector<8x512xf32> -> vector<8x512xf32>
    %858 = arith.addf %854, %857 : vector<8x512xf32>
    %859 = vector.extract_strided_slice %858 {offsets = [0, 0], sizes = [8, 128], strides = [1, 1]} : vector<8x512xf32> to vector<8x128xf32>
    %860 = arith.negf %859 : vector<8x128xf32>
    %861 = math.exp %860 : vector<8x128xf32>
    %cst_276 = arith.constant 1.000000e+00 : f32
    %862 = vector.broadcast %cst_276 : f32 to vector<8x128xf32>
    %863 = arith.addf %862, %861 : vector<8x128xf32>
    %864 = arith.divf %862, %863 : vector<8x128xf32>
    %865 = vector.extract_strided_slice %858 {offsets = [0, 128], sizes = [8, 128], strides = [1, 1]} : vector<8x512xf32> to vector<8x128xf32>
    %866 = arith.negf %865 : vector<8x128xf32>
    %867 = math.exp %866 : vector<8x128xf32>
    %cst_277 = arith.constant 1.000000e+00 : f32
    %868 = vector.broadcast %cst_277 : f32 to vector<8x128xf32>
    %869 = arith.addf %868, %867 : vector<8x128xf32>
    %870 = arith.divf %868, %869 : vector<8x128xf32>
    %871 = vector.extract_strided_slice %858 {offsets = [0, 256], sizes = [8, 128], strides = [1, 1]} : vector<8x512xf32> to vector<8x128xf32>
    %872 = math.tanh %871 : vector<8x128xf32>
    %873 = vector.extract_strided_slice %858 {offsets = [0, 384], sizes = [8, 128], strides = [1, 1]} : vector<8x512xf32> to vector<8x128xf32>
    %874 = arith.negf %873 : vector<8x128xf32>
    %875 = math.exp %874 : vector<8x128xf32>
    %cst_278 = arith.constant 1.000000e+00 : f32
    %876 = vector.broadcast %cst_278 : f32 to vector<8x128xf32>
    %877 = arith.addf %876, %875 : vector<8x128xf32>
    %878 = arith.divf %876, %877 : vector<8x128xf32>
    %879 = arith.mulf %870, %821 : vector<8x128xf32>
    %880 = arith.mulf %864, %872 : vector<8x128xf32>
    %881 = arith.addf %879, %880 : vector<8x128xf32>
    %882 = math.tanh %881 : vector<8x128xf32>
    %883 = arith.mulf %878, %882 : vector<8x128xf32>
    %c48_279 = arith.constant 48 : index
    %c0_280 = arith.constant 0 : index
    %884 = vector.load %arg19[%c48_279, %c0_280] : memref<64x512xf32, #tpu.memory_space<vmem>>, vector<8x512xf32>
    %885 = arith.truncf %853 : vector<8x128xf32> to vector<8x128xbf16>
    %c0_281 = arith.constant 0 : index
    %c0_282 = arith.constant 0 : index
    %886 = vector.load %arg9[%c0_281, %c0_282] : memref<128x512xbf16, #tpu.memory_space<vmem>>, vector<128x512xbf16>
    %cst_283 = arith.constant dense<0.000000e+00> : vector<8x512xf32>
    %887 = tpu.matmul %885, %886, %cst_283 {dimension_numbers = #tpu.dot_dimension_numbers<[1], [0], [0], [1], [0, 0, 1, 1], [], []>} : vector<8x128xbf16>, vector<128x512xbf16>, vector<8x512xf32> -> vector<8x512xf32>
    %888 = arith.addf %884, %887 : vector<8x512xf32>
    %889 = vector.extract_strided_slice %888 {offsets = [0, 0], sizes = [8, 128], strides = [1, 1]} : vector<8x512xf32> to vector<8x128xf32>
    %890 = arith.negf %889 : vector<8x128xf32>
    %891 = math.exp %890 : vector<8x128xf32>
    %cst_284 = arith.constant 1.000000e+00 : f32
    %892 = vector.broadcast %cst_284 : f32 to vector<8x128xf32>
    %893 = arith.addf %892, %891 : vector<8x128xf32>
    %894 = arith.divf %892, %893 : vector<8x128xf32>
    %895 = vector.extract_strided_slice %888 {offsets = [0, 128], sizes = [8, 128], strides = [1, 1]} : vector<8x512xf32> to vector<8x128xf32>
    %896 = arith.negf %895 : vector<8x128xf32>
    %897 = math.exp %896 : vector<8x128xf32>
    %cst_285 = arith.constant 1.000000e+00 : f32
    %898 = vector.broadcast %cst_285 : f32 to vector<8x128xf32>
    %899 = arith.addf %898, %897 : vector<8x128xf32>
    %900 = arith.divf %898, %899 : vector<8x128xf32>
    %901 = vector.extract_strided_slice %888 {offsets = [0, 256], sizes = [8, 128], strides = [1, 1]} : vector<8x512xf32> to vector<8x128xf32>
    %902 = math.tanh %901 : vector<8x128xf32>
    %903 = vector.extract_strided_slice %888 {offsets = [0, 384], sizes = [8, 128], strides = [1, 1]} : vector<8x512xf32> to vector<8x128xf32>
    %904 = arith.negf %903 : vector<8x128xf32>
    %905 = math.exp %904 : vector<8x128xf32>
    %cst_286 = arith.constant 1.000000e+00 : f32
    %906 = vector.broadcast %cst_286 : f32 to vector<8x128xf32>
    %907 = arith.addf %906, %905 : vector<8x128xf32>
    %908 = arith.divf %906, %907 : vector<8x128xf32>
    %909 = arith.mulf %900, %851 : vector<8x128xf32>
    %910 = arith.mulf %894, %902 : vector<8x128xf32>
    %911 = arith.addf %909, %910 : vector<8x128xf32>
    %912 = math.tanh %911 : vector<8x128xf32>
    %913 = arith.mulf %908, %912 : vector<8x128xf32>
    %c8_287 = arith.constant 8 : index
    %c0_288 = arith.constant 0 : index
    %914 = vector.load %arg20[%c8_287, %c0_288] : memref<64x512xf32, #tpu.memory_space<vmem>>, vector<8x512xf32>
    %915 = arith.truncf %883 : vector<8x128xf32> to vector<8x128xbf16>
    %c0_289 = arith.constant 0 : index
    %c0_290 = arith.constant 0 : index
    %916 = vector.load %arg12[%c0_289, %c0_290] : memref<128x512xbf16, #tpu.memory_space<vmem>>, vector<128x512xbf16>
    %cst_291 = arith.constant dense<0.000000e+00> : vector<8x512xf32>
    %917 = tpu.matmul %915, %916, %cst_291 {dimension_numbers = #tpu.dot_dimension_numbers<[1], [0], [0], [1], [0, 0, 1, 1], [], []>} : vector<8x128xbf16>, vector<128x512xbf16>, vector<8x512xf32> -> vector<8x512xf32>
    %918 = arith.addf %914, %917 : vector<8x512xf32>
    %919 = vector.extract_strided_slice %918 {offsets = [0, 0], sizes = [8, 128], strides = [1, 1]} : vector<8x512xf32> to vector<8x128xf32>
    %920 = arith.negf %919 : vector<8x128xf32>
    %921 = math.exp %920 : vector<8x128xf32>
    %cst_292 = arith.constant 1.000000e+00 : f32
    %922 = vector.broadcast %cst_292 : f32 to vector<8x128xf32>
    %923 = arith.addf %922, %921 : vector<8x128xf32>
    %924 = arith.divf %922, %923 : vector<8x128xf32>
    %925 = vector.extract_strided_slice %918 {offsets = [0, 128], sizes = [8, 128], strides = [1, 1]} : vector<8x512xf32> to vector<8x128xf32>
    %926 = arith.negf %925 : vector<8x128xf32>
    %927 = math.exp %926 : vector<8x128xf32>
    %cst_293 = arith.constant 1.000000e+00 : f32
    %928 = vector.broadcast %cst_293 : f32 to vector<8x128xf32>
    %929 = arith.addf %928, %927 : vector<8x128xf32>
    %930 = arith.divf %928, %929 : vector<8x128xf32>
    %931 = vector.extract_strided_slice %918 {offsets = [0, 256], sizes = [8, 128], strides = [1, 1]} : vector<8x512xf32> to vector<8x128xf32>
    %932 = math.tanh %931 : vector<8x128xf32>
    %933 = vector.extract_strided_slice %918 {offsets = [0, 384], sizes = [8, 128], strides = [1, 1]} : vector<8x512xf32> to vector<8x128xf32>
    %934 = arith.negf %933 : vector<8x128xf32>
    %935 = math.exp %934 : vector<8x128xf32>
    %cst_294 = arith.constant 1.000000e+00 : f32
    %936 = vector.broadcast %cst_294 : f32 to vector<8x128xf32>
    %937 = arith.addf %936, %935 : vector<8x128xf32>
    %938 = arith.divf %936, %937 : vector<8x128xf32>
    %939 = arith.mulf %930, %881 : vector<8x128xf32>
    %940 = arith.mulf %924, %932 : vector<8x128xf32>
    %941 = arith.addf %939, %940 : vector<8x128xf32>
    %942 = math.tanh %941 : vector<8x128xf32>
    %943 = arith.mulf %938, %942 : vector<8x128xf32>
    %c56_295 = arith.constant 56 : index
    %c0_296 = arith.constant 0 : index
    %944 = vector.load %arg19[%c56_295, %c0_296] : memref<64x512xf32, #tpu.memory_space<vmem>>, vector<8x512xf32>
    %945 = arith.truncf %913 : vector<8x128xf32> to vector<8x128xbf16>
    %c0_297 = arith.constant 0 : index
    %c0_298 = arith.constant 0 : index
    %946 = vector.load %arg9[%c0_297, %c0_298] : memref<128x512xbf16, #tpu.memory_space<vmem>>, vector<128x512xbf16>
    %cst_299 = arith.constant dense<0.000000e+00> : vector<8x512xf32>
    %947 = tpu.matmul %945, %946, %cst_299 {dimension_numbers = #tpu.dot_dimension_numbers<[1], [0], [0], [1], [0, 0, 1, 1], [], []>} : vector<8x128xbf16>, vector<128x512xbf16>, vector<8x512xf32> -> vector<8x512xf32>
    %948 = arith.addf %944, %947 : vector<8x512xf32>
    %949 = vector.extract_strided_slice %948 {offsets = [0, 0], sizes = [8, 128], strides = [1, 1]} : vector<8x512xf32> to vector<8x128xf32>
    %950 = arith.negf %949 : vector<8x128xf32>
    %951 = math.exp %950 : vector<8x128xf32>
    %cst_300 = arith.constant 1.000000e+00 : f32
    %952 = vector.broadcast %cst_300 : f32 to vector<8x128xf32>
    %953 = arith.addf %952, %951 : vector<8x128xf32>
    %954 = arith.divf %952, %953 : vector<8x128xf32>
    %955 = vector.extract_strided_slice %948 {offsets = [0, 128], sizes = [8, 128], strides = [1, 1]} : vector<8x512xf32> to vector<8x128xf32>
    %956 = arith.negf %955 : vector<8x128xf32>
    %957 = math.exp %956 : vector<8x128xf32>
    %cst_301 = arith.constant 1.000000e+00 : f32
    %958 = vector.broadcast %cst_301 : f32 to vector<8x128xf32>
    %959 = arith.addf %958, %957 : vector<8x128xf32>
    %960 = arith.divf %958, %959 : vector<8x128xf32>
    %961 = vector.extract_strided_slice %948 {offsets = [0, 256], sizes = [8, 128], strides = [1, 1]} : vector<8x512xf32> to vector<8x128xf32>
    %962 = math.tanh %961 : vector<8x128xf32>
    %963 = vector.extract_strided_slice %948 {offsets = [0, 384], sizes = [8, 128], strides = [1, 1]} : vector<8x512xf32> to vector<8x128xf32>
    %964 = arith.negf %963 : vector<8x128xf32>
    %965 = math.exp %964 : vector<8x128xf32>
    %cst_302 = arith.constant 1.000000e+00 : f32
    %966 = vector.broadcast %cst_302 : f32 to vector<8x128xf32>
    %967 = arith.addf %966, %965 : vector<8x128xf32>
    %968 = arith.divf %966, %967 : vector<8x128xf32>
    %969 = arith.mulf %960, %911 : vector<8x128xf32>
    %970 = arith.mulf %954, %962 : vector<8x128xf32>
    %971 = arith.addf %969, %970 : vector<8x128xf32>
    %972 = math.tanh %971 : vector<8x128xf32>
    %973 = arith.mulf %968, %972 : vector<8x128xf32>
    %c0_303 = arith.constant 0 : index
    %c0_304 = arith.constant 0 : index
    %974 = vector.load %arg20[%c0_303, %c0_304] : memref<64x512xf32, #tpu.memory_space<vmem>>, vector<8x512xf32>
    %975 = arith.truncf %943 : vector<8x128xf32> to vector<8x128xbf16>
    %c0_305 = arith.constant 0 : index
    %c0_306 = arith.constant 0 : index
    %976 = vector.load %arg12[%c0_305, %c0_306] : memref<128x512xbf16, #tpu.memory_space<vmem>>, vector<128x512xbf16>
    %cst_307 = arith.constant dense<0.000000e+00> : vector<8x512xf32>
    %977 = tpu.matmul %975, %976, %cst_307 {dimension_numbers = #tpu.dot_dimension_numbers<[1], [0], [0], [1], [0, 0, 1, 1], [], []>} : vector<8x128xbf16>, vector<128x512xbf16>, vector<8x512xf32> -> vector<8x512xf32>
    %978 = arith.addf %974, %977 : vector<8x512xf32>
    %979 = vector.extract_strided_slice %978 {offsets = [0, 0], sizes = [8, 128], strides = [1, 1]} : vector<8x512xf32> to vector<8x128xf32>
    %980 = arith.negf %979 : vector<8x128xf32>
    %981 = math.exp %980 : vector<8x128xf32>
    %cst_308 = arith.constant 1.000000e+00 : f32
    %982 = vector.broadcast %cst_308 : f32 to vector<8x128xf32>
    %983 = arith.addf %982, %981 : vector<8x128xf32>
    %984 = arith.divf %982, %983 : vector<8x128xf32>
    %985 = vector.extract_strided_slice %978 {offsets = [0, 128], sizes = [8, 128], strides = [1, 1]} : vector<8x512xf32> to vector<8x128xf32>
    %986 = arith.negf %985 : vector<8x128xf32>
    %987 = math.exp %986 : vector<8x128xf32>
    %cst_309 = arith.constant 1.000000e+00 : f32
    %988 = vector.broadcast %cst_309 : f32 to vector<8x128xf32>
    %989 = arith.addf %988, %987 : vector<8x128xf32>
    %990 = arith.divf %988, %989 : vector<8x128xf32>
    %991 = vector.extract_strided_slice %978 {offsets = [0, 256], sizes = [8, 128], strides = [1, 1]} : vector<8x512xf32> to vector<8x128xf32>
    %992 = math.tanh %991 : vector<8x128xf32>
    %993 = vector.extract_strided_slice %978 {offsets = [0, 384], sizes = [8, 128], strides = [1, 1]} : vector<8x512xf32> to vector<8x128xf32>
    %994 = arith.negf %993 : vector<8x128xf32>
    %995 = math.exp %994 : vector<8x128xf32>
    %cst_310 = arith.constant 1.000000e+00 : f32
    %996 = vector.broadcast %cst_310 : f32 to vector<8x128xf32>
    %997 = arith.addf %996, %995 : vector<8x128xf32>
    %998 = arith.divf %996, %997 : vector<8x128xf32>
    %999 = arith.mulf %990, %941 : vector<8x128xf32>
    %1000 = arith.mulf %984, %992 : vector<8x128xf32>
    %1001 = arith.addf %999, %1000 : vector<8x128xf32>
    %1002 = math.tanh %1001 : vector<8x128xf32>
    %1003 = arith.mulf %998, %1002 : vector<8x128xf32>
    %1004 = tpu.concatenate %973, %1003 in 1 : vector<8x128xf32>, vector<8x128xf32> -> vector<8x256xf32>
    %c0_311 = arith.constant 0 : index
    %c0_312 = arith.constant 0 : index
    %1005 = vector.load %arg1[%c0_311, %c0_312] : memref<2x8xf32, #tpu.memory_space<vmem>>, vector<2x8xf32>
    %cst_313 = arith.constant dense<0.000000e+00> : vector<2x256xf32>
    %1006 = tpu.matmul %1005, %1004, %cst_313 {dimension_numbers = #tpu.dot_dimension_numbers<[1], [0], [0], [1], [0, 0, 1, 1], [], []>} : vector<2x8xf32>, vector<8x256xf32>, vector<2x256xf32> -> vector<2x256xf32>
    %c0_314 = arith.constant 0 : index
    %c0_315 = arith.constant 0 : index
    %1007 = vector.load %arg14[%c0_314, %c0_315] : memref<256x64xf32, #tpu.memory_space<vmem>>, vector<256x64xf32>
    %cst_316 = arith.constant dense<0.000000e+00> : vector<2x64xf32>
    %1008 = tpu.matmul %1006, %1007, %cst_316 {dimension_numbers = #tpu.dot_dimension_numbers<[1], [0], [0], [1], [0, 0, 1, 1], [], []>} : vector<2x256xf32>, vector<256x64xf32>, vector<2x64xf32> -> vector<2x64xf32>
    %c0_317 = arith.constant 0 : index
    %c0_318 = arith.constant 0 : index
    %1009 = vector.load %arg15[%c0_317, %c0_318] : memref<1x64xf32, #tpu.memory_space<vmem>>, vector<1x64xf32>
    %1010 = vector.broadcast %1009 : vector<1x64xf32> to vector<2x64xf32>
    %1011 = arith.addf %1008, %1010 : vector<2x64xf32>
    %cst_319 = arith.constant 0.000000e+00 : f32
    %1012 = vector.broadcast %cst_319 : f32 to vector<2x64xf32>
    %1013 = arith.maximumf %1011, %1012 : vector<2x64xf32>
    %c0_320 = arith.constant 0 : index
    %c0_321 = arith.constant 0 : index
    %1014 = vector.load %arg16[%c0_320, %c0_321] : memref<64x1xf32, #tpu.memory_space<vmem>>, vector<64x1xf32>
    %cst_322 = arith.constant dense<0.000000e+00> : vector<2x1xf32>
    %1015 = tpu.matmul %1013, %1014, %cst_322 {dimension_numbers = #tpu.dot_dimension_numbers<[1], [0], [0], [1], [0, 0, 1, 1], [], []>} : vector<2x64xf32>, vector<64x1xf32>, vector<2x1xf32> -> vector<2x1xf32>
    %c0_323 = arith.constant 0 : index
    %c0_324 = arith.constant 0 : index
    %1016 = vector.load %arg17[%c0_323, %c0_324] : memref<1x1xf32, #tpu.memory_space<vmem>>, vector<1x1xf32>
    %1017 = vector.broadcast %1016 : vector<1x1xf32> to vector<2x1xf32>
    %1018 = arith.addf %1015, %1017 : vector<2x1xf32>
    %1019 = arith.negf %1018 : vector<2x1xf32>
    %1020 = math.exp %1019 : vector<2x1xf32>
    %cst_325 = arith.constant 1.000000e+00 : f32
    %1021 = vector.broadcast %cst_325 : f32 to vector<2x1xf32>
    %1022 = arith.addf %1021, %1020 : vector<2x1xf32>
    %1023 = arith.divf %1021, %1022 : vector<2x1xf32>
    %c0_326 = arith.constant 0 : index
    %c0_327 = arith.constant 0 : index
    %1024 = vector.load %arg18[%c0_326, %c0_327] : memref<2x1xf32, #tpu.memory_space<vmem>>, vector<2x1xf32>
    tpu.vector_store %arg18[%c0_326, %c0_327], %1023 {strides = array<i32>} : memref<2x1xf32, #tpu.memory_space<vmem>>, vector<2x1xf32>,
    return
  }
}

</mosaic_0001>

<llo_original>
// kernel: tpu_custom_call.1
$region0: #{tpu_custom_call.1}
  #allocation0 [shape = 'u32[]', space=smem, size = 0x4, offset = 0x4, fixed_abs, tag = 'smem constant byte address 0x4 - core index']
  #allocation1 [shape = 'u32[144,128]{1,0:T(1,128)}', space=vmem, size = 0x12000, scoped, tag = 'internal scratch']
  #allocation2 [shape = 'f32[64,512]{1,0:T(8,128)}', space=vmem, size = 0x20000, scoped, tag = 'scratch operand']
  #allocation3 [shape = 'f32[64,512]{1,0:T(8,128)}', space=vmem, size = 0x20000, scoped, tag = 'scratch operand']
  #allocation4 [shape = 'f32[64,256]{1,0:T(8,128)}', space=vmem, size = 0x10000, scoped, tag = 'scratch operand']
  #allocation5 [shape = 'f32[1,1]{1,0:T(1,128)S(1)}', space=vmem, size = 0x200, scoped, tag = 'scoped memory for tpu_custom_call.1']
  %s0 = inlined_call_operand.vmem [shape: f32[64,2], index: 0, kind: input, shape index: {}]
  %s1 = inlined_call_operand.vmem [shape: f32[2,8], index: 1, kind: input, shape index: {}]
  %s2 = inlined_call_operand.vmem [shape: f32[2,512], index: 2, kind: input, shape index: {}]
  %s3 = inlined_call_operand.hbm [shape: bf16[128,512], index: 3, kind: input, shape index: {}]
  %s4 = inlined_call_operand.hbm [shape: f32[1,512], index: 4, kind: input, shape index: {}]
  %s5 = inlined_call_operand.vmem [shape: f32[2,512], index: 5, kind: input, shape index: {}]
  %s6 = inlined_call_operand.hbm [shape: bf16[128,512], index: 6, kind: input, shape index: {}]
  %s7 = inlined_call_operand.hbm [shape: f32[1,512], index: 7, kind: input, shape index: {}]
  %s8 = inlined_call_operand.vmem [shape: bf16[256,512], index: 8, kind: input, shape index: {}]
  %s9 = inlined_call_operand.hbm [shape: bf16[128,512], index: 9, kind: input, shape index: {}]
  %s10 = inlined_call_operand.hbm [shape: f32[1,512], index: 10, kind: input, shape index: {}]
  %s11 = inlined_call_operand.hbm [shape: bf16[256,512], index: 11, kind: input, shape index: {}]
  %s12 = inlined_call_operand.hbm [shape: bf16[128,512], index: 12, kind: input, shape index: {}]
  %s13 = inlined_call_operand.vmem [shape: f32[1,512], index: 13, kind: input, shape index: {}]
  %s14 = inlined_call_operand.vmem [shape: f32[256,64], index: 14, kind: input, shape index: {}]
  %s15 = inlined_call_operand.vmem [shape: f32[1,64], index: 15, kind: input, shape index: {}]
  %s16 = inlined_call_operand.vmem [shape: f32[64,1], index: 16, kind: input, shape index: {}]
  %s17 = inlined_call_operand.<no memory space> [shape: f32[1,1], index: 17, kind: input, shape index: {}]
  %s18 = inlined_call_operand.vmem [shape: f32[2,1], index: 18, kind: output, shape index: {}]
  %s19 = sld [smem:[#allocation0]]
  $region114: #{tpu_custom_call.1} parent=0
    _
  %s21 = ssub.s32 1, %s19
  %s22 = scalar_select 0, %s21, %s19
  %v23 = vstv %s17
  %24 = vst [vmem:[#allocation5] sm:$0x1] %v23
  $region1: #{tpu_custom_call.1} parent=0
    #allocation6 [shape = 'u8[131072]{0}', space=vmem, size = 0x20000, scoped, tag = 'input window, operand 3, single buffered']
    #allocation7 [shape = 's32[1]{0}', space=sflag, size = 0x4, scoped, tag = 'scoped memory for tpu_custom_call.1']
    #allocation8 [shape = 'u8[2048]{0}', space=vmem, size = 0x800, scoped, tag = 'input window, operand 4, single buffered']
    #allocation9 [shape = 's32[1]{0}', space=sflag, size = 0x4, scoped, tag = 'scoped memory for tpu_custom_call.1']
    #allocation10 [shape = 'u8[131072]{0}', space=vmem, size = 0x20000, scoped, tag = 'input window, operand 6, single buffered']
    #allocation11 [shape = 'u8[2048]{0}', space=vmem, size = 0x800, scoped, tag = 'input window, operand 7, single buffered']
    #allocation12 [shape = 's32[1]{0}', space=sflag, size = 0x4, scoped, tag = 'scoped memory for tpu_custom_call.1']
    #allocation13 [shape = 'u8[131072]{0}', space=vmem, size = 0x20000, scoped, tag = 'input window, operand 9, single buffered']
    #allocation14 [shape = 'u8[2048]{0}', space=vmem, size = 0x800, scoped, tag = 'input window, operand 10, single buffered']
    #allocation15 [shape = 's32[1]{0}', space=sflag, size = 0x4, scoped, tag = 'scoped memory for tpu_custom_call.1']
    #allocation16 [shape = 'u8[262144]{0}', space=vmem, size = 0x40000, scoped, tag = 'input window, operand 11, single buffered']
    #allocation17 [shape = 'u8[131072]{0}', space=vmem, size = 0x20000, scoped, tag = 'input window, operand 12, single buffered']
    #allocation18 [shape = 's32[1]{0}', space=sflag, size = 0x4, scoped, tag = 'scoped memory for tpu_custom_call.1']
    %25 = vsyncpa [#allocation7], 0
    %26 = vsyncpa [#allocation9], 0
    %27 = vsyncpa [#allocation12], 0
    %28 = vsyncpa [#allocation15], 0
    %29 = vsyncpa [#allocation18], 0
    // Predicated region
    $region2: #{tpu_custom_call.1} parent=1 // pred_check
      _
    $region3: #{tpu_custom_call.1} parent=1 // pred_check_branch
      %31 = sbr.rel (0) target = $region5
    $region4: #{tpu_custom_call.1} parent=1 // pred_region
      _
    $region5: #{tpu_custom_call.1} parent=1 // pred_fallthru
      _
    // Predicated region
    $region6: #{tpu_custom_call.1} parent=1 // pred_check
      _
    $region7: #{tpu_custom_call.1} parent=1 // pred_check_branch
      %33 = sbr.rel (0) target = $region9
    $region8: #{tpu_custom_call.1} parent=1 // pred_region
      _
    $region9: #{tpu_custom_call.1} parent=1 // pred_fallthru
      _
    // Predicated region
    $region10: #{tpu_custom_call.1} parent=1 // pred_check
      _
    $region11: #{tpu_custom_call.1} parent=1 // pred_check_branch
      %35 = sbr.rel (0) target = $region13
    $region12: #{tpu_custom_call.1} parent=1 // pred_region
      _
    $region13: #{tpu_custom_call.1} parent=1 // pred_fallthru
      _
    // Predicated region
    $region14: #{tpu_custom_call.1} parent=1 // pred_check
      _
    $region15: #{tpu_custom_call.1} parent=1 // pred_check_branch
      %37 = sbr.rel (0) target = $region17
    $region16: #{tpu_custom_call.1} parent=1 // pred_region
      %s39 = ssub.s32 4096, 4096
      %40 = vsyncadd [#allocation7], %s39
      %s41 = sshll.u32 [#allocation6], 4
      %s42 = int_to_ptr.vmem [resolvable:$true] %s41
      %47 = dma.hbm_to_vmem [thread:$0]  %s3, 4096, %s42, [#allocation7], 256, 256, 16
    $region17: #{tpu_custom_call.1} parent=1 // pred_fallthru
      _
    // Predicated region
    $region18: #{tpu_custom_call.1} parent=1 // pred_check
      _
    $region19: #{tpu_custom_call.1} parent=1 // pred_check_branch
      %49 = sbr.rel (0) target = $region21
    $region20: #{tpu_custom_call.1} parent=1 // pred_region
      %s51 = ssub.s32 64, 64
      %52 = vsyncadd [#allocation9], %s51
      %s54 = sshll.u32 [#allocation8], 4
      %s55 = int_to_ptr.vmem [resolvable:$true] %s54
      %57 = dma.hbm_to_vmem [thread:$0]  %s4, 64, %s55, [#allocation9]
    $region21: #{tpu_custom_call.1} parent=1 // pred_fallthru
      _
    // Predicated region
    $region22: #{tpu_custom_call.1} parent=1 // pred_check
      _
    $region23: #{tpu_custom_call.1} parent=1 // pred_check_branch
      %59 = sbr.rel (0) target = $region25
    $region24: #{tpu_custom_call.1} parent=1 // pred_region
      _
    $region25: #{tpu_custom_call.1} parent=1 // pred_fallthru
      _
    // Predicated region
    $region26: #{tpu_custom_call.1} parent=1 // pred_check
      _
    $region27: #{tpu_custom_call.1} parent=1 // pred_check_branch
      %61 = sbr.rel (0) target = $region29
    $region28: #{tpu_custom_call.1} parent=1 // pred_region
      %s63 = ssub.s32 4096, 4096
      %64 = vsyncadd [#allocation9], %s63
      %s65 = sshll.u32 [#allocation10], 4
      %s66 = int_to_ptr.vmem [resolvable:$true] %s65
      %71 = dma.hbm_to_vmem [thread:$0]  %s6, 4096, %s66, [#allocation9], 256, 256, 16
    $region29: #{tpu_custom_call.1} parent=1 // pred_fallthru
      _
    // Predicated region
    $region30: #{tpu_custom_call.1} parent=1 // pred_check
      _
    $region31: #{tpu_custom_call.1} parent=1 // pred_check_branch
      %73 = sbr.rel (0) target = $region33
    $region32: #{tpu_custom_call.1} parent=1 // pred_region
      %s75 = ssub.s32 64, 64
      %76 = vsyncadd [#allocation12], %s75
      %s78 = sshll.u32 [#allocation11], 4
      %s79 = int_to_ptr.vmem [resolvable:$true] %s78
      %81 = dma.hbm_to_vmem [thread:$0]  %s7, 64, %s79, [#allocation12]
    $region33: #{tpu_custom_call.1} parent=1 // pred_fallthru
      _
    // Predicated region
    $region34: #{tpu_custom_call.1} parent=1 // pred_check
      _
    $region35: #{tpu_custom_call.1} parent=1 // pred_check_branch
      %83 = sbr.rel (0) target = $region37
    $region36: #{tpu_custom_call.1} parent=1 // pred_region
      _
    $region37: #{tpu_custom_call.1} parent=1 // pred_fallthru
      _
    // Predicated region
    $region38: #{tpu_custom_call.1} parent=1 // pred_check
      _
    $region39: #{tpu_custom_call.1} parent=1 // pred_check_branch
      %85 = sbr.rel (0) target = $region41
    $region40: #{tpu_custom_call.1} parent=1 // pred_region
      %s87 = ssub.s32 4096, 4096
      %88 = vsyncadd [#allocation12], %s87
      %s89 = sshll.u32 [#allocation13], 4
      %s90 = int_to_ptr.vmem [resolvable:$true] %s89
      %95 = dma.hbm_to_vmem [thread:$0]  %s9, 4096, %s90, [#allocation12], 256, 256, 16
    $region41: #{tpu_custom_call.1} parent=1 // pred_fallthru
      _
    // Predicated region
    $region42: #{tpu_custom_call.1} parent=1 // pred_check
      _
    $region43: #{tpu_custom_call.1} parent=1 // pred_check_branch
      %97 = sbr.rel (0) target = $region45
    $region44: #{tpu_custom_call.1} parent=1 // pred_region
      %s99 = ssub.s32 64, 64
      %100 = vsyncadd [#allocation15], %s99
      %s102 = sshll.u32 [#allocation14], 4
      %s103 = int_to_ptr.vmem [resolvable:$true] %s102
      %105 = dma.hbm_to_vmem [thread:$0]  %s10, 64, %s103, [#allocation15]
    $region45: #{tpu_custom_call.1} parent=1 // pred_fallthru
      _
    // Predicated region
    $region46: #{tpu_custom_call.1} parent=1 // pred_check
      _
    $region47: #{tpu_custom_call.1} parent=1 // pred_check_branch
      %107 = sbr.rel (0) target = $region49
    $region48: #{tpu_custom_call.1} parent=1 // pred_region
      %s109 = ssub.s32 8192, 8192
      %110 = vsyncadd [#allocation15], %s109
      %s111 = sshll.u32 [#allocation16], 4
      %s112 = int_to_ptr.vmem [resolvable:$true] %s111
      %117 = dma.hbm_to_vmem [thread:$0]  %s11, 8192, %s112, [#allocation15], 256, 256, 16
    $region49: #{tpu_custom_call.1} parent=1 // pred_fallthru
      _
    // Predicated region
    $region50: #{tpu_custom_call.1} parent=1 // pred_check
      _
    $region51: #{tpu_custom_call.1} parent=1 // pred_check_branch
      %119 = sbr.rel (0) target = $region53
    $region52: #{tpu_custom_call.1} parent=1 // pred_region
      %s121 = ssub.s32 4096, 4096
      %122 = vsyncadd [#allocation18], %s121
      %s123 = sshll.u32 [#allocation17], 4
      %s124 = int_to_ptr.vmem [resolvable:$true] %s123
      %129 = dma.hbm_to_vmem [thread:$0]  %s12, 4096, %s124, [#allocation18], 256, 256, 16
    $region53: #{tpu_custom_call.1} parent=1 // pred_fallthru
      _
    // Predicated region
    $region54: #{tpu_custom_call.1} parent=1 // pred_check
      _
    $region55: #{tpu_custom_call.1} parent=1 // pred_check_branch
      %131 = sbr.rel (0) target = $region57
    $region56: #{tpu_custom_call.1} parent=1 // pred_region
      _
    $region57: #{tpu_custom_call.1} parent=1 // pred_fallthru
      _
    // Predicated region
    $region58: #{tpu_custom_call.1} parent=1 // pred_check
      _
    $region59: #{tpu_custom_call.1} parent=1 // pred_check_branch
      %133 = sbr.rel (0) target = $region61
    $region60: #{tpu_custom_call.1} parent=1 // pred_region
      _
    $region61: #{tpu_custom_call.1} parent=1 // pred_fallthru
      _
    // Predicated region
    $region62: #{tpu_custom_call.1} parent=1 // pred_check
      _
    $region63: #{tpu_custom_call.1} parent=1 // pred_check_branch
      %135 = sbr.rel (0) target = $region65
    $region64: #{tpu_custom_call.1} parent=1 // pred_region
      _
    $region65: #{tpu_custom_call.1} parent=1 // pred_fallthru
      _
    // Predicated region
    $region66: #{tpu_custom_call.1} parent=1 // pred_check
      _
    $region67: #{tpu_custom_call.1} parent=1 // pred_check_branch
      %137 = sbr.rel (0) target = $region69
    $region68: #{tpu_custom_call.1} parent=1 // pred_region
      _
    $region69: #{tpu_custom_call.1} parent=1 // pred_fallthru
      _
    // Predicated region
    $region70: #{tpu_custom_call.1} parent=1 // pred_check
      _
    $region71: #{tpu_custom_call.1} parent=1 // pred_check_branch
      %139 = sbr.rel (0) target = $region73
    $region72: #{tpu_custom_call.1} parent=1 // pred_region
      _
    $region73: #{tpu_custom_call.1} parent=1 // pred_fallthru
      _
    // Predicated region
    $region74: #{tpu_custom_call.1} parent=1 // pred_check
      _
    $region75: #{tpu_custom_call.1} parent=1 // pred_check_branch
      %141 = sbr.rel (0) target = $region77
    $region76: #{tpu_custom_call.1} parent=1 // pred_region
      %142 = dma.done [#allocation7], 4096
    $region77: #{tpu_custom_call.1} parent=1 // pred_fallthru
      _
    // Predicated region
    $region78: #{tpu_custom_call.1} parent=1 // pred_check
      _
    $region79: #{tpu_custom_call.1} parent=1 // pred_check_branch
      %144 = sbr.rel (0) target = $region81
    $region80: #{tpu_custom_call.1} parent=1 // pred_region
      %145 = dma.done [#allocation9], 64
    $region81: #{tpu_custom_call.1} parent=1 // pred_fallthru
      _
    // Predicated region
    $region82: #{tpu_custom_call.1} parent=1 // pred_check
      _
    $region83: #{tpu_custom_call.1} parent=1 // pred_check_branch
      %147 = sbr.rel (0) target = $region85
    $region84: #{tpu_custom_call.1} parent=1 // pred_region
      %148 = dma.done [#allocation9], 4096
    $region85: #{tpu_custom_call.1} parent=1 // pred_fallthru
      _
    // Predicated region
    $region86: #{tpu_custom_call.1} parent=1 // pred_check
      _
    $region87: #{tpu_custom_call.1} parent=1 // pred_check_branch
      %150 = sbr.rel (0) target = $region89
    $region88: #{tpu_custom_call.1} parent=1 // pred_region
      %151 = dma.done [#allocation12], 64
    $region89: #{tpu_custom_call.1} parent=1 // pred_fallthru
      _
    // Predicated region
    $region90: #{tpu_custom_call.1} parent=1 // pred_check
      _
    $region91: #{tpu_custom_call.1} parent=1 // pred_check_branch
      %153 = sbr.rel (0) target = $region93
    $region92: #{tpu_custom_call.1} parent=1 // pred_region
      %154 = dma.done [#allocation12], 4096
    $region93: #{tpu_custom_call.1} parent=1 // pred_fallthru
      _
    // Predicated region
    $region94: #{tpu_custom_call.1} parent=1 // pred_check
      _
    $region95: #{tpu_custom_call.1} parent=1 // pred_check_branch
      %156 = sbr.rel (0) target = $region97
    $region96: #{tpu_custom_call.1} parent=1 // pred_region
      %157 = dma.done [#allocation15], 64
    $region97: #{tpu_custom_call.1} parent=1 // pred_fallthru
      _
    // Predicated region
    $region98: #{tpu_custom_call.1} parent=1 // pred_check
      _
    $region99: #{tpu_custom_call.1} parent=1 // pred_check_branch
      %159 = sbr.rel (0) target = $region101
    $region100: #{tpu_custom_call.1} parent=1 // pred_region
      %160 = dma.done [#allocation15], 8192
    $region101: #{tpu_custom_call.1} parent=1 // pred_fallthru
      _
    // Predicated region
    $region102: #{tpu_custom_call.1} parent=1 // pred_check
      _
    $region103: #{tpu_custom_call.1} parent=1 // pred_check_branch
      %162 = sbr.rel (0) target = $region105
    $region104: #{tpu_custom_call.1} parent=1 // pred_region
      %163 = dma.done [#allocation18], 4096
    $region105: #{tpu_custom_call.1} parent=1 // pred_fallthru
      _
    %v165 = vld [vmem:[%s0] sm:$0xff]
    %v166 = vld [vmem:[%s0 + $0x8] sm:$0xff]
    %v167 = vld [vmem:[%s0 + $0x10] sm:$0xff]
    %v168 = vld [vmem:[%s0 + $0x18] sm:$0xff]
    %v169 = vld [vmem:[%s0 + $0x20] sm:$0xff]
    %v170 = vld [vmem:[%s0 + $0x28] sm:$0xff]
    %v171 = vld [vmem:[%s0 + $0x30] sm:$0xff]
    %v172 = vld [vmem:[%s0 + $0x38] sm:$0xff]
    %v173 = vld [vmem:[%s2] sm:$0xff]
    %v174 = vld [vmem:[#allocation8] sm:$0xf]
    %v176 = vlaneseq
    %v177 = vshrl.u32 %v176, 7
    %v178 = vsub.s32 0, %v177
    %v179 = vrot.slane %v174, %v178
    %v180 = vlaneseq
    %v181 = vshrl.u32 %v180, 7
    %v182 = vsub.s32 1, %v181
    %v183 = vrot.slane %v174, %v182
    %v184 = vlaneseq
    %v185 = vshrl.u32 %v184, 7
    %v186 = vsub.s32 2, %v185
    %v187 = vrot.slane %v174, %v186
    %v188 = vlaneseq
    %v189 = vshrl.u32 %v188, 7
    %v190 = vsub.s32 3, %v189
    %v191 = vrot.slane %v174, %v190
    %v197 = vcombine.high %v173, %v173
    %v199 = vunpack.c.l.s4 1983009808
    %v200 = vunpack.c.0.s8 %v199
    %v201 = vlaneseq
    %v202 = vshrl.u32 %v201, 7
    %v203 = vsub.s32 %v200, %v202
    %v204 = vrot.slane %v173, %v203
    %v206 = vunpack.c.l.s4 1983009808
    %v207 = vunpack.c.0.s8 %v206
    %v208 = vlaneseq
    %v209 = vshrl.u32 %v208, 7
    %v210 = vsub.s32 %v207, %v209
    %v211 = vrot.slane %v197, %v210
    %v212 = vcombine.high %v204, %v204
    %v213 = vcombine.high %v211, %v211
    %vm214 = vcmask 15360
    %v216 = vsel %vm214, %v165, 0
    %v219 = vsel %vm214, %v166, 0
    %v222 = vsel %vm214, %v167, 0
    %v225 = vsel %vm214, %v168, 0
    %v228 = vsel %vm214, %v169, 0
    %v231 = vsel %vm214, %v170, 0
    %v234 = vsel %vm214, %v171, 0
    %v237 = vsel %vm214, %v172, 0
    %vm239 = vcmask 1041408
    %v240 = vsel %vm239, %v204, 0
    %v242 = vsel %vm239, %v212, 0
    %v244 = vsel %vm239, %v211, 0
    %v246 = vsel %vm239, %v213, 0
    %248 = vmatprep.subr.mxu0 0.0
    %249 = vmatpush1.msra.mxu0 0.0
    %250 = vmatprep.subr.mxu0 0.0
    %251 = vmatpush1.msra.mxu0 0.0
    %252 = vmatprep.subr.mxu0 0.0
    %253 = vmatpush1.msra.mxu0 0.0
    %254 = vmatprep.subr.mxu0 0.0
    %255 = vmatpush1.msra.mxu0 0.0
    %256 = vmatprep.subr.mxu0 0.0
    %257 = vmatpush1.msra.mxu0 0.0
    %258 = vmatprep.subr.mxu0 0.0
    %259 = vmatpush1.msra.mxu0 0.0
    %260 = vmatprep.subr.mxu0 0.0
    %261 = vmatpush1.msra.mxu0 0.0
    %262 = vmatprep.subr.mxu0 0.0
    %263 = vmatpush1.msra.mxu0 0.0
    %264 = vmatprep.subr.mxu0 0.0
    %265 = vmatpush1.msra.mxu0 0.0
    %266 = vmatprep.subr.mxu0 0.0
    %267 = vmatpush1.msra.mxu0 0.0
    %268 = vmatprep.subr.mxu0 0.0
    %269 = vmatpush1.msra.mxu0 0.0
    %270 = vmatprep.subr.mxu0 0.0
    %271 = vmatpush1.msra.mxu0 0.0
    %272 = vmatprep.subr.mxu0 0.0
    %273 = vmatpush1.msra.mxu0 0.0
    %274 = vmatprep.subr.mxu0 0.0
    %275 = vmatpush1.msra.mxu0 0.0
    %276 = vmatprep.subr.mxu0 0.0
    %277 = vmatpush1.msra.mxu0 0.0
    %278 = vmatprep.subr.mxu0 %v242
    %279 = vmatpush1.msra.mxu0 %v240
    %280 = vmatprep.subr.mxu0 0.0
    %281 = vmatpush2.msra.mxu0 0.0
    %282 = vmatprep.subr.mxu0 0.0
    %283 = vmatpush2.msra.mxu0 0.0
    %284 = vmatprep.subr.mxu0 0.0
    %285 = vmatpush2.msra.mxu0 0.0
    %286 = vmatprep.subr.mxu0 0.0
    %287 = vmatpush2.msra.mxu0 0.0
    %288 = vmatprep.subr.mxu0 0.0
    %289 = vmatpush2.msra.mxu0 0.0
    %290 = vmatprep.subr.mxu0 0.0
    %291 = vmatpush2.msra.mxu0 0.0
    %292 = vmatprep.subr.mxu0 0.0
    %293 = vmatpush2.msra.mxu0 0.0
    %294 = vmatprep.subr.mxu0 0.0
    %295 = vmatpush2.msra.mxu0 0.0
    %296 = vmatprep.subr.mxu0 0.0
    %297 = vmatpush2.msra.mxu0 0.0
    %298 = vmatprep.subr.mxu0 0.0
    %299 = vmatpush2.msra.mxu0 0.0
    %300 = vmatprep.subr.mxu0 0.0
    %301 = vmatpush2.msra.mxu0 0.0
    %302 = vmatprep.subr.mxu0 0.0
    %303 = vmatpush2.msra.mxu0 0.0
    %304 = vmatprep.subr.mxu0 0.0
    %305 = vmatpush2.msra.mxu0 0.0
    %306 = vmatprep.subr.mxu0 0.0
    %307 = vmatpush2.msra.mxu0 0.0
    %308 = vmatprep.subr.mxu0 0.0
    %309 = vmatpush2.msra.mxu0 0.0
    %310 = vmatprep.subr.mxu0 0.0
    %311 = vmatpush2.msra.mxu0 0.0
    %312 = vmatprep.mubr.f32.mxu0 0.0
    %313 = vmatmul.mubr.f32.gmra.mxu0 %v216
    %v314 = vpop.f32.mrf.mxu0
    %v315 = vadd.f32 %v179, %v314
    %v316 = vpop.f32.mrf.mxu0
    %v317 = vadd.f32 %v183, %v316
    %318 = vmatprep.mubr.f32.mxu0 0.0
    %319 = vmatmul.mubr.f32.gmra.mxu0 %v219
    %v320 = vpop.f32.mrf.mxu0
    %v321 = vadd.f32 %v179, %v320
    %v322 = vpop.f32.mrf.mxu0
    %v323 = vadd.f32 %v183, %v322
    %324 = vmatprep.mubr.f32.mxu0 0.0
    %325 = vmatmul.mubr.f32.gmra.mxu0 %v222
    %v326 = vpop.f32.mrf.mxu0
    %v327 = vadd.f32 %v179, %v326
    %v328 = vpop.f32.mrf.mxu0
    %v329 = vadd.f32 %v183, %v328
    %330 = vmatprep.mubr.f32.mxu0 0.0
    %331 = vmatmul.mubr.f32.gmra.mxu0 %v225
    %v332 = vpop.f32.mrf.mxu0
    %v333 = vadd.f32 %v179, %v332
    %v334 = vpop.f32.mrf.mxu0
    %v335 = vadd.f32 %v183, %v334
    %336 = vmatprep.mubr.f32.mxu0 0.0
    %337 = vmatmul.mubr.f32.gmra.mxu0 %v228
    %v338 = vpop.f32.mrf.mxu0
    %v339 = vadd.f32 %v179, %v338
    %v340 = vpop.f32.mrf.mxu0
    %v341 = vadd.f32 %v183, %v340
    %342 = vmatprep.mubr.f32.mxu0 0.0
    %343 = vmatmul.mubr.f32.gmra.mxu0 %v231
    %v344 = vpop.f32.mrf.mxu0
    %v345 = vadd.f32 %v179, %v344
    %v346 = vpop.f32.mrf.mxu0
    %v347 = vadd.f32 %v183, %v346
    %348 = vmatprep.mubr.f32.mxu0 0.0
    %349 = vmatmul.mubr.f32.gmra.mxu0 %v234
    %v350 = vpop.f32.mrf.mxu0
    %v351 = vadd.f32 %v179, %v350
    %v352 = vpop.f32.mrf.mxu0
    %v353 = vadd.f32 %v183, %v352
    %354 = vmatprep.mubr.f32.mxu0 0.0
    %355 = vmatmul.mubr.f32.gmra.mxu0 %v237
    %v356 = vpop.f32.mrf.mxu0
    %v357 = vadd.f32 %v179, %v356
    %v358 = vpop.f32.mrf.mxu0
    %v359 = vadd.f32 %v183, %v358
    %360 = vdwg.mxu0
    %361 = vmatprep.subr.mxu0 0.0
    %362 = vmatpush1.msra.mxu0 0.0
    %363 = vmatprep.subr.mxu0 0.0
    %364 = vmatpush1.msra.mxu0 0.0
    %365 = vmatprep.subr.mxu0 0.0
    %366 = vmatpush1.msra.mxu0 0.0
    %367 = vmatprep.subr.mxu0 0.0
    %368 = vmatpush1.msra.mxu0 0.0
    %369 = vmatprep.subr.mxu0 0.0
    %370 = vmatpush1.msra.mxu0 0.0
    %371 = vmatprep.subr.mxu0 0.0
    %372 = vmatpush1.msra.mxu0 0.0
    %373 = vmatprep.subr.mxu0 0.0
    %374 = vmatpush1.msra.mxu0 0.0
    %375 = vmatprep.subr.mxu0 0.0
    %376 = vmatpush1.msra.mxu0 0.0
    %377 = vmatprep.subr.mxu0 0.0
    %378 = vmatpush1.msra.mxu0 0.0
    %379 = vmatprep.subr.mxu0 0.0
    %380 = vmatpush1.msra.mxu0 0.0
    %381 = vmatprep.subr.mxu0 0.0
    %382 = vmatpush1.msra.mxu0 0.0
    %383 = vmatprep.subr.mxu0 0.0
    %384 = vmatpush1.msra.mxu0 0.0
    %385 = vmatprep.subr.mxu0 0.0
    %386 = vmatpush1.msra.mxu0 0.0
    %387 = vmatprep.subr.mxu0 0.0
    %388 = vmatpush1.msra.mxu0 0.0
    %389 = vmatprep.subr.mxu0 0.0
    %390 = vmatpush1.msra.mxu0 0.0
    %391 = vmatprep.subr.mxu0 %v246
    %392 = vmatpush1.msra.mxu0 %v244
    %393 = vmatprep.subr.mxu0 0.0
    %394 = vmatpush2.msra.mxu0 0.0
    %395 = vmatprep.subr.mxu0 0.0
    %396 = vmatpush2.msra.mxu0 0.0
    %397 = vmatprep.subr.mxu0 0.0
    %398 = vmatpush2.msra.mxu0 0.0
    %399 = vmatprep.subr.mxu0 0.0
    %400 = vmatpush2.msra.mxu0 0.0
    %401 = vmatprep.subr.mxu0 0.0
    %402 = vmatpush2.msra.mxu0 0.0
    %403 = vmatprep.subr.mxu0 0.0
    %404 = vmatpush2.msra.mxu0 0.0
    %405 = vmatprep.subr.mxu0 0.0
    %406 = vmatpush2.msra.mxu0 0.0
    %407 = vmatprep.subr.mxu0 0.0
    %408 = vmatpush2.msra.mxu0 0.0
    %409 = vmatprep.subr.mxu0 0.0
    %410 = vmatpush2.msra.mxu0 0.0
    %411 = vmatprep.subr.mxu0 0.0
    %412 = vmatpush2.msra.mxu0 0.0
    %413 = vmatprep.subr.mxu0 0.0
    %414 = vmatpush2.msra.mxu0 0.0
    %415 = vmatprep.subr.mxu0 0.0
    %416 = vmatpush2.msra.mxu0 0.0
    %417 = vmatprep.subr.mxu0 0.0
    %418 = vmatpush2.msra.mxu0 0.0
    %419 = vmatprep.subr.mxu0 0.0
    %420 = vmatpush2.msra.mxu0 0.0
    %421 = vmatprep.subr.mxu0 0.0
    %422 = vmatpush2.msra.mxu0 0.0
    %423 = vmatprep.subr.mxu0 0.0
    %424 = vmatpush2.msra.mxu0 0.0
    %425 = vmatprep.mubr.f32.mxu0 0.0
    %426 = vmatmul.mubr.f32.gmra.mxu0 %v216
    %v427 = vpop.f32.mrf.mxu0
    %v428 = vadd.f32 %v187, %v427
    %v429 = vpop.f32.mrf.mxu0
    %v430 = vadd.f32 %v191, %v429
    %431 = vmatprep.mubr.f32.mxu0 0.0
    %432 = vmatmul.mubr.f32.gmra.mxu0 %v219
    %v433 = vpop.f32.mrf.mxu0
    %v434 = vadd.f32 %v187, %v433
    %v435 = vpop.f32.mrf.mxu0
    %v436 = vadd.f32 %v191, %v435
    %437 = vmatprep.mubr.f32.mxu0 0.0
    %438 = vmatmul.mubr.f32.gmra.mxu0 %v222
    %v439 = vpop.f32.mrf.mxu0
    %v440 = vadd.f32 %v187, %v439
    %v441 = vpop.f32.mrf.mxu0
    %v442 = vadd.f32 %v191, %v441
    %443 = vmatprep.mubr.f32.mxu0 0.0
    %444 = vmatmul.mubr.f32.gmra.mxu0 %v225
    %v445 = vpop.f32.mrf.mxu0
    %v446 = vadd.f32 %v187, %v445
    %v447 = vpop.f32.mrf.mxu0
    %v448 = vadd.f32 %v191, %v447
    %449 = vmatprep.mubr.f32.mxu0 0.0
    %450 = vmatmul.mubr.f32.gmra.mxu0 %v228
    %v451 = vpop.f32.mrf.mxu0
    %v452 = vadd.f32 %v187, %v451
    %v453 = vpop.f32.mrf.mxu0
    %v454 = vadd.f32 %v191, %v453
    %455 = vmatprep.mubr.f32.mxu0 0.0
    %456 = vmatmul.mubr.f32.gmra.mxu0 %v231
    %v457 = vpop.f32.mrf.mxu0
    %v458 = vadd.f32 %v187, %v457
    %v459 = vpop.f32.mrf.mxu0
    %v460 = vadd.f32 %v191, %v459
    %461 = vmatprep.mubr.f32.mxu0 0.0
    %462 = vmatmul.mubr.f32.gmra.mxu0 %v234
    %v463 = vpop.f32.mrf.mxu0
    %v464 = vadd.f32 %v187, %v463
    %v465 = vpop.f32.mrf.mxu0
    %v466 = vadd.f32 %v191, %v465
    %467 = vmatprep.mubr.f32.mxu0 0.0
    %468 = vmatmul.mubr.f32.gmra.mxu0 %v237
    %v469 = vpop.f32.mrf.mxu0
    %v470 = vadd.f32 %v187, %v469
    %v471 = vpop.f32.mrf.mxu0
    %v472 = vadd.f32 %v191, %v471
    %473 = vdwg.mxu0
    %474 = vst [vmem:[#allocation2] sm:$0xff] %v315
    %475 = vst [vmem:[#allocation2 + $0x8] sm:$0xff] %v317
    %476 = vst [vmem:[#allocation2 + $0x10] sm:$0xff] %v428
    %477 = vst [vmem:[#allocation2 + $0x18] sm:$0xff] %v430
    %478 = vst [vmem:[#allocation2 + $0x20] sm:$0xff] %v321
    %479 = vst [vmem:[#allocation2 + $0x28] sm:$0xff] %v323
    %480 = vst [vmem:[#allocation2 + $0x30] sm:$0xff] %v434
    %481 = vst [vmem:[#allocation2 + $0x38] sm:$0xff] %v436
    %482 = vst [vmem:[#allocation2 + $0x40] sm:$0xff] %v327
    %483 = vst [vmem:[#allocation2 + $0x48] sm:$0xff] %v329
    %484 = vst [vmem:[#allocation2 + $0x50] sm:$0xff] %v440
    %485 = vst [vmem:[#allocation2 + $0x58] sm:$0xff] %v442
    %486 = vst [vmem:[#allocation2 + $0x60] sm:$0xff] %v333
    %487 = vst [vmem:[#allocation2 + $0x68] sm:$0xff] %v335
    %488 = vst [vmem:[#allocation2 + $0x70] sm:$0xff] %v446
    %489 = vst [vmem:[#allocation2 + $0x78] sm:$0xff] %v448
    %490 = vst [vmem:[#allocation2 + $0x80] sm:$0xff] %v339
    %491 = vst [vmem:[#allocation2 + $0x88] sm:$0xff] %v341
    %492 = vst [vmem:[#allocation2 + $0x90] sm:$0xff] %v452
    %493 = vst [vmem:[#allocation2 + $0x98] sm:$0xff] %v454
    %494 = vst [vmem:[#allocation2 + $0xa0] sm:$0xff] %v345
    %495 = vst [vmem:[#allocation2 + $0xa8] sm:$0xff] %v347
    %496 = vst [vmem:[#allocation2 + $0xb0] sm:$0xff] %v458
    %497 = vst [vmem:[#allocation2 + $0xb8] sm:$0xff] %v460
    %498 = vst [vmem:[#allocation2 + $0xc0] sm:$0xff] %v351
    %499 = vst [vmem:[#allocation2 + $0xc8] sm:$0xff] %v353
    %500 = vst [vmem:[#allocation2 + $0xd0] sm:$0xff] %v464
    %501 = vst [vmem:[#allocation2 + $0xd8] sm:$0xff] %v466
    %502 = vst [vmem:[#allocation2 + $0xe0] sm:$0xff] %v357
    %503 = vst [vmem:[#allocation2 + $0xe8] sm:$0xff] %v359
    %504 = vst [vmem:[#allocation2 + $0xf0] sm:$0xff] %v470
    %505 = vst [vmem:[#allocation2 + $0xf8] sm:$0xff] %v472
    %v506 = vld [vmem:[%s5] sm:$0xff]
    %v507 = vld [vmem:[#allocation11] sm:$0xf]
    %v509 = vlaneseq
    %v510 = vshrl.u32 %v509, 7
    %v511 = vsub.s32 0, %v510
    %v512 = vrot.slane %v507, %v511
    %v513 = vlaneseq
    %v514 = vshrl.u32 %v513, 7
    %v515 = vsub.s32 1, %v514
    %v516 = vrot.slane %v507, %v515
    %v517 = vlaneseq
    %v518 = vshrl.u32 %v517, 7
    %v519 = vsub.s32 2, %v518
    %v520 = vrot.slane %v507, %v519
    %v521 = vlaneseq
    %v522 = vshrl.u32 %v521, 7
    %v523 = vsub.s32 3, %v522
    %v524 = vrot.slane %v507, %v523
    %v530 = vcombine.high %v506, %v506
    %v532 = vunpack.c.l.s4 1983009808
    %v533 = vunpack.c.0.s8 %v532
    %v534 = vlaneseq
    %v535 = vshrl.u32 %v534, 7
    %v536 = vsub.s32 %v533, %v535
    %v537 = vrot.slane %v506, %v536
    %v539 = vunpack.c.l.s4 1983009808
    %v540 = vunpack.c.0.s8 %v539
    %v541 = vlaneseq
    %v542 = vshrl.u32 %v541, 7
    %v543 = vsub.s32 %v540, %v542
    %v544 = vrot.slane %v530, %v543
    %v545 = vcombine.high %v537, %v537
    %v546 = vcombine.high %v544, %v544
    %v547 = vsel %vm239, %v537, 0
    %v549 = vsel %vm239, %v545, 0
    %v551 = vsel %vm239, %v544, 0
    %v553 = vsel %vm239, %v546, 0
    %555 = vmatprep.subr.mxu0 0.0
    %556 = vmatpush1.msra.mxu0 0.0
    %557 = vmatprep.subr.mxu0 0.0
    %558 = vmatpush1.msra.mxu0 0.0
    %559 = vmatprep.subr.mxu0 0.0
    %560 = vmatpush1.msra.mxu0 0.0
    %561 = vmatprep.subr.mxu0 0.0
    %562 = vmatpush1.msra.mxu0 0.0
    %563 = vmatprep.subr.mxu0 0.0
    %564 = vmatpush1.msra.mxu0 0.0
    %565 = vmatprep.subr.mxu0 0.0
    %566 = vmatpush1.msra.mxu0 0.0
    %567 = vmatprep.subr.mxu0 0.0
    %568 = vmatpush1.msra.mxu0 0.0
    %569 = vmatprep.subr.mxu0 0.0
    %570 = vmatpush1.msra.mxu0 0.0
    %571 = vmatprep.subr.mxu0 0.0
    %572 = vmatpush1.msra.mxu0 0.0
    %573 = vmatprep.subr.mxu0 0.0
    %574 = vmatpush1.msra.mxu0 0.0
    %575 = vmatprep.subr.mxu0 0.0
    %576 = vmatpush1.msra.mxu0 0.0
    %577 = vmatprep.subr.mxu0 0.0
    %578 = vmatpush1.msra.mxu0 0.0
    %579 = vmatprep.subr.mxu0 0.0
    %580 = vmatpush1.msra.mxu0 0.0
    %581 = vmatprep.subr.mxu0 0.0
    %582 = vmatpush1.msra.mxu0 0.0
    %583 = vmatprep.subr.mxu0 0.0
    %584 = vmatpush1.msra.mxu0 0.0
    %585 = vmatprep.subr.mxu0 %v549
    %586 = vmatpush1.msra.mxu0 %v547
    %587 = vmatprep.subr.mxu0 0.0
    %588 = vmatpush2.msra.mxu0 0.0
    %589 = vmatprep.subr.mxu0 0.0
    %590 = vmatpush2.msra.mxu0 0.0
    %591 = vmatprep.subr.mxu0 0.0
    %592 = vmatpush2.msra.mxu0 0.0
    %593 = vmatprep.subr.mxu0 0.0
    %594 = vmatpush2.msra.mxu0 0.0
    %595 = vmatprep.subr.mxu0 0.0
    %596 = vmatpush2.msra.mxu0 0.0
    %597 = vmatprep.subr.mxu0 0.0
    %598 = vmatpush2.msra.mxu0 0.0
    %599 = vmatprep.subr.mxu0 0.0
    %600 = vmatpush2.msra.mxu0 0.0
    %601 = vmatprep.subr.mxu0 0.0
    %602 = vmatpush2.msra.mxu0 0.0
    %603 = vmatprep.subr.mxu0 0.0
    %604 = vmatpush2.msra.mxu0 0.0
    %605 = vmatprep.subr.mxu0 0.0
    %606 = vmatpush2.msra.mxu0 0.0
    %607 = vmatprep.subr.mxu0 0.0
    %608 = vmatpush2.msra.mxu0 0.0
    %609 = vmatprep.subr.mxu0 0.0
    %610 = vmatpush2.msra.mxu0 0.0
    %611 = vmatprep.subr.mxu0 0.0
    %612 = vmatpush2.msra.mxu0 0.0
    %613 = vmatprep.subr.mxu0 0.0
    %614 = vmatpush2.msra.mxu0 0.0
    %615 = vmatprep.subr.mxu0 0.0
    %616 = vmatpush2.msra.mxu0 0.0
    %617 = vmatprep.subr.mxu0 0.0
    %618 = vmatpush2.msra.mxu0 0.0
    %619 = vmatprep.mubr.f32.mxu0 0.0
    %620 = vmatmul.mubr.f32.gmra.mxu0 %v216
    %v621 = vpop.f32.mrf.mxu0
    %v622 = vadd.f32 %v512, %v621
    %v623 = vpop.f32.mrf.mxu0
    %v624 = vadd.f32 %v516, %v623
    %625 = vmatprep.mubr.f32.mxu0 0.0
    %626 = vmatmul.mubr.f32.gmra.mxu0 %v219
    %v627 = vpop.f32.mrf.mxu0
    %v628 = vadd.f32 %v512, %v627
    %v629 = vpop.f32.mrf.mxu0
    %v630 = vadd.f32 %v516, %v629
    %631 = vmatprep.mubr.f32.mxu0 0.0
    %632 = vmatmul.mubr.f32.gmra.mxu0 %v222
    %v633 = vpop.f32.mrf.mxu0
    %v634 = vadd.f32 %v512, %v633
    %v635 = vpop.f32.mrf.mxu0
    %v636 = vadd.f32 %v516, %v635
    %637 = vmatprep.mubr.f32.mxu0 0.0
    %638 = vmatmul.mubr.f32.gmra.mxu0 %v225
    %v639 = vpop.f32.mrf.mxu0
    %v640 = vadd.f32 %v512, %v639
    %v641 = vpop.f32.mrf.mxu0
    %v642 = vadd.f32 %v516, %v641
    %643 = vmatprep.mubr.f32.mxu0 0.0
    %644 = vmatmul.mubr.f32.gmra.mxu0 %v228
    %v645 = vpop.f32.mrf.mxu0
    %v646 = vadd.f32 %v512, %v645
    %v647 = vpop.f32.mrf.mxu0
    %v648 = vadd.f32 %v516, %v647
    %649 = vmatprep.mubr.f32.mxu0 0.0
    %650 = vmatmul.mubr.f32.gmra.mxu0 %v231
    %v651 = vpop.f32.mrf.mxu0
    %v652 = vadd.f32 %v512, %v651
    %v653 = vpop.f32.mrf.mxu0
    %v654 = vadd.f32 %v516, %v653
    %655 = vmatprep.mubr.f32.mxu0 0.0
    %656 = vmatmul.mubr.f32.gmra.mxu0 %v234
    %v657 = vpop.f32.mrf.mxu0
    %v658 = vadd.f32 %v512, %v657
    %v659 = vpop.f32.mrf.mxu0
    %v660 = vadd.f32 %v516, %v659
    %661 = vmatprep.mubr.f32.mxu0 0.0
    %662 = vmatmul.mubr.f32.gmra.mxu0 %v237
    %v663 = vpop.f32.mrf.mxu0
    %v664 = vadd.f32 %v512, %v663
    %v665 = vpop.f32.mrf.mxu0
    %v666 = vadd.f32 %v516, %v665
    %667 = vdwg.mxu0
    %668 = vmatprep.subr.mxu0 0.0
    %669 = vmatpush1.msra.mxu0 0.0
    %670 = vmatprep.subr.mxu0 0.0
    %671 = vmatpush1.msra.mxu0 0.0
    %672 = vmatprep.subr.mxu0 0.0
    %673 = vmatpush1.msra.mxu0 0.0
    %674 = vmatprep.subr.mxu0 0.0
    %675 = vmatpush1.msra.mxu0 0.0
    %676 = vmatprep.subr.mxu0 0.0
    %677 = vmatpush1.msra.mxu0 0.0
    %678 = vmatprep.subr.mxu0 0.0
    %679 = vmatpush1.msra.mxu0 0.0
    %680 = vmatprep.subr.mxu0 0.0
    %681 = vmatpush1.msra.mxu0 0.0
    %682 = vmatprep.subr.mxu0 0.0
    %683 = vmatpush1.msra.mxu0 0.0
    %684 = vmatprep.subr.mxu0 0.0
    %685 = vmatpush1.msra.mxu0 0.0
    %686 = vmatprep.subr.mxu0 0.0
    %687 = vmatpush1.msra.mxu0 0.0
    %688 = vmatprep.subr.mxu0 0.0
    %689 = vmatpush1.msra.mxu0 0.0
    %690 = vmatprep.subr.mxu0 0.0
    %691 = vmatpush1.msra.mxu0 0.0
    %692 = vmatprep.subr.mxu0 0.0
    %693 = vmatpush1.msra.mxu0 0.0
    %694 = vmatprep.subr.mxu0 0.0
    %695 = vmatpush1.msra.mxu0 0.0
    %696 = vmatprep.subr.mxu0 0.0
    %697 = vmatpush1.msra.mxu0 0.0
    %698 = vmatprep.subr.mxu0 %v553
    %699 = vmatpush1.msra.mxu0 %v551
    %700 = vmatprep.subr.mxu0 0.0
    %701 = vmatpush2.msra.mxu0 0.0
    %702 = vmatprep.subr.mxu0 0.0
    %703 = vmatpush2.msra.mxu0 0.0
    %704 = vmatprep.subr.mxu0 0.0
    %705 = vmatpush2.msra.mxu0 0.0
    %706 = vmatprep.subr.mxu0 0.0
    %707 = vmatpush2.msra.mxu0 0.0
    %708 = vmatprep.subr.mxu0 0.0
    %709 = vmatpush2.msra.mxu0 0.0
    %710 = vmatprep.subr.mxu0 0.0
    %711 = vmatpush2.msra.mxu0 0.0
    %712 = vmatprep.subr.mxu0 0.0
    %713 = vmatpush2.msra.mxu0 0.0
    %714 = vmatprep.subr.mxu0 0.0
    %715 = vmatpush2.msra.mxu0 0.0
    %716 = vmatprep.subr.mxu0 0.0
    %717 = vmatpush2.msra.mxu0 0.0
    %718 = vmatprep.subr.mxu0 0.0
    %719 = vmatpush2.msra.mxu0 0.0
    %720 = vmatprep.subr.mxu0 0.0
    %721 = vmatpush2.msra.mxu0 0.0
    %722 = vmatprep.subr.mxu0 0.0
    %723 = vmatpush2.msra.mxu0 0.0
    %724 = vmatprep.subr.mxu0 0.0
    %725 = vmatpush2.msra.mxu0 0.0
    %726 = vmatprep.subr.mxu0 0.0
    %727 = vmatpush2.msra.mxu0 0.0
    %728 = vmatprep.subr.mxu0 0.0
    %729 = vmatpush2.msra.mxu0 0.0
    %730 = vmatprep.subr.mxu0 0.0
    %731 = vmatpush2.msra.mxu0 0.0
    %732 = vmatprep.mubr.f32.mxu0 0.0
    %733 = vmatmul.mubr.f32.gmra.mxu0 %v216
    %v734 = vpop.f32.mrf.mxu0
    %v735 = vadd.f32 %v520, %v734
    %v736 = vpop.f32.mrf.mxu0
    %v737 = vadd.f32 %v524, %v736
    %738 = vmatprep.mubr.f32.mxu0 0.0
    %739 = vmatmul.mubr.f32.gmra.mxu0 %v219
    %v740 = vpop.f32.mrf.mxu0
    %v741 = vadd.f32 %v520, %v740
    %v742 = vpop.f32.mrf.mxu0
    %v743 = vadd.f32 %v524, %v742
    %744 = vmatprep.mubr.f32.mxu0 0.0
    %745 = vmatmul.mubr.f32.gmra.mxu0 %v222
    %v746 = vpop.f32.mrf.mxu0
    %v747 = vadd.f32 %v520, %v746
    %v748 = vpop.f32.mrf.mxu0
    %v749 = vadd.f32 %v524, %v748
    %750 = vmatprep.mubr.f32.mxu0 0.0
    %751 = vmatmul.mubr.f32.gmra.mxu0 %v225
    %v752 = vpop.f32.mrf.mxu0
    %v753 = vadd.f32 %v520, %v752
    %v754 = vpop.f32.mrf.mxu0
    %v755 = vadd.f32 %v524, %v754
    %756 = vmatprep.mubr.f32.mxu0 0.0
    %757 = vmatmul.mubr.f32.gmra.mxu0 %v228
    %v758 = vpop.f32.mrf.mxu0
    %v759 = vadd.f32 %v520, %v758
    %v760 = vpop.f32.mrf.mxu0
    %v761 = vadd.f32 %v524, %v760
    %762 = vmatprep.mubr.f32.mxu0 0.0
    %763 = vmatmul.mubr.f32.gmra.mxu0 %v231
    %v764 = vpop.f32.mrf.mxu0
    %v765 = vadd.f32 %v520, %v764
    %v766 = vpop.f32.mrf.mxu0
    %v767 = vadd.f32 %v524, %v766
    %768 = vmatprep.mubr.f32.mxu0 0.0
    %769 = vmatmul.mubr.f32.gmra.mxu0 %v234
    %v770 = vpop.f32.mrf.mxu0
    %v771 = vadd.f32 %v520, %v770
    %v772 = vpop.f32.mrf.mxu0
    %v773 = vadd.f32 %v524, %v772
    %774 = vmatprep.mubr.f32.mxu0 0.0
    %775 = vmatmul.mubr.f32.gmra.mxu0 %v237
    %v776 = vpop.f32.mrf.mxu0
    %v777 = vadd.f32 %v520, %v776
    %v778 = vpop.f32.mrf.mxu0
    %v779 = vadd.f32 %v524, %v778
    %780 = vdwg.mxu0
    %781 = vst [vmem:[#allocation3] sm:$0xff] %v622
    %782 = vst [vmem:[#allocation3 + $0x8] sm:$0xff] %v624
    %783 = vst [vmem:[#allocation3 + $0x10] sm:$0xff] %v735
    %784 = vst [vmem:[#allocation3 + $0x18] sm:$0xff] %v737
    %785 = vst [vmem:[#allocation3 + $0x20] sm:$0xff] %v628
    %786 = vst [vmem:[#allocation3 + $0x28] sm:$0xff] %v630
    %787 = vst [vmem:[#allocation3 + $0x30] sm:$0xff] %v741
    %788 = vst [vmem:[#allocation3 + $0x38] sm:$0xff] %v743
    %789 = vst [vmem:[#allocation3 + $0x40] sm:$0xff] %v634
    %790 = vst [vmem:[#allocation3 + $0x48] sm:$0xff] %v636
    %791 = vst [vmem:[#allocation3 + $0x50] sm:$0xff] %v747
    %792 = vst [vmem:[#allocation3 + $0x58] sm:$0xff] %v749
    %793 = vst [vmem:[#allocation3 + $0x60] sm:$0xff] %v640
    %794 = vst [vmem:[#allocation3 + $0x68] sm:$0xff] %v642
    %795 = vst [vmem:[#allocation3 + $0x70] sm:$0xff] %v753
    %796 = vst [vmem:[#allocation3 + $0x78] sm:$0xff] %v755
    %797 = vst [vmem:[#allocation3 + $0x80] sm:$0xff] %v646
    %798 = vst [vmem:[#allocation3 + $0x88] sm:$0xff] %v648
    %799 = vst [vmem:[#allocation3 + $0x90] sm:$0xff] %v759
    %800 = vst [vmem:[#allocation3 + $0x98] sm:$0xff] %v761
    %801 = vst [vmem:[#allocation3 + $0xa0] sm:$0xff] %v652
    %802 = vst [vmem:[#allocation3 + $0xa8] sm:$0xff] %v654
    %803 = vst [vmem:[#allocation3 + $0xb0] sm:$0xff] %v765
    %804 = vst [vmem:[#allocation3 + $0xb8] sm:$0xff] %v767
    %805 = vst [vmem:[#allocation3 + $0xc0] sm:$0xff] %v658
    %806 = vst [vmem:[#allocation3 + $0xc8] sm:$0xff] %v660
    %807 = vst [vmem:[#allocation3 + $0xd0] sm:$0xff] %v771
    %808 = vst [vmem:[#allocation3 + $0xd8] sm:$0xff] %v773
    %809 = vst [vmem:[#allocation3 + $0xe0] sm:$0xff] %v664
    %810 = vst [vmem:[#allocation3 + $0xe8] sm:$0xff] %v666
    %811 = vst [vmem:[#allocation3 + $0xf0] sm:$0xff] %v777
    %812 = vst [vmem:[#allocation3 + $0xf8] sm:$0xff] %v779
    %v813 = vld [vmem:[#allocation2] sm:$0xff]
    %v814 = vld [vmem:[#allocation2 + $0x8] sm:$0xff]
    %v815 = vld [vmem:[#allocation2 + $0x10] sm:$0xff]
    %v816 = vld [vmem:[#allocation2 + $0x18] sm:$0xff]
    %v817 = vld [vmem:[#allocation6] sm:$0xff]
    %v818 = vld [vmem:[#allocation6 + $0x8] sm:$0xff]
    %v819 = vld [vmem:[#allocation6 + $0x10] sm:$0xff]
    %v820 = vld [vmem:[#allocation6 + $0x18] sm:$0xff]
    %v821 = vld [vmem:[#allocation6 + $0x20] sm:$0xff]
    %v822 = vld [vmem:[#allocation6 + $0x28] sm:$0xff]
    %v823 = vld [vmem:[#allocation6 + $0x30] sm:$0xff]
    %v824 = vld [vmem:[#allocation6 + $0x38] sm:$0xff]
    %v825 = vld [vmem:[#allocation6 + $0x40] sm:$0xff]
    %v826 = vld [vmem:[#allocation6 + $0x48] sm:$0xff]
    %v827 = vld [vmem:[#allocation6 + $0x50] sm:$0xff]
    %v828 = vld [vmem:[#allocation6 + $0x58] sm:$0xff]
    %v829 = vld [vmem:[#allocation6 + $0x60] sm:$0xff]
    %v830 = vld [vmem:[#allocation6 + $0x68] sm:$0xff]
    %v831 = vld [vmem:[#allocation6 + $0x70] sm:$0xff]
    %v832 = vld [vmem:[#allocation6 + $0x78] sm:$0xff]
    %v833 = vld [vmem:[#allocation6 + $0x80] sm:$0xff]
    %v834 = vld [vmem:[#allocation6 + $0x88] sm:$0xff]
    %v835 = vld [vmem:[#allocation6 + $0x90] sm:$0xff]
    %v836 = vld [vmem:[#allocation6 + $0x98] sm:$0xff]
    %v837 = vld [vmem:[#allocation6 + $0xa0] sm:$0xff]
    %v838 = vld [vmem:[#allocation6 + $0xa8] sm:$0xff]
    %v839 = vld [vmem:[#allocation6 + $0xb0] sm:$0xff]
    %v840 = vld [vmem:[#allocation6 + $0xb8] sm:$0xff]
    %v841 = vld [vmem:[#allocation6 + $0xc0] sm:$0xff]
    %v842 = vld [vmem:[#allocation6 + $0xc8] sm:$0xff]
    %v843 = vld [vmem:[#allocation6 + $0xd0] sm:$0xff]
    %v844 = vld [vmem:[#allocation6 + $0xd8] sm:$0xff]
    %v845 = vld [vmem:[#allocation6 + $0xe0] sm:$0xff]
    %v846 = vld [vmem:[#allocation6 + $0xe8] sm:$0xff]
    %v847 = vld [vmem:[#allocation6 + $0xf0] sm:$0xff]
    %v848 = vld [vmem:[#allocation6 + $0xf8] sm:$0xff]
    %v881 = vunpack.c.l.b16 %v817
    %v882 = vunpack.c.h.b16 %v817
    %v883 = vunpack.c.l.b16 %v818
    %v884 = vunpack.c.h.b16 %v818
    %v885 = vunpack.c.l.b16 %v819
    %v886 = vunpack.c.h.b16 %v819
    %v887 = vunpack.c.l.b16 %v820
    %v888 = vunpack.c.h.b16 %v820
    %v889 = vunpack.c.l.b16 %v821
    %v890 = vunpack.c.h.b16 %v821
    %v891 = vunpack.c.l.b16 %v822
    %v892 = vunpack.c.h.b16 %v822
    %v893 = vunpack.c.l.b16 %v823
    %v894 = vunpack.c.h.b16 %v823
    %v895 = vunpack.c.l.b16 %v824
    %v896 = vunpack.c.h.b16 %v824
    %v897 = vunpack.c.l.b16 %v825
    %v898 = vunpack.c.h.b16 %v825
    %v899 = vunpack.c.l.b16 %v826
    %v900 = vunpack.c.h.b16 %v826
    %v901 = vunpack.c.l.b16 %v827
    %v902 = vunpack.c.h.b16 %v827
    %v903 = vunpack.c.l.b16 %v828
    %v904 = vunpack.c.h.b16 %v828
    %v905 = vunpack.c.l.b16 %v829
    %v906 = vunpack.c.h.b16 %v829
    %v907 = vunpack.c.l.b16 %v830
    %v908 = vunpack.c.h.b16 %v830
    %v909 = vunpack.c.l.b16 %v831
    %v910 = vunpack.c.h.b16 %v831
    %v911 = vunpack.c.l.b16 %v832
    %v912 = vunpack.c.h.b16 %v832
    %v913 = vunpack.c.l.b16 %v833
    %v914 = vunpack.c.h.b16 %v833
    %v915 = vunpack.c.l.b16 %v834
    %v916 = vunpack.c.h.b16 %v834
    %v917 = vunpack.c.l.b16 %v835
    %v918 = vunpack.c.h.b16 %v835
    %v919 = vunpack.c.l.b16 %v836
    %v920 = vunpack.c.h.b16 %v836
    %v921 = vunpack.c.l.b16 %v837
    %v922 = vunpack.c.h.b16 %v837
    %v923 = vunpack.c.l.b16 %v838
    %v924 = vunpack.c.h.b16 %v838
    %v925 = vunpack.c.l.b16 %v839
    %v926 = vunpack.c.h.b16 %v839
    %v927 = vunpack.c.l.b16 %v840
    %v928 = vunpack.c.h.b16 %v840
    %v929 = vunpack.c.l.b16 %v841
    %v930 = vunpack.c.h.b16 %v841
    %v931 = vunpack.c.l.b16 %v842
    %v932 = vunpack.c.h.b16 %v842
    %v933 = vunpack.c.l.b16 %v843
    %v934 = vunpack.c.h.b16 %v843
    %v935 = vunpack.c.l.b16 %v844
    %v936 = vunpack.c.h.b16 %v844
    %v937 = vunpack.c.l.b16 %v845
    %v938 = vunpack.c.h.b16 %v845
    %v939 = vunpack.c.l.b16 %v846
    %v940 = vunpack.c.h.b16 %v846
    %v941 = vunpack.c.l.b16 %v847
    %v942 = vunpack.c.h.b16 %v847
    %v943 = vunpack.c.l.b16 %v848
    %v944 = vunpack.c.h.b16 %v848
    %v945 = vpack.c.b16 %v885, %v881
    %v946 = vpack.c.b16 %v886, %v882
    %v947 = vpack.c.b16 %v887, %v883
    %v948 = vpack.c.b16 %v888, %v884
    %v949 = vpack.c.b16 %v893, %v889
    %v950 = vpack.c.b16 %v894, %v890
    %v951 = vpack.c.b16 %v895, %v891
    %v952 = vpack.c.b16 %v896, %v892
    %v953 = vpack.c.b16 %v901, %v897
    %v954 = vpack.c.b16 %v902, %v898
    %v955 = vpack.c.b16 %v903, %v899
    %v956 = vpack.c.b16 %v904, %v900
    %v957 = vpack.c.b16 %v909, %v905
    %v958 = vpack.c.b16 %v910, %v906
    %v959 = vpack.c.b16 %v911, %v907
    %v960 = vpack.c.b16 %v912, %v908
    %v961 = vpack.c.b16 %v917, %v913
    %v962 = vpack.c.b16 %v918, %v914
    %v963 = vpack.c.b16 %v919, %v915
    %v964 = vpack.c.b16 %v920, %v916
    %v965 = vpack.c.b16 %v925, %v921
    %v966 = vpack.c.b16 %v926, %v922
    %v967 = vpack.c.b16 %v927, %v923
    %v968 = vpack.c.b16 %v928, %v924
    %v969 = vpack.c.b16 %v933, %v929
    %v970 = vpack.c.b16 %v934, %v930
    %v971 = vpack.c.b16 %v935, %v931
    %v972 = vpack.c.b16 %v936, %v932
    %v973 = vpack.c.b16 %v941, %v937
    %v974 = vpack.c.b16 %v942, %v938
    %v975 = vpack.c.b16 %v943, %v939
    %v976 = vpack.c.b16 %v944, %v940
    %1009 = vmatprep.subr.bf16.mxu0 %v974
    %1010 = vmatpush1.bf16.msra.mxu0 %v973
    %1011 = vmatprep.subr.bf16.mxu0 %v970
    %1012 = vmatpush1.bf16.msra.mxu0 %v969
    %1013 = vmatprep.subr.bf16.mxu0 %v966
    %1014 = vmatpush1.bf16.msra.mxu0 %v965
    %1015 = vmatprep.subr.bf16.mxu0 %v962
    %1016 = vmatpush1.bf16.msra.mxu0 %v961
    %1017 = vmatprep.subr.bf16.mxu0 %v958
    %1018 = vmatpush1.bf16.msra.mxu0 %v957
    %1019 = vmatprep.subr.bf16.mxu0 %v954
    %1020 = vmatpush1.bf16.msra.mxu0 %v953
    %1021 = vmatprep.subr.bf16.mxu0 %v950
    %1022 = vmatpush1.bf16.msra.mxu0 %v949
    %1023 = vmatprep.subr.bf16.mxu0 %v946
    %1024 = vmatpush1.bf16.msra.mxu0 %v945
    %1025 = vmatprep.subr.bf16.mxu0 0
    %1026 = vmatpush2.bf16.msra.mxu0 0
    %1027 = vmatprep.subr.bf16.mxu0 0
    %1028 = vmatpush2.bf16.msra.mxu0 0
    %1029 = vmatprep.subr.bf16.mxu0 0
    %1030 = vmatpush2.bf16.msra.mxu0 0
    %1031 = vmatprep.subr.bf16.mxu0 0
    %1032 = vmatpush2.bf16.msra.mxu0 0
    %1033 = vmatprep.subr.bf16.mxu0 0
    %1034 = vmatpush2.bf16.msra.mxu0 0
    %1035 = vmatprep.subr.bf16.mxu0 0
    %1036 = vmatpush2.bf16.msra.mxu0 0
    %1037 = vmatprep.subr.bf16.mxu0 0
    %1038 = vmatpush2.bf16.msra.mxu0 0
    %1039 = vmatprep.subr.bf16.mxu0 0
    %1040 = vmatpush2.bf16.msra.mxu0 0
    %1041 = vmatprep.mubr.bf16.mxu0 0
    %1042 = vmatmul.mubr.bf16.gmra.mxu0 0
    %v1043 = vpop.f32.mrf.mxu0
    %v1044 = vadd.f32 0.0, %v1043
    %v1045 = vpop.f32.mrf.mxu0
    %v1046 = vadd.f32 0.0, %v1045
    %v1047 = vpop.f32.mrf.mxu0
    %v1048 = vpop.f32.mrf.mxu0
    %1049 = vdwg.mxu0
    %1050 = vmatprep.subr.bf16.mxu0 %v976
    %1051 = vmatpush1.bf16.msra.mxu0 %v975
    %1052 = vmatprep.subr.bf16.mxu0 %v972
    %1053 = vmatpush1.bf16.msra.mxu0 %v971
    %1054 = vmatprep.subr.bf16.mxu0 %v968
    %1055 = vmatpush1.bf16.msra.mxu0 %v967
    %1056 = vmatprep.subr.bf16.mxu0 %v964
    %1057 = vmatpush1.bf16.msra.mxu0 %v963
    %1058 = vmatprep.subr.bf16.mxu0 %v960
    %1059 = vmatpush1.bf16.msra.mxu0 %v959
    %1060 = vmatprep.subr.bf16.mxu0 %v956
    %1061 = vmatpush1.bf16.msra.mxu0 %v955
    %1062 = vmatprep.subr.bf16.mxu0 %v952
    %1063 = vmatpush1.bf16.msra.mxu0 %v951
    %1064 = vmatprep.subr.bf16.mxu0 %v948
    %1065 = vmatpush1.bf16.msra.mxu0 %v947
    %1066 = vmatprep.subr.bf16.mxu0 0
    %1067 = vmatpush2.bf16.msra.mxu0 0
    %1068 = vmatprep.subr.bf16.mxu0 0
    %1069 = vmatpush2.bf16.msra.mxu0 0
    %1070 = vmatprep.subr.bf16.mxu0 0
    %1071 = vmatpush2.bf16.msra.mxu0 0
    %1072 = vmatprep.subr.bf16.mxu0 0
    %1073 = vmatpush2.bf16.msra.mxu0 0
    %1074 = vmatprep.subr.bf16.mxu0 0
    %1075 = vmatpush2.bf16.msra.mxu0 0
    %1076 = vmatprep.subr.bf16.mxu0 0
    %1077 = vmatpush2.bf16.msra.mxu0 0
    %1078 = vmatprep.subr.bf16.mxu0 0
    %1079 = vmatpush2.bf16.msra.mxu0 0
    %1080 = vmatprep.subr.bf16.mxu0 0
    %1081 = vmatpush2.bf16.msra.mxu0 0
    %1082 = vmatprep.mubr.bf16.mxu0 0
    %1083 = vmatmul.mubr.bf16.gmra.mxu0 0
    %v1084 = vpop.f32.mrf.mxu0
    %v1085 = vadd.f32 0.0, %v1084
    %v1086 = vpop.f32.mrf.mxu0
    %v1087 = vadd.f32 0.0, %v1086
    %v1088 = vpop.f32.mrf.mxu0
    %v1089 = vpop.f32.mrf.mxu0
    %1090 = vdwg.mxu0
    %v1091 = vadd.f32 %v813, %v1044
    %v1092 = vadd.f32 %v814, %v1046
    %v1093 = vadd.f32 %v815, %v1085
    %v1094 = vadd.f32 %v816, %v1087
    %v1095 = vxor.u32 %v1091, 2147483648
    %v1096 = vmul.f32 %v1095, 1.442695
    %v1097 = vpow.pop %v1096
    %v1098 = vadd.f32 %v1097, 1.0
    %v1099 = vrcp.pop %v1098
    %v1100 = vmul.f32 1.0, %v1099
    %v1101 = vxor.u32 %v1092, 2147483648
    %v1102 = vmul.f32 %v1101, 1.442695
    %v1103 = vpow.pop %v1102
    %v1104 = vadd.f32 %v1103, 1.0
    %v1105 = vrcp.pop %v1104
    %v1106 = vmul.f32 1.0, %v1105
    %v1107 = vtanh.pop %v1093
    %v1108 = vxor.u32 %v1094, 2147483648
    %v1109 = vmul.f32 %v1108, 1.442695
    %v1110 = vpow.pop %v1109
    %v1111 = vadd.f32 %v1110, 1.0
    %v1112 = vrcp.pop %v1111
    %v1113 = vmul.f32 1.0, %v1112
    %v1114 = vmul.f32 %v1106, 0.0
    %v1115 = vmul.f32 %v1100, %v1107
    %v1116 = vadd.f32 %v1114, %v1115
    %v1117 = vtanh.pop %v1116
    %v1118 = vmul.f32 %v1113, %v1117
    %1119 = vst [vmem:[#allocation4] sm:$0xff] %v1118
    %v1120 = vld [vmem:[#allocation3 + $0xe0] sm:$0xff]
    %v1121 = vld [vmem:[#allocation3 + $0xe8] sm:$0xff]
    %v1122 = vld [vmem:[#allocation3 + $0xf0] sm:$0xff]
    %v1123 = vld [vmem:[#allocation3 + $0xf8] sm:$0xff]
    %v1124 = vld [vmem:[#allocation10] sm:$0xff]
    %v1125 = vld [vmem:[#allocation10 + $0x8] sm:$0xff]
    %v1126 = vld [vmem:[#allocation10 + $0x10] sm:$0xff]
    %v1127 = vld [vmem:[#allocation10 + $0x18] sm:$0xff]
    %v1128 = vld [vmem:[#allocation10 + $0x20] sm:$0xff]
    %v1129 = vld [vmem:[#allocation10 + $0x28] sm:$0xff]
    %v1130 = vld [vmem:[#allocation10 + $0x30] sm:$0xff]
    %v1131 = vld [vmem:[#allocation10 + $0x38] sm:$0xff]
    %v1132 = vld [vmem:[#allocation10 + $0x40] sm:$0xff]
    %v1133 = vld [vmem:[#allocation10 + $0x48] sm:$0xff]
    %v1134 = vld [vmem:[#allocation10 + $0x50] sm:$0xff]
    %v1135 = vld [vmem:[#allocation10 + $0x58] sm:$0xff]
    %v1136 = vld [vmem:[#allocation10 + $0x60] sm:$0xff]
    %v1137 = vld [vmem:[#allocation10 + $0x68] sm:$0xff]
    %v1138 = vld [vmem:[#allocation10 + $0x70] sm:$0xff]
    %v1139 = vld [vmem:[#allocation10 + $0x78] sm:$0xff]
    %v1140 = vld [vmem:[#allocation10 + $0x80] sm:$0xff]
    %v1141 = vld [vmem:[#allocation10 + $0x88] sm:$0xff]
    %v1142 = vld [vmem:[#allocation10 + $0x90] sm:$0xff]
    %v1143 = vld [vmem:[#allocation10 + $0x98] sm:$0xff]
    %v1144 = vld [vmem:[#allocation10 + $0xa0] sm:$0xff]
    %v1145 = vld [vmem:[#allocation10 + $0xa8] sm:$0xff]
    %v1146 = vld [vmem:[#allocation10 + $0xb0] sm:$0xff]
    %v1147 = vld [vmem:[#allocation10 + $0xb8] sm:$0xff]
    %v1148 = vld [vmem:[#allocation10 + $0xc0] sm:$0xff]
    %v1149 = vld [vmem:[#allocation10 + $0xc8] sm:$0xff]
    %v1150 = vld [vmem:[#allocation10 + $0xd0] sm:$0xff]
    %v1151 = vld [vmem:[#allocation10 + $0xd8] sm:$0xff]
    %v1152 = vld [vmem:[#allocation10 + $0xe0] sm:$0xff]
    %v1153 = vld [vmem:[#allocation10 + $0xe8] sm:$0xff]
    %v1154 = vld [vmem:[#allocation10 + $0xf0] sm:$0xff]
    %v1155 = vld [vmem:[#allocation10 + $0xf8] sm:$0xff]
    %v1188 = vunpack.c.l.b16 %v1124
    %v1189 = vunpack.c.h.b16 %v1124
    %v1190 = vunpack.c.l.b16 %v1125
    %v1191 = vunpack.c.h.b16 %v1125
    %v1192 = vunpack.c.l.b16 %v1126
    %v1193 = vunpack.c.h.b16 %v1126
    %v1194 = vunpack.c.l.b16 %v1127
    %v1195 = vunpack.c.h.b16 %v1127
    %v1196 = vunpack.c.l.b16 %v1128
    %v1197 = vunpack.c.h.b16 %v1128
    %v1198 = vunpack.c.l.b16 %v1129
    %v1199 = vunpack.c.h.b16 %v1129
    %v1200 = vunpack.c.l.b16 %v1130
    %v1201 = vunpack.c.h.b16 %v1130
    %v1202 = vunpack.c.l.b16 %v1131
    %v1203 = vunpack.c.h.b16 %v1131
    %v1204 = vunpack.c.l.b16 %v1132
    %v1205 = vunpack.c.h.b16 %v1132
    %v1206 = vunpack.c.l.b16 %v1133
    %v1207 = vunpack.c.h.b16 %v1133
    %v1208 = vunpack.c.l.b16 %v1134
    %v1209 = vunpack.c.h.b16 %v1134
    %v1210 = vunpack.c.l.b16 %v1135
    %v1211 = vunpack.c.h.b16 %v1135
    %v1212 = vunpack.c.l.b16 %v1136
    %v1213 = vunpack.c.h.b16 %v1136
    %v1214 = vunpack.c.l.b16 %v1137
    %v1215 = vunpack.c.h.b16 %v1137
    %v1216 = vunpack.c.l.b16 %v1138
    %v1217 = vunpack.c.h.b16 %v1138
    %v1218 = vunpack.c.l.b16 %v1139
    %v1219 = vunpack.c.h.b16 %v1139
    %v1220 = vunpack.c.l.b16 %v1140
    %v1221 = vunpack.c.h.b16 %v1140
    %v1222 = vunpack.c.l.b16 %v1141
    %v1223 = vunpack.c.h.b16 %v1141
    %v1224 = vunpack.c.l.b16 %v1142
    %v1225 = vunpack.c.h.b16 %v1142
    %v1226 = vunpack.c.l.b16 %v1143
    %v1227 = vunpack.c.h.b16 %v1143
    %v1228 = vunpack.c.l.b16 %v1144
    %v1229 = vunpack.c.h.b16 %v1144
    %v1230 = vunpack.c.l.b16 %v1145
    %v1231 = vunpack.c.h.b16 %v1145
    %v1232 = vunpack.c.l.b16 %v1146
    %v1233 = vunpack.c.h.b16 %v1146
    %v1234 = vunpack.c.l.b16 %v1147
    %v1235 = vunpack.c.h.b16 %v1147
    %v1236 = vunpack.c.l.b16 %v1148
    %v1237 = vunpack.c.h.b16 %v1148
    %v1238 = vunpack.c.l.b16 %v1149
    %v1239 = vunpack.c.h.b16 %v1149
    %v1240 = vunpack.c.l.b16 %v1150
    %v1241 = vunpack.c.h.b16 %v1150
    %v1242 = vunpack.c.l.b16 %v1151
    %v1243 = vunpack.c.h.b16 %v1151
    %v1244 = vunpack.c.l.b16 %v1152
    %v1245 = vunpack.c.h.b16 %v1152
    %v1246 = vunpack.c.l.b16 %v1153
    %v1247 = vunpack.c.h.b16 %v1153
    %v1248 = vunpack.c.l.b16 %v1154
    %v1249 = vunpack.c.h.b16 %v1154
    %v1250 = vunpack.c.l.b16 %v1155
    %v1251 = vunpack.c.h.b16 %v1155
    %v1252 = vpack.c.b16 %v1192, %v1188
    %v1253 = vpack.c.b16 %v1193, %v1189
    %v1254 = vpack.c.b16 %v1194, %v1190
    %v1255 = vpack.c.b16 %v1195, %v1191
    %v1256 = vpack.c.b16 %v1200, %v1196
    %v1257 = vpack.c.b16 %v1201, %v1197
    %v1258 = vpack.c.b16 %v1202, %v1198
    %v1259 = vpack.c.b16 %v1203, %v1199
    %v1260 = vpack.c.b16 %v1208, %v1204
    %v1261 = vpack.c.b16 %v1209, %v1205
    %v1262 = vpack.c.b16 %v1210, %v1206
    %v1263 = vpack.c.b16 %v1211, %v1207
    %v1264 = vpack.c.b16 %v1216, %v1212
    %v1265 = vpack.c.b16 %v1217, %v1213
    %v1266 = vpack.c.b16 %v1218, %v1214
    %v1267 = vpack.c.b16 %v1219, %v1215
    %v1268 = vpack.c.b16 %v1224, %v1220
    %v1269 = vpack.c.b16 %v1225, %v1221
    %v1270 = vpack.c.b16 %v1226, %v1222
    %v1271 = vpack.c.b16 %v1227, %v1223
    %v1272 = vpack.c.b16 %v1232, %v1228
    %v1273 = vpack.c.b16 %v1233, %v1229
    %v1274 = vpack.c.b16 %v1234, %v1230
    %v1275 = vpack.c.b16 %v1235, %v1231
    %v1276 = vpack.c.b16 %v1240, %v1236
    %v1277 = vpack.c.b16 %v1241, %v1237
    %v1278 = vpack.c.b16 %v1242, %v1238
    %v1279 = vpack.c.b16 %v1243, %v1239
    %v1280 = vpack.c.b16 %v1248, %v1244
    %v1281 = vpack.c.b16 %v1249, %v1245
    %v1282 = vpack.c.b16 %v1250, %v1246
    %v1283 = vpack.c.b16 %v1251, %v1247
    %1316 = vmatprep.subr.bf16.mxu0 %v1281
    %1317 = vmatpush1.bf16.msra.mxu0 %v1280
    %1318 = vmatprep.subr.bf16.mxu0 %v1277
    %1319 = vmatpush1.bf16.msra.mxu0 %v1276
    %1320 = vmatprep.subr.bf16.mxu0 %v1273
    %1321 = vmatpush1.bf16.msra.mxu0 %v1272
    %1322 = vmatprep.subr.bf16.mxu0 %v1269
    %1323 = vmatpush1.bf16.msra.mxu0 %v1268
    %1324 = vmatprep.subr.bf16.mxu0 %v1265
    %1325 = vmatpush1.bf16.msra.mxu0 %v1264
    %1326 = vmatprep.subr.bf16.mxu0 %v1261
    %1327 = vmatpush1.bf16.msra.mxu0 %v1260
    %1328 = vmatprep.subr.bf16.mxu0 %v1257
    %1329 = vmatpush1.bf16.msra.mxu0 %v1256
    %1330 = vmatprep.subr.bf16.mxu0 %v1253
    %1331 = vmatpush1.bf16.msra.mxu0 %v1252
    %1332 = vmatprep.subr.bf16.mxu0 0
    %1333 = vmatpush2.bf16.msra.mxu0 0
    %1334 = vmatprep.subr.bf16.mxu0 0
    %1335 = vmatpush2.bf16.msra.mxu0 0
    %1336 = vmatprep.subr.bf16.mxu0 0
    %1337 = vmatpush2.bf16.msra.mxu0 0
    %1338 = vmatprep.subr.bf16.mxu0 0
    %1339 = vmatpush2.bf16.msra.mxu0 0
    %1340 = vmatprep.subr.bf16.mxu0 0
    %1341 = vmatpush2.bf16.msra.mxu0 0
    %1342 = vmatprep.subr.bf16.mxu0 0
    %1343 = vmatpush2.bf16.msra.mxu0 0
    %1344 = vmatprep.subr.bf16.mxu0 0
    %1345 = vmatpush2.bf16.msra.mxu0 0
    %1346 = vmatprep.subr.bf16.mxu0 0
    %1347 = vmatpush2.bf16.msra.mxu0 0
    %1348 = vmatprep.mubr.bf16.mxu0 0
    %1349 = vmatmul.mubr.bf16.gmra.mxu0 0
    %v1350 = vpop.f32.mrf.mxu0
    %v1351 = vadd.f32 0.0, %v1350
    %v1352 = vpop.f32.mrf.mxu0
    %v1353 = vadd.f32 0.0, %v1352
    %v1354 = vpop.f32.mrf.mxu0
    %v1355 = vpop.f32.mrf.mxu0
    %1356 = vdwg.mxu0
    %1357 = vmatprep.subr.bf16.mxu0 %v1283
    %1358 = vmatpush1.bf16.msra.mxu0 %v1282
    %1359 = vmatprep.subr.bf16.mxu0 %v1279
    %1360 = vmatpush1.bf16.msra.mxu0 %v1278
    %1361 = vmatprep.subr.bf16.mxu0 %v1275
    %1362 = vmatpush1.bf16.msra.mxu0 %v1274
    %1363 = vmatprep.subr.bf16.mxu0 %v1271
    %1364 = vmatpush1.bf16.msra.mxu0 %v1270
    %1365 = vmatprep.subr.bf16.mxu0 %v1267
    %1366 = vmatpush1.bf16.msra.mxu0 %v1266
    %1367 = vmatprep.subr.bf16.mxu0 %v1263
    %1368 = vmatpush1.bf16.msra.mxu0 %v1262
    %1369 = vmatprep.subr.bf16.mxu0 %v1259
    %1370 = vmatpush1.bf16.msra.mxu0 %v1258
    %1371 = vmatprep.subr.bf16.mxu0 %v1255
    %1372 = vmatpush1.bf16.msra.mxu0 %v1254
    %1373 = vmatprep.subr.bf16.mxu0 0
    %1374 = vmatpush2.bf16.msra.mxu0 0
    %1375 = vmatprep.subr.bf16.mxu0 0
    %1376 = vmatpush2.bf16.msra.mxu0 0
    %1377 = vmatprep.subr.bf16.mxu0 0
    %1378 = vmatpush2.bf16.msra.mxu0 0
    %1379 = vmatprep.subr.bf16.mxu0 0
    %1380 = vmatpush2.bf16.msra.mxu0 0
    %1381 = vmatprep.subr.bf16.mxu0 0
    %1382 = vmatpush2.bf16.msra.mxu0 0
    %1383 = vmatprep.subr.bf16.mxu0 0
    %1384 = vmatpush2.bf16.msra.mxu0 0
    %1385 = vmatprep.subr.bf16.mxu0 0
    %1386 = vmatpush2.bf16.msra.mxu0 0
    %1387 = vmatprep.subr.bf16.mxu0 0
    %1388 = vmatpush2.bf16.msra.mxu0 0
    %1389 = vmatprep.mubr.bf16.mxu0 0
    %1390 = vmatmul.mubr.bf16.gmra.mxu0 0
    %v1391 = vpop.f32.mrf.mxu0
    %v1392 = vadd.f32 0.0, %v1391
    %v1393 = vpop.f32.mrf.mxu0
    %v1394 = vadd.f32 0.0, %v1393
    %v1395 = vpop.f32.mrf.mxu0
    %v1396 = vpop.f32.mrf.mxu0
    %1397 = vdwg.mxu0
    %v1398 = vadd.f32 %v1120, %v1351
    %v1399 = vadd.f32 %v1121, %v1353
    %v1400 = vadd.f32 %v1122, %v1392
    %v1401 = vadd.f32 %v1123, %v1394
    %v1402 = vxor.u32 %v1398, 2147483648
    %v1403 = vmul.f32 %v1402, 1.442695
    %v1404 = vpow.pop %v1403
    %v1405 = vadd.f32 %v1404, 1.0
    %v1406 = vrcp.pop %v1405
    %v1407 = vmul.f32 1.0, %v1406
    %v1408 = vxor.u32 %v1399, 2147483648
    %v1409 = vmul.f32 %v1408, 1.442695
    %v1410 = vpow.pop %v1409
    %v1411 = vadd.f32 %v1410, 1.0
    %v1412 = vrcp.pop %v1411
    %v1413 = vmul.f32 1.0, %v1412
    %v1414 = vtanh.pop %v1400
    %v1415 = vxor.u32 %v1401, 2147483648
    %v1416 = vmul.f32 %v1415, 1.442695
    %v1417 = vpow.pop %v1416
    %v1418 = vadd.f32 %v1417, 1.0
    %v1419 = vrcp.pop %v1418
    %v1420 = vmul.f32 1.0, %v1419
    %v1421 = vmul.f32 %v1413, 0.0
    %v1422 = vmul.f32 %v1407, %v1414
    %v1423 = vadd.f32 %v1421, %v1422
    %v1424 = vtanh.pop %v1423
    %v1425 = vmul.f32 %v1420, %v1424
    %1426 = vst [vmem:[#allocation4 + $0x78] sm:$0xff] %v1425
    %v1427 = vld [vmem:[#allocation2 + $0x20] sm:$0xff]
    %v1428 = vld [vmem:[#allocation2 + $0x28] sm:$0xff]
    %v1429 = vld [vmem:[#allocation2 + $0x30] sm:$0xff]
    %v1430 = vld [vmem:[#allocation2 + $0x38] sm:$0xff]
    %v1431 = vpack.c.bf16 %v1118, %v1118
    %v1432 = vld [vmem:[#allocation6] sm:$0xff]
    %v1433 = vld [vmem:[#allocation6 + $0x8] sm:$0xff]
    %v1434 = vld [vmem:[#allocation6 + $0x10] sm:$0xff]
    %v1435 = vld [vmem:[#allocation6 + $0x18] sm:$0xff]
    %v1436 = vld [vmem:[#allocation6 + $0x20] sm:$0xff]
    %v1437 = vld [vmem:[#allocation6 + $0x28] sm:$0xff]
    %v1438 = vld [vmem:[#allocation6 + $0x30] sm:$0xff]
    %v1439 = vld [vmem:[#allocation6 + $0x38] sm:$0xff]
    %v1440 = vld [vmem:[#allocation6 + $0x40] sm:$0xff]
    %v1441 = vld [vmem:[#allocation6 + $0x48] sm:$0xff]
    %v1442 = vld [vmem:[#allocation6 + $0x50] sm:$0xff]
    %v1443 = vld [vmem:[#allocation6 + $0x58] sm:$0xff]
    %v1444 = vld [vmem:[#allocation6 + $0x60] sm:$0xff]
    %v1445 = vld [vmem:[#allocation6 + $0x68] sm:$0xff]
    %v1446 = vld [vmem:[#allocation6 + $0x70] sm:$0xff]
    %v1447 = vld [vmem:[#allocation6 + $0x78] sm:$0xff]
    %v1448 = vld [vmem:[#allocation6 + $0x80] sm:$0xff]
    %v1449 = vld [vmem:[#allocation6 + $0x88] sm:$0xff]
    %v1450 = vld [vmem:[#allocation6 + $0x90] sm:$0xff]
    %v1451 = vld [vmem:[#allocation6 + $0x98] sm:$0xff]
    %v1452 = vld [vmem:[#allocation6 + $0xa0] sm:$0xff]
    %v1453 = vld [vmem:[#allocation6 + $0xa8] sm:$0xff]
    %v1454 = vld [vmem:[#allocation6 + $0xb0] sm:$0xff]
    %v1455 = vld [vmem:[#allocation6 + $0xb8] sm:$0xff]
    %v1456 = vld [vmem:[#allocation6 + $0xc0] sm:$0xff]
    %v1457 = vld [vmem:[#allocation6 + $0xc8] sm:$0xff]
    %v1458 = vld [vmem:[#allocation6 + $0xd0] sm:$0xff]
    %v1459 = vld [vmem:[#allocation6 + $0xd8] sm:$0xff]
    %v1460 = vld [vmem:[#allocation6 + $0xe0] sm:$0xff]
    %v1461 = vld [vmem:[#allocation6 + $0xe8] sm:$0xff]
    %v1462 = vld [vmem:[#allocation6 + $0xf0] sm:$0xff]
    %v1463 = vld [vmem:[#allocation6 + $0xf8] sm:$0xff]
    %v1496 = vunpack.c.l.b16 %v1432
    %v1497 = vunpack.c.h.b16 %v1432
    %v1498 = vunpack.c.l.b16 %v1433
    %v1499 = vunpack.c.h.b16 %v1433
    %v1500 = vunpack.c.l.b16 %v1434
    %v1501 = vunpack.c.h.b16 %v1434
    %v1502 = vunpack.c.l.b16 %v1435
    %v1503 = vunpack.c.h.b16 %v1435
    %v1504 = vunpack.c.l.b16 %v1436
    %v1505 = vunpack.c.h.b16 %v1436
    %v1506 = vunpack.c.l.b16 %v1437
    %v1507 = vunpack.c.h.b16 %v1437
    %v1508 = vunpack.c.l.b16 %v1438
    %v1509 = vunpack.c.h.b16 %v1438
    %v1510 = vunpack.c.l.b16 %v1439
    %v1511 = vunpack.c.h.b16 %v1439
    %v1512 = vunpack.c.l.b16 %v1440
    %v1513 = vunpack.c.h.b16 %v1440
    %v1514 = vunpack.c.l.b16 %v1441
    %v1515 = vunpack.c.h.b16 %v1441
    %v1516 = vunpack.c.l.b16 %v1442
    %v1517 = vunpack.c.h.b16 %v1442
    %v1518 = vunpack.c.l.b16 %v1443
    %v1519 = vunpack.c.h.b16 %v1443
    %v1520 = vunpack.c.l.b16 %v1444
    %v1521 = vunpack.c.h.b16 %v1444
    %v1522 = vunpack.c.l.b16 %v1445
    %v1523 = vunpack.c.h.b16 %v1445
    %v1524 = vunpack.c.l.b16 %v1446
    %v1525 = vunpack.c.h.b16 %v1446
    %v1526 = vunpack.c.l.b16 %v1447
    %v1527 = vunpack.c.h.b16 %v1447
    %v1528 = vunpack.c.l.b16 %v1448
    %v1529 = vunpack.c.h.b16 %v1448
    %v1530 = vunpack.c.l.b16 %v1449
    %v1531 = vunpack.c.h.b16 %v1449
    %v1532 = vunpack.c.l.b16 %v1450
    %v1533 = vunpack.c.h.b16 %v1450
    %v1534 = vunpack.c.l.b16 %v1451
    %v1535 = vunpack.c.h.b16 %v1451
    %v1536 = vunpack.c.l.b16 %v1452
    %v1537 = vunpack.c.h.b16 %v1452
    %v1538 = vunpack.c.l.b16 %v1453
    %v1539 = vunpack.c.h.b16 %v1453
    %v1540 = vunpack.c.l.b16 %v1454
    %v1541 = vunpack.c.h.b16 %v1454
    %v1542 = vunpack.c.l.b16 %v1455
    %v1543 = vunpack.c.h.b16 %v1455
    %v1544 = vunpack.c.l.b16 %v1456
    %v1545 = vunpack.c.h.b16 %v1456
    %v1546 = vunpack.c.l.b16 %v1457
    %v1547 = vunpack.c.h.b16 %v1457
    %v1548 = vunpack.c.l.b16 %v1458
    %v1549 = vunpack.c.h.b16 %v1458
    %v1550 = vunpack.c.l.b16 %v1459
    %v1551 = vunpack.c.h.b16 %v1459
    %v1552 = vunpack.c.l.b16 %v1460
    %v1553 = vunpack.c.h.b16 %v1460
    %v1554 = vunpack.c.l.b16 %v1461
    %v1555 = vunpack.c.h.b16 %v1461
    %v1556 = vunpack.c.l.b16 %v1462
    %v1557 = vunpack.c.h.b16 %v1462
    %v1558 = vunpack.c.l.b16 %v1463
    %v1559 = vunpack.c.h.b16 %v1463
    %v1560 = vpack.c.b16 %v1500, %v1496
    %v1561 = vpack.c.b16 %v1501, %v1497
    %v1562 = vpack.c.b16 %v1502, %v1498
    %v1563 = vpack.c.b16 %v1503, %v1499
    %v1564 = vpack.c.b16 %v1508, %v1504
    %v1565 = vpack.c.b16 %v1509, %v1505
    %v1566 = vpack.c.b16 %v1510, %v1506
    %v1567 = vpack.c.b16 %v1511, %v1507
    %v1568 = vpack.c.b16 %v1516, %v1512
    %v1569 = vpack.c.b16 %v1517, %v1513
    %v1570 = vpack.c.b16 %v1518, %v1514
    %v1571 = vpack.c.b16 %v1519, %v1515
    %v1572 = vpack.c.b16 %v1524, %v1520
    %v1573 = vpack.c.b16 %v1525, %v1521
    %v1574 = vpack.c.b16 %v1526, %v1522
    %v1575 = vpack.c.b16 %v1527, %v1523
    %v1576 = vpack.c.b16 %v1532, %v1528
    %v1577 = vpack.c.b16 %v1533, %v1529
    %v1578 = vpack.c.b16 %v1534, %v1530
    %v1579 = vpack.c.b16 %v1535, %v1531
    %v1580 = vpack.c.b16 %v1540, %v1536
    %v1581 = vpack.c.b16 %v1541, %v1537
    %v1582 = vpack.c.b16 %v1542, %v1538
    %v1583 = vpack.c.b16 %v1543, %v1539
    %v1584 = vpack.c.b16 %v1548, %v1544
    %v1585 = vpack.c.b16 %v1549, %v1545
    %v1586 = vpack.c.b16 %v1550, %v1546
    %v1587 = vpack.c.b16 %v1551, %v1547
    %v1588 = vpack.c.b16 %v1556, %v1552
    %v1589 = vpack.c.b16 %v1557, %v1553
    %v1590 = vpack.c.b16 %v1558, %v1554
    %v1591 = vpack.c.b16 %v1559, %v1555
    %1624 = vmatprep.subr.bf16.mxu0 %v1589
    %1625 = vmatpush1.bf16.msra.mxu0 %v1588
    %1626 = vmatprep.subr.bf16.mxu0 %v1585
    %1627 = vmatpush1.bf16.msra.mxu0 %v1584
    %1628 = vmatprep.subr.bf16.mxu0 %v1581
    %1629 = vmatpush1.bf16.msra.mxu0 %v1580
    %1630 = vmatprep.subr.bf16.mxu0 %v1577
    %1631 = vmatpush1.bf16.msra.mxu0 %v1576
    %1632 = vmatprep.subr.bf16.mxu0 %v1573
    %1633 = vmatpush1.bf16.msra.mxu0 %v1572
    %1634 = vmatprep.subr.bf16.mxu0 %v1569
    %1635 = vmatpush1.bf16.msra.mxu0 %v1568
    %1636 = vmatprep.subr.bf16.mxu0 %v1565
    %1637 = vmatpush1.bf16.msra.mxu0 %v1564
    %1638 = vmatprep.subr.bf16.mxu0 %v1561
    %1639 = vmatpush1.bf16.msra.mxu0 %v1560
    %1640 = vmatprep.subr.bf16.mxu0 0
    %1641 = vmatpush2.bf16.msra.mxu0 0
    %1642 = vmatprep.subr.bf16.mxu0 0
    %1643 = vmatpush2.bf16.msra.mxu0 0
    %1644 = vmatprep.subr.bf16.mxu0 0
    %1645 = vmatpush2.bf16.msra.mxu0 0
    %1646 = vmatprep.subr.bf16.mxu0 0
    %1647 = vmatpush2.bf16.msra.mxu0 0
    %1648 = vmatprep.subr.bf16.mxu0 0
    %1649 = vmatpush2.bf16.msra.mxu0 0
    %1650 = vmatprep.subr.bf16.mxu0 0
    %1651 = vmatpush2.bf16.msra.mxu0 0
    %1652 = vmatprep.subr.bf16.mxu0 0
    %1653 = vmatpush2.bf16.msra.mxu0 0
    %1654 = vmatprep.subr.bf16.mxu0 0
    %1655 = vmatpush2.bf16.msra.mxu0 0
    %1656 = vmatprep.mubr.bf16.mxu0 0
    %1657 = vmatmul.mubr.bf16.gmra.mxu0 %v1431
    %v1658 = vpop.f32.mrf.mxu0
    %v1659 = vadd.f32 0.0, %v1658
    %v1660 = vpop.f32.mrf.mxu0
    %v1661 = vadd.f32 0.0, %v1660
    %v1662 = vpop.f32.mrf.mxu0
    %v1663 = vpop.f32.mrf.mxu0
    %1664 = vdwg.mxu0
    %1665 = vmatprep.subr.bf16.mxu0 %v1591
    %1666 = vmatpush1.bf16.msra.mxu0 %v1590
    %1667 = vmatprep.subr.bf16.mxu0 %v1587
    %1668 = vmatpush1.bf16.msra.mxu0 %v1586
    %1669 = vmatprep.subr.bf16.mxu0 %v1583
    %1670 = vmatpush1.bf16.msra.mxu0 %v1582
    %1671 = vmatprep.subr.bf16.mxu0 %v1579
    %1672 = vmatpush1.bf16.msra.mxu0 %v1578
    %1673 = vmatprep.subr.bf16.mxu0 %v1575
    %1674 = vmatpush1.bf16.msra.mxu0 %v1574
    %1675 = vmatprep.subr.bf16.mxu0 %v1571
    %1676 = vmatpush1.bf16.msra.mxu0 %v1570
    %1677 = vmatprep.subr.bf16.mxu0 %v1567
    %1678 = vmatpush1.bf16.msra.mxu0 %v1566
    %1679 = vmatprep.subr.bf16.mxu0 %v1563
    %1680 = vmatpush1.bf16.msra.mxu0 %v1562
    %1681 = vmatprep.subr.bf16.mxu0 0
    %1682 = vmatpush2.bf16.msra.mxu0 0
    %1683 = vmatprep.subr.bf16.mxu0 0
    %1684 = vmatpush2.bf16.msra.mxu0 0
    %1685 = vmatprep.subr.bf16.mxu0 0
    %1686 = vmatpush2.bf16.msra.mxu0 0
    %1687 = vmatprep.subr.bf16.mxu0 0
    %1688 = vmatpush2.bf16.msra.mxu0 0
    %1689 = vmatprep.subr.bf16.mxu0 0
    %1690 = vmatpush2.bf16.msra.mxu0 0
    %1691 = vmatprep.subr.bf16.mxu0 0
    %1692 = vmatpush2.bf16.msra.mxu0 0
    %1693 = vmatprep.subr.bf16.mxu0 0
    %1694 = vmatpush2.bf16.msra.mxu0 0
    %1695 = vmatprep.subr.bf16.mxu0 0
    %1696 = vmatpush2.bf16.msra.mxu0 0
    %1697 = vmatprep.mubr.bf16.mxu0 0
    %1698 = vmatmul.mubr.bf16.gmra.mxu0 %v1431
    %v1699 = vpop.f32.mrf.mxu0
    %v1700 = vadd.f32 0.0, %v1699
    %v1701 = vpop.f32.mrf.mxu0
    %v1702 = vadd.f32 0.0, %v1701
    %v1703 = vpop.f32.mrf.mxu0
    %v1704 = vpop.f32.mrf.mxu0
    %1705 = vdwg.mxu0
    %v1706 = vadd.f32 %v1427, %v1659
    %v1707 = vadd.f32 %v1428, %v1661
    %v1708 = vadd.f32 %v1429, %v1700
    %v1709 = vadd.f32 %v1430, %v1702
    %v1710 = vxor.u32 %v1706, 2147483648
    %v1711 = vmul.f32 %v1710, 1.442695
    %v1712 = vpow.pop %v1711
    %v1713 = vadd.f32 %v1712, 1.0
    %v1714 = vrcp.pop %v1713
    %v1715 = vmul.f32 1.0, %v1714
    %v1716 = vxor.u32 %v1707, 2147483648
    %v1717 = vmul.f32 %v1716, 1.442695
    %v1718 = vpow.pop %v1717
    %v1719 = vadd.f32 %v1718, 1.0
    %v1720 = vrcp.pop %v1719
    %v1721 = vmul.f32 1.0, %v1720
    %v1722 = vtanh.pop %v1708
    %v1723 = vxor.u32 %v1709, 2147483648
    %v1724 = vmul.f32 %v1723, 1.442695
    %v1725 = vpow.pop %v1724
    %v1726 = vadd.f32 %v1725, 1.0
    %v1727 = vrcp.pop %v1726
    %v1728 = vmul.f32 1.0, %v1727
    %v1729 = vmul.f32 %v1721, %v1116
    %v1730 = vmul.f32 %v1715, %v1722
    %v1731 = vadd.f32 %v1729, %v1730
    %v1732 = vtanh.pop %v1731
    %v1733 = vmul.f32 %v1728, %v1732
    %1734 = vst [vmem:[#allocation4 + $0x10] sm:$0xff] %v1733
    %v1735 = vld [vmem:[#allocation3 + $0xc0] sm:$0xff]
    %v1736 = vld [vmem:[#allocation3 + $0xc8] sm:$0xff]
    %v1737 = vld [vmem:[#allocation3 + $0xd0] sm:$0xff]
    %v1738 = vld [vmem:[#allocation3 + $0xd8] sm:$0xff]
    %v1739 = vpack.c.bf16 %v1425, %v1425
    %v1740 = vld [vmem:[#allocation10] sm:$0xff]
    %v1741 = vld [vmem:[#allocation10 + $0x8] sm:$0xff]
    %v1742 = vld [vmem:[#allocation10 + $0x10] sm:$0xff]
    %v1743 = vld [vmem:[#allocation10 + $0x18] sm:$0xff]
    %v1744 = vld [vmem:[#allocation10 + $0x20] sm:$0xff]
    %v1745 = vld [vmem:[#allocation10 + $0x28] sm:$0xff]
    %v1746 = vld [vmem:[#allocation10 + $0x30] sm:$0xff]
    %v1747 = vld [vmem:[#allocation10 + $0x38] sm:$0xff]
    %v1748 = vld [vmem:[#allocation10 + $0x40] sm:$0xff]
    %v1749 = vld [vmem:[#allocation10 + $0x48] sm:$0xff]
    %v1750 = vld [vmem:[#allocation10 + $0x50] sm:$0xff]
    %v1751 = vld [vmem:[#allocation10 + $0x58] sm:$0xff]
    %v1752 = vld [vmem:[#allocation10 + $0x60] sm:$0xff]
    %v1753 = vld [vmem:[#allocation10 + $0x68] sm:$0xff]
    %v1754 = vld [vmem:[#allocation10 + $0x70] sm:$0xff]
    %v1755 = vld [vmem:[#allocation10 + $0x78] sm:$0xff]
    %v1756 = vld [vmem:[#allocation10 + $0x80] sm:$0xff]
    %v1757 = vld [vmem:[#allocation10 + $0x88] sm:$0xff]
    %v1758 = vld [vmem:[#allocation10 + $0x90] sm:$0xff]
    %v1759 = vld [vmem:[#allocation10 + $0x98] sm:$0xff]
    %v1760 = vld [vmem:[#allocation10 + $0xa0] sm:$0xff]
    %v1761 = vld [vmem:[#allocation10 + $0xa8] sm:$0xff]
    %v1762 = vld [vmem:[#allocation10 + $0xb0] sm:$0xff]
    %v1763 = vld [vmem:[#allocation10 + $0xb8] sm:$0xff]
    %v1764 = vld [vmem:[#allocation10 + $0xc0] sm:$0xff]
    %v1765 = vld [vmem:[#allocation10 + $0xc8] sm:$0xff]
    %v1766 = vld [vmem:[#allocation10 + $0xd0] sm:$0xff]
    %v1767 = vld [vmem:[#allocation10 + $0xd8] sm:$0xff]
    %v1768 = vld [vmem:[#allocation10 + $0xe0] sm:$0xff]
    %v1769 = vld [vmem:[#allocation10 + $0xe8] sm:$0xff]
    %v1770 = vld [vmem:[#allocation10 + $0xf0] sm:$0xff]
    %v1771 = vld [vmem:[#allocation10 + $0xf8] sm:$0xff]
    %v1804 = vunpack.c.l.b16 %v1740
    %v1805 = vunpack.c.h.b16 %v1740
    %v1806 = vunpack.c.l.b16 %v1741
    %v1807 = vunpack.c.h.b16 %v1741
    %v1808 = vunpack.c.l.b16 %v1742
    %v1809 = vunpack.c.h.b16 %v1742
    %v1810 = vunpack.c.l.b16 %v1743
    %v1811 = vunpack.c.h.b16 %v1743
    %v1812 = vunpack.c.l.b16 %v1744
    %v1813 = vunpack.c.h.b16 %v1744
    %v1814 = vunpack.c.l.b16 %v1745
    %v1815 = vunpack.c.h.b16 %v1745
    %v1816 = vunpack.c.l.b16 %v1746
    %v1817 = vunpack.c.h.b16 %v1746
    %v1818 = vunpack.c.l.b16 %v1747
    %v1819 = vunpack.c.h.b16 %v1747
    %v1820 = vunpack.c.l.b16 %v1748
    %v1821 = vunpack.c.h.b16 %v1748
    %v1822 = vunpack.c.l.b16 %v1749
    %v1823 = vunpack.c.h.b16 %v1749
    %v1824 = vunpack.c.l.b16 %v1750
    %v1825 = vunpack.c.h.b16 %v1750
    %v1826 = vunpack.c.l.b16 %v1751
    %v1827 = vunpack.c.h.b16 %v1751
    %v1828 = vunpack.c.l.b16 %v1752
    %v1829 = vunpack.c.h.b16 %v1752
    %v1830 = vunpack.c.l.b16 %v1753
    %v1831 = vunpack.c.h.b16 %v1753
    %v1832 = vunpack.c.l.b16 %v1754
    %v1833 = vunpack.c.h.b16 %v1754
    %v1834 = vunpack.c.l.b16 %v1755
    %v1835 = vunpack.c.h.b16 %v1755
    %v1836 = vunpack.c.l.b16 %v1756
    %v1837 = vunpack.c.h.b16 %v1756
    %v1838 = vunpack.c.l.b16 %v1757
    %v1839 = vunpack.c.h.b16 %v1757
    %v1840 = vunpack.c.l.b16 %v1758
    %v1841 = vunpack.c.h.b16 %v1758
    %v1842 = vunpack.c.l.b16 %v1759
    %v1843 = vunpack.c.h.b16 %v1759
    %v1844 = vunpack.c.l.b16 %v1760
    %v1845 = vunpack.c.h.b16 %v1760
    %v1846 = vunpack.c.l.b16 %v1761
    %v1847 = vunpack.c.h.b16 %v1761
    %v1848 = vunpack.c.l.b16 %v1762
    %v1849 = vunpack.c.h.b16 %v1762
    %v1850 = vunpack.c.l.b16 %v1763
    %v1851 = vunpack.c.h.b16 %v1763
    %v1852 = vunpack.c.l.b16 %v1764
    %v1853 = vunpack.c.h.b16 %v1764
    %v1854 = vunpack.c.l.b16 %v1765
    %v1855 = vunpack.c.h.b16 %v1765
    %v1856 = vunpack.c.l.b16 %v1766
    %v1857 = vunpack.c.h.b16 %v1766
    %v1858 = vunpack.c.l.b16 %v1767
    %v1859 = vunpack.c.h.b16 %v1767
    %v1860 = vunpack.c.l.b16 %v1768
    %v1861 = vunpack.c.h.b16 %v1768
    %v1862 = vunpack.c.l.b16 %v1769
    %v1863 = vunpack.c.h.b16 %v1769
    %v1864 = vunpack.c.l.b16 %v1770
    %v1865 = vunpack.c.h.b16 %v1770
    %v1866 = vunpack.c.l.b16 %v1771
    %v1867 = vunpack.c.h.b16 %v1771
    %v1868 = vpack.c.b16 %v1808, %v1804
    %v1869 = vpack.c.b16 %v1809, %v1805
    %v1870 = vpack.c.b16 %v1810, %v1806
    %v1871 = vpack.c.b16 %v1811, %v1807
    %v1872 = vpack.c.b16 %v1816, %v1812
    %v1873 = vpack.c.b16 %v1817, %v1813
    %v1874 = vpack.c.b16 %v1818, %v1814
    %v1875 = vpack.c.b16 %v1819, %v1815
    %v1876 = vpack.c.b16 %v1824, %v1820
    %v1877 = vpack.c.b16 %v1825, %v1821
    %v1878 = vpack.c.b16 %v1826, %v1822
    %v1879 = vpack.c.b16 %v1827, %v1823
    %v1880 = vpack.c.b16 %v1832, %v1828
    %v1881 = vpack.c.b16 %v1833, %v1829
    %v1882 = vpack.c.b16 %v1834, %v1830
    %v1883 = vpack.c.b16 %v1835, %v1831
    %v1884 = vpack.c.b16 %v1840, %v1836
    %v1885 = vpack.c.b16 %v1841, %v1837
    %v1886 = vpack.c.b16 %v1842, %v1838
    %v1887 = vpack.c.b16 %v1843, %v1839
    %v1888 = vpack.c.b16 %v1848, %v1844
    %v1889 = vpack.c.b16 %v1849, %v1845
    %v1890 = vpack.c.b16 %v1850, %v1846
    %v1891 = vpack.c.b16 %v1851, %v1847
    %v1892 = vpack.c.b16 %v1856, %v1852
    %v1893 = vpack.c.b16 %v1857, %v1853
    %v1894 = vpack.c.b16 %v1858, %v1854
    %v1895 = vpack.c.b16 %v1859, %v1855
    %v1896 = vpack.c.b16 %v1864, %v1860
    %v1897 = vpack.c.b16 %v1865, %v1861
    %v1898 = vpack.c.b16 %v1866, %v1862
    %v1899 = vpack.c.b16 %v1867, %v1863
    %1932 = vmatprep.subr.bf16.mxu0 %v1897
    %1933 = vmatpush1.bf16.msra.mxu0 %v1896
    %1934 = vmatprep.subr.bf16.mxu0 %v1893
    %1935 = vmatpush1.bf16.msra.mxu0 %v1892
    %1936 = vmatprep.subr.bf16.mxu0 %v1889
    %1937 = vmatpush1.bf16.msra.mxu0 %v1888
    %1938 = vmatprep.subr.bf16.mxu0 %v1885
    %1939 = vmatpush1.bf16.msra.mxu0 %v1884
    %1940 = vmatprep.subr.bf16.mxu0 %v1881
    %1941 = vmatpush1.bf16.msra.mxu0 %v1880
    %1942 = vmatprep.subr.bf16.mxu0 %v1877
    %1943 = vmatpush1.bf16.msra.mxu0 %v1876
    %1944 = vmatprep.subr.bf16.mxu0 %v1873
    %1945 = vmatpush1.bf16.msra.mxu0 %v1872
    %1946 = vmatprep.subr.bf16.mxu0 %v1869
    %1947 = vmatpush1.bf16.msra.mxu0 %v1868
    %1948 = vmatprep.subr.bf16.mxu0 0
    %1949 = vmatpush2.bf16.msra.mxu0 0
    %1950 = vmatprep.subr.bf16.mxu0 0
    %1951 = vmatpush2.bf16.msra.mxu0 0
    %1952 = vmatprep.subr.bf16.mxu0 0
    %1953 = vmatpush2.bf16.msra.mxu0 0
    %1954 = vmatprep.subr.bf16.mxu0 0
    %1955 = vmatpush2.bf16.msra.mxu0 0
    %1956 = vmatprep.subr.bf16.mxu0 0
    %1957 = vmatpush2.bf16.msra.mxu0 0
    %1958 = vmatprep.subr.bf16.mxu0 0
    %1959 = vmatpush2.bf16.msra.mxu0 0
    %1960 = vmatprep.subr.bf16.mxu0 0
    %1961 = vmatpush2.bf16.msra.mxu0 0
    %1962 = vmatprep.subr.bf16.mxu0 0
    %1963 = vmatpush2.bf16.msra.mxu0 0
    %1964 = vmatprep.mubr.bf16.mxu0 0
    %1965 = vmatmul.mubr.bf16.gmra.mxu0 %v1739
    %v1966 = vpop.f32.mrf.mxu0
    %v1967 = vadd.f32 0.0, %v1966
    %v1968 = vpop.f32.mrf.mxu0
    %v1969 = vadd.f32 0.0, %v1968
    %v1970 = vpop.f32.mrf.mxu0
    %v1971 = vpop.f32.mrf.mxu0
    %1972 = vdwg.mxu0
    %1973 = vmatprep.subr.bf16.mxu0 %v1899
    %1974 = vmatpush1.bf16.msra.mxu0 %v1898
    %1975 = vmatprep.subr.bf16.mxu0 %v1895
    %1976 = vmatpush1.bf16.msra.mxu0 %v1894
    %1977 = vmatprep.subr.bf16.mxu0 %v1891
    %1978 = vmatpush1.bf16.msra.mxu0 %v1890
    %1979 = vmatprep.subr.bf16.mxu0 %v1887
    %1980 = vmatpush1.bf16.msra.mxu0 %v1886
    %1981 = vmatprep.subr.bf16.mxu0 %v1883
    %1982 = vmatpush1.bf16.msra.mxu0 %v1882
    %1983 = vmatprep.subr.bf16.mxu0 %v1879
    %1984 = vmatpush1.bf16.msra.mxu0 %v1878
    %1985 = vmatprep.subr.bf16.mxu0 %v1875
    %1986 = vmatpush1.bf16.msra.mxu0 %v1874
    %1987 = vmatprep.subr.bf16.mxu0 %v1871
    %1988 = vmatpush1.bf16.msra.mxu0 %v1870
    %1989 = vmatprep.subr.bf16.mxu0 0
    %1990 = vmatpush2.bf16.msra.mxu0 0
    %1991 = vmatprep.subr.bf16.mxu0 0
    %1992 = vmatpush2.bf16.msra.mxu0 0
    %1993 = vmatprep.subr.bf16.mxu0 0
    %1994 = vmatpush2.bf16.msra.mxu0 0
    %1995 = vmatprep.subr.bf16.mxu0 0
    %1996 = vmatpush2.bf16.msra.mxu0 0
    %1997 = vmatprep.subr.bf16.mxu0 0
    %1998 = vmatpush2.bf16.msra.mxu0 0
    %1999 = vmatprep.subr.bf16.mxu0 0
    %2000 = vmatpush2.bf16.msra.mxu0 0
    %2001 = vmatprep.subr.bf16.mxu0 0
    %2002 = vmatpush2.bf16.msra.mxu0 0
    %2003 = vmatprep.subr.bf16.mxu0 0
    %2004 = vmatpush2.bf16.msra.mxu0 0
    %2005 = vmatprep.mubr.bf16.mxu0 0
    %2006 = vmatmul.mubr.bf16.gmra.mxu0 %v1739
    %v2007 = vpop.f32.mrf.mxu0
    %v2008 = vadd.f32 0.0, %v2007
    %v2009 = vpop.f32.mrf.mxu0
    %v2010 = vadd.f32 0.0, %v2009
    %v2011 = vpop.f32.mrf.mxu0
    %v2012 = vpop.f32.mrf.mxu0
    %2013 = vdwg.mxu0
    %v2014 = vadd.f32 %v1735, %v1967
    %v2015 = vadd.f32 %v1736, %v1969
    %v2016 = vadd.f32 %v1737, %v2008
    %v2017 = vadd.f32 %v1738, %v2010
    %v2018 = vxor.u32 %v2014, 2147483648
    %v2019 = vmul.f32 %v2018, 1.442695
    %v2020 = vpow.pop %v2019
    %v2021 = vadd.f32 %v2020, 1.0
    %v2022 = vrcp.pop %v2021
    %v2023 = vmul.f32 1.0, %v2022
    %v2024 = vxor.u32 %v2015, 2147483648
    %v2025 = vmul.f32 %v2024, 1.442695
    %v2026 = vpow.pop %v2025
    %v2027 = vadd.f32 %v2026, 1.0
    %v2028 = vrcp.pop %v2027
    %v2029 = vmul.f32 1.0, %v2028
    %v2030 = vtanh.pop %v2016
    %v2031 = vxor.u32 %v2017, 2147483648
    %v2032 = vmul.f32 %v2031, 1.442695
    %v2033 = vpow.pop %v2032
    %v2034 = vadd.f32 %v2033, 1.0
    %v2035 = vrcp.pop %v2034
    %v2036 = vmul.f32 1.0, %v2035
    %v2037 = vmul.f32 %v2029, %v1423
    %v2038 = vmul.f32 %v2023, %v2030
    %v2039 = vadd.f32 %v2037, %v2038
    %v2040 = vtanh.pop %v2039
    %v2041 = vmul.f32 %v2036, %v2040
    %2042 = vst [vmem:[#allocation4 + $0x68] sm:$0xff] %v2041
    %v2043 = vld [vmem:[#allocation2 + $0x40] sm:$0xff]
    %v2044 = vld [vmem:[#allocation2 + $0x48] sm:$0xff]
    %v2045 = vld [vmem:[#allocation2 + $0x50] sm:$0xff]
    %v2046 = vld [vmem:[#allocation2 + $0x58] sm:$0xff]
    %v2047 = vpack.c.bf16 %v1733, %v1733
    %v2048 = vld [vmem:[#allocation6] sm:$0xff]
    %v2049 = vld [vmem:[#allocation6 + $0x8] sm:$0xff]
    %v2050 = vld [vmem:[#allocation6 + $0x10] sm:$0xff]
    %v2051 = vld [vmem:[#allocation6 + $0x18] sm:$0xff]
    %v2052 = vld [vmem:[#allocation6 + $0x20] sm:$0xff]
    %v2053 = vld [vmem:[#allocation6 + $0x28] sm:$0xff]
    %v2054 = vld [vmem:[#allocation6 + $0x30] sm:$0xff]
    %v2055 = vld [vmem:[#allocation6 + $0x38] sm:$0xff]
    %v2056 = vld [vmem:[#allocation6 + $0x40] sm:$0xff]
    %v2057 = vld [vmem:[#allocation6 + $0x48] sm:$0xff]
    %v2058 = vld [vmem:[#allocation6 + $0x50] sm:$0xff]
    %v2059 = vld [vmem:[#allocation6 + $0x58] sm:$0xff]
    %v2060 = vld [vmem:[#allocation6 + $0x60] sm:$0xff]
    %v2061 = vld [vmem:[#allocation6 + $0x68] sm:$0xff]
    %v2062 = vld [vmem:[#allocation6 + $0x70] sm:$0xff]
    %v2063 = vld [vmem:[#allocation6 + $0x78] sm:$0xff]
    %v2064 = vld [vmem:[#allocation6 + $0x80] sm:$0xff]
    %v2065 = vld [vmem:[#allocation6 + $0x88] sm:$0xff]
    %v2066 = vld [vmem:[#allocation6 + $0x90] sm:$0xff]
    %v2067 = vld [vmem:[#allocation6 + $0x98] sm:$0xff]
    %v2068 = vld [vmem:[#allocation6 + $0xa0] sm:$0xff]
    %v2069 = vld [vmem:[#allocation6 + $0xa8] sm:$0xff]
    %v2070 = vld [vmem:[#allocation6 + $0xb0] sm:$0xff]
    %v2071 = vld [vmem:[#allocation6 + $0xb8] sm:$0xff]
    %v2072 = vld [vmem:[#allocation6 + $0xc0] sm:$0xff]
    %v2073 = vld [vmem:[#allocation6 + $0xc8] sm:$0xff]
    %v2074 = vld [vmem:[#allocation6 + $0xd0] sm:$0xff]
    %v2075 = vld [vmem:[#allocation6 + $0xd8] sm:$0xff]
    %v2076 = vld [vmem:[#allocation6 + $0xe0] sm:$0xff]
    %v2077 = vld [vmem:[#allocation6 + $0xe8] sm:$0xff]
    %v2078 = vld [vmem:[#allocation6 + $0xf0] sm:$0xff]
    %v2079 = vld [vmem:[#allocation6 + $0xf8] sm:$0xff]
    %v2112 = vunpack.c.l.b16 %v2048
    %v2113 = vunpack.c.h.b16 %v2048
    %v2114 = vunpack.c.l.b16 %v2049
    %v2115 = vunpack.c.h.b16 %v2049
    %v2116 = vunpack.c.l.b16 %v2050
    %v2117 = vunpack.c.h.b16 %v2050
    %v2118 = vunpack.c.l.b16 %v2051
    %v2119 = vunpack.c.h.b16 %v2051
    %v2120 = vunpack.c.l.b16 %v2052
    %v2121 = vunpack.c.h.b16 %v2052
    %v2122 = vunpack.c.l.b16 %v2053
    %v2123 = vunpack.c.h.b16 %v2053
    %v2124 = vunpack.c.l.b16 %v2054
    %v2125 = vunpack.c.h.b16 %v2054
    %v2126 = vunpack.c.l.b16 %v2055
    %v2127 = vunpack.c.h.b16 %v2055
    %v2128 = vunpack.c.l.b16 %v2056
    %v2129 = vunpack.c.h.b16 %v2056
    %v2130 = vunpack.c.l.b16 %v2057
    %v2131 = vunpack.c.h.b16 %v2057
    %v2132 = vunpack.c.l.b16 %v2058
    %v2133 = vunpack.c.h.b16 %v2058
    %v2134 = vunpack.c.l.b16 %v2059
    %v2135 = vunpack.c.h.b16 %v2059
    %v2136 = vunpack.c.l.b16 %v2060
    %v2137 = vunpack.c.h.b16 %v2060
    %v2138 = vunpack.c.l.b16 %v2061
    %v2139 = vunpack.c.h.b16 %v2061
    %v2140 = vunpack.c.l.b16 %v2062
    %v2141 = vunpack.c.h.b16 %v2062
    %v2142 = vunpack.c.l.b16 %v2063
    %v2143 = vunpack.c.h.b16 %v2063
    %v2144 = vunpack.c.l.b16 %v2064
    %v2145 = vunpack.c.h.b16 %v2064
    %v2146 = vunpack.c.l.b16 %v2065
    %v2147 = vunpack.c.h.b16 %v2065
    %v2148 = vunpack.c.l.b16 %v2066
    %v2149 = vunpack.c.h.b16 %v2066
    %v2150 = vunpack.c.l.b16 %v2067
    %v2151 = vunpack.c.h.b16 %v2067
    %v2152 = vunpack.c.l.b16 %v2068
    %v2153 = vunpack.c.h.b16 %v2068
    %v2154 = vunpack.c.l.b16 %v2069
    %v2155 = vunpack.c.h.b16 %v2069
    %v2156 = vunpack.c.l.b16 %v2070
    %v2157 = vunpack.c.h.b16 %v2070
    %v2158 = vunpack.c.l.b16 %v2071
    %v2159 = vunpack.c.h.b16 %v2071
    %v2160 = vunpack.c.l.b16 %v2072
    %v2161 = vunpack.c.h.b16 %v2072
    %v2162 = vunpack.c.l.b16 %v2073
    %v2163 = vunpack.c.h.b16 %v2073
    %v2164 = vunpack.c.l.b16 %v2074
    %v2165 = vunpack.c.h.b16 %v2074
    %v2166 = vunpack.c.l.b16 %v2075
    %v2167 = vunpack.c.h.b16 %v2075
    %v2168 = vunpack.c.l.b16 %v2076
    %v2169 = vunpack.c.h.b16 %v2076
    %v2170 = vunpack.c.l.b16 %v2077
    %v2171 = vunpack.c.h.b16 %v2077
    %v2172 = vunpack.c.l.b16 %v2078
    %v2173 = vunpack.c.h.b16 %v2078
    %v2174 = vunpack.c.l.b16 %v2079
    %v2175 = vunpack.c.h.b16 %v2079
    %v2176 = vpack.c.b16 %v2116, %v2112
    %v2177 = vpack.c.b16 %v2117, %v2113
    %v2178 = vpack.c.b16 %v2118, %v2114
    %v2179 = vpack.c.b16 %v2119, %v2115
    %v2180 = vpack.c.b16 %v2124, %v2120
    %v2181 = vpack.c.b16 %v2125, %v2121
    %v2182 = vpack.c.b16 %v2126, %v2122
    %v2183 = vpack.c.b16 %v2127, %v2123
    %v2184 = vpack.c.b16 %v2132, %v2128
    %v2185 = vpack.c.b16 %v2133, %v2129
    %v2186 = vpack.c.b16 %v2134, %v2130
    %v2187 = vpack.c.b16 %v2135, %v2131
    %v2188 = vpack.c.b16 %v2140, %v2136
    %v2189 = vpack.c.b16 %v2141, %v2137
    %v2190 = vpack.c.b16 %v2142, %v2138
    %v2191 = vpack.c.b16 %v2143, %v2139
    %v2192 = vpack.c.b16 %v2148, %v2144
    %v2193 = vpack.c.b16 %v2149, %v2145
    %v2194 = vpack.c.b16 %v2150, %v2146
    %v2195 = vpack.c.b16 %v2151, %v2147
    %v2196 = vpack.c.b16 %v2156, %v2152
    %v2197 = vpack.c.b16 %v2157, %v2153
    %v2198 = vpack.c.b16 %v2158, %v2154
    %v2199 = vpack.c.b16 %v2159, %v2155
    %v2200 = vpack.c.b16 %v2164, %v2160
    %v2201 = vpack.c.b16 %v2165, %v2161
    %v2202 = vpack.c.b16 %v2166, %v2162
    %v2203 = vpack.c.b16 %v2167, %v2163
    %v2204 = vpack.c.b16 %v2172, %v2168
    %v2205 = vpack.c.b16 %v2173, %v2169
    %v2206 = vpack.c.b16 %v2174, %v2170
    %v2207 = vpack.c.b16 %v2175, %v2171
    %2240 = vmatprep.subr.bf16.mxu0 %v2205
    %2241 = vmatpush1.bf16.msra.mxu0 %v2204
    %2242 = vmatprep.subr.bf16.mxu0 %v2201
    %2243 = vmatpush1.bf16.msra.mxu0 %v2200
    %2244 = vmatprep.subr.bf16.mxu0 %v2197
    %2245 = vmatpush1.bf16.msra.mxu0 %v2196
    %2246 = vmatprep.subr.bf16.mxu0 %v2193
    %2247 = vmatpush1.bf16.msra.mxu0 %v2192
    %2248 = vmatprep.subr.bf16.mxu0 %v2189
    %2249 = vmatpush1.bf16.msra.mxu0 %v2188
    %2250 = vmatprep.subr.bf16.mxu0 %v2185
    %2251 = vmatpush1.bf16.msra.mxu0 %v2184
    %2252 = vmatprep.subr.bf16.mxu0 %v2181
    %2253 = vmatpush1.bf16.msra.mxu0 %v2180
    %2254 = vmatprep.subr.bf16.mxu0 %v2177
    %2255 = vmatpush1.bf16.msra.mxu0 %v2176
    %2256 = vmatprep.subr.bf16.mxu0 0
    %2257 = vmatpush2.bf16.msra.mxu0 0
    %2258 = vmatprep.subr.bf16.mxu0 0
    %2259 = vmatpush2.bf16.msra.mxu0 0
    %2260 = vmatprep.subr.bf16.mxu0 0
    %2261 = vmatpush2.bf16.msra.mxu0 0
    %2262 = vmatprep.subr.bf16.mxu0 0
    %2263 = vmatpush2.bf16.msra.mxu0 0
    %2264 = vmatprep.subr.bf16.mxu0 0
    %2265 = vmatpush2.bf16.msra.mxu0 0
    %2266 = vmatprep.subr.bf16.mxu0 0
    %2267 = vmatpush2.bf16.msra.mxu0 0
    %2268 = vmatprep.subr.bf16.mxu0 0
    %2269 = vmatpush2.bf16.msra.mxu0 0
    %2270 = vmatprep.subr.bf16.mxu0 0
    %2271 = vmatpush2.bf16.msra.mxu0 0
    %2272 = vmatprep.mubr.bf16.mxu0 0
    %2273 = vmatmul.mubr.bf16.gmra.mxu0 %v2047
    %v2274 = vpop.f32.mrf.mxu0
    %v2275 = vadd.f32 0.0, %v2274
    %v2276 = vpop.f32.mrf.mxu0
    %v2277 = vadd.f32 0.0, %v2276
    %v2278 = vpop.f32.mrf.mxu0
    %v2279 = vpop.f32.mrf.mxu0
    %2280 = vdwg.mxu0
    %2281 = vmatprep.subr.bf16.mxu0 %v2207
    %2282 = vmatpush1.bf16.msra.mxu0 %v2206
    %2283 = vmatprep.subr.bf16.mxu0 %v2203
    %2284 = vmatpush1.bf16.msra.mxu0 %v2202
    %2285 = vmatprep.subr.bf16.mxu0 %v2199
    %2286 = vmatpush1.bf16.msra.mxu0 %v2198
    %2287 = vmatprep.subr.bf16.mxu0 %v2195
    %2288 = vmatpush1.bf16.msra.mxu0 %v2194
    %2289 = vmatprep.subr.bf16.mxu0 %v2191
    %2290 = vmatpush1.bf16.msra.mxu0 %v2190
    %2291 = vmatprep.subr.bf16.mxu0 %v2187
    %2292 = vmatpush1.bf16.msra.mxu0 %v2186
    %2293 = vmatprep.subr.bf16.mxu0 %v2183
    %2294 = vmatpush1.bf16.msra.mxu0 %v2182
    %2295 = vmatprep.subr.bf16.mxu0 %v2179
    %2296 = vmatpush1.bf16.msra.mxu0 %v2178
    %2297 = vmatprep.subr.bf16.mxu0 0
    %2298 = vmatpush2.bf16.msra.mxu0 0
    %2299 = vmatprep.subr.bf16.mxu0 0
    %2300 = vmatpush2.bf16.msra.mxu0 0
    %2301 = vmatprep.subr.bf16.mxu0 0
    %2302 = vmatpush2.bf16.msra.mxu0 0
    %2303 = vmatprep.subr.bf16.mxu0 0
    %2304 = vmatpush2.bf16.msra.mxu0 0
    %2305 = vmatprep.subr.bf16.mxu0 0
    %2306 = vmatpush2.bf16.msra.mxu0 0
    %2307 = vmatprep.subr.bf16.mxu0 0
    %2308 = vmatpush2.bf16.msra.mxu0 0
    %2309 = vmatprep.subr.bf16.mxu0 0
    %2310 = vmatpush2.bf16.msra.mxu0 0
    %2311 = vmatprep.subr.bf16.mxu0 0
    %2312 = vmatpush2.bf16.msra.mxu0 0
    %2313 = vmatprep.mubr.bf16.mxu0 0
    %2314 = vmatmul.mubr.bf16.gmra.mxu0 %v2047
    %v2315 = vpop.f32.mrf.mxu0
    %v2316 = vadd.f32 0.0, %v2315
    %v2317 = vpop.f32.mrf.mxu0
    %v2318 = vadd.f32 0.0, %v2317
    %v2319 = vpop.f32.mrf.mxu0
    %v2320 = vpop.f32.mrf.mxu0
    %2321 = vdwg.mxu0
    %v2322 = vadd.f32 %v2043, %v2275
    %v2323 = vadd.f32 %v2044, %v2277
    %v2324 = vadd.f32 %v2045, %v2316
    %v2325 = vadd.f32 %v2046, %v2318
    %v2326 = vxor.u32 %v2322, 2147483648
    %v2327 = vmul.f32 %v2326, 1.442695
    %v2328 = vpow.pop %v2327
    %v2329 = vadd.f32 %v2328, 1.0
    %v2330 = vrcp.pop %v2329
    %v2331 = vmul.f32 1.0, %v2330
    %v2332 = vxor.u32 %v2323, 2147483648
    %v2333 = vmul.f32 %v2332, 1.442695
    %v2334 = vpow.pop %v2333
    %v2335 = vadd.f32 %v2334, 1.0
    %v2336 = vrcp.pop %v2335
    %v2337 = vmul.f32 1.0, %v2336
    %v2338 = vtanh.pop %v2324
    %v2339 = vxor.u32 %v2325, 2147483648
    %v2340 = vmul.f32 %v2339, 1.442695
    %v2341 = vpow.pop %v2340
    %v2342 = vadd.f32 %v2341, 1.0
    %v2343 = vrcp.pop %v2342
    %v2344 = vmul.f32 1.0, %v2343
    %v2345 = vmul.f32 %v2337, %v1731
    %v2346 = vmul.f32 %v2331, %v2338
    %v2347 = vadd.f32 %v2345, %v2346
    %v2348 = vtanh.pop %v2347
    %v2349 = vmul.f32 %v2344, %v2348
    %2350 = vst [vmem:[#allocation4 + $0x20] sm:$0xff] %v2349
    %v2351 = vld [vmem:[#allocation3 + $0xa0] sm:$0xff]
    %v2352 = vld [vmem:[#allocation3 + $0xa8] sm:$0xff]
    %v2353 = vld [vmem:[#allocation3 + $0xb0] sm:$0xff]
    %v2354 = vld [vmem:[#allocation3 + $0xb8] sm:$0xff]
    %v2355 = vpack.c.bf16 %v2041, %v2041
    %v2356 = vld [vmem:[#allocation10] sm:$0xff]
    %v2357 = vld [vmem:[#allocation10 + $0x8] sm:$0xff]
    %v2358 = vld [vmem:[#allocation10 + $0x10] sm:$0xff]
    %v2359 = vld [vmem:[#allocation10 + $0x18] sm:$0xff]
    %v2360 = vld [vmem:[#allocation10 + $0x20] sm:$0xff]
    %v2361 = vld [vmem:[#allocation10 + $0x28] sm:$0xff]
    %v2362 = vld [vmem:[#allocation10 + $0x30] sm:$0xff]
    %v2363 = vld [vmem:[#allocation10 + $0x38] sm:$0xff]
    %v2364 = vld [vmem:[#allocation10 + $0x40] sm:$0xff]
    %v2365 = vld [vmem:[#allocation10 + $0x48] sm:$0xff]
    %v2366 = vld [vmem:[#allocation10 + $0x50] sm:$0xff]
    %v2367 = vld [vmem:[#allocation10 + $0x58] sm:$0xff]
    %v2368 = vld [vmem:[#allocation10 + $0x60] sm:$0xff]
    %v2369 = vld [vmem:[#allocation10 + $0x68] sm:$0xff]
    %v2370 = vld [vmem:[#allocation10 + $0x70] sm:$0xff]
    %v2371 = vld [vmem:[#allocation10 + $0x78] sm:$0xff]
    %v2372 = vld [vmem:[#allocation10 + $0x80] sm:$0xff]
    %v2373 = vld [vmem:[#allocation10 + $0x88] sm:$0xff]
    %v2374 = vld [vmem:[#allocation10 + $0x90] sm:$0xff]
    %v2375 = vld [vmem:[#allocation10 + $0x98] sm:$0xff]
    %v2376 = vld [vmem:[#allocation10 + $0xa0] sm:$0xff]
    %v2377 = vld [vmem:[#allocation10 + $0xa8] sm:$0xff]
    %v2378 = vld [vmem:[#allocation10 + $0xb0] sm:$0xff]
    %v2379 = vld [vmem:[#allocation10 + $0xb8] sm:$0xff]
    %v2380 = vld [vmem:[#allocation10 + $0xc0] sm:$0xff]
    %v2381 = vld [vmem:[#allocation10 + $0xc8] sm:$0xff]
    %v2382 = vld [vmem:[#allocation10 + $0xd0] sm:$0xff]
    %v2383 = vld [vmem:[#allocation10 + $0xd8] sm:$0xff]
    %v2384 = vld [vmem:[#allocation10 + $0xe0] sm:$0xff]
    %v2385 = vld [vmem:[#allocation10 + $0xe8] sm:$0xff]
    %v2386 = vld [vmem:[#allocation10 + $0xf0] sm:$0xff]
    %v2387 = vld [vmem:[#allocation10 + $0xf8] sm:$0xff]
    %v2420 = vunpack.c.l.b16 %v2356
    %v2421 = vunpack.c.h.b16 %v2356
    %v2422 = vunpack.c.l.b16 %v2357
    %v2423 = vunpack.c.h.b16 %v2357
    %v2424 = vunpack.c.l.b16 %v2358
    %v2425 = vunpack.c.h.b16 %v2358
    %v2426 = vunpack.c.l.b16 %v2359
    %v2427 = vunpack.c.h.b16 %v2359
    %v2428 = vunpack.c.l.b16 %v2360
    %v2429 = vunpack.c.h.b16 %v2360
    %v2430 = vunpack.c.l.b16 %v2361
    %v2431 = vunpack.c.h.b16 %v2361
    %v2432 = vunpack.c.l.b16 %v2362
    %v2433 = vunpack.c.h.b16 %v2362
    %v2434 = vunpack.c.l.b16 %v2363
    %v2435 = vunpack.c.h.b16 %v2363
    %v2436 = vunpack.c.l.b16 %v2364
    %v2437 = vunpack.c.h.b16 %v2364
    %v2438 = vunpack.c.l.b16 %v2365
    %v2439 = vunpack.c.h.b16 %v2365
    %v2440 = vunpack.c.l.b16 %v2366
    %v2441 = vunpack.c.h.b16 %v2366
    %v2442 = vunpack.c.l.b16 %v2367
    %v2443 = vunpack.c.h.b16 %v2367
    %v2444 = vunpack.c.l.b16 %v2368
    %v2445 = vunpack.c.h.b16 %v2368
    %v2446 = vunpack.c.l.b16 %v2369
    %v2447 = vunpack.c.h.b16 %v2369
    %v2448 = vunpack.c.l.b16 %v2370
    %v2449 = vunpack.c.h.b16 %v2370
    %v2450 = vunpack.c.l.b16 %v2371
    %v2451 = vunpack.c.h.b16 %v2371
    %v2452 = vunpack.c.l.b16 %v2372
    %v2453 = vunpack.c.h.b16 %v2372
    %v2454 = vunpack.c.l.b16 %v2373
    %v2455 = vunpack.c.h.b16 %v2373
    %v2456 = vunpack.c.l.b16 %v2374
    %v2457 = vunpack.c.h.b16 %v2374
    %v2458 = vunpack.c.l.b16 %v2375
    %v2459 = vunpack.c.h.b16 %v2375
    %v2460 = vunpack.c.l.b16 %v2376
    %v2461 = vunpack.c.h.b16 %v2376
    %v2462 = vunpack.c.l.b16 %v2377
    %v2463 = vunpack.c.h.b16 %v2377
    %v2464 = vunpack.c.l.b16 %v2378
    %v2465 = vunpack.c.h.b16 %v2378
    %v2466 = vunpack.c.l.b16 %v2379
    %v2467 = vunpack.c.h.b16 %v2379
    %v2468 = vunpack.c.l.b16 %v2380
    %v2469 = vunpack.c.h.b16 %v2380
    %v2470 = vunpack.c.l.b16 %v2381
    %v2471 = vunpack.c.h.b16 %v2381
    %v2472 = vunpack.c.l.b16 %v2382
    %v2473 = vunpack.c.h.b16 %v2382
    %v2474 = vunpack.c.l.b16 %v2383
    %v2475 = vunpack.c.h.b16 %v2383
    %v2476 = vunpack.c.l.b16 %v2384
    %v2477 = vunpack.c.h.b16 %v2384
    %v2478 = vunpack.c.l.b16 %v2385
    %v2479 = vunpack.c.h.b16 %v2385
    %v2480 = vunpack.c.l.b16 %v2386
    %v2481 = vunpack.c.h.b16 %v2386
    %v2482 = vunpack.c.l.b16 %v2387
    %v2483 = vunpack.c.h.b16 %v2387
    %v2484 = vpack.c.b16 %v2424, %v2420
    %v2485 = vpack.c.b16 %v2425, %v2421
    %v2486 = vpack.c.b16 %v2426, %v2422
    %v2487 = vpack.c.b16 %v2427, %v2423
    %v2488 = vpack.c.b16 %v2432, %v2428
    %v2489 = vpack.c.b16 %v2433, %v2429
    %v2490 = vpack.c.b16 %v2434, %v2430
    %v2491 = vpack.c.b16 %v2435, %v2431
    %v2492 = vpack.c.b16 %v2440, %v2436
    %v2493 = vpack.c.b16 %v2441, %v2437
    %v2494 = vpack.c.b16 %v2442, %v2438
    %v2495 = vpack.c.b16 %v2443, %v2439
    %v2496 = vpack.c.b16 %v2448, %v2444
    %v2497 = vpack.c.b16 %v2449, %v2445
    %v2498 = vpack.c.b16 %v2450, %v2446
    %v2499 = vpack.c.b16 %v2451, %v2447
    %v2500 = vpack.c.b16 %v2456, %v2452
    %v2501 = vpack.c.b16 %v2457, %v2453
    %v2502 = vpack.c.b16 %v2458, %v2454
    %v2503 = vpack.c.b16 %v2459, %v2455
    %v2504 = vpack.c.b16 %v2464, %v2460
    %v2505 = vpack.c.b16 %v2465, %v2461
    %v2506 = vpack.c.b16 %v2466, %v2462
    %v2507 = vpack.c.b16 %v2467, %v2463
    %v2508 = vpack.c.b16 %v2472, %v2468
    %v2509 = vpack.c.b16 %v2473, %v2469
    %v2510 = vpack.c.b16 %v2474, %v2470
    %v2511 = vpack.c.b16 %v2475, %v2471
    %v2512 = vpack.c.b16 %v2480, %v2476
    %v2513 = vpack.c.b16 %v2481, %v2477
    %v2514 = vpack.c.b16 %v2482, %v2478
    %v2515 = vpack.c.b16 %v2483, %v2479
    %2548 = vmatprep.subr.bf16.mxu0 %v2513
    %2549 = vmatpush1.bf16.msra.mxu0 %v2512
    %2550 = vmatprep.subr.bf16.mxu0 %v2509
    %2551 = vmatpush1.bf16.msra.mxu0 %v2508
    %2552 = vmatprep.subr.bf16.mxu0 %v2505
    %2553 = vmatpush1.bf16.msra.mxu0 %v2504
    %2554 = vmatprep.subr.bf16.mxu0 %v2501
    %2555 = vmatpush1.bf16.msra.mxu0 %v2500
    %2556 = vmatprep.subr.bf16.mxu0 %v2497
    %2557 = vmatpush1.bf16.msra.mxu0 %v2496
    %2558 = vmatprep.subr.bf16.mxu0 %v2493
    %2559 = vmatpush1.bf16.msra.mxu0 %v2492
    %2560 = vmatprep.subr.bf16.mxu0 %v2489
    %2561 = vmatpush1.bf16.msra.mxu0 %v2488
    %2562 = vmatprep.subr.bf16.mxu0 %v2485
    %2563 = vmatpush1.bf16.msra.mxu0 %v2484
    %2564 = vmatprep.subr.bf16.mxu0 0
    %2565 = vmatpush2.bf16.msra.mxu0 0
    %2566 = vmatprep.subr.bf16.mxu0 0
    %2567 = vmatpush2.bf16.msra.mxu0 0
    %2568 = vmatprep.subr.bf16.mxu0 0
    %2569 = vmatpush2.bf16.msra.mxu0 0
    %2570 = vmatprep.subr.bf16.mxu0 0
    %2571 = vmatpush2.bf16.msra.mxu0 0
    %2572 = vmatprep.subr.bf16.mxu0 0
    %2573 = vmatpush2.bf16.msra.mxu0 0
    %2574 = vmatprep.subr.bf16.mxu0 0
    %2575 = vmatpush2.bf16.msra.mxu0 0
    %2576 = vmatprep.subr.bf16.mxu0 0
    %2577 = vmatpush2.bf16.msra.mxu0 0
    %2578 = vmatprep.subr.bf16.mxu0 0
    %2579 = vmatpush2.bf16.msra.mxu0 0
    %2580 = vmatprep.mubr.bf16.mxu0 0
    %2581 = vmatmul.mubr.bf16.gmra.mxu0 %v2355
    %v2582 = vpop.f32.mrf.mxu0
    %v2583 = vadd.f32 0.0, %v2582
    %v2584 = vpop.f32.mrf.mxu0
    %v2585 = vadd.f32 0.0, %v2584
    %v2586 = vpop.f32.mrf.mxu0
    %v2587 = vpop.f32.mrf.mxu0
    %2588 = vdwg.mxu0
    %2589 = vmatprep.subr.bf16.mxu0 %v2515
    %2590 = vmatpush1.bf16.msra.mxu0 %v2514
    %2591 = vmatprep.subr.bf16.mxu0 %v2511
    %2592 = vmatpush1.bf16.msra.mxu0 %v2510
    %2593 = vmatprep.subr.bf16.mxu0 %v2507
    %2594 = vmatpush1.bf16.msra.mxu0 %v2506
    %2595 = vmatprep.subr.bf16.mxu0 %v2503
    %2596 = vmatpush1.bf16.msra.mxu0 %v2502
    %2597 = vmatprep.subr.bf16.mxu0 %v2499
    %2598 = vmatpush1.bf16.msra.mxu0 %v2498
    %2599 = vmatprep.subr.bf16.mxu0 %v2495
    %2600 = vmatpush1.bf16.msra.mxu0 %v2494
    %2601 = vmatprep.subr.bf16.mxu0 %v2491
    %2602 = vmatpush1.bf16.msra.mxu0 %v2490
    %2603 = vmatprep.subr.bf16.mxu0 %v2487
    %2604 = vmatpush1.bf16.msra.mxu0 %v2486
    %2605 = vmatprep.subr.bf16.mxu0 0
    %2606 = vmatpush2.bf16.msra.mxu0 0
    %2607 = vmatprep.subr.bf16.mxu0 0
    %2608 = vmatpush2.bf16.msra.mxu0 0
    %2609 = vmatprep.subr.bf16.mxu0 0
    %2610 = vmatpush2.bf16.msra.mxu0 0
    %2611 = vmatprep.subr.bf16.mxu0 0
    %2612 = vmatpush2.bf16.msra.mxu0 0
    %2613 = vmatprep.subr.bf16.mxu0 0
    %2614 = vmatpush2.bf16.msra.mxu0 0
    %2615 = vmatprep.subr.bf16.mxu0 0
    %2616 = vmatpush2.bf16.msra.mxu0 0
    %2617 = vmatprep.subr.bf16.mxu0 0
    %2618 = vmatpush2.bf16.msra.mxu0 0
    %2619 = vmatprep.subr.bf16.mxu0 0
    %2620 = vmatpush2.bf16.msra.mxu0 0
    %2621 = vmatprep.mubr.bf16.mxu0 0
    %2622 = vmatmul.mubr.bf16.gmra.mxu0 %v2355
    %v2623 = vpop.f32.mrf.mxu0
    %v2624 = vadd.f32 0.0, %v2623
    %v2625 = vpop.f32.mrf.mxu0
    %v2626 = vadd.f32 0.0, %v2625
    %v2627 = vpop.f32.mrf.mxu0
    %v2628 = vpop.f32.mrf.mxu0
    %2629 = vdwg.mxu0
    %v2630 = vadd.f32 %v2351, %v2583
    %v2631 = vadd.f32 %v2352, %v2585
    %v2632 = vadd.f32 %v2353, %v2624
    %v2633 = vadd.f32 %v2354, %v2626
    %v2634 = vxor.u32 %v2630, 2147483648
    %v2635 = vmul.f32 %v2634, 1.442695
    %v2636 = vpow.pop %v2635
    %v2637 = vadd.f32 %v2636, 1.0
    %v2638 = vrcp.pop %v2637
    %v2639 = vmul.f32 1.0, %v2638
    %v2640 = vxor.u32 %v2631, 2147483648
    %v2641 = vmul.f32 %v2640, 1.442695
    %v2642 = vpow.pop %v2641
    %v2643 = vadd.f32 %v2642, 1.0
    %v2644 = vrcp.pop %v2643
    %v2645 = vmul.f32 1.0, %v2644
    %v2646 = vtanh.pop %v2632
    %v2647 = vxor.u32 %v2633, 2147483648
    %v2648 = vmul.f32 %v2647, 1.442695
    %v2649 = vpow.pop %v2648
    %v2650 = vadd.f32 %v2649, 1.0
    %v2651 = vrcp.pop %v2650
    %v2652 = vmul.f32 1.0, %v2651
    %v2653 = vmul.f32 %v2645, %v2039
    %v2654 = vmul.f32 %v2639, %v2646
    %v2655 = vadd.f32 %v2653, %v2654
    %v2656 = vtanh.pop %v2655
    %v2657 = vmul.f32 %v2652, %v2656
    %2658 = vst [vmem:[#allocation4 + $0x58] sm:$0xff] %v2657
    %v2659 = vld [vmem:[#allocation2 + $0x60] sm:$0xff]
    %v2660 = vld [vmem:[#allocation2 + $0x68] sm:$0xff]
    %v2661 = vld [vmem:[#allocation2 + $0x70] sm:$0xff]
    %v2662 = vld [vmem:[#allocation2 + $0x78] sm:$0xff]
    %v2663 = vpack.c.bf16 %v2349, %v2349
    %v2664 = vld [vmem:[#allocation6] sm:$0xff]
    %v2665 = vld [vmem:[#allocation6 + $0x8] sm:$0xff]
    %v2666 = vld [vmem:[#allocation6 + $0x10] sm:$0xff]
    %v2667 = vld [vmem:[#allocation6 + $0x18] sm:$0xff]
    %v2668 = vld [vmem:[#allocation6 + $0x20] sm:$0xff]
    %v2669 = vld [vmem:[#allocation6 + $0x28] sm:$0xff]
    %v2670 = vld [vmem:[#allocation6 + $0x30] sm:$0xff]
    %v2671 = vld [vmem:[#allocation6 + $0x38] sm:$0xff]
    %v2672 = vld [vmem:[#allocation6 + $0x40] sm:$0xff]
    %v2673 = vld [vmem:[#allocation6 + $0x48] sm:$0xff]
    %v2674 = vld [vmem:[#allocation6 + $0x50] sm:$0xff]
    %v2675 = vld [vmem:[#allocation6 + $0x58] sm:$0xff]
    %v2676 = vld [vmem:[#allocation6 + $0x60] sm:$0xff]
    %v2677 = vld [vmem:[#allocation6 + $0x68] sm:$0xff]
    %v2678 = vld [vmem:[#allocation6 + $0x70] sm:$0xff]
    %v2679 = vld [vmem:[#allocation6 + $0x78] sm:$0xff]
    %v2680 = vld [vmem:[#allocation6 + $0x80] sm:$0xff]
    %v2681 = vld [vmem:[#allocation6 + $0x88] sm:$0xff]
    %v2682 = vld [vmem:[#allocation6 + $0x90] sm:$0xff]
    %v2683 = vld [vmem:[#allocation6 + $0x98] sm:$0xff]
    %v2684 = vld [vmem:[#allocation6 + $0xa0] sm:$0xff]
    %v2685 = vld [vmem:[#allocation6 + $0xa8] sm:$0xff]
    %v2686 = vld [vmem:[#allocation6 + $0xb0] sm:$0xff]
    %v2687 = vld [vmem:[#allocation6 + $0xb8] sm:$0xff]
    %v2688 = vld [vmem:[#allocation6 + $0xc0] sm:$0xff]
    %v2689 = vld [vmem:[#allocation6 + $0xc8] sm:$0xff]
    %v2690 = vld [vmem:[#allocation6 + $0xd0] sm:$0xff]
    %v2691 = vld [vmem:[#allocation6 + $0xd8] sm:$0xff]
    %v2692 = vld [vmem:[#allocation6 + $0xe0] sm:$0xff]
    %v2693 = vld [vmem:[#allocation6 + $0xe8] sm:$0xff]
    %v2694 = vld [vmem:[#allocation6 + $0xf0] sm:$0xff]
    %v2695 = vld [vmem:[#allocation6 + $0xf8] sm:$0xff]
    %v2728 = vunpack.c.l.b16 %v2664
    %v2729 = vunpack.c.h.b16 %v2664
    %v2730 = vunpack.c.l.b16 %v2665
    %v2731 = vunpack.c.h.b16 %v2665
    %v2732 = vunpack.c.l.b16 %v2666
    %v2733 = vunpack.c.h.b16 %v2666
    %v2734 = vunpack.c.l.b16 %v2667
    %v2735 = vunpack.c.h.b16 %v2667
    %v2736 = vunpack.c.l.b16 %v2668
    %v2737 = vunpack.c.h.b16 %v2668
    %v2738 = vunpack.c.l.b16 %v2669
    %v2739 = vunpack.c.h.b16 %v2669
    %v2740 = vunpack.c.l.b16 %v2670
    %v2741 = vunpack.c.h.b16 %v2670
    %v2742 = vunpack.c.l.b16 %v2671
    %v2743 = vunpack.c.h.b16 %v2671
    %v2744 = vunpack.c.l.b16 %v2672
    %v2745 = vunpack.c.h.b16 %v2672
    %v2746 = vunpack.c.l.b16 %v2673
    %v2747 = vunpack.c.h.b16 %v2673
    %v2748 = vunpack.c.l.b16 %v2674
    %v2749 = vunpack.c.h.b16 %v2674
    %v2750 = vunpack.c.l.b16 %v2675
    %v2751 = vunpack.c.h.b16 %v2675
    %v2752 = vunpack.c.l.b16 %v2676
    %v2753 = vunpack.c.h.b16 %v2676
    %v2754 = vunpack.c.l.b16 %v2677
    %v2755 = vunpack.c.h.b16 %v2677
    %v2756 = vunpack.c.l.b16 %v2678
    %v2757 = vunpack.c.h.b16 %v2678
    %v2758 = vunpack.c.l.b16 %v2679
    %v2759 = vunpack.c.h.b16 %v2679
    %v2760 = vunpack.c.l.b16 %v2680
    %v2761 = vunpack.c.h.b16 %v2680
    %v2762 = vunpack.c.l.b16 %v2681
    %v2763 = vunpack.c.h.b16 %v2681
    %v2764 = vunpack.c.l.b16 %v2682
    %v2765 = vunpack.c.h.b16 %v2682
    %v2766 = vunpack.c.l.b16 %v2683
    %v2767 = vunpack.c.h.b16 %v2683
    %v2768 = vunpack.c.l.b16 %v2684
    %v2769 = vunpack.c.h.b16 %v2684
    %v2770 = vunpack.c.l.b16 %v2685
    %v2771 = vunpack.c.h.b16 %v2685
    %v2772 = vunpack.c.l.b16 %v2686
    %v2773 = vunpack.c.h.b16 %v2686
    %v2774 = vunpack.c.l.b16 %v2687
    %v2775 = vunpack.c.h.b16 %v2687
    %v2776 = vunpack.c.l.b16 %v2688
    %v2777 = vunpack.c.h.b16 %v2688
    %v2778 = vunpack.c.l.b16 %v2689
    %v2779 = vunpack.c.h.b16 %v2689
    %v2780 = vunpack.c.l.b16 %v2690
    %v2781 = vunpack.c.h.b16 %v2690
    %v2782 = vunpack.c.l.b16 %v2691
    %v2783 = vunpack.c.h.b16 %v2691
    %v2784 = vunpack.c.l.b16 %v2692
    %v2785 = vunpack.c.h.b16 %v2692
    %v2786 = vunpack.c.l.b16 %v2693
    %v2787 = vunpack.c.h.b16 %v2693
    %v2788 = vunpack.c.l.b16 %v2694
    %v2789 = vunpack.c.h.b16 %v2694
    %v2790 = vunpack.c.l.b16 %v2695
    %v2791 = vunpack.c.h.b16 %v2695
    %v2792 = vpack.c.b16 %v2732, %v2728
    %v2793 = vpack.c.b16 %v2733, %v2729
    %v2794 = vpack.c.b16 %v2734, %v2730
    %v2795 = vpack.c.b16 %v2735, %v2731
    %v2796 = vpack.c.b16 %v2740, %v2736
    %v2797 = vpack.c.b16 %v2741, %v2737
    %v2798 = vpack.c.b16 %v2742, %v2738
    %v2799 = vpack.c.b16 %v2743, %v2739
    %v2800 = vpack.c.b16 %v2748, %v2744
    %v2801 = vpack.c.b16 %v2749, %v2745
    %v2802 = vpack.c.b16 %v2750, %v2746
    %v2803 = vpack.c.b16 %v2751, %v2747
    %v2804 = vpack.c.b16 %v2756, %v2752
    %v2805 = vpack.c.b16 %v2757, %v2753
    %v2806 = vpack.c.b16 %v2758, %v2754
    %v2807 = vpack.c.b16 %v2759, %v2755
    %v2808 = vpack.c.b16 %v2764, %v2760
    %v2809 = vpack.c.b16 %v2765, %v2761
    %v2810 = vpack.c.b16 %v2766, %v2762
    %v2811 = vpack.c.b16 %v2767, %v2763
    %v2812 = vpack.c.b16 %v2772, %v2768
    %v2813 = vpack.c.b16 %v2773, %v2769
    %v2814 = vpack.c.b16 %v2774, %v2770
    %v2815 = vpack.c.b16 %v2775, %v2771
    %v2816 = vpack.c.b16 %v2780, %v2776
    %v2817 = vpack.c.b16 %v2781, %v2777
    %v2818 = vpack.c.b16 %v2782, %v2778
    %v2819 = vpack.c.b16 %v2783, %v2779
    %v2820 = vpack.c.b16 %v2788, %v2784
    %v2821 = vpack.c.b16 %v2789, %v2785
    %v2822 = vpack.c.b16 %v2790, %v2786
    %v2823 = vpack.c.b16 %v2791, %v2787
    %2856 = vmatprep.subr.bf16.mxu0 %v2821
    %2857 = vmatpush1.bf16.msra.mxu0 %v2820
    %2858 = vmatprep.subr.bf16.mxu0 %v2817
    %2859 = vmatpush1.bf16.msra.mxu0 %v2816
    %2860 = vmatprep.subr.bf16.mxu0 %v2813
    %2861 = vmatpush1.bf16.msra.mxu0 %v2812
    %2862 = vmatprep.subr.bf16.mxu0 %v2809
    %2863 = vmatpush1.bf16.msra.mxu0 %v2808
    %2864 = vmatprep.subr.bf16.mxu0 %v2805
    %2865 = vmatpush1.bf16.msra.mxu0 %v2804
    %2866 = vmatprep.subr.bf16.mxu0 %v2801
    %2867 = vmatpush1.bf16.msra.mxu0 %v2800
    %2868 = vmatprep.subr.bf16.mxu0 %v2797
    %2869 = vmatpush1.bf16.msra.mxu0 %v2796
    %2870 = vmatprep.subr.bf16.mxu0 %v2793
    %2871 = vmatpush1.bf16.msra.mxu0 %v2792
    %2872 = vmatprep.subr.bf16.mxu0 0
    %2873 = vmatpush2.bf16.msra.mxu0 0
    %2874 = vmatprep.subr.bf16.mxu0 0
    %2875 = vmatpush2.bf16.msra.mxu0 0
    %2876 = vmatprep.subr.bf16.mxu0 0
    %2877 = vmatpush2.bf16.msra.mxu0 0
    %2878 = vmatprep.subr.bf16.mxu0 0
    %2879 = vmatpush2.bf16.msra.mxu0 0
    %2880 = vmatprep.subr.bf16.mxu0 0
    %2881 = vmatpush2.bf16.msra.mxu0 0
    %2882 = vmatprep.subr.bf16.mxu0 0
    %2883 = vmatpush2.bf16.msra.mxu0 0
    %2884 = vmatprep.subr.bf16.mxu0 0
    %2885 = vmatpush2.bf16.msra.mxu0 0
    %2886 = vmatprep.subr.bf16.mxu0 0
    %2887 = vmatpush2.bf16.msra.mxu0 0
    %2888 = vmatprep.mubr.bf16.mxu0 0
    %2889 = vmatmul.mubr.bf16.gmra.mxu0 %v2663
    %v2890 = vpop.f32.mrf.mxu0
    %v2891 = vadd.f32 0.0, %v2890
    %v2892 = vpop.f32.mrf.mxu0
    %v2893 = vadd.f32 0.0, %v2892
    %v2894 = vpop.f32.mrf.mxu0
    %v2895 = vpop.f32.mrf.mxu0
    %2896 = vdwg.mxu0
    %2897 = vmatprep.subr.bf16.mxu0 %v2823
    %2898 = vmatpush1.bf16.msra.mxu0 %v2822
    %2899 = vmatprep.subr.bf16.mxu0 %v2819
    %2900 = vmatpush1.bf16.msra.mxu0 %v2818
    %2901 = vmatprep.subr.bf16.mxu0 %v2815
    %2902 = vmatpush1.bf16.msra.mxu0 %v2814
    %2903 = vmatprep.subr.bf16.mxu0 %v2811
    %2904 = vmatpush1.bf16.msra.mxu0 %v2810
    %2905 = vmatprep.subr.bf16.mxu0 %v2807
    %2906 = vmatpush1.bf16.msra.mxu0 %v2806
    %2907 = vmatprep.subr.bf16.mxu0 %v2803
    %2908 = vmatpush1.bf16.msra.mxu0 %v2802
    %2909 = vmatprep.subr.bf16.mxu0 %v2799
    %2910 = vmatpush1.bf16.msra.mxu0 %v2798
    %2911 = vmatprep.subr.bf16.mxu0 %v2795
    %2912 = vmatpush1.bf16.msra.mxu0 %v2794
    %2913 = vmatprep.subr.bf16.mxu0 0
    %2914 = vmatpush2.bf16.msra.mxu0 0
    %2915 = vmatprep.subr.bf16.mxu0 0
    %2916 = vmatpush2.bf16.msra.mxu0 0
    %2917 = vmatprep.subr.bf16.mxu0 0
    %2918 = vmatpush2.bf16.msra.mxu0 0
    %2919 = vmatprep.subr.bf16.mxu0 0
    %2920 = vmatpush2.bf16.msra.mxu0 0
    %2921 = vmatprep.subr.bf16.mxu0 0
    %2922 = vmatpush2.bf16.msra.mxu0 0
    %2923 = vmatprep.subr.bf16.mxu0 0
    %2924 = vmatpush2.bf16.msra.mxu0 0
    %2925 = vmatprep.subr.bf16.mxu0 0
    %2926 = vmatpush2.bf16.msra.mxu0 0
    %2927 = vmatprep.subr.bf16.mxu0 0
    %2928 = vmatpush2.bf16.msra.mxu0 0
    %2929 = vmatprep.mubr.bf16.mxu0 0
    %2930 = vmatmul.mubr.bf16.gmra.mxu0 %v2663
    %v2931 = vpop.f32.mrf.mxu0
    %v2932 = vadd.f32 0.0, %v2931
    %v2933 = vpop.f32.mrf.mxu0
    %v2934 = vadd.f32 0.0, %v2933
    %v2935 = vpop.f32.mrf.mxu0
    %v2936 = vpop.f32.mrf.mxu0
    %2937 = vdwg.mxu0
    %v2938 = vadd.f32 %v2659, %v2891
    %v2939 = vadd.f32 %v2660, %v2893
    %v2940 = vadd.f32 %v2661, %v2932
    %v2941 = vadd.f32 %v2662, %v2934
    %v2942 = vxor.u32 %v2938, 2147483648
    %v2943 = vmul.f32 %v2942, 1.442695
    %v2944 = vpow.pop %v2943
    %v2945 = vadd.f32 %v2944, 1.0
    %v2946 = vrcp.pop %v2945
    %v2947 = vmul.f32 1.0, %v2946
    %v2948 = vxor.u32 %v2939, 2147483648
    %v2949 = vmul.f32 %v2948, 1.442695
    %v2950 = vpow.pop %v2949
    %v2951 = vadd.f32 %v2950, 1.0
    %v2952 = vrcp.pop %v2951
    %v2953 = vmul.f32 1.0, %v2952
    %v2954 = vtanh.pop %v2940
    %v2955 = vxor.u32 %v2941, 2147483648
    %v2956 = vmul.f32 %v2955, 1.442695
    %v2957 = vpow.pop %v2956
    %v2958 = vadd.f32 %v2957, 1.0
    %v2959 = vrcp.pop %v2958
    %v2960 = vmul.f32 1.0, %v2959
    %v2961 = vmul.f32 %v2953, %v2347
    %v2962 = vmul.f32 %v2947, %v2954
    %v2963 = vadd.f32 %v2961, %v2962
    %v2964 = vtanh.pop %v2963
    %v2965 = vmul.f32 %v2960, %v2964
    %2966 = vst [vmem:[#allocation4 + $0x30] sm:$0xff] %v2965
    %v2967 = vld [vmem:[#allocation3 + $0x80] sm:$0xff]
    %v2968 = vld [vmem:[#allocation3 + $0x88] sm:$0xff]
    %v2969 = vld [vmem:[#allocation3 + $0x90] sm:$0xff]
    %v2970 = vld [vmem:[#allocation3 + $0x98] sm:$0xff]
    %v2971 = vpack.c.bf16 %v2657, %v2657
    %v2972 = vld [vmem:[#allocation10] sm:$0xff]
    %v2973 = vld [vmem:[#allocation10 + $0x8] sm:$0xff]
    %v2974 = vld [vmem:[#allocation10 + $0x10] sm:$0xff]
    %v2975 = vld [vmem:[#allocation10 + $0x18] sm:$0xff]
    %v2976 = vld [vmem:[#allocation10 + $0x20] sm:$0xff]
    %v2977 = vld [vmem:[#allocation10 + $0x28] sm:$0xff]
    %v2978 = vld [vmem:[#allocation10 + $0x30] sm:$0xff]
    %v2979 = vld [vmem:[#allocation10 + $0x38] sm:$0xff]
    %v2980 = vld [vmem:[#allocation10 + $0x40] sm:$0xff]
    %v2981 = vld [vmem:[#allocation10 + $0x48] sm:$0xff]
    %v2982 = vld [vmem:[#allocation10 + $0x50] sm:$0xff]
    %v2983 = vld [vmem:[#allocation10 + $0x58] sm:$0xff]
    %v2984 = vld [vmem:[#allocation10 + $0x60] sm:$0xff]
    %v2985 = vld [vmem:[#allocation10 + $0x68] sm:$0xff]
    %v2986 = vld [vmem:[#allocation10 + $0x70] sm:$0xff]
    %v2987 = vld [vmem:[#allocation10 + $0x78] sm:$0xff]
    %v2988 = vld [vmem:[#allocation10 + $0x80] sm:$0xff]
    %v2989 = vld [vmem:[#allocation10 + $0x88] sm:$0xff]
    %v2990 = vld [vmem:[#allocation10 + $0x90] sm:$0xff]
    %v2991 = vld [vmem:[#allocation10 + $0x98] sm:$0xff]
    %v2992 = vld [vmem:[#allocation10 + $0xa0] sm:$0xff]
    %v2993 = vld [vmem:[#allocation10 + $0xa8] sm:$0xff]
    %v2994 = vld [vmem:[#allocation10 + $0xb0] sm:$0xff]
    %v2995 = vld [vmem:[#allocation10 + $0xb8] sm:$0xff]
    %v2996 = vld [vmem:[#allocation10 + $0xc0] sm:$0xff]
    %v2997 = vld [vmem:[#allocation10 + $0xc8] sm:$0xff]
    %v2998 = vld [vmem:[#allocation10 + $0xd0] sm:$0xff]
    %v2999 = vld [vmem:[#allocation10 + $0xd8] sm:$0xff]
    %v3000 = vld [vmem:[#allocation10 + $0xe0] sm:$0xff]
    %v3001 = vld [vmem:[#allocation10 + $0xe8] sm:$0xff]
    %v3002 = vld [vmem:[#allocation10 + $0xf0] sm:$0xff]
    %v3003 = vld [vmem:[#allocation10 + $0xf8] sm:$0xff]
    %v3036 = vunpack.c.l.b16 %v2972
    %v3037 = vunpack.c.h.b16 %v2972
    %v3038 = vunpack.c.l.b16 %v2973
    %v3039 = vunpack.c.h.b16 %v2973
    %v3040 = vunpack.c.l.b16 %v2974
    %v3041 = vunpack.c.h.b16 %v2974
    %v3042 = vunpack.c.l.b16 %v2975
    %v3043 = vunpack.c.h.b16 %v2975
    %v3044 = vunpack.c.l.b16 %v2976
    %v3045 = vunpack.c.h.b16 %v2976
    %v3046 = vunpack.c.l.b16 %v2977
    %v3047 = vunpack.c.h.b16 %v2977
    %v3048 = vunpack.c.l.b16 %v2978
    %v3049 = vunpack.c.h.b16 %v2978
    %v3050 = vunpack.c.l.b16 %v2979
    %v3051 = vunpack.c.h.b16 %v2979
    %v3052 = vunpack.c.l.b16 %v2980
    %v3053 = vunpack.c.h.b16 %v2980
    %v3054 = vunpack.c.l.b16 %v2981
    %v3055 = vunpack.c.h.b16 %v2981
    %v3056 = vunpack.c.l.b16 %v2982
    %v3057 = vunpack.c.h.b16 %v2982
    %v3058 = vunpack.c.l.b16 %v2983
    %v3059 = vunpack.c.h.b16 %v2983
    %v3060 = vunpack.c.l.b16 %v2984
    %v3061 = vunpack.c.h.b16 %v2984
    %v3062 = vunpack.c.l.b16 %v2985
    %v3063 = vunpack.c.h.b16 %v2985
    %v3064 = vunpack.c.l.b16 %v2986
    %v3065 = vunpack.c.h.b16 %v2986
    %v3066 = vunpack.c.l.b16 %v2987
    %v3067 = vunpack.c.h.b16 %v2987
    %v3068 = vunpack.c.l.b16 %v2988
    %v3069 = vunpack.c.h.b16 %v2988
    %v3070 = vunpack.c.l.b16 %v2989
    %v3071 = vunpack.c.h.b16 %v2989
    %v3072 = vunpack.c.l.b16 %v2990
    %v3073 = vunpack.c.h.b16 %v2990
    %v3074 = vunpack.c.l.b16 %v2991
    %v3075 = vunpack.c.h.b16 %v2991
    %v3076 = vunpack.c.l.b16 %v2992
    %v3077 = vunpack.c.h.b16 %v2992
    %v3078 = vunpack.c.l.b16 %v2993
    %v3079 = vunpack.c.h.b16 %v2993
    %v3080 = vunpack.c.l.b16 %v2994
    %v3081 = vunpack.c.h.b16 %v2994
    %v3082 = vunpack.c.l.b16 %v2995
    %v3083 = vunpack.c.h.b16 %v2995
    %v3084 = vunpack.c.l.b16 %v2996
    %v3085 = vunpack.c.h.b16 %v2996
    %v3086 = vunpack.c.l.b16 %v2997
    %v3087 = vunpack.c.h.b16 %v2997
    %v3088 = vunpack.c.l.b16 %v2998
    %v3089 = vunpack.c.h.b16 %v2998
    %v3090 = vunpack.c.l.b16 %v2999
    %v3091 = vunpack.c.h.b16 %v2999
    %v3092 = vunpack.c.l.b16 %v3000
    %v3093 = vunpack.c.h.b16 %v3000
    %v3094 = vunpack.c.l.b16 %v3001
    %v3095 = vunpack.c.h.b16 %v3001
    %v3096 = vunpack.c.l.b16 %v3002
    %v3097 = vunpack.c.h.b16 %v3002
    %v3098 = vunpack.c.l.b16 %v3003
    %v3099 = vunpack.c.h.b16 %v3003
    %v3100 = vpack.c.b16 %v3040, %v3036
    %v3101 = vpack.c.b16 %v3041, %v3037
    %v3102 = vpack.c.b16 %v3042, %v3038
    %v3103 = vpack.c.b16 %v3043, %v3039
    %v3104 = vpack.c.b16 %v3048, %v3044
    %v3105 = vpack.c.b16 %v3049, %v3045
    %v3106 = vpack.c.b16 %v3050, %v3046
    %v3107 = vpack.c.b16 %v3051, %v3047
    %v3108 = vpack.c.b16 %v3056, %v3052
    %v3109 = vpack.c.b16 %v3057, %v3053
    %v3110 = vpack.c.b16 %v3058, %v3054
    %v3111 = vpack.c.b16 %v3059, %v3055
    %v3112 = vpack.c.b16 %v3064, %v3060
    %v3113 = vpack.c.b16 %v3065, %v3061
    %v3114 = vpack.c.b16 %v3066, %v3062
    %v3115 = vpack.c.b16 %v3067, %v3063
    %v3116 = vpack.c.b16 %v3072, %v3068
    %v3117 = vpack.c.b16 %v3073, %v3069
    %v3118 = vpack.c.b16 %v3074, %v3070
    %v3119 = vpack.c.b16 %v3075, %v3071
    %v3120 = vpack.c.b16 %v3080, %v3076
    %v3121 = vpack.c.b16 %v3081, %v3077
    %v3122 = vpack.c.b16 %v3082, %v3078
    %v3123 = vpack.c.b16 %v3083, %v3079
    %v3124 = vpack.c.b16 %v3088, %v3084
    %v3125 = vpack.c.b16 %v3089, %v3085
    %v3126 = vpack.c.b16 %v3090, %v3086
    %v3127 = vpack.c.b16 %v3091, %v3087
    %v3128 = vpack.c.b16 %v3096, %v3092
    %v3129 = vpack.c.b16 %v3097, %v3093
    %v3130 = vpack.c.b16 %v3098, %v3094
    %v3131 = vpack.c.b16 %v3099, %v3095
    %3164 = vmatprep.subr.bf16.mxu0 %v3129
    %3165 = vmatpush1.bf16.msra.mxu0 %v3128
    %3166 = vmatprep.subr.bf16.mxu0 %v3125
    %3167 = vmatpush1.bf16.msra.mxu0 %v3124
    %3168 = vmatprep.subr.bf16.mxu0 %v3121
    %3169 = vmatpush1.bf16.msra.mxu0 %v3120
    %3170 = vmatprep.subr.bf16.mxu0 %v3117
    %3171 = vmatpush1.bf16.msra.mxu0 %v3116
    %3172 = vmatprep.subr.bf16.mxu0 %v3113
    %3173 = vmatpush1.bf16.msra.mxu0 %v3112
    %3174 = vmatprep.subr.bf16.mxu0 %v3109
    %3175 = vmatpush1.bf16.msra.mxu0 %v3108
    %3176 = vmatprep.subr.bf16.mxu0 %v3105
    %3177 = vmatpush1.bf16.msra.mxu0 %v3104
    %3178 = vmatprep.subr.bf16.mxu0 %v3101
    %3179 = vmatpush1.bf16.msra.mxu0 %v3100
    %3180 = vmatprep.subr.bf16.mxu0 0
    %3181 = vmatpush2.bf16.msra.mxu0 0
    %3182 = vmatprep.subr.bf16.mxu0 0
    %3183 = vmatpush2.bf16.msra.mxu0 0
    %3184 = vmatprep.subr.bf16.mxu0 0
    %3185 = vmatpush2.bf16.msra.mxu0 0
    %3186 = vmatprep.subr.bf16.mxu0 0
    %3187 = vmatpush2.bf16.msra.mxu0 0
    %3188 = vmatprep.subr.bf16.mxu0 0
    %3189 = vmatpush2.bf16.msra.mxu0 0
    %3190 = vmatprep.subr.bf16.mxu0 0
    %3191 = vmatpush2.bf16.msra.mxu0 0
    %3192 = vmatprep.subr.bf16.mxu0 0
    %3193 = vmatpush2.bf16.msra.mxu0 0
    %3194 = vmatprep.subr.bf16.mxu0 0
    %3195 = vmatpush2.bf16.msra.mxu0 0
    %3196 = vmatprep.mubr.bf16.mxu0 0
    %3197 = vmatmul.mubr.bf16.gmra.mxu0 %v2971
    %v3198 = vpop.f32.mrf.mxu0
    %v3199 = vadd.f32 0.0, %v3198
    %v3200 = vpop.f32.mrf.mxu0
    %v3201 = vadd.f32 0.0, %v3200
    %v3202 = vpop.f32.mrf.mxu0
    %v3203 = vpop.f32.mrf.mxu0
    %3204 = vdwg.mxu0
    %3205 = vmatprep.subr.bf16.mxu0 %v3131
    %3206 = vmatpush1.bf16.msra.mxu0 %v3130
    %3207 = vmatprep.subr.bf16.mxu0 %v3127
    %3208 = vmatpush1.bf16.msra.mxu0 %v3126
    %3209 = vmatprep.subr.bf16.mxu0 %v3123
    %3210 = vmatpush1.bf16.msra.mxu0 %v3122
    %3211 = vmatprep.subr.bf16.mxu0 %v3119
    %3212 = vmatpush1.bf16.msra.mxu0 %v3118
    %3213 = vmatprep.subr.bf16.mxu0 %v3115
    %3214 = vmatpush1.bf16.msra.mxu0 %v3114
    %3215 = vmatprep.subr.bf16.mxu0 %v3111
    %3216 = vmatpush1.bf16.msra.mxu0 %v3110
    %3217 = vmatprep.subr.bf16.mxu0 %v3107
    %3218 = vmatpush1.bf16.msra.mxu0 %v3106
    %3219 = vmatprep.subr.bf16.mxu0 %v3103
    %3220 = vmatpush1.bf16.msra.mxu0 %v3102
    %3221 = vmatprep.subr.bf16.mxu0 0
    %3222 = vmatpush2.bf16.msra.mxu0 0
    %3223 = vmatprep.subr.bf16.mxu0 0
    %3224 = vmatpush2.bf16.msra.mxu0 0
    %3225 = vmatprep.subr.bf16.mxu0 0
    %3226 = vmatpush2.bf16.msra.mxu0 0
    %3227 = vmatprep.subr.bf16.mxu0 0
    %3228 = vmatpush2.bf16.msra.mxu0 0
    %3229 = vmatprep.subr.bf16.mxu0 0
    %3230 = vmatpush2.bf16.msra.mxu0 0
    %3231 = vmatprep.subr.bf16.mxu0 0
    %3232 = vmatpush2.bf16.msra.mxu0 0
    %3233 = vmatprep.subr.bf16.mxu0 0
    %3234 = vmatpush2.bf16.msra.mxu0 0
    %3235 = vmatprep.subr.bf16.mxu0 0
    %3236 = vmatpush2.bf16.msra.mxu0 0
    %3237 = vmatprep.mubr.bf16.mxu0 0
    %3238 = vmatmul.mubr.bf16.gmra.mxu0 %v2971
    %v3239 = vpop.f32.mrf.mxu0
    %v3240 = vadd.f32 0.0, %v3239
    %v3241 = vpop.f32.mrf.mxu0
    %v3242 = vadd.f32 0.0, %v3241
    %v3243 = vpop.f32.mrf.mxu0
    %v3244 = vpop.f32.mrf.mxu0
    %3245 = vdwg.mxu0
    %v3246 = vadd.f32 %v2967, %v3199
    %v3247 = vadd.f32 %v2968, %v3201
    %v3248 = vadd.f32 %v2969, %v3240
    %v3249 = vadd.f32 %v2970, %v3242
    %v3250 = vxor.u32 %v3246, 2147483648
    %v3251 = vmul.f32 %v3250, 1.442695
    %v3252 = vpow.pop %v3251
    %v3253 = vadd.f32 %v3252, 1.0
    %v3254 = vrcp.pop %v3253
    %v3255 = vmul.f32 1.0, %v3254
    %v3256 = vxor.u32 %v3247, 2147483648
    %v3257 = vmul.f32 %v3256, 1.442695
    %v3258 = vpow.pop %v3257
    %v3259 = vadd.f32 %v3258, 1.0
    %v3260 = vrcp.pop %v3259
    %v3261 = vmul.f32 1.0, %v3260
    %v3262 = vtanh.pop %v3248
    %v3263 = vxor.u32 %v3249, 2147483648
    %v3264 = vmul.f32 %v3263, 1.442695
    %v3265 = vpow.pop %v3264
    %v3266 = vadd.f32 %v3265, 1.0
    %v3267 = vrcp.pop %v3266
    %v3268 = vmul.f32 1.0, %v3267
    %v3269 = vmul.f32 %v3261, %v2655
    %v3270 = vmul.f32 %v3255, %v3262
    %v3271 = vadd.f32 %v3269, %v3270
    %v3272 = vtanh.pop %v3271
    %v3273 = vmul.f32 %v3268, %v3272
    %3274 = vst [vmem:[#allocation4 + $0x48] sm:$0xff] %v3273
    %v3275 = vld [vmem:[#allocation2 + $0x80] sm:$0xff]
    %v3276 = vld [vmem:[#allocation2 + $0x88] sm:$0xff]
    %v3277 = vld [vmem:[#allocation2 + $0x90] sm:$0xff]
    %v3278 = vld [vmem:[#allocation2 + $0x98] sm:$0xff]
    %v3279 = vpack.c.bf16 %v2965, %v2965
    %v3280 = vld [vmem:[#allocation6] sm:$0xff]
    %v3281 = vld [vmem:[#allocation6 + $0x8] sm:$0xff]
    %v3282 = vld [vmem:[#allocation6 + $0x10] sm:$0xff]
    %v3283 = vld [vmem:[#allocation6 + $0x18] sm:$0xff]
    %v3284 = vld [vmem:[#allocation6 + $0x20] sm:$0xff]
    %v3285 = vld [vmem:[#allocation6 + $0x28] sm:$0xff]
    %v3286 = vld [vmem:[#allocation6 + $0x30] sm:$0xff]
    %v3287 = vld [vmem:[#allocation6 + $0x38] sm:$0xff]
    %v3288 = vld [vmem:[#allocation6 + $0x40] sm:$0xff]
    %v3289 = vld [vmem:[#allocation6 + $0x48] sm:$0xff]
    %v3290 = vld [vmem:[#allocation6 + $0x50] sm:$0xff]
    %v3291 = vld [vmem:[#allocation6 + $0x58] sm:$0xff]
    %v3292 = vld [vmem:[#allocation6 + $0x60] sm:$0xff]
    %v3293 = vld [vmem:[#allocation6 + $0x68] sm:$0xff]
    %v3294 = vld [vmem:[#allocation6 + $0x70] sm:$0xff]
    %v3295 = vld [vmem:[#allocation6 + $0x78] sm:$0xff]
    %v3296 = vld [vmem:[#allocation6 + $0x80] sm:$0xff]
    %v3297 = vld [vmem:[#allocation6 + $0x88] sm:$0xff]
    %v3298 = vld [vmem:[#allocation6 + $0x90] sm:$0xff]
    %v3299 = vld [vmem:[#allocation6 + $0x98] sm:$0xff]
    %v3300 = vld [vmem:[#allocation6 + $0xa0] sm:$0xff]
    %v3301 = vld [vmem:[#allocation6 + $0xa8] sm:$0xff]
    %v3302 = vld [vmem:[#allocation6 + $0xb0] sm:$0xff]
    %v3303 = vld [vmem:[#allocation6 + $0xb8] sm:$0xff]
    %v3304 = vld [vmem:[#allocation6 + $0xc0] sm:$0xff]
    %v3305 = vld [vmem:[#allocation6 + $0xc8] sm:$0xff]
    %v3306 = vld [vmem:[#allocation6 + $0xd0] sm:$0xff]
    %v3307 = vld [vmem:[#allocation6 + $0xd8] sm:$0xff]
    %v3308 = vld [vmem:[#allocation6 + $0xe0] sm:$0xff]
    %v3309 = vld [vmem:[#allocation6 + $0xe8] sm:$0xff]
    %v3310 = vld [vmem:[#allocation6 + $0xf0] sm:$0xff]
    %v3311 = vld [vmem:[#allocation6 + $0xf8] sm:$0xff]
    %v3344 = vunpack.c.l.b16 %v3280
    %v3345 = vunpack.c.h.b16 %v3280
    %v3346 = vunpack.c.l.b16 %v3281
    %v3347 = vunpack.c.h.b16 %v3281
    %v3348 = vunpack.c.l.b16 %v3282
    %v3349 = vunpack.c.h.b16 %v3282
    %v3350 = vunpack.c.l.b16 %v3283
    %v3351 = vunpack.c.h.b16 %v3283
    %v3352 = vunpack.c.l.b16 %v3284
    %v3353 = vunpack.c.h.b16 %v3284
    %v3354 = vunpack.c.l.b16 %v3285
    %v3355 = vunpack.c.h.b16 %v3285
    %v3356 = vunpack.c.l.b16 %v3286
    %v3357 = vunpack.c.h.b16 %v3286
    %v3358 = vunpack.c.l.b16 %v3287
    %v3359 = vunpack.c.h.b16 %v3287
    %v3360 = vunpack.c.l.b16 %v3288
    %v3361 = vunpack.c.h.b16 %v3288
    %v3362 = vunpack.c.l.b16 %v3289
    %v3363 = vunpack.c.h.b16 %v3289
    %v3364 = vunpack.c.l.b16 %v3290
    %v3365 = vunpack.c.h.b16 %v3290
    %v3366 = vunpack.c.l.b16 %v3291
    %v3367 = vunpack.c.h.b16 %v3291
    %v3368 = vunpack.c.l.b16 %v3292
    %v3369 = vunpack.c.h.b16 %v3292
    %v3370 = vunpack.c.l.b16 %v3293
    %v3371 = vunpack.c.h.b16 %v3293
    %v3372 = vunpack.c.l.b16 %v3294
    %v3373 = vunpack.c.h.b16 %v3294
    %v3374 = vunpack.c.l.b16 %v3295
    %v3375 = vunpack.c.h.b16 %v3295
    %v3376 = vunpack.c.l.b16 %v3296
    %v3377 = vunpack.c.h.b16 %v3296
    %v3378 = vunpack.c.l.b16 %v3297
    %v3379 = vunpack.c.h.b16 %v3297
    %v3380 = vunpack.c.l.b16 %v3298
    %v3381 = vunpack.c.h.b16 %v3298
    %v3382 = vunpack.c.l.b16 %v3299
    %v3383 = vunpack.c.h.b16 %v3299
    %v3384 = vunpack.c.l.b16 %v3300
    %v3385 = vunpack.c.h.b16 %v3300
    %v3386 = vunpack.c.l.b16 %v3301
    %v3387 = vunpack.c.h.b16 %v3301
    %v3388 = vunpack.c.l.b16 %v3302
    %v3389 = vunpack.c.h.b16 %v3302
    %v3390 = vunpack.c.l.b16 %v3303
    %v3391 = vunpack.c.h.b16 %v3303
    %v3392 = vunpack.c.l.b16 %v3304
    %v3393 = vunpack.c.h.b16 %v3304
    %v3394 = vunpack.c.l.b16 %v3305
    %v3395 = vunpack.c.h.b16 %v3305
    %v3396 = vunpack.c.l.b16 %v3306
    %v3397 = vunpack.c.h.b16 %v3306
    %v3398 = vunpack.c.l.b16 %v3307
    %v3399 = vunpack.c.h.b16 %v3307
    %v3400 = vunpack.c.l.b16 %v3308
    %v3401 = vunpack.c.h.b16 %v3308
    %v3402 = vunpack.c.l.b16 %v3309
    %v3403 = vunpack.c.h.b16 %v3309
    %v3404 = vunpack.c.l.b16 %v3310
    %v3405 = vunpack.c.h.b16 %v3310
    %v3406 = vunpack.c.l.b16 %v3311
    %v3407 = vunpack.c.h.b16 %v3311
    %v3408 = vpack.c.b16 %v3348, %v3344
    %v3409 = vpack.c.b16 %v3349, %v3345
    %v3410 = vpack.c.b16 %v3350, %v3346
    %v3411 = vpack.c.b16 %v3351, %v3347
    %v3412 = vpack.c.b16 %v3356, %v3352
    %v3413 = vpack.c.b16 %v3357, %v3353
    %v3414 = vpack.c.b16 %v3358, %v3354
    %v3415 = vpack.c.b16 %v3359, %v3355
    %v3416 = vpack.c.b16 %v3364, %v3360
    %v3417 = vpack.c.b16 %v3365, %v3361
    %v3418 = vpack.c.b16 %v3366, %v3362
    %v3419 = vpack.c.b16 %v3367, %v3363
    %v3420 = vpack.c.b16 %v3372, %v3368
    %v3421 = vpack.c.b16 %v3373, %v3369
    %v3422 = vpack.c.b16 %v3374, %v3370
    %v3423 = vpack.c.b16 %v3375, %v3371
    %v3424 = vpack.c.b16 %v3380, %v3376
    %v3425 = vpack.c.b16 %v3381, %v3377
    %v3426 = vpack.c.b16 %v3382, %v3378
    %v3427 = vpack.c.b16 %v3383, %v3379
    %v3428 = vpack.c.b16 %v3388, %v3384
    %v3429 = vpack.c.b16 %v3389, %v3385
    %v3430 = vpack.c.b16 %v3390, %v3386
    %v3431 = vpack.c.b16 %v3391, %v3387
    %v3432 = vpack.c.b16 %v3396, %v3392
    %v3433 = vpack.c.b16 %v3397, %v3393
    %v3434 = vpack.c.b16 %v3398, %v3394
    %v3435 = vpack.c.b16 %v3399, %v3395
    %v3436 = vpack.c.b16 %v3404, %v3400
    %v3437 = vpack.c.b16 %v3405, %v3401
    %v3438 = vpack.c.b16 %v3406, %v3402
    %v3439 = vpack.c.b16 %v3407, %v3403
    %3472 = vmatprep.subr.bf16.mxu0 %v3437
    %3473 = vmatpush1.bf16.msra.mxu0 %v3436
    %3474 = vmatprep.subr.bf16.mxu0 %v3433
    %3475 = vmatpush1.bf16.msra.mxu0 %v3432
    %3476 = vmatprep.subr.bf16.mxu0 %v3429
    %3477 = vmatpush1.bf16.msra.mxu0 %v3428
    %3478 = vmatprep.subr.bf16.mxu0 %v3425
    %3479 = vmatpush1.bf16.msra.mxu0 %v3424
    %3480 = vmatprep.subr.bf16.mxu0 %v3421
    %3481 = vmatpush1.bf16.msra.mxu0 %v3420
    %3482 = vmatprep.subr.bf16.mxu0 %v3417
    %3483 = vmatpush1.bf16.msra.mxu0 %v3416
    %3484 = vmatprep.subr.bf16.mxu0 %v3413
    %3485 = vmatpush1.bf16.msra.mxu0 %v3412
    %3486 = vmatprep.subr.bf16.mxu0 %v3409
    %3487 = vmatpush1.bf16.msra.mxu0 %v3408
    %3488 = vmatprep.subr.bf16.mxu0 0
    %3489 = vmatpush2.bf16.msra.mxu0 0
    %3490 = vmatprep.subr.bf16.mxu0 0
    %3491 = vmatpush2.bf16.msra.mxu0 0
    %3492 = vmatprep.subr.bf16.mxu0 0
    %3493 = vmatpush2.bf16.msra.mxu0 0
    %3494 = vmatprep.subr.bf16.mxu0 0
    %3495 = vmatpush2.bf16.msra.mxu0 0
    %3496 = vmatprep.subr.bf16.mxu0 0
    %3497 = vmatpush2.bf16.msra.mxu0 0
    %3498 = vmatprep.subr.bf16.mxu0 0
    %3499 = vmatpush2.bf16.msra.mxu0 0
    %3500 = vmatprep.subr.bf16.mxu0 0
    %3501 = vmatpush2.bf16.msra.mxu0 0
    %3502 = vmatprep.subr.bf16.mxu0 0
    %3503 = vmatpush2.bf16.msra.mxu0 0
    %3504 = vmatprep.mubr.bf16.mxu0 0
    %3505 = vmatmul.mubr.bf16.gmra.mxu0 %v3279
    %v3506 = vpop.f32.mrf.mxu0
    %v3507 = vadd.f32 0.0, %v3506
    %v3508 = vpop.f32.mrf.mxu0
    %v3509 = vadd.f32 0.0, %v3508
    %v3510 = vpop.f32.mrf.mxu0
    %v3511 = vpop.f32.mrf.mxu0
    %3512 = vdwg.mxu0
    %3513 = vmatprep.subr.bf16.mxu0 %v3439
    %3514 = vmatpush1.bf16.msra.mxu0 %v3438
    %3515 = vmatprep.subr.bf16.mxu0 %v3435
    %3516 = vmatpush1.bf16.msra.mxu0 %v3434
    %3517 = vmatprep.subr.bf16.mxu0 %v3431
    %3518 = vmatpush1.bf16.msra.mxu0 %v3430
    %3519 = vmatprep.subr.bf16.mxu0 %v3427
    %3520 = vmatpush1.bf16.msra.mxu0 %v3426
    %3521 = vmatprep.subr.bf16.mxu0 %v3423
    %3522 = vmatpush1.bf16.msra.mxu0 %v3422
    %3523 = vmatprep.subr.bf16.mxu0 %v3419
    %3524 = vmatpush1.bf16.msra.mxu0 %v3418
    %3525 = vmatprep.subr.bf16.mxu0 %v3415
    %3526 = vmatpush1.bf16.msra.mxu0 %v3414
    %3527 = vmatprep.subr.bf16.mxu0 %v3411
    %3528 = vmatpush1.bf16.msra.mxu0 %v3410
    %3529 = vmatprep.subr.bf16.mxu0 0
    %3530 = vmatpush2.bf16.msra.mxu0 0
    %3531 = vmatprep.subr.bf16.mxu0 0
    %3532 = vmatpush2.bf16.msra.mxu0 0
    %3533 = vmatprep.subr.bf16.mxu0 0
    %3534 = vmatpush2.bf16.msra.mxu0 0
    %3535 = vmatprep.subr.bf16.mxu0 0
    %3536 = vmatpush2.bf16.msra.mxu0 0
    %3537 = vmatprep.subr.bf16.mxu0 0
    %3538 = vmatpush2.bf16.msra.mxu0 0
    %3539 = vmatprep.subr.bf16.mxu0 0
    %3540 = vmatpush2.bf16.msra.mxu0 0
    %3541 = vmatprep.subr.bf16.mxu0 0
    %3542 = vmatpush2.bf16.msra.mxu0 0
    %3543 = vmatprep.subr.bf16.mxu0 0
    %3544 = vmatpush2.bf16.msra.mxu0 0
    %3545 = vmatprep.mubr.bf16.mxu0 0
    %3546 = vmatmul.mubr.bf16.gmra.mxu0 %v3279
    %v3547 = vpop.f32.mrf.mxu0
    %v3548 = vadd.f32 0.0, %v3547
    %v3549 = vpop.f32.mrf.mxu0
    %v3550 = vadd.f32 0.0, %v3549
    %v3551 = vpop.f32.mrf.mxu0
    %v3552 = vpop.f32.mrf.mxu0
    %3553 = vdwg.mxu0
    %v3554 = vadd.f32 %v3275, %v3507
    %v3555 = vadd.f32 %v3276, %v3509
    %v3556 = vadd.f32 %v3277, %v3548
    %v3557 = vadd.f32 %v3278, %v3550
    %v3558 = vxor.u32 %v3554, 2147483648
    %v3559 = vmul.f32 %v3558, 1.442695
    %v3560 = vpow.pop %v3559
    %v3561 = vadd.f32 %v3560, 1.0
    %v3562 = vrcp.pop %v3561
    %v3563 = vmul.f32 1.0, %v3562
    %v3564 = vxor.u32 %v3555, 2147483648
    %v3565 = vmul.f32 %v3564, 1.442695
    %v3566 = vpow.pop %v3565
    %v3567 = vadd.f32 %v3566, 1.0
    %v3568 = vrcp.pop %v3567
    %v3569 = vmul.f32 1.0, %v3568
    %v3570 = vtanh.pop %v3556
    %v3571 = vxor.u32 %v3557, 2147483648
    %v3572 = vmul.f32 %v3571, 1.442695
    %v3573 = vpow.pop %v3572
    %v3574 = vadd.f32 %v3573, 1.0
    %v3575 = vrcp.pop %v3574
    %v3576 = vmul.f32 1.0, %v3575
    %v3577 = vmul.f32 %v3569, %v2963
    %v3578 = vmul.f32 %v3563, %v3570
    %v3579 = vadd.f32 %v3577, %v3578
    %v3580 = vtanh.pop %v3579
    %v3581 = vmul.f32 %v3576, %v3580
    %3582 = vst [vmem:[#allocation4 + $0x40] sm:$0xff] %v3581
    %v3583 = vld [vmem:[#allocation3 + $0x60] sm:$0xff]
    %v3584 = vld [vmem:[#allocation3 + $0x68] sm:$0xff]
    %v3585 = vld [vmem:[#allocation3 + $0x70] sm:$0xff]
    %v3586 = vld [vmem:[#allocation3 + $0x78] sm:$0xff]
    %v3587 = vpack.c.bf16 %v3273, %v3273
    %v3588 = vld [vmem:[#allocation10] sm:$0xff]
    %v3589 = vld [vmem:[#allocation10 + $0x8] sm:$0xff]
    %v3590 = vld [vmem:[#allocation10 + $0x10] sm:$0xff]
    %v3591 = vld [vmem:[#allocation10 + $0x18] sm:$0xff]
    %v3592 = vld [vmem:[#allocation10 + $0x20] sm:$0xff]
    %v3593 = vld [vmem:[#allocation10 + $0x28] sm:$0xff]
    %v3594 = vld [vmem:[#allocation10 + $0x30] sm:$0xff]
    %v3595 = vld [vmem:[#allocation10 + $0x38] sm:$0xff]
    %v3596 = vld [vmem:[#allocation10 + $0x40] sm:$0xff]
    %v3597 = vld [vmem:[#allocation10 + $0x48] sm:$0xff]
    %v3598 = vld [vmem:[#allocation10 + $0x50] sm:$0xff]
    %v3599 = vld [vmem:[#allocation10 + $0x58] sm:$0xff]
    %v3600 = vld [vmem:[#allocation10 + $0x60] sm:$0xff]
    %v3601 = vld [vmem:[#allocation10 + $0x68] sm:$0xff]
    %v3602 = vld [vmem:[#allocation10 + $0x70] sm:$0xff]
    %v3603 = vld [vmem:[#allocation10 + $0x78] sm:$0xff]
    %v3604 = vld [vmem:[#allocation10 + $0x80] sm:$0xff]
    %v3605 = vld [vmem:[#allocation10 + $0x88] sm:$0xff]
    %v3606 = vld [vmem:[#allocation10 + $0x90] sm:$0xff]
    %v3607 = vld [vmem:[#allocation10 + $0x98] sm:$0xff]
    %v3608 = vld [vmem:[#allocation10 + $0xa0] sm:$0xff]
    %v3609 = vld [vmem:[#allocation10 + $0xa8] sm:$0xff]
    %v3610 = vld [vmem:[#allocation10 + $0xb0] sm:$0xff]
    %v3611 = vld [vmem:[#allocation10 + $0xb8] sm:$0xff]
    %v3612 = vld [vmem:[#allocation10 + $0xc0] sm:$0xff]
    %v3613 = vld [vmem:[#allocation10 + $0xc8] sm:$0xff]
    %v3614 = vld [vmem:[#allocation10 + $0xd0] sm:$0xff]
    %v3615 = vld [vmem:[#allocation10 + $0xd8] sm:$0xff]
    %v3616 = vld [vmem:[#allocation10 + $0xe0] sm:$0xff]
    %v3617 = vld [vmem:[#allocation10 + $0xe8] sm:$0xff]
    %v3618 = vld [vmem:[#allocation10 + $0xf0] sm:$0xff]
    %v3619 = vld [vmem:[#allocation10 + $0xf8] sm:$0xff]
    %v3652 = vunpack.c.l.b16 %v3588
    %v3653 = vunpack.c.h.b16 %v3588
    %v3654 = vunpack.c.l.b16 %v3589
    %v3655 = vunpack.c.h.b16 %v3589
    %v3656 = vunpack.c.l.b16 %v3590
    %v3657 = vunpack.c.h.b16 %v3590
    %v3658 = vunpack.c.l.b16 %v3591
    %v3659 = vunpack.c.h.b16 %v3591
    %v3660 = vunpack.c.l.b16 %v3592
    %v3661 = vunpack.c.h.b16 %v3592
    %v3662 = vunpack.c.l.b16 %v3593
    %v3663 = vunpack.c.h.b16 %v3593
    %v3664 = vunpack.c.l.b16 %v3594
    %v3665 = vunpack.c.h.b16 %v3594
    %v3666 = vunpack.c.l.b16 %v3595
    %v3667 = vunpack.c.h.b16 %v3595
    %v3668 = vunpack.c.l.b16 %v3596
    %v3669 = vunpack.c.h.b16 %v3596
    %v3670 = vunpack.c.l.b16 %v3597
    %v3671 = vunpack.c.h.b16 %v3597
    %v3672 = vunpack.c.l.b16 %v3598
    %v3673 = vunpack.c.h.b16 %v3598
    %v3674 = vunpack.c.l.b16 %v3599
    %v3675 = vunpack.c.h.b16 %v3599
    %v3676 = vunpack.c.l.b16 %v3600
    %v3677 = vunpack.c.h.b16 %v3600
    %v3678 = vunpack.c.l.b16 %v3601
    %v3679 = vunpack.c.h.b16 %v3601
    %v3680 = vunpack.c.l.b16 %v3602
    %v3681 = vunpack.c.h.b16 %v3602
    %v3682 = vunpack.c.l.b16 %v3603
    %v3683 = vunpack.c.h.b16 %v3603
    %v3684 = vunpack.c.l.b16 %v3604
    %v3685 = vunpack.c.h.b16 %v3604
    %v3686 = vunpack.c.l.b16 %v3605
    %v3687 = vunpack.c.h.b16 %v3605
    %v3688 = vunpack.c.l.b16 %v3606
    %v3689 = vunpack.c.h.b16 %v3606
    %v3690 = vunpack.c.l.b16 %v3607
    %v3691 = vunpack.c.h.b16 %v3607
    %v3692 = vunpack.c.l.b16 %v3608
    %v3693 = vunpack.c.h.b16 %v3608
    %v3694 = vunpack.c.l.b16 %v3609
    %v3695 = vunpack.c.h.b16 %v3609
    %v3696 = vunpack.c.l.b16 %v3610
    %v3697 = vunpack.c.h.b16 %v3610
    %v3698 = vunpack.c.l.b16 %v3611
    %v3699 = vunpack.c.h.b16 %v3611
    %v3700 = vunpack.c.l.b16 %v3612
    %v3701 = vunpack.c.h.b16 %v3612
    %v3702 = vunpack.c.l.b16 %v3613
    %v3703 = vunpack.c.h.b16 %v3613
    %v3704 = vunpack.c.l.b16 %v3614
    %v3705 = vunpack.c.h.b16 %v3614
    %v3706 = vunpack.c.l.b16 %v3615
    %v3707 = vunpack.c.h.b16 %v3615
    %v3708 = vunpack.c.l.b16 %v3616
    %v3709 = vunpack.c.h.b16 %v3616
    %v3710 = vunpack.c.l.b16 %v3617
    %v3711 = vunpack.c.h.b16 %v3617
    %v3712 = vunpack.c.l.b16 %v3618
    %v3713 = vunpack.c.h.b16 %v3618
    %v3714 = vunpack.c.l.b16 %v3619
    %v3715 = vunpack.c.h.b16 %v3619
    %v3716 = vpack.c.b16 %v3656, %v3652
    %v3717 = vpack.c.b16 %v3657, %v3653
    %v3718 = vpack.c.b16 %v3658, %v3654
    %v3719 = vpack.c.b16 %v3659, %v3655
    %v3720 = vpack.c.b16 %v3664, %v3660
    %v3721 = vpack.c.b16 %v3665, %v3661
    %v3722 = vpack.c.b16 %v3666, %v3662
    %v3723 = vpack.c.b16 %v3667, %v3663
    %v3724 = vpack.c.b16 %v3672, %v3668
    %v3725 = vpack.c.b16 %v3673, %v3669
    %v3726 = vpack.c.b16 %v3674, %v3670
    %v3727 = vpack.c.b16 %v3675, %v3671
    %v3728 = vpack.c.b16 %v3680, %v3676
    %v3729 = vpack.c.b16 %v3681, %v3677
    %v3730 = vpack.c.b16 %v3682, %v3678
    %v3731 = vpack.c.b16 %v3683, %v3679
    %v3732 = vpack.c.b16 %v3688, %v3684
    %v3733 = vpack.c.b16 %v3689, %v3685
    %v3734 = vpack.c.b16 %v3690, %v3686
    %v3735 = vpack.c.b16 %v3691, %v3687
    %v3736 = vpack.c.b16 %v3696, %v3692
    %v3737 = vpack.c.b16 %v3697, %v3693
    %v3738 = vpack.c.b16 %v3698, %v3694
    %v3739 = vpack.c.b16 %v3699, %v3695
    %v3740 = vpack.c.b16 %v3704, %v3700
    %v3741 = vpack.c.b16 %v3705, %v3701
    %v3742 = vpack.c.b16 %v3706, %v3702
    %v3743 = vpack.c.b16 %v3707, %v3703
    %v3744 = vpack.c.b16 %v3712, %v3708
    %v3745 = vpack.c.b16 %v3713, %v3709
    %v3746 = vpack.c.b16 %v3714, %v3710
    %v3747 = vpack.c.b16 %v3715, %v3711
    %3780 = vmatprep.subr.bf16.mxu0 %v3745
    %3781 = vmatpush1.bf16.msra.mxu0 %v3744
    %3782 = vmatprep.subr.bf16.mxu0 %v3741
    %3783 = vmatpush1.bf16.msra.mxu0 %v3740
    %3784 = vmatprep.subr.bf16.mxu0 %v3737
    %3785 = vmatpush1.bf16.msra.mxu0 %v3736
    %3786 = vmatprep.subr.bf16.mxu0 %v3733
    %3787 = vmatpush1.bf16.msra.mxu0 %v3732
    %3788 = vmatprep.subr.bf16.mxu0 %v3729
    %3789 = vmatpush1.bf16.msra.mxu0 %v3728
    %3790 = vmatprep.subr.bf16.mxu0 %v3725
    %3791 = vmatpush1.bf16.msra.mxu0 %v3724
    %3792 = vmatprep.subr.bf16.mxu0 %v3721
    %3793 = vmatpush1.bf16.msra.mxu0 %v3720
    %3794 = vmatprep.subr.bf16.mxu0 %v3717
    %3795 = vmatpush1.bf16.msra.mxu0 %v3716
    %3796 = vmatprep.subr.bf16.mxu0 0
    %3797 = vmatpush2.bf16.msra.mxu0 0
    %3798 = vmatprep.subr.bf16.mxu0 0
    %3799 = vmatpush2.bf16.msra.mxu0 0
    %3800 = vmatprep.subr.bf16.mxu0 0
    %3801 = vmatpush2.bf16.msra.mxu0 0
    %3802 = vmatprep.subr.bf16.mxu0 0
    %3803 = vmatpush2.bf16.msra.mxu0 0
    %3804 = vmatprep.subr.bf16.mxu0 0
    %3805 = vmatpush2.bf16.msra.mxu0 0
    %3806 = vmatprep.subr.bf16.mxu0 0
    %3807 = vmatpush2.bf16.msra.mxu0 0
    %3808 = vmatprep.subr.bf16.mxu0 0
    %3809 = vmatpush2.bf16.msra.mxu0 0
    %3810 = vmatprep.subr.bf16.mxu0 0
    %3811 = vmatpush2.bf16.msra.mxu0 0
    %3812 = vmatprep.mubr.bf16.mxu0 0
    %3813 = vmatmul.mubr.bf16.gmra.mxu0 %v3587
    %v3814 = vpop.f32.mrf.mxu0
    %v3815 = vadd.f32 0.0, %v3814
    %v3816 = vpop.f32.mrf.mxu0
    %v3817 = vadd.f32 0.0, %v3816
    %v3818 = vpop.f32.mrf.mxu0
    %v3819 = vpop.f32.mrf.mxu0
    %3820 = vdwg.mxu0
    %3821 = vmatprep.subr.bf16.mxu0 %v3747
    %3822 = vmatpush1.bf16.msra.mxu0 %v3746
    %3823 = vmatprep.subr.bf16.mxu0 %v3743
    %3824 = vmatpush1.bf16.msra.mxu0 %v3742
    %3825 = vmatprep.subr.bf16.mxu0 %v3739
    %3826 = vmatpush1.bf16.msra.mxu0 %v3738
    %3827 = vmatprep.subr.bf16.mxu0 %v3735
    %3828 = vmatpush1.bf16.msra.mxu0 %v3734
    %3829 = vmatprep.subr.bf16.mxu0 %v3731
    %3830 = vmatpush1.bf16.msra.mxu0 %v3730
    %3831 = vmatprep.subr.bf16.mxu0 %v3727
    %3832 = vmatpush1.bf16.msra.mxu0 %v3726
    %3833 = vmatprep.subr.bf16.mxu0 %v3723
    %3834 = vmatpush1.bf16.msra.mxu0 %v3722
    %3835 = vmatprep.subr.bf16.mxu0 %v3719
    %3836 = vmatpush1.bf16.msra.mxu0 %v3718
    %3837 = vmatprep.subr.bf16.mxu0 0
    %3838 = vmatpush2.bf16.msra.mxu0 0
    %3839 = vmatprep.subr.bf16.mxu0 0
    %3840 = vmatpush2.bf16.msra.mxu0 0
    %3841 = vmatprep.subr.bf16.mxu0 0
    %3842 = vmatpush2.bf16.msra.mxu0 0
    %3843 = vmatprep.subr.bf16.mxu0 0
    %3844 = vmatpush2.bf16.msra.mxu0 0
    %3845 = vmatprep.subr.bf16.mxu0 0
    %3846 = vmatpush2.bf16.msra.mxu0 0
    %3847 = vmatprep.subr.bf16.mxu0 0
    %3848 = vmatpush2.bf16.msra.mxu0 0
    %3849 = vmatprep.subr.bf16.mxu0 0
    %3850 = vmatpush2.bf16.msra.mxu0 0
    %3851 = vmatprep.subr.bf16.mxu0 0
    %3852 = vmatpush2.bf16.msra.mxu0 0
    %3853 = vmatprep.mubr.bf16.mxu0 0
    %3854 = vmatmul.mubr.bf16.gmra.mxu0 %v3587
    %v3855 = vpop.f32.mrf.mxu0
    %v3856 = vadd.f32 0.0, %v3855
    %v3857 = vpop.f32.mrf.mxu0
    %v3858 = vadd.f32 0.0, %v3857
    %v3859 = vpop.f32.mrf.mxu0
    %v3860 = vpop.f32.mrf.mxu0
    %3861 = vdwg.mxu0
    %v3862 = vadd.f32 %v3583, %v3815
    %v3863 = vadd.f32 %v3584, %v3817
    %v3864 = vadd.f32 %v3585, %v3856
    %v3865 = vadd.f32 %v3586, %v3858
    %v3866 = vxor.u32 %v3862, 2147483648
    %v3867 = vmul.f32 %v3866, 1.442695
    %v3868 = vpow.pop %v3867
    %v3869 = vadd.f32 %v3868, 1.0
    %v3870 = vrcp.pop %v3869
    %v3871 = vmul.f32 1.0, %v3870
    %v3872 = vxor.u32 %v3863, 2147483648
    %v3873 = vmul.f32 %v3872, 1.442695
    %v3874 = vpow.pop %v3873
    %v3875 = vadd.f32 %v3874, 1.0
    %v3876 = vrcp.pop %v3875
    %v3877 = vmul.f32 1.0, %v3876
    %v3878 = vtanh.pop %v3864
    %v3879 = vxor.u32 %v3865, 2147483648
    %v3880 = vmul.f32 %v3879, 1.442695
    %v3881 = vpow.pop %v3880
    %v3882 = vadd.f32 %v3881, 1.0
    %v3883 = vrcp.pop %v3882
    %v3884 = vmul.f32 1.0, %v3883
    %v3885 = vmul.f32 %v3877, %v3271
    %v3886 = vmul.f32 %v3871, %v3878
    %v3887 = vadd.f32 %v3885, %v3886
    %v3888 = vtanh.pop %v3887
    %v3889 = vmul.f32 %v3884, %v3888
    %3890 = vst [vmem:[#allocation4 + $0x38] sm:$0xff] %v3889
    %v3891 = vld [vmem:[#allocation2 + $0xa0] sm:$0xff]
    %v3892 = vld [vmem:[#allocation2 + $0xa8] sm:$0xff]
    %v3893 = vld [vmem:[#allocation2 + $0xb0] sm:$0xff]
    %v3894 = vld [vmem:[#allocation2 + $0xb8] sm:$0xff]
    %v3895 = vpack.c.bf16 %v3581, %v3581
    %v3896 = vld [vmem:[#allocation6] sm:$0xff]
    %v3897 = vld [vmem:[#allocation6 + $0x8] sm:$0xff]
    %v3898 = vld [vmem:[#allocation6 + $0x10] sm:$0xff]
    %v3899 = vld [vmem:[#allocation6 + $0x18] sm:$0xff]
    %v3900 = vld [vmem:[#allocation6 + $0x20] sm:$0xff]
    %v3901 = vld [vmem:[#allocation6 + $0x28] sm:$0xff]
    %v3902 = vld [vmem:[#allocation6 + $0x30] sm:$0xff]
    %v3903 = vld [vmem:[#allocation6 + $0x38] sm:$0xff]
    %v3904 = vld [vmem:[#allocation6 + $0x40] sm:$0xff]
    %v3905 = vld [vmem:[#allocation6 + $0x48] sm:$0xff]
    %v3906 = vld [vmem:[#allocation6 + $0x50] sm:$0xff]
    %v3907 = vld [vmem:[#allocation6 + $0x58] sm:$0xff]
    %v3908 = vld [vmem:[#allocation6 + $0x60] sm:$0xff]
    %v3909 = vld [vmem:[#allocation6 + $0x68] sm:$0xff]
    %v3910 = vld [vmem:[#allocation6 + $0x70] sm:$0xff]
    %v3911 = vld [vmem:[#allocation6 + $0x78] sm:$0xff]
    %v3912 = vld [vmem:[#allocation6 + $0x80] sm:$0xff]
    %v3913 = vld [vmem:[#allocation6 + $0x88] sm:$0xff]
    %v3914 = vld [vmem:[#allocation6 + $0x90] sm:$0xff]
    %v3915 = vld [vmem:[#allocation6 + $0x98] sm:$0xff]
    %v3916 = vld [vmem:[#allocation6 + $0xa0] sm:$0xff]
    %v3917 = vld [vmem:[#allocation6 + $0xa8] sm:$0xff]
    %v3918 = vld [vmem:[#allocation6 + $0xb0] sm:$0xff]
    %v3919 = vld [vmem:[#allocation6 + $0xb8] sm:$0xff]
    %v3920 = vld [vmem:[#allocation6 + $0xc0] sm:$0xff]
    %v3921 = vld [vmem:[#allocation6 + $0xc8] sm:$0xff]
    %v3922 = vld [vmem:[#allocation6 + $0xd0] sm:$0xff]
    %v3923 = vld [vmem:[#allocation6 + $0xd8] sm:$0xff]
    %v3924 = vld [vmem:[#allocation6 + $0xe0] sm:$0xff]
    %v3925 = vld [vmem:[#allocation6 + $0xe8] sm:$0xff]
    %v3926 = vld [vmem:[#allocation6 + $0xf0] sm:$0xff]
    %v3927 = vld [vmem:[#allocation6 + $0xf8] sm:$0xff]
    %v3960 = vunpack.c.l.b16 %v3896
    %v3961 = vunpack.c.h.b16 %v3896
    %v3962 = vunpack.c.l.b16 %v3897
    %v3963 = vunpack.c.h.b16 %v3897
    %v3964 = vunpack.c.l.b16 %v3898
    %v3965 = vunpack.c.h.b16 %v3898
    %v3966 = vunpack.c.l.b16 %v3899
    %v3967 = vunpack.c.h.b16 %v3899
    %v3968 = vunpack.c.l.b16 %v3900
    %v3969 = vunpack.c.h.b16 %v3900
    %v3970 = vunpack.c.l.b16 %v3901
    %v3971 = vunpack.c.h.b16 %v3901
    %v3972 = vunpack.c.l.b16 %v3902
    %v3973 = vunpack.c.h.b16 %v3902
    %v3974 = vunpack.c.l.b16 %v3903
    %v3975 = vunpack.c.h.b16 %v3903
    %v3976 = vunpack.c.l.b16 %v3904
    %v3977 = vunpack.c.h.b16 %v3904
    %v3978 = vunpack.c.l.b16 %v3905
    %v3979 = vunpack.c.h.b16 %v3905
    %v3980 = vunpack.c.l.b16 %v3906
    %v3981 = vunpack.c.h.b16 %v3906
    %v3982 = vunpack.c.l.b16 %v3907
    %v3983 = vunpack.c.h.b16 %v3907
    %v3984 = vunpack.c.l.b16 %v3908
    %v3985 = vunpack.c.h.b16 %v3908
    %v3986 = vunpack.c.l.b16 %v3909
    %v3987 = vunpack.c.h.b16 %v3909
    %v3988 = vunpack.c.l.b16 %v3910
    %v3989 = vunpack.c.h.b16 %v3910
    %v3990 = vunpack.c.l.b16 %v3911
    %v3991 = vunpack.c.h.b16 %v3911
    %v3992 = vunpack.c.l.b16 %v3912
    %v3993 = vunpack.c.h.b16 %v3912
    %v3994 = vunpack.c.l.b16 %v3913
    %v3995 = vunpack.c.h.b16 %v3913
    %v3996 = vunpack.c.l.b16 %v3914
    %v3997 = vunpack.c.h.b16 %v3914
    %v3998 = vunpack.c.l.b16 %v3915
    %v3999 = vunpack.c.h.b16 %v3915
    %v4000 = vunpack.c.l.b16 %v3916
    %v4001 = vunpack.c.h.b16 %v3916
    %v4002 = vunpack.c.l.b16 %v3917
    %v4003 = vunpack.c.h.b16 %v3917
    %v4004 = vunpack.c.l.b16 %v3918
    %v4005 = vunpack.c.h.b16 %v3918
    %v4006 = vunpack.c.l.b16 %v3919
    %v4007 = vunpack.c.h.b16 %v3919
    %v4008 = vunpack.c.l.b16 %v3920
    %v4009 = vunpack.c.h.b16 %v3920
    %v4010 = vunpack.c.l.b16 %v3921
    %v4011 = vunpack.c.h.b16 %v3921
    %v4012 = vunpack.c.l.b16 %v3922
    %v4013 = vunpack.c.h.b16 %v3922
    %v4014 = vunpack.c.l.b16 %v3923
    %v4015 = vunpack.c.h.b16 %v3923
    %v4016 = vunpack.c.l.b16 %v3924
    %v4017 = vunpack.c.h.b16 %v3924
    %v4018 = vunpack.c.l.b16 %v3925
    %v4019 = vunpack.c.h.b16 %v3925
    %v4020 = vunpack.c.l.b16 %v3926
    %v4021 = vunpack.c.h.b16 %v3926
    %v4022 = vunpack.c.l.b16 %v3927
    %v4023 = vunpack.c.h.b16 %v3927
    %v4024 = vpack.c.b16 %v3964, %v3960
    %v4025 = vpack.c.b16 %v3965, %v3961
    %v4026 = vpack.c.b16 %v3966, %v3962
    %v4027 = vpack.c.b16 %v3967, %v3963
    %v4028 = vpack.c.b16 %v3972, %v3968
    %v4029 = vpack.c.b16 %v3973, %v3969
    %v4030 = vpack.c.b16 %v3974, %v3970
    %v4031 = vpack.c.b16 %v3975, %v3971
    %v4032 = vpack.c.b16 %v3980, %v3976
    %v4033 = vpack.c.b16 %v3981, %v3977
    %v4034 = vpack.c.b16 %v3982, %v3978
    %v4035 = vpack.c.b16 %v3983, %v3979
    %v4036 = vpack.c.b16 %v3988, %v3984
    %v4037 = vpack.c.b16 %v3989, %v3985
    %v4038 = vpack.c.b16 %v3990, %v3986
    %v4039 = vpack.c.b16 %v3991, %v3987
    %v4040 = vpack.c.b16 %v3996, %v3992
    %v4041 = vpack.c.b16 %v3997, %v3993
    %v4042 = vpack.c.b16 %v3998, %v3994
    %v4043 = vpack.c.b16 %v3999, %v3995
    %v4044 = vpack.c.b16 %v4004, %v4000
    %v4045 = vpack.c.b16 %v4005, %v4001
    %v4046 = vpack.c.b16 %v4006, %v4002
    %v4047 = vpack.c.b16 %v4007, %v4003
    %v4048 = vpack.c.b16 %v4012, %v4008
    %v4049 = vpack.c.b16 %v4013, %v4009
    %v4050 = vpack.c.b16 %v4014, %v4010
    %v4051 = vpack.c.b16 %v4015, %v4011
    %v4052 = vpack.c.b16 %v4020, %v4016
    %v4053 = vpack.c.b16 %v4021, %v4017
    %v4054 = vpack.c.b16 %v4022, %v4018
    %v4055 = vpack.c.b16 %v4023, %v4019
    %4088 = vmatprep.subr.bf16.mxu0 %v4053
    %4089 = vmatpush1.bf16.msra.mxu0 %v4052
    %4090 = vmatprep.subr.bf16.mxu0 %v4049
    %4091 = vmatpush1.bf16.msra.mxu0 %v4048
    %4092 = vmatprep.subr.bf16.mxu0 %v4045
    %4093 = vmatpush1.bf16.msra.mxu0 %v4044
    %4094 = vmatprep.subr.bf16.mxu0 %v4041
    %4095 = vmatpush1.bf16.msra.mxu0 %v4040
    %4096 = vmatprep.subr.bf16.mxu0 %v4037
    %4097 = vmatpush1.bf16.msra.mxu0 %v4036
    %4098 = vmatprep.subr.bf16.mxu0 %v4033
    %4099 = vmatpush1.bf16.msra.mxu0 %v4032
    %4100 = vmatprep.subr.bf16.mxu0 %v4029
    %4101 = vmatpush1.bf16.msra.mxu0 %v4028
    %4102 = vmatprep.subr.bf16.mxu0 %v4025
    %4103 = vmatpush1.bf16.msra.mxu0 %v4024
    %4104 = vmatprep.subr.bf16.mxu0 0
    %4105 = vmatpush2.bf16.msra.mxu0 0
    %4106 = vmatprep.subr.bf16.mxu0 0
    %4107 = vmatpush2.bf16.msra.mxu0 0
    %4108 = vmatprep.subr.bf16.mxu0 0
    %4109 = vmatpush2.bf16.msra.mxu0 0
    %4110 = vmatprep.subr.bf16.mxu0 0
    %4111 = vmatpush2.bf16.msra.mxu0 0
    %4112 = vmatprep.subr.bf16.mxu0 0
    %4113 = vmatpush2.bf16.msra.mxu0 0
    %4114 = vmatprep.subr.bf16.mxu0 0
    %4115 = vmatpush2.bf16.msra.mxu0 0
    %4116 = vmatprep.subr.bf16.mxu0 0
    %4117 = vmatpush2.bf16.msra.mxu0 0
    %4118 = vmatprep.subr.bf16.mxu0 0
    %4119 = vmatpush2.bf16.msra.mxu0 0
    %4120 = vmatprep.mubr.bf16.mxu0 0
    %4121 = vmatmul.mubr.bf16.gmra.mxu0 %v3895
    %v4122 = vpop.f32.mrf.mxu0
    %v4123 = vadd.f32 0.0, %v4122
    %v4124 = vpop.f32.mrf.mxu0
    %v4125 = vadd.f32 0.0, %v4124
    %v4126 = vpop.f32.mrf.mxu0
    %v4127 = vpop.f32.mrf.mxu0
    %4128 = vdwg.mxu0
    %4129 = vmatprep.subr.bf16.mxu0 %v4055
    %4130 = vmatpush1.bf16.msra.mxu0 %v4054
    %4131 = vmatprep.subr.bf16.mxu0 %v4051
    %4132 = vmatpush1.bf16.msra.mxu0 %v4050
    %4133 = vmatprep.subr.bf16.mxu0 %v4047
    %4134 = vmatpush1.bf16.msra.mxu0 %v4046
    %4135 = vmatprep.subr.bf16.mxu0 %v4043
    %4136 = vmatpush1.bf16.msra.mxu0 %v4042
    %4137 = vmatprep.subr.bf16.mxu0 %v4039
    %4138 = vmatpush1.bf16.msra.mxu0 %v4038
    %4139 = vmatprep.subr.bf16.mxu0 %v4035
    %4140 = vmatpush1.bf16.msra.mxu0 %v4034
    %4141 = vmatprep.subr.bf16.mxu0 %v4031
    %4142 = vmatpush1.bf16.msra.mxu0 %v4030
    %4143 = vmatprep.subr.bf16.mxu0 %v4027
    %4144 = vmatpush1.bf16.msra.mxu0 %v4026
    %4145 = vmatprep.subr.bf16.mxu0 0
    %4146 = vmatpush2.bf16.msra.mxu0 0
    %4147 = vmatprep.subr.bf16.mxu0 0
    %4148 = vmatpush2.bf16.msra.mxu0 0
    %4149 = vmatprep.subr.bf16.mxu0 0
    %4150 = vmatpush2.bf16.msra.mxu0 0
    %4151 = vmatprep.subr.bf16.mxu0 0
    %4152 = vmatpush2.bf16.msra.mxu0 0
    %4153 = vmatprep.subr.bf16.mxu0 0
    %4154 = vmatpush2.bf16.msra.mxu0 0
    %4155 = vmatprep.subr.bf16.mxu0 0
    %4156 = vmatpush2.bf16.msra.mxu0 0
    %4157 = vmatprep.subr.bf16.mxu0 0
    %4158 = vmatpush2.bf16.msra.mxu0 0
    %4159 = vmatprep.subr.bf16.mxu0 0
    %4160 = vmatpush2.bf16.msra.mxu0 0
    %4161 = vmatprep.mubr.bf16.mxu0 0
    %4162 = vmatmul.mubr.bf16.gmra.mxu0 %v3895
    %v4163 = vpop.f32.mrf.mxu0
    %v4164 = vadd.f32 0.0, %v4163
    %v4165 = vpop.f32.mrf.mxu0
    %v4166 = vadd.f32 0.0, %v4165
    %v4167 = vpop.f32.mrf.mxu0
    %v4168 = vpop.f32.mrf.mxu0
    %4169 = vdwg.mxu0
    %v4170 = vadd.f32 %v3891, %v4123
    %v4171 = vadd.f32 %v3892, %v4125
    %v4172 = vadd.f32 %v3893, %v4164
    %v4173 = vadd.f32 %v3894, %v4166
    %v4174 = vxor.u32 %v4170, 2147483648
    %v4175 = vmul.f32 %v4174, 1.442695
    %v4176 = vpow.pop %v4175
    %v4177 = vadd.f32 %v4176, 1.0
    %v4178 = vrcp.pop %v4177
    %v4179 = vmul.f32 1.0, %v4178
    %v4180 = vxor.u32 %v4171, 2147483648
    %v4181 = vmul.f32 %v4180, 1.442695
    %v4182 = vpow.pop %v4181
    %v4183 = vadd.f32 %v4182, 1.0
    %v4184 = vrcp.pop %v4183
    %v4185 = vmul.f32 1.0, %v4184
    %v4186 = vtanh.pop %v4172
    %v4187 = vxor.u32 %v4173, 2147483648
    %v4188 = vmul.f32 %v4187, 1.442695
    %v4189 = vpow.pop %v4188
    %v4190 = vadd.f32 %v4189, 1.0
    %v4191 = vrcp.pop %v4190
    %v4192 = vmul.f32 1.0, %v4191
    %v4193 = vmul.f32 %v4185, %v3579
    %v4194 = vmul.f32 %v4179, %v4186
    %v4195 = vadd.f32 %v4193, %v4194
    %v4196 = vtanh.pop %v4195
    %v4197 = vmul.f32 %v4192, %v4196
    %4198 = vst [vmem:[#allocation4 + $0x50] sm:$0xff] %v4197
    %v4199 = vld [vmem:[#allocation3 + $0x40] sm:$0xff]
    %v4200 = vld [vmem:[#allocation3 + $0x48] sm:$0xff]
    %v4201 = vld [vmem:[#allocation3 + $0x50] sm:$0xff]
    %v4202 = vld [vmem:[#allocation3 + $0x58] sm:$0xff]
    %v4203 = vpack.c.bf16 %v3889, %v3889
    %v4204 = vld [vmem:[#allocation10] sm:$0xff]
    %v4205 = vld [vmem:[#allocation10 + $0x8] sm:$0xff]
    %v4206 = vld [vmem:[#allocation10 + $0x10] sm:$0xff]
    %v4207 = vld [vmem:[#allocation10 + $0x18] sm:$0xff]
    %v4208 = vld [vmem:[#allocation10 + $0x20] sm:$0xff]
    %v4209 = vld [vmem:[#allocation10 + $0x28] sm:$0xff]
    %v4210 = vld [vmem:[#allocation10 + $0x30] sm:$0xff]
    %v4211 = vld [vmem:[#allocation10 + $0x38] sm:$0xff]
    %v4212 = vld [vmem:[#allocation10 + $0x40] sm:$0xff]
    %v4213 = vld [vmem:[#allocation10 + $0x48] sm:$0xff]
    %v4214 = vld [vmem:[#allocation10 + $0x50] sm:$0xff]
    %v4215 = vld [vmem:[#allocation10 + $0x58] sm:$0xff]
    %v4216 = vld [vmem:[#allocation10 + $0x60] sm:$0xff]
    %v4217 = vld [vmem:[#allocation10 + $0x68] sm:$0xff]
    %v4218 = vld [vmem:[#allocation10 + $0x70] sm:$0xff]
    %v4219 = vld [vmem:[#allocation10 + $0x78] sm:$0xff]
    %v4220 = vld [vmem:[#allocation10 + $0x80] sm:$0xff]
    %v4221 = vld [vmem:[#allocation10 + $0x88] sm:$0xff]
    %v4222 = vld [vmem:[#allocation10 + $0x90] sm:$0xff]
    %v4223 = vld [vmem:[#allocation10 + $0x98] sm:$0xff]
    %v4224 = vld [vmem:[#allocation10 + $0xa0] sm:$0xff]
    %v4225 = vld [vmem:[#allocation10 + $0xa8] sm:$0xff]
    %v4226 = vld [vmem:[#allocation10 + $0xb0] sm:$0xff]
    %v4227 = vld [vmem:[#allocation10 + $0xb8] sm:$0xff]
    %v4228 = vld [vmem:[#allocation10 + $0xc0] sm:$0xff]
    %v4229 = vld [vmem:[#allocation10 + $0xc8] sm:$0xff]
    %v4230 = vld [vmem:[#allocation10 + $0xd0] sm:$0xff]
    %v4231 = vld [vmem:[#allocation10 + $0xd8] sm:$0xff]
    %v4232 = vld [vmem:[#allocation10 + $0xe0] sm:$0xff]
    %v4233 = vld [vmem:[#allocation10 + $0xe8] sm:$0xff]
    %v4234 = vld [vmem:[#allocation10 + $0xf0] sm:$0xff]
    %v4235 = vld [vmem:[#allocation10 + $0xf8] sm:$0xff]
    %v4268 = vunpack.c.l.b16 %v4204
    %v4269 = vunpack.c.h.b16 %v4204
    %v4270 = vunpack.c.l.b16 %v4205
    %v4271 = vunpack.c.h.b16 %v4205
    %v4272 = vunpack.c.l.b16 %v4206
    %v4273 = vunpack.c.h.b16 %v4206
    %v4274 = vunpack.c.l.b16 %v4207
    %v4275 = vunpack.c.h.b16 %v4207
    %v4276 = vunpack.c.l.b16 %v4208
    %v4277 = vunpack.c.h.b16 %v4208
    %v4278 = vunpack.c.l.b16 %v4209
    %v4279 = vunpack.c.h.b16 %v4209
    %v4280 = vunpack.c.l.b16 %v4210
    %v4281 = vunpack.c.h.b16 %v4210
    %v4282 = vunpack.c.l.b16 %v4211
    %v4283 = vunpack.c.h.b16 %v4211
    %v4284 = vunpack.c.l.b16 %v4212
    %v4285 = vunpack.c.h.b16 %v4212
    %v4286 = vunpack.c.l.b16 %v4213
    %v4287 = vunpack.c.h.b16 %v4213
    %v4288 = vunpack.c.l.b16 %v4214
    %v4289 = vunpack.c.h.b16 %v4214
    %v4290 = vunpack.c.l.b16 %v4215
    %v4291 = vunpack.c.h.b16 %v4215
    %v4292 = vunpack.c.l.b16 %v4216
    %v4293 = vunpack.c.h.b16 %v4216
    %v4294 = vunpack.c.l.b16 %v4217
    %v4295 = vunpack.c.h.b16 %v4217
    %v4296 = vunpack.c.l.b16 %v4218
    %v4297 = vunpack.c.h.b16 %v4218
    %v4298 = vunpack.c.l.b16 %v4219
    %v4299 = vunpack.c.h.b16 %v4219
    %v4300 = vunpack.c.l.b16 %v4220
    %v4301 = vunpack.c.h.b16 %v4220
    %v4302 = vunpack.c.l.b16 %v4221
    %v4303 = vunpack.c.h.b16 %v4221
    %v4304 = vunpack.c.l.b16 %v4222
    %v4305 = vunpack.c.h.b16 %v4222
    %v4306 = vunpack.c.l.b16 %v4223
    %v4307 = vunpack.c.h.b16 %v4223
    %v4308 = vunpack.c.l.b16 %v4224
    %v4309 = vunpack.c.h.b16 %v4224
    %v4310 = vunpack.c.l.b16 %v4225
    %v4311 = vunpack.c.h.b16 %v4225
    %v4312 = vunpack.c.l.b16 %v4226
    %v4313 = vunpack.c.h.b16 %v4226
    %v4314 = vunpack.c.l.b16 %v4227
    %v4315 = vunpack.c.h.b16 %v4227
    %v4316 = vunpack.c.l.b16 %v4228
    %v4317 = vunpack.c.h.b16 %v4228
    %v4318 = vunpack.c.l.b16 %v4229
    %v4319 = vunpack.c.h.b16 %v4229
    %v4320 = vunpack.c.l.b16 %v4230
    %v4321 = vunpack.c.h.b16 %v4230
    %v4322 = vunpack.c.l.b16 %v4231
    %v4323 = vunpack.c.h.b16 %v4231
    %v4324 = vunpack.c.l.b16 %v4232
    %v4325 = vunpack.c.h.b16 %v4232
    %v4326 = vunpack.c.l.b16 %v4233
    %v4327 = vunpack.c.h.b16 %v4233
    %v4328 = vunpack.c.l.b16 %v4234
    %v4329 = vunpack.c.h.b16 %v4234
    %v4330 = vunpack.c.l.b16 %v4235
    %v4331 = vunpack.c.h.b16 %v4235
    %v4332 = vpack.c.b16 %v4272, %v4268
    %v4333 = vpack.c.b16 %v4273, %v4269
    %v4334 = vpack.c.b16 %v4274, %v4270
    %v4335 = vpack.c.b16 %v4275, %v4271
    %v4336 = vpack.c.b16 %v4280, %v4276
    %v4337 = vpack.c.b16 %v4281, %v4277
    %v4338 = vpack.c.b16 %v4282, %v4278
    %v4339 = vpack.c.b16 %v4283, %v4279
    %v4340 = vpack.c.b16 %v4288, %v4284
    %v4341 = vpack.c.b16 %v4289, %v4285
    %v4342 = vpack.c.b16 %v4290, %v4286
    %v4343 = vpack.c.b16 %v4291, %v4287
    %v4344 = vpack.c.b16 %v4296, %v4292
    %v4345 = vpack.c.b16 %v4297, %v4293
    %v4346 = vpack.c.b16 %v4298, %v4294
    %v4347 = vpack.c.b16 %v4299, %v4295
    %v4348 = vpack.c.b16 %v4304, %v4300
    %v4349 = vpack.c.b16 %v4305, %v4301
    %v4350 = vpack.c.b16 %v4306, %v4302
    %v4351 = vpack.c.b16 %v4307, %v4303
    %v4352 = vpack.c.b16 %v4312, %v4308
    %v4353 = vpack.c.b16 %v4313, %v4309
    %v4354 = vpack.c.b16 %v4314, %v4310
    %v4355 = vpack.c.b16 %v4315, %v4311
    %v4356 = vpack.c.b16 %v4320, %v4316
    %v4357 = vpack.c.b16 %v4321, %v4317
    %v4358 = vpack.c.b16 %v4322, %v4318
    %v4359 = vpack.c.b16 %v4323, %v4319
    %v4360 = vpack.c.b16 %v4328, %v4324
    %v4361 = vpack.c.b16 %v4329, %v4325
    %v4362 = vpack.c.b16 %v4330, %v4326
    %v4363 = vpack.c.b16 %v4331, %v4327
    %4396 = vmatprep.subr.bf16.mxu0 %v4361
    %4397 = vmatpush1.bf16.msra.mxu0 %v4360
    %4398 = vmatprep.subr.bf16.mxu0 %v4357
    %4399 = vmatpush1.bf16.msra.mxu0 %v4356
    %4400 = vmatprep.subr.bf16.mxu0 %v4353
    %4401 = vmatpush1.bf16.msra.mxu0 %v4352
    %4402 = vmatprep.subr.bf16.mxu0 %v4349
    %4403 = vmatpush1.bf16.msra.mxu0 %v4348
    %4404 = vmatprep.subr.bf16.mxu0 %v4345
    %4405 = vmatpush1.bf16.msra.mxu0 %v4344
    %4406 = vmatprep.subr.bf16.mxu0 %v4341
    %4407 = vmatpush1.bf16.msra.mxu0 %v4340
    %4408 = vmatprep.subr.bf16.mxu0 %v4337
    %4409 = vmatpush1.bf16.msra.mxu0 %v4336
    %4410 = vmatprep.subr.bf16.mxu0 %v4333
    %4411 = vmatpush1.bf16.msra.mxu0 %v4332
    %4412 = vmatprep.subr.bf16.mxu0 0
    %4413 = vmatpush2.bf16.msra.mxu0 0
    %4414 = vmatprep.subr.bf16.mxu0 0
    %4415 = vmatpush2.bf16.msra.mxu0 0
    %4416 = vmatprep.subr.bf16.mxu0 0
    %4417 = vmatpush2.bf16.msra.mxu0 0
    %4418 = vmatprep.subr.bf16.mxu0 0
    %4419 = vmatpush2.bf16.msra.mxu0 0
    %4420 = vmatprep.subr.bf16.mxu0 0
    %4421 = vmatpush2.bf16.msra.mxu0 0
    %4422 = vmatprep.subr.bf16.mxu0 0
    %4423 = vmatpush2.bf16.msra.mxu0 0
    %4424 = vmatprep.subr.bf16.mxu0 0
    %4425 = vmatpush2.bf16.msra.mxu0 0
    %4426 = vmatprep.subr.bf16.mxu0 0
    %4427 = vmatpush2.bf16.msra.mxu0 0
    %4428 = vmatprep.mubr.bf16.mxu0 0
    %4429 = vmatmul.mubr.bf16.gmra.mxu0 %v4203
    %v4430 = vpop.f32.mrf.mxu0
    %v4431 = vadd.f32 0.0, %v4430
    %v4432 = vpop.f32.mrf.mxu0
    %v4433 = vadd.f32 0.0, %v4432
    %v4434 = vpop.f32.mrf.mxu0
    %v4435 = vpop.f32.mrf.mxu0
    %4436 = vdwg.mxu0
    %4437 = vmatprep.subr.bf16.mxu0 %v4363
    %4438 = vmatpush1.bf16.msra.mxu0 %v4362
    %4439 = vmatprep.subr.bf16.mxu0 %v4359
    %4440 = vmatpush1.bf16.msra.mxu0 %v4358
    %4441 = vmatprep.subr.bf16.mxu0 %v4355
    %4442 = vmatpush1.bf16.msra.mxu0 %v4354
    %4443 = vmatprep.subr.bf16.mxu0 %v4351
    %4444 = vmatpush1.bf16.msra.mxu0 %v4350
    %4445 = vmatprep.subr.bf16.mxu0 %v4347
    %4446 = vmatpush1.bf16.msra.mxu0 %v4346
    %4447 = vmatprep.subr.bf16.mxu0 %v4343
    %4448 = vmatpush1.bf16.msra.mxu0 %v4342
    %4449 = vmatprep.subr.bf16.mxu0 %v4339
    %4450 = vmatpush1.bf16.msra.mxu0 %v4338
    %4451 = vmatprep.subr.bf16.mxu0 %v4335
    %4452 = vmatpush1.bf16.msra.mxu0 %v4334
    %4453 = vmatprep.subr.bf16.mxu0 0
    %4454 = vmatpush2.bf16.msra.mxu0 0
    %4455 = vmatprep.subr.bf16.mxu0 0
    %4456 = vmatpush2.bf16.msra.mxu0 0
    %4457 = vmatprep.subr.bf16.mxu0 0
    %4458 = vmatpush2.bf16.msra.mxu0 0
    %4459 = vmatprep.subr.bf16.mxu0 0
    %4460 = vmatpush2.bf16.msra.mxu0 0
    %4461 = vmatprep.subr.bf16.mxu0 0
    %4462 = vmatpush2.bf16.msra.mxu0 0
    %4463 = vmatprep.subr.bf16.mxu0 0
    %4464 = vmatpush2.bf16.msra.mxu0 0
    %4465 = vmatprep.subr.bf16.mxu0 0
    %4466 = vmatpush2.bf16.msra.mxu0 0
    %4467 = vmatprep.subr.bf16.mxu0 0
    %4468 = vmatpush2.bf16.msra.mxu0 0
    %4469 = vmatprep.mubr.bf16.mxu0 0
    %4470 = vmatmul.mubr.bf16.gmra.mxu0 %v4203
    %v4471 = vpop.f32.mrf.mxu0
    %v4472 = vadd.f32 0.0, %v4471
    %v4473 = vpop.f32.mrf.mxu0
    %v4474 = vadd.f32 0.0, %v4473
    %v4475 = vpop.f32.mrf.mxu0
    %v4476 = vpop.f32.mrf.mxu0
    %4477 = vdwg.mxu0
    %v4478 = vadd.f32 %v4199, %v4431
    %v4479 = vadd.f32 %v4200, %v4433
    %v4480 = vadd.f32 %v4201, %v4472
    %v4481 = vadd.f32 %v4202, %v4474
    %v4482 = vxor.u32 %v4478, 2147483648
    %v4483 = vmul.f32 %v4482, 1.442695
    %v4484 = vpow.pop %v4483
    %v4485 = vadd.f32 %v4484, 1.0
    %v4486 = vrcp.pop %v4485
    %v4487 = vmul.f32 1.0, %v4486
    %v4488 = vxor.u32 %v4479, 2147483648
    %v4489 = vmul.f32 %v4488, 1.442695
    %v4490 = vpow.pop %v4489
    %v4491 = vadd.f32 %v4490, 1.0
    %v4492 = vrcp.pop %v4491
    %v4493 = vmul.f32 1.0, %v4492
    %v4494 = vtanh.pop %v4480
    %v4495 = vxor.u32 %v4481, 2147483648
    %v4496 = vmul.f32 %v4495, 1.442695
    %v4497 = vpow.pop %v4496
    %v4498 = vadd.f32 %v4497, 1.0
    %v4499 = vrcp.pop %v4498
    %v4500 = vmul.f32 1.0, %v4499
    %v4501 = vmul.f32 %v4493, %v3887
    %v4502 = vmul.f32 %v4487, %v4494
    %v4503 = vadd.f32 %v4501, %v4502
    %v4504 = vtanh.pop %v4503
    %v4505 = vmul.f32 %v4500, %v4504
    %4506 = vst [vmem:[#allocation4 + $0x28] sm:$0xff] %v4505
    %v4507 = vld [vmem:[#allocation2 + $0xc0] sm:$0xff]
    %v4508 = vld [vmem:[#allocation2 + $0xc8] sm:$0xff]
    %v4509 = vld [vmem:[#allocation2 + $0xd0] sm:$0xff]
    %v4510 = vld [vmem:[#allocation2 + $0xd8] sm:$0xff]
    %v4511 = vpack.c.bf16 %v4197, %v4197
    %v4512 = vld [vmem:[#allocation6] sm:$0xff]
    %v4513 = vld [vmem:[#allocation6 + $0x8] sm:$0xff]
    %v4514 = vld [vmem:[#allocation6 + $0x10] sm:$0xff]
    %v4515 = vld [vmem:[#allocation6 + $0x18] sm:$0xff]
    %v4516 = vld [vmem:[#allocation6 + $0x20] sm:$0xff]
    %v4517 = vld [vmem:[#allocation6 + $0x28] sm:$0xff]
    %v4518 = vld [vmem:[#allocation6 + $0x30] sm:$0xff]
    %v4519 = vld [vmem:[#allocation6 + $0x38] sm:$0xff]
    %v4520 = vld [vmem:[#allocation6 + $0x40] sm:$0xff]
    %v4521 = vld [vmem:[#allocation6 + $0x48] sm:$0xff]
    %v4522 = vld [vmem:[#allocation6 + $0x50] sm:$0xff]
    %v4523 = vld [vmem:[#allocation6 + $0x58] sm:$0xff]
    %v4524 = vld [vmem:[#allocation6 + $0x60] sm:$0xff]
    %v4525 = vld [vmem:[#allocation6 + $0x68] sm:$0xff]
    %v4526 = vld [vmem:[#allocation6 + $0x70] sm:$0xff]
    %v4527 = vld [vmem:[#allocation6 + $0x78] sm:$0xff]
    %v4528 = vld [vmem:[#allocation6 + $0x80] sm:$0xff]
    %v4529 = vld [vmem:[#allocation6 + $0x88] sm:$0xff]
    %v4530 = vld [vmem:[#allocation6 + $0x90] sm:$0xff]
    %v4531 = vld [vmem:[#allocation6 + $0x98] sm:$0xff]
    %v4532 = vld [vmem:[#allocation6 + $0xa0] sm:$0xff]
    %v4533 = vld [vmem:[#allocation6 + $0xa8] sm:$0xff]
    %v4534 = vld [vmem:[#allocation6 + $0xb0] sm:$0xff]
    %v4535 = vld [vmem:[#allocation6 + $0xb8] sm:$0xff]
    %v4536 = vld [vmem:[#allocation6 + $0xc0] sm:$0xff]
    %v4537 = vld [vmem:[#allocation6 + $0xc8] sm:$0xff]
    %v4538 = vld [vmem:[#allocation6 + $0xd0] sm:$0xff]
    %v4539 = vld [vmem:[#allocation6 + $0xd8] sm:$0xff]
    %v4540 = vld [vmem:[#allocation6 + $0xe0] sm:$0xff]
    %v4541 = vld [vmem:[#allocation6 + $0xe8] sm:$0xff]
    %v4542 = vld [vmem:[#allocation6 + $0xf0] sm:$0xff]
    %v4543 = vld [vmem:[#allocation6 + $0xf8] sm:$0xff]
    %v4576 = vunpack.c.l.b16 %v4512
    %v4577 = vunpack.c.h.b16 %v4512
    %v4578 = vunpack.c.l.b16 %v4513
    %v4579 = vunpack.c.h.b16 %v4513
    %v4580 = vunpack.c.l.b16 %v4514
    %v4581 = vunpack.c.h.b16 %v4514
    %v4582 = vunpack.c.l.b16 %v4515
    %v4583 = vunpack.c.h.b16 %v4515
    %v4584 = vunpack.c.l.b16 %v4516
    %v4585 = vunpack.c.h.b16 %v4516
    %v4586 = vunpack.c.l.b16 %v4517
    %v4587 = vunpack.c.h.b16 %v4517
    %v4588 = vunpack.c.l.b16 %v4518
    %v4589 = vunpack.c.h.b16 %v4518
    %v4590 = vunpack.c.l.b16 %v4519
    %v4591 = vunpack.c.h.b16 %v4519
    %v4592 = vunpack.c.l.b16 %v4520
    %v4593 = vunpack.c.h.b16 %v4520
    %v4594 = vunpack.c.l.b16 %v4521
    %v4595 = vunpack.c.h.b16 %v4521
    %v4596 = vunpack.c.l.b16 %v4522
    %v4597 = vunpack.c.h.b16 %v4522
    %v4598 = vunpack.c.l.b16 %v4523
    %v4599 = vunpack.c.h.b16 %v4523
    %v4600 = vunpack.c.l.b16 %v4524
    %v4601 = vunpack.c.h.b16 %v4524
    %v4602 = vunpack.c.l.b16 %v4525
    %v4603 = vunpack.c.h.b16 %v4525
    %v4604 = vunpack.c.l.b16 %v4526
    %v4605 = vunpack.c.h.b16 %v4526
    %v4606 = vunpack.c.l.b16 %v4527
    %v4607 = vunpack.c.h.b16 %v4527
    %v4608 = vunpack.c.l.b16 %v4528
    %v4609 = vunpack.c.h.b16 %v4528
    %v4610 = vunpack.c.l.b16 %v4529
    %v4611 = vunpack.c.h.b16 %v4529
    %v4612 = vunpack.c.l.b16 %v4530
    %v4613 = vunpack.c.h.b16 %v4530
    %v4614 = vunpack.c.l.b16 %v4531
    %v4615 = vunpack.c.h.b16 %v4531
    %v4616 = vunpack.c.l.b16 %v4532
    %v4617 = vunpack.c.h.b16 %v4532
    %v4618 = vunpack.c.l.b16 %v4533
    %v4619 = vunpack.c.h.b16 %v4533
    %v4620 = vunpack.c.l.b16 %v4534
    %v4621 = vunpack.c.h.b16 %v4534
    %v4622 = vunpack.c.l.b16 %v4535
    %v4623 = vunpack.c.h.b16 %v4535
    %v4624 = vunpack.c.l.b16 %v4536
    %v4625 = vunpack.c.h.b16 %v4536
    %v4626 = vunpack.c.l.b16 %v4537
    %v4627 = vunpack.c.h.b16 %v4537
    %v4628 = vunpack.c.l.b16 %v4538
    %v4629 = vunpack.c.h.b16 %v4538
    %v4630 = vunpack.c.l.b16 %v4539
    %v4631 = vunpack.c.h.b16 %v4539
    %v4632 = vunpack.c.l.b16 %v4540
    %v4633 = vunpack.c.h.b16 %v4540
    %v4634 = vunpack.c.l.b16 %v4541
    %v4635 = vunpack.c.h.b16 %v4541
    %v4636 = vunpack.c.l.b16 %v4542
    %v4637 = vunpack.c.h.b16 %v4542
    %v4638 = vunpack.c.l.b16 %v4543
    %v4639 = vunpack.c.h.b16 %v4543
    %v4640 = vpack.c.b16 %v4580, %v4576
    %v4641 = vpack.c.b16 %v4581, %v4577
    %v4642 = vpack.c.b16 %v4582, %v4578
    %v4643 = vpack.c.b16 %v4583, %v4579
    %v4644 = vpack.c.b16 %v4588, %v4584
    %v4645 = vpack.c.b16 %v4589, %v4585
    %v4646 = vpack.c.b16 %v4590, %v4586
    %v4647 = vpack.c.b16 %v4591, %v4587
    %v4648 = vpack.c.b16 %v4596, %v4592
    %v4649 = vpack.c.b16 %v4597, %v4593
    %v4650 = vpack.c.b16 %v4598, %v4594
    %v4651 = vpack.c.b16 %v4599, %v4595
    %v4652 = vpack.c.b16 %v4604, %v4600
    %v4653 = vpack.c.b16 %v4605, %v4601
    %v4654 = vpack.c.b16 %v4606, %v4602
    %v4655 = vpack.c.b16 %v4607, %v4603
    %v4656 = vpack.c.b16 %v4612, %v4608
    %v4657 = vpack.c.b16 %v4613, %v4609
    %v4658 = vpack.c.b16 %v4614, %v4610
    %v4659 = vpack.c.b16 %v4615, %v4611
    %v4660 = vpack.c.b16 %v4620, %v4616
    %v4661 = vpack.c.b16 %v4621, %v4617
    %v4662 = vpack.c.b16 %v4622, %v4618
    %v4663 = vpack.c.b16 %v4623, %v4619
    %v4664 = vpack.c.b16 %v4628, %v4624
    %v4665 = vpack.c.b16 %v4629, %v4625
    %v4666 = vpack.c.b16 %v4630, %v4626
    %v4667 = vpack.c.b16 %v4631, %v4627
    %v4668 = vpack.c.b16 %v4636, %v4632
    %v4669 = vpack.c.b16 %v4637, %v4633
    %v4670 = vpack.c.b16 %v4638, %v4634
    %v4671 = vpack.c.b16 %v4639, %v4635
    %4704 = vmatprep.subr.bf16.mxu0 %v4669
    %4705 = vmatpush1.bf16.msra.mxu0 %v4668
    %4706 = vmatprep.subr.bf16.mxu0 %v4665
    %4707 = vmatpush1.bf16.msra.mxu0 %v4664
    %4708 = vmatprep.subr.bf16.mxu0 %v4661
    %4709 = vmatpush1.bf16.msra.mxu0 %v4660
    %4710 = vmatprep.subr.bf16.mxu0 %v4657
    %4711 = vmatpush1.bf16.msra.mxu0 %v4656
    %4712 = vmatprep.subr.bf16.mxu0 %v4653
    %4713 = vmatpush1.bf16.msra.mxu0 %v4652
    %4714 = vmatprep.subr.bf16.mxu0 %v4649
    %4715 = vmatpush1.bf16.msra.mxu0 %v4648
    %4716 = vmatprep.subr.bf16.mxu0 %v4645
    %4717 = vmatpush1.bf16.msra.mxu0 %v4644
    %4718 = vmatprep.subr.bf16.mxu0 %v4641
    %4719 = vmatpush1.bf16.msra.mxu0 %v4640
    %4720 = vmatprep.subr.bf16.mxu0 0
    %4721 = vmatpush2.bf16.msra.mxu0 0
    %4722 = vmatprep.subr.bf16.mxu0 0
    %4723 = vmatpush2.bf16.msra.mxu0 0
    %4724 = vmatprep.subr.bf16.mxu0 0
    %4725 = vmatpush2.bf16.msra.mxu0 0
    %4726 = vmatprep.subr.bf16.mxu0 0
    %4727 = vmatpush2.bf16.msra.mxu0 0
    %4728 = vmatprep.subr.bf16.mxu0 0
    %4729 = vmatpush2.bf16.msra.mxu0 0
    %4730 = vmatprep.subr.bf16.mxu0 0
    %4731 = vmatpush2.bf16.msra.mxu0 0
    %4732 = vmatprep.subr.bf16.mxu0 0
    %4733 = vmatpush2.bf16.msra.mxu0 0
    %4734 = vmatprep.subr.bf16.mxu0 0
    %4735 = vmatpush2.bf16.msra.mxu0 0
    %4736 = vmatprep.mubr.bf16.mxu0 0
    %4737 = vmatmul.mubr.bf16.gmra.mxu0 %v4511
    %v4738 = vpop.f32.mrf.mxu0
    %v4739 = vadd.f32 0.0, %v4738
    %v4740 = vpop.f32.mrf.mxu0
    %v4741 = vadd.f32 0.0, %v4740
    %v4742 = vpop.f32.mrf.mxu0
    %v4743 = vpop.f32.mrf.mxu0
    %4744 = vdwg.mxu0
    %4745 = vmatprep.subr.bf16.mxu0 %v4671
    %4746 = vmatpush1.bf16.msra.mxu0 %v4670
    %4747 = vmatprep.subr.bf16.mxu0 %v4667
    %4748 = vmatpush1.bf16.msra.mxu0 %v4666
    %4749 = vmatprep.subr.bf16.mxu0 %v4663
    %4750 = vmatpush1.bf16.msra.mxu0 %v4662
    %4751 = vmatprep.subr.bf16.mxu0 %v4659
    %4752 = vmatpush1.bf16.msra.mxu0 %v4658
    %4753 = vmatprep.subr.bf16.mxu0 %v4655
    %4754 = vmatpush1.bf16.msra.mxu0 %v4654
    %4755 = vmatprep.subr.bf16.mxu0 %v4651
    %4756 = vmatpush1.bf16.msra.mxu0 %v4650
    %4757 = vmatprep.subr.bf16.mxu0 %v4647
    %4758 = vmatpush1.bf16.msra.mxu0 %v4646
    %4759 = vmatprep.subr.bf16.mxu0 %v4643
    %4760 = vmatpush1.bf16.msra.mxu0 %v4642
    %4761 = vmatprep.subr.bf16.mxu0 0
    %4762 = vmatpush2.bf16.msra.mxu0 0
    %4763 = vmatprep.subr.bf16.mxu0 0
    %4764 = vmatpush2.bf16.msra.mxu0 0
    %4765 = vmatprep.subr.bf16.mxu0 0
    %4766 = vmatpush2.bf16.msra.mxu0 0
    %4767 = vmatprep.subr.bf16.mxu0 0
    %4768 = vmatpush2.bf16.msra.mxu0 0
    %4769 = vmatprep.subr.bf16.mxu0 0
    %4770 = vmatpush2.bf16.msra.mxu0 0
    %4771 = vmatprep.subr.bf16.mxu0 0
    %4772 = vmatpush2.bf16.msra.mxu0 0
    %4773 = vmatprep.subr.bf16.mxu0 0
    %4774 = vmatpush2.bf16.msra.mxu0 0
    %4775 = vmatprep.subr.bf16.mxu0 0
    %4776 = vmatpush2.bf16.msra.mxu0 0
    %4777 = vmatprep.mubr.bf16.mxu0 0
    %4778 = vmatmul.mubr.bf16.gmra.mxu0 %v4511
    %v4779 = vpop.f32.mrf.mxu0
    %v4780 = vadd.f32 0.0, %v4779
    %v4781 = vpop.f32.mrf.mxu0
    %v4782 = vadd.f32 0.0, %v4781
    %v4783 = vpop.f32.mrf.mxu0
    %v4784 = vpop.f32.mrf.mxu0
    %4785 = vdwg.mxu0
    %v4786 = vadd.f32 %v4507, %v4739
    %v4787 = vadd.f32 %v4508, %v4741
    %v4788 = vadd.f32 %v4509, %v4780
    %v4789 = vadd.f32 %v4510, %v4782
    %v4790 = vxor.u32 %v4786, 2147483648
    %v4791 = vmul.f32 %v4790, 1.442695
    %v4792 = vpow.pop %v4791
    %v4793 = vadd.f32 %v4792, 1.0
    %v4794 = vrcp.pop %v4793
    %v4795 = vmul.f32 1.0, %v4794
    %v4796 = vxor.u32 %v4787, 2147483648
    %v4797 = vmul.f32 %v4796, 1.442695
    %v4798 = vpow.pop %v4797
    %v4799 = vadd.f32 %v4798, 1.0
    %v4800 = vrcp.pop %v4799
    %v4801 = vmul.f32 1.0, %v4800
    %v4802 = vtanh.pop %v4788
    %v4803 = vxor.u32 %v4789, 2147483648
    %v4804 = vmul.f32 %v4803, 1.442695
    %v4805 = vpow.pop %v4804
    %v4806 = vadd.f32 %v4805, 1.0
    %v4807 = vrcp.pop %v4806
    %v4808 = vmul.f32 1.0, %v4807
    %v4809 = vmul.f32 %v4801, %v4195
    %v4810 = vmul.f32 %v4795, %v4802
    %v4811 = vadd.f32 %v4809, %v4810
    %v4812 = vtanh.pop %v4811
    %v4813 = vmul.f32 %v4808, %v4812
    %4814 = vst [vmem:[#allocation4 + $0x60] sm:$0xff] %v4813
    %v4815 = vld [vmem:[#allocation3 + $0x20] sm:$0xff]
    %v4816 = vld [vmem:[#allocation3 + $0x28] sm:$0xff]
    %v4817 = vld [vmem:[#allocation3 + $0x30] sm:$0xff]
    %v4818 = vld [vmem:[#allocation3 + $0x38] sm:$0xff]
    %v4819 = vpack.c.bf16 %v4505, %v4505
    %v4820 = vld [vmem:[#allocation10] sm:$0xff]
    %v4821 = vld [vmem:[#allocation10 + $0x8] sm:$0xff]
    %v4822 = vld [vmem:[#allocation10 + $0x10] sm:$0xff]
    %v4823 = vld [vmem:[#allocation10 + $0x18] sm:$0xff]
    %v4824 = vld [vmem:[#allocation10 + $0x20] sm:$0xff]
    %v4825 = vld [vmem:[#allocation10 + $0x28] sm:$0xff]
    %v4826 = vld [vmem:[#allocation10 + $0x30] sm:$0xff]
    %v4827 = vld [vmem:[#allocation10 + $0x38] sm:$0xff]
    %v4828 = vld [vmem:[#allocation10 + $0x40] sm:$0xff]
    %v4829 = vld [vmem:[#allocation10 + $0x48] sm:$0xff]
    %v4830 = vld [vmem:[#allocation10 + $0x50] sm:$0xff]
    %v4831 = vld [vmem:[#allocation10 + $0x58] sm:$0xff]
    %v4832 = vld [vmem:[#allocation10 + $0x60] sm:$0xff]
    %v4833 = vld [vmem:[#allocation10 + $0x68] sm:$0xff]
    %v4834 = vld [vmem:[#allocation10 + $0x70] sm:$0xff]
    %v4835 = vld [vmem:[#allocation10 + $0x78] sm:$0xff]
    %v4836 = vld [vmem:[#allocation10 + $0x80] sm:$0xff]
    %v4837 = vld [vmem:[#allocation10 + $0x88] sm:$0xff]
    %v4838 = vld [vmem:[#allocation10 + $0x90] sm:$0xff]
    %v4839 = vld [vmem:[#allocation10 + $0x98] sm:$0xff]
    %v4840 = vld [vmem:[#allocation10 + $0xa0] sm:$0xff]
    %v4841 = vld [vmem:[#allocation10 + $0xa8] sm:$0xff]
    %v4842 = vld [vmem:[#allocation10 + $0xb0] sm:$0xff]
    %v4843 = vld [vmem:[#allocation10 + $0xb8] sm:$0xff]
    %v4844 = vld [vmem:[#allocation10 + $0xc0] sm:$0xff]
    %v4845 = vld [vmem:[#allocation10 + $0xc8] sm:$0xff]
    %v4846 = vld [vmem:[#allocation10 + $0xd0] sm:$0xff]
    %v4847 = vld [vmem:[#allocation10 + $0xd8] sm:$0xff]
    %v4848 = vld [vmem:[#allocation10 + $0xe0] sm:$0xff]
    %v4849 = vld [vmem:[#allocation10 + $0xe8] sm:$0xff]
    %v4850 = vld [vmem:[#allocation10 + $0xf0] sm:$0xff]
    %v4851 = vld [vmem:[#allocation10 + $0xf8] sm:$0xff]
    %v4884 = vunpack.c.l.b16 %v4820
    %v4885 = vunpack.c.h.b16 %v4820
    %v4886 = vunpack.c.l.b16 %v4821
    %v4887 = vunpack.c.h.b16 %v4821
    %v4888 = vunpack.c.l.b16 %v4822
    %v4889 = vunpack.c.h.b16 %v4822
    %v4890 = vunpack.c.l.b16 %v4823
    %v4891 = vunpack.c.h.b16 %v4823
    %v4892 = vunpack.c.l.b16 %v4824
    %v4893 = vunpack.c.h.b16 %v4824
    %v4894 = vunpack.c.l.b16 %v4825
    %v4895 = vunpack.c.h.b16 %v4825
    %v4896 = vunpack.c.l.b16 %v4826
    %v4897 = vunpack.c.h.b16 %v4826
    %v4898 = vunpack.c.l.b16 %v4827
    %v4899 = vunpack.c.h.b16 %v4827
    %v4900 = vunpack.c.l.b16 %v4828
    %v4901 = vunpack.c.h.b16 %v4828
    %v4902 = vunpack.c.l.b16 %v4829
    %v4903 = vunpack.c.h.b16 %v4829
    %v4904 = vunpack.c.l.b16 %v4830
    %v4905 = vunpack.c.h.b16 %v4830
    %v4906 = vunpack.c.l.b16 %v4831
    %v4907 = vunpack.c.h.b16 %v4831
    %v4908 = vunpack.c.l.b16 %v4832
    %v4909 = vunpack.c.h.b16 %v4832
    %v4910 = vunpack.c.l.b16 %v4833
    %v4911 = vunpack.c.h.b16 %v4833
    %v4912 = vunpack.c.l.b16 %v4834
    %v4913 = vunpack.c.h.b16 %v4834
    %v4914 = vunpack.c.l.b16 %v4835
    %v4915 = vunpack.c.h.b16 %v4835
    %v4916 = vunpack.c.l.b16 %v4836
    %v4917 = vunpack.c.h.b16 %v4836
    %v4918 = vunpack.c.l.b16 %v4837
    %v4919 = vunpack.c.h.b16 %v4837
    %v4920 = vunpack.c.l.b16 %v4838
    %v4921 = vunpack.c.h.b16 %v4838
    %v4922 = vunpack.c.l.b16 %v4839
    %v4923 = vunpack.c.h.b16 %v4839
    %v4924 = vunpack.c.l.b16 %v4840
    %v4925 = vunpack.c.h.b16 %v4840
    %v4926 = vunpack.c.l.b16 %v4841
    %v4927 = vunpack.c.h.b16 %v4841
    %v4928 = vunpack.c.l.b16 %v4842
    %v4929 = vunpack.c.h.b16 %v4842
    %v4930 = vunpack.c.l.b16 %v4843
    %v4931 = vunpack.c.h.b16 %v4843
    %v4932 = vunpack.c.l.b16 %v4844
    %v4933 = vunpack.c.h.b16 %v4844
    %v4934 = vunpack.c.l.b16 %v4845
    %v4935 = vunpack.c.h.b16 %v4845
    %v4936 = vunpack.c.l.b16 %v4846
    %v4937 = vunpack.c.h.b16 %v4846
    %v4938 = vunpack.c.l.b16 %v4847
    %v4939 = vunpack.c.h.b16 %v4847
    %v4940 = vunpack.c.l.b16 %v4848
    %v4941 = vunpack.c.h.b16 %v4848
    %v4942 = vunpack.c.l.b16 %v4849
    %v4943 = vunpack.c.h.b16 %v4849
    %v4944 = vunpack.c.l.b16 %v4850
    %v4945 = vunpack.c.h.b16 %v4850
    %v4946 = vunpack.c.l.b16 %v4851
    %v4947 = vunpack.c.h.b16 %v4851
    %v4948 = vpack.c.b16 %v4888, %v4884
    %v4949 = vpack.c.b16 %v4889, %v4885
    %v4950 = vpack.c.b16 %v4890, %v4886
    %v4951 = vpack.c.b16 %v4891, %v4887
    %v4952 = vpack.c.b16 %v4896, %v4892
    %v4953 = vpack.c.b16 %v4897, %v4893
    %v4954 = vpack.c.b16 %v4898, %v4894
    %v4955 = vpack.c.b16 %v4899, %v4895
    %v4956 = vpack.c.b16 %v4904, %v4900
    %v4957 = vpack.c.b16 %v4905, %v4901
    %v4958 = vpack.c.b16 %v4906, %v4902
    %v4959 = vpack.c.b16 %v4907, %v4903
    %v4960 = vpack.c.b16 %v4912, %v4908
    %v4961 = vpack.c.b16 %v4913, %v4909
    %v4962 = vpack.c.b16 %v4914, %v4910
    %v4963 = vpack.c.b16 %v4915, %v4911
    %v4964 = vpack.c.b16 %v4920, %v4916
    %v4965 = vpack.c.b16 %v4921, %v4917
    %v4966 = vpack.c.b16 %v4922, %v4918
    %v4967 = vpack.c.b16 %v4923, %v4919
    %v4968 = vpack.c.b16 %v4928, %v4924
    %v4969 = vpack.c.b16 %v4929, %v4925
    %v4970 = vpack.c.b16 %v4930, %v4926
    %v4971 = vpack.c.b16 %v4931, %v4927
    %v4972 = vpack.c.b16 %v4936, %v4932
    %v4973 = vpack.c.b16 %v4937, %v4933
    %v4974 = vpack.c.b16 %v4938, %v4934
    %v4975 = vpack.c.b16 %v4939, %v4935
    %v4976 = vpack.c.b16 %v4944, %v4940
    %v4977 = vpack.c.b16 %v4945, %v4941
    %v4978 = vpack.c.b16 %v4946, %v4942
    %v4979 = vpack.c.b16 %v4947, %v4943
    %5012 = vmatprep.subr.bf16.mxu0 %v4977
    %5013 = vmatpush1.bf16.msra.mxu0 %v4976
    %5014 = vmatprep.subr.bf16.mxu0 %v4973
    %5015 = vmatpush1.bf16.msra.mxu0 %v4972
    %5016 = vmatprep.subr.bf16.mxu0 %v4969
    %5017 = vmatpush1.bf16.msra.mxu0 %v4968
    %5018 = vmatprep.subr.bf16.mxu0 %v4965
    %5019 = vmatpush1.bf16.msra.mxu0 %v4964
    %5020 = vmatprep.subr.bf16.mxu0 %v4961
    %5021 = vmatpush1.bf16.msra.mxu0 %v4960
    %5022 = vmatprep.subr.bf16.mxu0 %v4957
    %5023 = vmatpush1.bf16.msra.mxu0 %v4956
    %5024 = vmatprep.subr.bf16.mxu0 %v4953
    %5025 = vmatpush1.bf16.msra.mxu0 %v4952
    %5026 = vmatprep.subr.bf16.mxu0 %v4949
    %5027 = vmatpush1.bf16.msra.mxu0 %v4948
    %5028 = vmatprep.subr.bf16.mxu0 0
    %5029 = vmatpush2.bf16.msra.mxu0 0
    %5030 = vmatprep.subr.bf16.mxu0 0
    %5031 = vmatpush2.bf16.msra.mxu0 0
    %5032 = vmatprep.subr.bf16.mxu0 0
    %5033 = vmatpush2.bf16.msra.mxu0 0
    %5034 = vmatprep.subr.bf16.mxu0 0
    %5035 = vmatpush2.bf16.msra.mxu0 0
    %5036 = vmatprep.subr.bf16.mxu0 0
    %5037 = vmatpush2.bf16.msra.mxu0 0
    %5038 = vmatprep.subr.bf16.mxu0 0
    %5039 = vmatpush2.bf16.msra.mxu0 0
    %5040 = vmatprep.subr.bf16.mxu0 0
    %5041 = vmatpush2.bf16.msra.mxu0 0
    %5042 = vmatprep.subr.bf16.mxu0 0
    %5043 = vmatpush2.bf16.msra.mxu0 0
    %5044 = vmatprep.mubr.bf16.mxu0 0
    %5045 = vmatmul.mubr.bf16.gmra.mxu0 %v4819
    %v5046 = vpop.f32.mrf.mxu0
    %v5047 = vadd.f32 0.0, %v5046
    %v5048 = vpop.f32.mrf.mxu0
    %v5049 = vadd.f32 0.0, %v5048
    %v5050 = vpop.f32.mrf.mxu0
    %v5051 = vpop.f32.mrf.mxu0
    %5052 = vdwg.mxu0
    %5053 = vmatprep.subr.bf16.mxu0 %v4979
    %5054 = vmatpush1.bf16.msra.mxu0 %v4978
    %5055 = vmatprep.subr.bf16.mxu0 %v4975
    %5056 = vmatpush1.bf16.msra.mxu0 %v4974
    %5057 = vmatprep.subr.bf16.mxu0 %v4971
    %5058 = vmatpush1.bf16.msra.mxu0 %v4970
    %5059 = vmatprep.subr.bf16.mxu0 %v4967
    %5060 = vmatpush1.bf16.msra.mxu0 %v4966
    %5061 = vmatprep.subr.bf16.mxu0 %v4963
    %5062 = vmatpush1.bf16.msra.mxu0 %v4962
    %5063 = vmatprep.subr.bf16.mxu0 %v4959
    %5064 = vmatpush1.bf16.msra.mxu0 %v4958
    %5065 = vmatprep.subr.bf16.mxu0 %v4955
    %5066 = vmatpush1.bf16.msra.mxu0 %v4954
    %5067 = vmatprep.subr.bf16.mxu0 %v4951
    %5068 = vmatpush1.bf16.msra.mxu0 %v4950
    %5069 = vmatprep.subr.bf16.mxu0 0
    %5070 = vmatpush2.bf16.msra.mxu0 0
    %5071 = vmatprep.subr.bf16.mxu0 0
    %5072 = vmatpush2.bf16.msra.mxu0 0
    %5073 = vmatprep.subr.bf16.mxu0 0
    %5074 = vmatpush2.bf16.msra.mxu0 0
    %5075 = vmatprep.subr.bf16.mxu0 0
    %5076 = vmatpush2.bf16.msra.mxu0 0
    %5077 = vmatprep.subr.bf16.mxu0 0
    %5078 = vmatpush2.bf16.msra.mxu0 0
    %5079 = vmatprep.subr.bf16.mxu0 0
    %5080 = vmatpush2.bf16.msra.mxu0 0
    %5081 = vmatprep.subr.bf16.mxu0 0
    %5082 = vmatpush2.bf16.msra.mxu0 0
    %5083 = vmatprep.subr.bf16.mxu0 0
    %5084 = vmatpush2.bf16.msra.mxu0 0
    %5085 = vmatprep.mubr.bf16.mxu0 0
    %5086 = vmatmul.mubr.bf16.gmra.mxu0 %v4819
    %v5087 = vpop.f32.mrf.mxu0
    %v5088 = vadd.f32 0.0, %v5087
    %v5089 = vpop.f32.mrf.mxu0
    %v5090 = vadd.f32 0.0, %v5089
    %v5091 = vpop.f32.mrf.mxu0
    %v5092 = vpop.f32.mrf.mxu0
    %5093 = vdwg.mxu0
    %v5094 = vadd.f32 %v4815, %v5047
    %v5095 = vadd.f32 %v4816, %v5049
    %v5096 = vadd.f32 %v4817, %v5088
    %v5097 = vadd.f32 %v4818, %v5090
    %v5098 = vxor.u32 %v5094, 2147483648
    %v5099 = vmul.f32 %v5098, 1.442695
    %v5100 = vpow.pop %v5099
    %v5101 = vadd.f32 %v5100, 1.0
    %v5102 = vrcp.pop %v5101
    %v5103 = vmul.f32 1.0, %v5102
    %v5104 = vxor.u32 %v5095, 2147483648
    %v5105 = vmul.f32 %v5104, 1.442695
    %v5106 = vpow.pop %v5105
    %v5107 = vadd.f32 %v5106, 1.0
    %v5108 = vrcp.pop %v5107
    %v5109 = vmul.f32 1.0, %v5108
    %v5110 = vtanh.pop %v5096
    %v5111 = vxor.u32 %v5097, 2147483648
    %v5112 = vmul.f32 %v5111, 1.442695
    %v5113 = vpow.pop %v5112
    %v5114 = vadd.f32 %v5113, 1.0
    %v5115 = vrcp.pop %v5114
    %v5116 = vmul.f32 1.0, %v5115
    %v5117 = vmul.f32 %v5109, %v4503
    %v5118 = vmul.f32 %v5103, %v5110
    %v5119 = vadd.f32 %v5117, %v5118
    %v5120 = vtanh.pop %v5119
    %v5121 = vmul.f32 %v5116, %v5120
    %5122 = vst [vmem:[#allocation4 + $0x18] sm:$0xff] %v5121
    %v5123 = vld [vmem:[#allocation2 + $0xe0] sm:$0xff]
    %v5124 = vld [vmem:[#allocation2 + $0xe8] sm:$0xff]
    %v5125 = vld [vmem:[#allocation2 + $0xf0] sm:$0xff]
    %v5126 = vld [vmem:[#allocation2 + $0xf8] sm:$0xff]
    %v5127 = vpack.c.bf16 %v4813, %v4813
    %v5128 = vld [vmem:[#allocation6] sm:$0xff]
    %v5129 = vld [vmem:[#allocation6 + $0x8] sm:$0xff]
    %v5130 = vld [vmem:[#allocation6 + $0x10] sm:$0xff]
    %v5131 = vld [vmem:[#allocation6 + $0x18] sm:$0xff]
    %v5132 = vld [vmem:[#allocation6 + $0x20] sm:$0xff]
    %v5133 = vld [vmem:[#allocation6 + $0x28] sm:$0xff]
    %v5134 = vld [vmem:[#allocation6 + $0x30] sm:$0xff]
    %v5135 = vld [vmem:[#allocation6 + $0x38] sm:$0xff]
    %v5136 = vld [vmem:[#allocation6 + $0x40] sm:$0xff]
    %v5137 = vld [vmem:[#allocation6 + $0x48] sm:$0xff]
    %v5138 = vld [vmem:[#allocation6 + $0x50] sm:$0xff]
    %v5139 = vld [vmem:[#allocation6 + $0x58] sm:$0xff]
    %v5140 = vld [vmem:[#allocation6 + $0x60] sm:$0xff]
    %v5141 = vld [vmem:[#allocation6 + $0x68] sm:$0xff]
    %v5142 = vld [vmem:[#allocation6 + $0x70] sm:$0xff]
    %v5143 = vld [vmem:[#allocation6 + $0x78] sm:$0xff]
    %v5144 = vld [vmem:[#allocation6 + $0x80] sm:$0xff]
    %v5145 = vld [vmem:[#allocation6 + $0x88] sm:$0xff]
    %v5146 = vld [vmem:[#allocation6 + $0x90] sm:$0xff]
    %v5147 = vld [vmem:[#allocation6 + $0x98] sm:$0xff]
    %v5148 = vld [vmem:[#allocation6 + $0xa0] sm:$0xff]
    %v5149 = vld [vmem:[#allocation6 + $0xa8] sm:$0xff]
    %v5150 = vld [vmem:[#allocation6 + $0xb0] sm:$0xff]
    %v5151 = vld [vmem:[#allocation6 + $0xb8] sm:$0xff]
    %v5152 = vld [vmem:[#allocation6 + $0xc0] sm:$0xff]
    %v5153 = vld [vmem:[#allocation6 + $0xc8] sm:$0xff]
    %v5154 = vld [vmem:[#allocation6 + $0xd0] sm:$0xff]
    %v5155 = vld [vmem:[#allocation6 + $0xd8] sm:$0xff]
    %v5156 = vld [vmem:[#allocation6 + $0xe0] sm:$0xff]
    %v5157 = vld [vmem:[#allocation6 + $0xe8] sm:$0xff]
    %v5158 = vld [vmem:[#allocation6 + $0xf0] sm:$0xff]
    %v5159 = vld [vmem:[#allocation6 + $0xf8] sm:$0xff]
    %v5192 = vunpack.c.l.b16 %v5128
    %v5193 = vunpack.c.h.b16 %v5128
    %v5194 = vunpack.c.l.b16 %v5129
    %v5195 = vunpack.c.h.b16 %v5129
    %v5196 = vunpack.c.l.b16 %v5130
    %v5197 = vunpack.c.h.b16 %v5130
    %v5198 = vunpack.c.l.b16 %v5131
    %v5199 = vunpack.c.h.b16 %v5131
    %v5200 = vunpack.c.l.b16 %v5132
    %v5201 = vunpack.c.h.b16 %v5132
    %v5202 = vunpack.c.l.b16 %v5133
    %v5203 = vunpack.c.h.b16 %v5133
    %v5204 = vunpack.c.l.b16 %v5134
    %v5205 = vunpack.c.h.b16 %v5134
    %v5206 = vunpack.c.l.b16 %v5135
    %v5207 = vunpack.c.h.b16 %v5135
    %v5208 = vunpack.c.l.b16 %v5136
    %v5209 = vunpack.c.h.b16 %v5136
    %v5210 = vunpack.c.l.b16 %v5137
    %v5211 = vunpack.c.h.b16 %v5137
    %v5212 = vunpack.c.l.b16 %v5138
    %v5213 = vunpack.c.h.b16 %v5138
    %v5214 = vunpack.c.l.b16 %v5139
    %v5215 = vunpack.c.h.b16 %v5139
    %v5216 = vunpack.c.l.b16 %v5140
    %v5217 = vunpack.c.h.b16 %v5140
    %v5218 = vunpack.c.l.b16 %v5141
    %v5219 = vunpack.c.h.b16 %v5141
    %v5220 = vunpack.c.l.b16 %v5142
    %v5221 = vunpack.c.h.b16 %v5142
    %v5222 = vunpack.c.l.b16 %v5143
    %v5223 = vunpack.c.h.b16 %v5143
    %v5224 = vunpack.c.l.b16 %v5144
    %v5225 = vunpack.c.h.b16 %v5144
    %v5226 = vunpack.c.l.b16 %v5145
    %v5227 = vunpack.c.h.b16 %v5145
    %v5228 = vunpack.c.l.b16 %v5146
    %v5229 = vunpack.c.h.b16 %v5146
    %v5230 = vunpack.c.l.b16 %v5147
    %v5231 = vunpack.c.h.b16 %v5147
    %v5232 = vunpack.c.l.b16 %v5148
    %v5233 = vunpack.c.h.b16 %v5148
    %v5234 = vunpack.c.l.b16 %v5149
    %v5235 = vunpack.c.h.b16 %v5149
    %v5236 = vunpack.c.l.b16 %v5150
    %v5237 = vunpack.c.h.b16 %v5150
    %v5238 = vunpack.c.l.b16 %v5151
    %v5239 = vunpack.c.h.b16 %v5151
    %v5240 = vunpack.c.l.b16 %v5152
    %v5241 = vunpack.c.h.b16 %v5152
    %v5242 = vunpack.c.l.b16 %v5153
    %v5243 = vunpack.c.h.b16 %v5153
    %v5244 = vunpack.c.l.b16 %v5154
    %v5245 = vunpack.c.h.b16 %v5154
    %v5246 = vunpack.c.l.b16 %v5155
    %v5247 = vunpack.c.h.b16 %v5155
    %v5248 = vunpack.c.l.b16 %v5156
    %v5249 = vunpack.c.h.b16 %v5156
    %v5250 = vunpack.c.l.b16 %v5157
    %v5251 = vunpack.c.h.b16 %v5157
    %v5252 = vunpack.c.l.b16 %v5158
    %v5253 = vunpack.c.h.b16 %v5158
    %v5254 = vunpack.c.l.b16 %v5159
    %v5255 = vunpack.c.h.b16 %v5159
    %v5256 = vpack.c.b16 %v5196, %v5192
    %v5257 = vpack.c.b16 %v5197, %v5193
    %v5258 = vpack.c.b16 %v5198, %v5194
    %v5259 = vpack.c.b16 %v5199, %v5195
    %v5260 = vpack.c.b16 %v5204, %v5200
    %v5261 = vpack.c.b16 %v5205, %v5201
    %v5262 = vpack.c.b16 %v5206, %v5202
    %v5263 = vpack.c.b16 %v5207, %v5203
    %v5264 = vpack.c.b16 %v5212, %v5208
    %v5265 = vpack.c.b16 %v5213, %v5209
    %v5266 = vpack.c.b16 %v5214, %v5210
    %v5267 = vpack.c.b16 %v5215, %v5211
    %v5268 = vpack.c.b16 %v5220, %v5216
    %v5269 = vpack.c.b16 %v5221, %v5217
    %v5270 = vpack.c.b16 %v5222, %v5218
    %v5271 = vpack.c.b16 %v5223, %v5219
    %v5272 = vpack.c.b16 %v5228, %v5224
    %v5273 = vpack.c.b16 %v5229, %v5225
    %v5274 = vpack.c.b16 %v5230, %v5226
    %v5275 = vpack.c.b16 %v5231, %v5227
    %v5276 = vpack.c.b16 %v5236, %v5232
    %v5277 = vpack.c.b16 %v5237, %v5233
    %v5278 = vpack.c.b16 %v5238, %v5234
    %v5279 = vpack.c.b16 %v5239, %v5235
    %v5280 = vpack.c.b16 %v5244, %v5240
    %v5281 = vpack.c.b16 %v5245, %v5241
    %v5282 = vpack.c.b16 %v5246, %v5242
    %v5283 = vpack.c.b16 %v5247, %v5243
    %v5284 = vpack.c.b16 %v5252, %v5248
    %v5285 = vpack.c.b16 %v5253, %v5249
    %v5286 = vpack.c.b16 %v5254, %v5250
    %v5287 = vpack.c.b16 %v5255, %v5251
    %5320 = vmatprep.subr.bf16.mxu0 %v5285
    %5321 = vmatpush1.bf16.msra.mxu0 %v5284
    %5322 = vmatprep.subr.bf16.mxu0 %v5281
    %5323 = vmatpush1.bf16.msra.mxu0 %v5280
    %5324 = vmatprep.subr.bf16.mxu0 %v5277
    %5325 = vmatpush1.bf16.msra.mxu0 %v5276
    %5326 = vmatprep.subr.bf16.mxu0 %v5273
    %5327 = vmatpush1.bf16.msra.mxu0 %v5272
    %5328 = vmatprep.subr.bf16.mxu0 %v5269
    %5329 = vmatpush1.bf16.msra.mxu0 %v5268
    %5330 = vmatprep.subr.bf16.mxu0 %v5265
    %5331 = vmatpush1.bf16.msra.mxu0 %v5264
    %5332 = vmatprep.subr.bf16.mxu0 %v5261
    %5333 = vmatpush1.bf16.msra.mxu0 %v5260
    %5334 = vmatprep.subr.bf16.mxu0 %v5257
    %5335 = vmatpush1.bf16.msra.mxu0 %v5256
    %5336 = vmatprep.subr.bf16.mxu0 0
    %5337 = vmatpush2.bf16.msra.mxu0 0
    %5338 = vmatprep.subr.bf16.mxu0 0
    %5339 = vmatpush2.bf16.msra.mxu0 0
    %5340 = vmatprep.subr.bf16.mxu0 0
    %5341 = vmatpush2.bf16.msra.mxu0 0
    %5342 = vmatprep.subr.bf16.mxu0 0
    %5343 = vmatpush2.bf16.msra.mxu0 0
    %5344 = vmatprep.subr.bf16.mxu0 0
    %5345 = vmatpush2.bf16.msra.mxu0 0
    %5346 = vmatprep.subr.bf16.mxu0 0
    %5347 = vmatpush2.bf16.msra.mxu0 0
    %5348 = vmatprep.subr.bf16.mxu0 0
    %5349 = vmatpush2.bf16.msra.mxu0 0
    %5350 = vmatprep.subr.bf16.mxu0 0
    %5351 = vmatpush2.bf16.msra.mxu0 0
    %5352 = vmatprep.mubr.bf16.mxu0 0
    %5353 = vmatmul.mubr.bf16.gmra.mxu0 %v5127
    %v5354 = vpop.f32.mrf.mxu0
    %v5355 = vadd.f32 0.0, %v5354
    %v5356 = vpop.f32.mrf.mxu0
    %v5357 = vadd.f32 0.0, %v5356
    %v5358 = vpop.f32.mrf.mxu0
    %v5359 = vpop.f32.mrf.mxu0
    %5360 = vdwg.mxu0
    %5361 = vmatprep.subr.bf16.mxu0 %v5287
    %5362 = vmatpush1.bf16.msra.mxu0 %v5286
    %5363 = vmatprep.subr.bf16.mxu0 %v5283
    %5364 = vmatpush1.bf16.msra.mxu0 %v5282
    %5365 = vmatprep.subr.bf16.mxu0 %v5279
    %5366 = vmatpush1.bf16.msra.mxu0 %v5278
    %5367 = vmatprep.subr.bf16.mxu0 %v5275
    %5368 = vmatpush1.bf16.msra.mxu0 %v5274
    %5369 = vmatprep.subr.bf16.mxu0 %v5271
    %5370 = vmatpush1.bf16.msra.mxu0 %v5270
    %5371 = vmatprep.subr.bf16.mxu0 %v5267
    %5372 = vmatpush1.bf16.msra.mxu0 %v5266
    %5373 = vmatprep.subr.bf16.mxu0 %v5263
    %5374 = vmatpush1.bf16.msra.mxu0 %v5262
    %5375 = vmatprep.subr.bf16.mxu0 %v5259
    %5376 = vmatpush1.bf16.msra.mxu0 %v5258
    %5377 = vmatprep.subr.bf16.mxu0 0
    %5378 = vmatpush2.bf16.msra.mxu0 0
    %5379 = vmatprep.subr.bf16.mxu0 0
    %5380 = vmatpush2.bf16.msra.mxu0 0
    %5381 = vmatprep.subr.bf16.mxu0 0
    %5382 = vmatpush2.bf16.msra.mxu0 0
    %5383 = vmatprep.subr.bf16.mxu0 0
    %5384 = vmatpush2.bf16.msra.mxu0 0
    %5385 = vmatprep.subr.bf16.mxu0 0
    %5386 = vmatpush2.bf16.msra.mxu0 0
    %5387 = vmatprep.subr.bf16.mxu0 0
    %5388 = vmatpush2.bf16.msra.mxu0 0
    %5389 = vmatprep.subr.bf16.mxu0 0
    %5390 = vmatpush2.bf16.msra.mxu0 0
    %5391 = vmatprep.subr.bf16.mxu0 0
    %5392 = vmatpush2.bf16.msra.mxu0 0
    %5393 = vmatprep.mubr.bf16.mxu0 0
    %5394 = vmatmul.mubr.bf16.gmra.mxu0 %v5127
    %v5395 = vpop.f32.mrf.mxu0
    %v5396 = vadd.f32 0.0, %v5395
    %v5397 = vpop.f32.mrf.mxu0
    %v5398 = vadd.f32 0.0, %v5397
    %v5399 = vpop.f32.mrf.mxu0
    %v5400 = vpop.f32.mrf.mxu0
    %5401 = vdwg.mxu0
    %v5402 = vadd.f32 %v5123, %v5355
    %v5403 = vadd.f32 %v5124, %v5357
    %v5404 = vadd.f32 %v5125, %v5396
    %v5405 = vadd.f32 %v5126, %v5398
    %v5406 = vxor.u32 %v5402, 2147483648
    %v5407 = vmul.f32 %v5406, 1.442695
    %v5408 = vpow.pop %v5407
    %v5409 = vadd.f32 %v5408, 1.0
    %v5410 = vrcp.pop %v5409
    %v5411 = vmul.f32 1.0, %v5410
    %v5412 = vxor.u32 %v5403, 2147483648
    %v5413 = vmul.f32 %v5412, 1.442695
    %v5414 = vpow.pop %v5413
    %v5415 = vadd.f32 %v5414, 1.0
    %v5416 = vrcp.pop %v5415
    %v5417 = vmul.f32 1.0, %v5416
    %v5418 = vtanh.pop %v5404
    %v5419 = vxor.u32 %v5405, 2147483648
    %v5420 = vmul.f32 %v5419, 1.442695
    %v5421 = vpow.pop %v5420
    %v5422 = vadd.f32 %v5421, 1.0
    %v5423 = vrcp.pop %v5422
    %v5424 = vmul.f32 1.0, %v5423
    %v5425 = vmul.f32 %v5417, %v4811
    %v5426 = vmul.f32 %v5411, %v5418
    %v5427 = vadd.f32 %v5425, %v5426
    %v5428 = vtanh.pop %v5427
    %v5429 = vmul.f32 %v5424, %v5428
    %5430 = vst [vmem:[#allocation4 + $0x70] sm:$0xff] %v5429
    %v5431 = vld [vmem:[#allocation3] sm:$0xff]
    %v5432 = vld [vmem:[#allocation3 + $0x8] sm:$0xff]
    %v5433 = vld [vmem:[#allocation3 + $0x10] sm:$0xff]
    %v5434 = vld [vmem:[#allocation3 + $0x18] sm:$0xff]
    %v5435 = vpack.c.bf16 %v5121, %v5121
    %v5436 = vld [vmem:[#allocation10] sm:$0xff]
    %v5437 = vld [vmem:[#allocation10 + $0x8] sm:$0xff]
    %v5438 = vld [vmem:[#allocation10 + $0x10] sm:$0xff]
    %v5439 = vld [vmem:[#allocation10 + $0x18] sm:$0xff]
    %v5440 = vld [vmem:[#allocation10 + $0x20] sm:$0xff]
    %v5441 = vld [vmem:[#allocation10 + $0x28] sm:$0xff]
    %v5442 = vld [vmem:[#allocation10 + $0x30] sm:$0xff]
    %v5443 = vld [vmem:[#allocation10 + $0x38] sm:$0xff]
    %v5444 = vld [vmem:[#allocation10 + $0x40] sm:$0xff]
    %v5445 = vld [vmem:[#allocation10 + $0x48] sm:$0xff]
    %v5446 = vld [vmem:[#allocation10 + $0x50] sm:$0xff]
    %v5447 = vld [vmem:[#allocation10 + $0x58] sm:$0xff]
    %v5448 = vld [vmem:[#allocation10 + $0x60] sm:$0xff]
    %v5449 = vld [vmem:[#allocation10 + $0x68] sm:$0xff]
    %v5450 = vld [vmem:[#allocation10 + $0x70] sm:$0xff]
    %v5451 = vld [vmem:[#allocation10 + $0x78] sm:$0xff]
    %v5452 = vld [vmem:[#allocation10 + $0x80] sm:$0xff]
    %v5453 = vld [vmem:[#allocation10 + $0x88] sm:$0xff]
    %v5454 = vld [vmem:[#allocation10 + $0x90] sm:$0xff]
    %v5455 = vld [vmem:[#allocation10 + $0x98] sm:$0xff]
    %v5456 = vld [vmem:[#allocation10 + $0xa0] sm:$0xff]
    %v5457 = vld [vmem:[#allocation10 + $0xa8] sm:$0xff]
    %v5458 = vld [vmem:[#allocation10 + $0xb0] sm:$0xff]
    %v5459 = vld [vmem:[#allocation10 + $0xb8] sm:$0xff]
    %v5460 = vld [vmem:[#allocation10 + $0xc0] sm:$0xff]
    %v5461 = vld [vmem:[#allocation10 + $0xc8] sm:$0xff]
    %v5462 = vld [vmem:[#allocation10 + $0xd0] sm:$0xff]
    %v5463 = vld [vmem:[#allocation10 + $0xd8] sm:$0xff]
    %v5464 = vld [vmem:[#allocation10 + $0xe0] sm:$0xff]
    %v5465 = vld [vmem:[#allocation10 + $0xe8] sm:$0xff]
    %v5466 = vld [vmem:[#allocation10 + $0xf0] sm:$0xff]
    %v5467 = vld [vmem:[#allocation10 + $0xf8] sm:$0xff]
    %v5500 = vunpack.c.l.b16 %v5436
    %v5501 = vunpack.c.h.b16 %v5436
    %v5502 = vunpack.c.l.b16 %v5437
    %v5503 = vunpack.c.h.b16 %v5437
    %v5504 = vunpack.c.l.b16 %v5438
    %v5505 = vunpack.c.h.b16 %v5438
    %v5506 = vunpack.c.l.b16 %v5439
    %v5507 = vunpack.c.h.b16 %v5439
    %v5508 = vunpack.c.l.b16 %v5440
    %v5509 = vunpack.c.h.b16 %v5440
    %v5510 = vunpack.c.l.b16 %v5441
    %v5511 = vunpack.c.h.b16 %v5441
    %v5512 = vunpack.c.l.b16 %v5442
    %v5513 = vunpack.c.h.b16 %v5442
    %v5514 = vunpack.c.l.b16 %v5443
    %v5515 = vunpack.c.h.b16 %v5443
    %v5516 = vunpack.c.l.b16 %v5444
    %v5517 = vunpack.c.h.b16 %v5444
    %v5518 = vunpack.c.l.b16 %v5445
    %v5519 = vunpack.c.h.b16 %v5445
    %v5520 = vunpack.c.l.b16 %v5446
    %v5521 = vunpack.c.h.b16 %v5446
    %v5522 = vunpack.c.l.b16 %v5447
    %v5523 = vunpack.c.h.b16 %v5447
    %v5524 = vunpack.c.l.b16 %v5448
    %v5525 = vunpack.c.h.b16 %v5448
    %v5526 = vunpack.c.l.b16 %v5449
    %v5527 = vunpack.c.h.b16 %v5449
    %v5528 = vunpack.c.l.b16 %v5450
    %v5529 = vunpack.c.h.b16 %v5450
    %v5530 = vunpack.c.l.b16 %v5451
    %v5531 = vunpack.c.h.b16 %v5451
    %v5532 = vunpack.c.l.b16 %v5452
    %v5533 = vunpack.c.h.b16 %v5452
    %v5534 = vunpack.c.l.b16 %v5453
    %v5535 = vunpack.c.h.b16 %v5453
    %v5536 = vunpack.c.l.b16 %v5454
    %v5537 = vunpack.c.h.b16 %v5454
    %v5538 = vunpack.c.l.b16 %v5455
    %v5539 = vunpack.c.h.b16 %v5455
    %v5540 = vunpack.c.l.b16 %v5456
    %v5541 = vunpack.c.h.b16 %v5456
    %v5542 = vunpack.c.l.b16 %v5457
    %v5543 = vunpack.c.h.b16 %v5457
    %v5544 = vunpack.c.l.b16 %v5458
    %v5545 = vunpack.c.h.b16 %v5458
    %v5546 = vunpack.c.l.b16 %v5459
    %v5547 = vunpack.c.h.b16 %v5459
    %v5548 = vunpack.c.l.b16 %v5460
    %v5549 = vunpack.c.h.b16 %v5460
    %v5550 = vunpack.c.l.b16 %v5461
    %v5551 = vunpack.c.h.b16 %v5461
    %v5552 = vunpack.c.l.b16 %v5462
    %v5553 = vunpack.c.h.b16 %v5462
    %v5554 = vunpack.c.l.b16 %v5463
    %v5555 = vunpack.c.h.b16 %v5463
    %v5556 = vunpack.c.l.b16 %v5464
    %v5557 = vunpack.c.h.b16 %v5464
    %v5558 = vunpack.c.l.b16 %v5465
    %v5559 = vunpack.c.h.b16 %v5465
    %v5560 = vunpack.c.l.b16 %v5466
    %v5561 = vunpack.c.h.b16 %v5466
    %v5562 = vunpack.c.l.b16 %v5467
    %v5563 = vunpack.c.h.b16 %v5467
    %v5564 = vpack.c.b16 %v5504, %v5500
    %v5565 = vpack.c.b16 %v5505, %v5501
    %v5566 = vpack.c.b16 %v5506, %v5502
    %v5567 = vpack.c.b16 %v5507, %v5503
    %v5568 = vpack.c.b16 %v5512, %v5508
    %v5569 = vpack.c.b16 %v5513, %v5509
    %v5570 = vpack.c.b16 %v5514, %v5510
    %v5571 = vpack.c.b16 %v5515, %v5511
    %v5572 = vpack.c.b16 %v5520, %v5516
    %v5573 = vpack.c.b16 %v5521, %v5517
    %v5574 = vpack.c.b16 %v5522, %v5518
    %v5575 = vpack.c.b16 %v5523, %v5519
    %v5576 = vpack.c.b16 %v5528, %v5524
    %v5577 = vpack.c.b16 %v5529, %v5525
    %v5578 = vpack.c.b16 %v5530, %v5526
    %v5579 = vpack.c.b16 %v5531, %v5527
    %v5580 = vpack.c.b16 %v5536, %v5532
    %v5581 = vpack.c.b16 %v5537, %v5533
    %v5582 = vpack.c.b16 %v5538, %v5534
    %v5583 = vpack.c.b16 %v5539, %v5535
    %v5584 = vpack.c.b16 %v5544, %v5540
    %v5585 = vpack.c.b16 %v5545, %v5541
    %v5586 = vpack.c.b16 %v5546, %v5542
    %v5587 = vpack.c.b16 %v5547, %v5543
    %v5588 = vpack.c.b16 %v5552, %v5548
    %v5589 = vpack.c.b16 %v5553, %v5549
    %v5590 = vpack.c.b16 %v5554, %v5550
    %v5591 = vpack.c.b16 %v5555, %v5551
    %v5592 = vpack.c.b16 %v5560, %v5556
    %v5593 = vpack.c.b16 %v5561, %v5557
    %v5594 = vpack.c.b16 %v5562, %v5558
    %v5595 = vpack.c.b16 %v5563, %v5559
    %5628 = vmatprep.subr.bf16.mxu0 %v5593
    %5629 = vmatpush1.bf16.msra.mxu0 %v5592
    %5630 = vmatprep.subr.bf16.mxu0 %v5589
    %5631 = vmatpush1.bf16.msra.mxu0 %v5588
    %5632 = vmatprep.subr.bf16.mxu0 %v5585
    %5633 = vmatpush1.bf16.msra.mxu0 %v5584
    %5634 = vmatprep.subr.bf16.mxu0 %v5581
    %5635 = vmatpush1.bf16.msra.mxu0 %v5580
    %5636 = vmatprep.subr.bf16.mxu0 %v5577
    %5637 = vmatpush1.bf16.msra.mxu0 %v5576
    %5638 = vmatprep.subr.bf16.mxu0 %v5573
    %5639 = vmatpush1.bf16.msra.mxu0 %v5572
    %5640 = vmatprep.subr.bf16.mxu0 %v5569
    %5641 = vmatpush1.bf16.msra.mxu0 %v5568
    %5642 = vmatprep.subr.bf16.mxu0 %v5565
    %5643 = vmatpush1.bf16.msra.mxu0 %v5564
    %5644 = vmatprep.subr.bf16.mxu0 0
    %5645 = vmatpush2.bf16.msra.mxu0 0
    %5646 = vmatprep.subr.bf16.mxu0 0
    %5647 = vmatpush2.bf16.msra.mxu0 0
    %5648 = vmatprep.subr.bf16.mxu0 0
    %5649 = vmatpush2.bf16.msra.mxu0 0
    %5650 = vmatprep.subr.bf16.mxu0 0
    %5651 = vmatpush2.bf16.msra.mxu0 0
    %5652 = vmatprep.subr.bf16.mxu0 0
    %5653 = vmatpush2.bf16.msra.mxu0 0
    %5654 = vmatprep.subr.bf16.mxu0 0
    %5655 = vmatpush2.bf16.msra.mxu0 0
    %5656 = vmatprep.subr.bf16.mxu0 0
    %5657 = vmatpush2.bf16.msra.mxu0 0
    %5658 = vmatprep.subr.bf16.mxu0 0
    %5659 = vmatpush2.bf16.msra.mxu0 0
    %5660 = vmatprep.mubr.bf16.mxu0 0
    %5661 = vmatmul.mubr.bf16.gmra.mxu0 %v5435
    %v5662 = vpop.f32.mrf.mxu0
    %v5663 = vadd.f32 0.0, %v5662
    %v5664 = vpop.f32.mrf.mxu0
    %v5665 = vadd.f32 0.0, %v5664
    %v5666 = vpop.f32.mrf.mxu0
    %v5667 = vpop.f32.mrf.mxu0
    %5668 = vdwg.mxu0
    %5669 = vmatprep.subr.bf16.mxu0 %v5595
    %5670 = vmatpush1.bf16.msra.mxu0 %v5594
    %5671 = vmatprep.subr.bf16.mxu0 %v5591
    %5672 = vmatpush1.bf16.msra.mxu0 %v5590
    %5673 = vmatprep.subr.bf16.mxu0 %v5587
    %5674 = vmatpush1.bf16.msra.mxu0 %v5586
    %5675 = vmatprep.subr.bf16.mxu0 %v5583
    %5676 = vmatpush1.bf16.msra.mxu0 %v5582
    %5677 = vmatprep.subr.bf16.mxu0 %v5579
    %5678 = vmatpush1.bf16.msra.mxu0 %v5578
    %5679 = vmatprep.subr.bf16.mxu0 %v5575
    %5680 = vmatpush1.bf16.msra.mxu0 %v5574
    %5681 = vmatprep.subr.bf16.mxu0 %v5571
    %5682 = vmatpush1.bf16.msra.mxu0 %v5570
    %5683 = vmatprep.subr.bf16.mxu0 %v5567
    %5684 = vmatpush1.bf16.msra.mxu0 %v5566
    %5685 = vmatprep.subr.bf16.mxu0 0
    %5686 = vmatpush2.bf16.msra.mxu0 0
    %5687 = vmatprep.subr.bf16.mxu0 0
    %5688 = vmatpush2.bf16.msra.mxu0 0
    %5689 = vmatprep.subr.bf16.mxu0 0
    %5690 = vmatpush2.bf16.msra.mxu0 0
    %5691 = vmatprep.subr.bf16.mxu0 0
    %5692 = vmatpush2.bf16.msra.mxu0 0
    %5693 = vmatprep.subr.bf16.mxu0 0
    %5694 = vmatpush2.bf16.msra.mxu0 0
    %5695 = vmatprep.subr.bf16.mxu0 0
    %5696 = vmatpush2.bf16.msra.mxu0 0
    %5697 = vmatprep.subr.bf16.mxu0 0
    %5698 = vmatpush2.bf16.msra.mxu0 0
    %5699 = vmatprep.subr.bf16.mxu0 0
    %5700 = vmatpush2.bf16.msra.mxu0 0
    %5701 = vmatprep.mubr.bf16.mxu0 0
    %5702 = vmatmul.mubr.bf16.gmra.mxu0 %v5435
    %v5703 = vpop.f32.mrf.mxu0
    %v5704 = vadd.f32 0.0, %v5703
    %v5705 = vpop.f32.mrf.mxu0
    %v5706 = vadd.f32 0.0, %v5705
    %v5707 = vpop.f32.mrf.mxu0
    %v5708 = vpop.f32.mrf.mxu0
    %5709 = vdwg.mxu0
    %v5710 = vadd.f32 %v5431, %v5663
    %v5711 = vadd.f32 %v5432, %v5665
    %v5712 = vadd.f32 %v5433, %v5704
    %v5713 = vadd.f32 %v5434, %v5706
    %v5714 = vxor.u32 %v5710, 2147483648
    %v5715 = vmul.f32 %v5714, 1.442695
    %v5716 = vpow.pop %v5715
    %v5717 = vadd.f32 %v5716, 1.0
    %v5718 = vrcp.pop %v5717
    %v5719 = vmul.f32 1.0, %v5718
    %v5720 = vxor.u32 %v5711, 2147483648
    %v5721 = vmul.f32 %v5720, 1.442695
    %v5722 = vpow.pop %v5721
    %v5723 = vadd.f32 %v5722, 1.0
    %v5724 = vrcp.pop %v5723
    %v5725 = vmul.f32 1.0, %v5724
    %v5726 = vtanh.pop %v5712
    %v5727 = vxor.u32 %v5713, 2147483648
    %v5728 = vmul.f32 %v5727, 1.442695
    %v5729 = vpow.pop %v5728
    %v5730 = vadd.f32 %v5729, 1.0
    %v5731 = vrcp.pop %v5730
    %v5732 = vmul.f32 1.0, %v5731
    %v5733 = vmul.f32 %v5725, %v5119
    %v5734 = vmul.f32 %v5719, %v5726
    %v5735 = vadd.f32 %v5733, %v5734
    %v5736 = vtanh.pop %v5735
    %v5737 = vmul.f32 %v5732, %v5736
    %5738 = vst [vmem:[#allocation4 + $0x8] sm:$0xff] %v5737
    %v5739 = vld [vmem:[#allocation4] sm:$0xff]
    %v5740 = vld [vmem:[#allocation4 + $0x8] sm:$0xff]
    %v5741 = vld [vmem:[#allocation4 + $0x10] sm:$0xff]
    %v5742 = vld [vmem:[#allocation4 + $0x18] sm:$0xff]
    %v5743 = vld [vmem:[#allocation4 + $0x20] sm:$0xff]
    %v5744 = vld [vmem:[#allocation4 + $0x28] sm:$0xff]
    %v5745 = vld [vmem:[#allocation4 + $0x30] sm:$0xff]
    %v5746 = vld [vmem:[#allocation4 + $0x38] sm:$0xff]
    %v5747 = vld [vmem:[#allocation4 + $0x40] sm:$0xff]
    %v5748 = vld [vmem:[#allocation4 + $0x48] sm:$0xff]
    %v5749 = vld [vmem:[#allocation4 + $0x50] sm:$0xff]
    %v5750 = vld [vmem:[#allocation4 + $0x58] sm:$0xff]
    %v5751 = vld [vmem:[#allocation4 + $0x60] sm:$0xff]
    %v5752 = vld [vmem:[#allocation4 + $0x68] sm:$0xff]
    %v5753 = vld [vmem:[#allocation4 + $0x70] sm:$0xff]
    %v5754 = vld [vmem:[#allocation4 + $0x78] sm:$0xff]
    %v5755 = vpack.c.bf16 %v5741, %v5739
    %v5756 = vpack.c.bf16 %v5742, %v5740
    %v5757 = vpack.c.bf16 %v5745, %v5743
    %v5758 = vpack.c.bf16 %v5746, %v5744
    %v5759 = vpack.c.bf16 %v5749, %v5747
    %v5760 = vpack.c.bf16 %v5750, %v5748
    %v5761 = vpack.c.bf16 %v5753, %v5751
    %v5762 = vpack.c.bf16 %v5754, %v5752
    %v5763 = vld [vmem:[%s8] sm:$0xff]
    %v5764 = vld [vmem:[%s8 + $0x8] sm:$0xff]
    %v5765 = vld [vmem:[%s8 + $0x10] sm:$0xff]
    %v5766 = vld [vmem:[%s8 + $0x18] sm:$0xff]
    %v5767 = vld [vmem:[%s8 + $0x20] sm:$0xff]
    %v5768 = vld [vmem:[%s8 + $0x28] sm:$0xff]
    %v5769 = vld [vmem:[%s8 + $0x30] sm:$0xff]
    %v5770 = vld [vmem:[%s8 + $0x38] sm:$0xff]
    %v5771 = vld [vmem:[%s8 + $0x40] sm:$0xff]
    %v5772 = vld [vmem:[%s8 + $0x48] sm:$0xff]
    %v5773 = vld [vmem:[%s8 + $0x50] sm:$0xff]
    %v5774 = vld [vmem:[%s8 + $0x58] sm:$0xff]
    %v5775 = vld [vmem:[%s8 + $0x60] sm:$0xff]
    %v5776 = vld [vmem:[%s8 + $0x68] sm:$0xff]
    %v5777 = vld [vmem:[%s8 + $0x70] sm:$0xff]
    %v5778 = vld [vmem:[%s8 + $0x78] sm:$0xff]
    %v5779 = vld [vmem:[%s8 + $0x80] sm:$0xff]
    %v5780 = vld [vmem:[%s8 + $0x88] sm:$0xff]
    %v5781 = vld [vmem:[%s8 + $0x90] sm:$0xff]
    %v5782 = vld [vmem:[%s8 + $0x98] sm:$0xff]
    %v5783 = vld [vmem:[%s8 + $0xa0] sm:$0xff]
    %v5784 = vld [vmem:[%s8 + $0xa8] sm:$0xff]
    %v5785 = vld [vmem:[%s8 + $0xb0] sm:$0xff]
    %v5786 = vld [vmem:[%s8 + $0xb8] sm:$0xff]
    %v5787 = vld [vmem:[%s8 + $0xc0] sm:$0xff]
    %v5788 = vld [vmem:[%s8 + $0xc8] sm:$0xff]
    %v5789 = vld [vmem:[%s8 + $0xd0] sm:$0xff]
    %v5790 = vld [vmem:[%s8 + $0xd8] sm:$0xff]
    %v5791 = vld [vmem:[%s8 + $0xe0] sm:$0xff]
    %v5792 = vld [vmem:[%s8 + $0xe8] sm:$0xff]
    %v5793 = vld [vmem:[%s8 + $0xf0] sm:$0xff]
    %v5794 = vld [vmem:[%s8 + $0xf8] sm:$0xff]
    %v5795 = vld [vmem:[%s8 + $0x100] sm:$0xff]
    %v5796 = vld [vmem:[%s8 + $0x108] sm:$0xff]
    %v5797 = vld [vmem:[%s8 + $0x110] sm:$0xff]
    %v5798 = vld [vmem:[%s8 + $0x118] sm:$0xff]
    %v5799 = vld [vmem:[%s8 + $0x120] sm:$0xff]
    %v5800 = vld [vmem:[%s8 + $0x128] sm:$0xff]
    %v5801 = vld [vmem:[%s8 + $0x130] sm:$0xff]
    %v5802 = vld [vmem:[%s8 + $0x138] sm:$0xff]
    %v5803 = vld [vmem:[%s8 + $0x140] sm:$0xff]
    %v5804 = vld [vmem:[%s8 + $0x148] sm:$0xff]
    %v5805 = vld [vmem:[%s8 + $0x150] sm:$0xff]
    %v5806 = vld [vmem:[%s8 + $0x158] sm:$0xff]
    %v5807 = vld [vmem:[%s8 + $0x160] sm:$0xff]
    %v5808 = vld [vmem:[%s8 + $0x168] sm:$0xff]
    %v5809 = vld [vmem:[%s8 + $0x170] sm:$0xff]
    %v5810 = vld [vmem:[%s8 + $0x178] sm:$0xff]
    %v5811 = vld [vmem:[%s8 + $0x180] sm:$0xff]
    %v5812 = vld [vmem:[%s8 + $0x188] sm:$0xff]
    %v5813 = vld [vmem:[%s8 + $0x190] sm:$0xff]
    %v5814 = vld [vmem:[%s8 + $0x198] sm:$0xff]
    %v5815 = vld [vmem:[%s8 + $0x1a0] sm:$0xff]
    %v5816 = vld [vmem:[%s8 + $0x1a8] sm:$0xff]
    %v5817 = vld [vmem:[%s8 + $0x1b0] sm:$0xff]
    %v5818 = vld [vmem:[%s8 + $0x1b8] sm:$0xff]
    %v5819 = vld [vmem:[%s8 + $0x1c0] sm:$0xff]
    %v5820 = vld [vmem:[%s8 + $0x1c8] sm:$0xff]
    %v5821 = vld [vmem:[%s8 + $0x1d0] sm:$0xff]
    %v5822 = vld [vmem:[%s8 + $0x1d8] sm:$0xff]
    %v5823 = vld [vmem:[%s8 + $0x1e0] sm:$0xff]
    %v5824 = vld [vmem:[%s8 + $0x1e8] sm:$0xff]
    %v5825 = vld [vmem:[%s8 + $0x1f0] sm:$0xff]
    %v5826 = vld [vmem:[%s8 + $0x1f8] sm:$0xff]
    %v5827 = vld [vmem:[#allocation14] sm:$0xf]
    %v5829 = vlaneseq
    %v5830 = vshrl.u32 %v5829, 7
    %v5831 = vsub.s32 0, %v5830
    %v5832 = vrot.slane %v5827, %v5831
    %v5833 = vlaneseq
    %v5834 = vshrl.u32 %v5833, 7
    %v5835 = vsub.s32 1, %v5834
    %v5836 = vrot.slane %v5827, %v5835
    %v5837 = vlaneseq
    %v5838 = vshrl.u32 %v5837, 7
    %v5839 = vsub.s32 2, %v5838
    %v5840 = vrot.slane %v5827, %v5839
    %v5841 = vlaneseq
    %v5842 = vshrl.u32 %v5841, 7
    %v5843 = vsub.s32 3, %v5842
    %v5844 = vrot.slane %v5827, %v5843
    %v5913 = vunpack.c.l.b16 %v5763
    %v5914 = vunpack.c.h.b16 %v5763
    %v5915 = vunpack.c.l.b16 %v5764
    %v5916 = vunpack.c.h.b16 %v5764
    %v5917 = vunpack.c.l.b16 %v5765
    %v5918 = vunpack.c.h.b16 %v5765
    %v5919 = vunpack.c.l.b16 %v5766
    %v5920 = vunpack.c.h.b16 %v5766
    %v5921 = vunpack.c.l.b16 %v5767
    %v5922 = vunpack.c.h.b16 %v5767
    %v5923 = vunpack.c.l.b16 %v5768
    %v5924 = vunpack.c.h.b16 %v5768
    %v5925 = vunpack.c.l.b16 %v5769
    %v5926 = vunpack.c.h.b16 %v5769
    %v5927 = vunpack.c.l.b16 %v5770
    %v5928 = vunpack.c.h.b16 %v5770
    %v5929 = vunpack.c.l.b16 %v5771
    %v5930 = vunpack.c.h.b16 %v5771
    %v5931 = vunpack.c.l.b16 %v5772
    %v5932 = vunpack.c.h.b16 %v5772
    %v5933 = vunpack.c.l.b16 %v5773
    %v5934 = vunpack.c.h.b16 %v5773
    %v5935 = vunpack.c.l.b16 %v5774
    %v5936 = vunpack.c.h.b16 %v5774
    %v5937 = vunpack.c.l.b16 %v5775
    %v5938 = vunpack.c.h.b16 %v5775
    %v5939 = vunpack.c.l.b16 %v5776
    %v5940 = vunpack.c.h.b16 %v5776
    %v5941 = vunpack.c.l.b16 %v5777
    %v5942 = vunpack.c.h.b16 %v5777
    %v5943 = vunpack.c.l.b16 %v5778
    %v5944 = vunpack.c.h.b16 %v5778
    %v5945 = vunpack.c.l.b16 %v5779
    %v5946 = vunpack.c.h.b16 %v5779
    %v5947 = vunpack.c.l.b16 %v5780
    %v5948 = vunpack.c.h.b16 %v5780
    %v5949 = vunpack.c.l.b16 %v5781
    %v5950 = vunpack.c.h.b16 %v5781
    %v5951 = vunpack.c.l.b16 %v5782
    %v5952 = vunpack.c.h.b16 %v5782
    %v5953 = vunpack.c.l.b16 %v5783
    %v5954 = vunpack.c.h.b16 %v5783
    %v5955 = vunpack.c.l.b16 %v5784
    %v5956 = vunpack.c.h.b16 %v5784
    %v5957 = vunpack.c.l.b16 %v5785
    %v5958 = vunpack.c.h.b16 %v5785
    %v5959 = vunpack.c.l.b16 %v5786
    %v5960 = vunpack.c.h.b16 %v5786
    %v5961 = vunpack.c.l.b16 %v5787
    %v5962 = vunpack.c.h.b16 %v5787
    %v5963 = vunpack.c.l.b16 %v5788
    %v5964 = vunpack.c.h.b16 %v5788
    %v5965 = vunpack.c.l.b16 %v5789
    %v5966 = vunpack.c.h.b16 %v5789
    %v5967 = vunpack.c.l.b16 %v5790
    %v5968 = vunpack.c.h.b16 %v5790
    %v5969 = vunpack.c.l.b16 %v5791
    %v5970 = vunpack.c.h.b16 %v5791
    %v5971 = vunpack.c.l.b16 %v5792
    %v5972 = vunpack.c.h.b16 %v5792
    %v5973 = vunpack.c.l.b16 %v5793
    %v5974 = vunpack.c.h.b16 %v5793
    %v5975 = vunpack.c.l.b16 %v5794
    %v5976 = vunpack.c.h.b16 %v5794
    %v5977 = vunpack.c.l.b16 %v5795
    %v5978 = vunpack.c.h.b16 %v5795
    %v5979 = vunpack.c.l.b16 %v5796
    %v5980 = vunpack.c.h.b16 %v5796
    %v5981 = vunpack.c.l.b16 %v5797
    %v5982 = vunpack.c.h.b16 %v5797
    %v5983 = vunpack.c.l.b16 %v5798
    %v5984 = vunpack.c.h.b16 %v5798
    %v5985 = vunpack.c.l.b16 %v5799
    %v5986 = vunpack.c.h.b16 %v5799
    %v5987 = vunpack.c.l.b16 %v5800
    %v5988 = vunpack.c.h.b16 %v5800
    %v5989 = vunpack.c.l.b16 %v5801
    %v5990 = vunpack.c.h.b16 %v5801
    %v5991 = vunpack.c.l.b16 %v5802
    %v5992 = vunpack.c.h.b16 %v5802
    %v5993 = vunpack.c.l.b16 %v5803
    %v5994 = vunpack.c.h.b16 %v5803
    %v5995 = vunpack.c.l.b16 %v5804
    %v5996 = vunpack.c.h.b16 %v5804
    %v5997 = vunpack.c.l.b16 %v5805
    %v5998 = vunpack.c.h.b16 %v5805
    %v5999 = vunpack.c.l.b16 %v5806
    %v6000 = vunpack.c.h.b16 %v5806
    %v6001 = vunpack.c.l.b16 %v5807
    %v6002 = vunpack.c.h.b16 %v5807
    %v6003 = vunpack.c.l.b16 %v5808
    %v6004 = vunpack.c.h.b16 %v5808
    %v6005 = vunpack.c.l.b16 %v5809
    %v6006 = vunpack.c.h.b16 %v5809
    %v6007 = vunpack.c.l.b16 %v5810
    %v6008 = vunpack.c.h.b16 %v5810
    %v6009 = vunpack.c.l.b16 %v5811
    %v6010 = vunpack.c.h.b16 %v5811
    %v6011 = vunpack.c.l.b16 %v5812
    %v6012 = vunpack.c.h.b16 %v5812
    %v6013 = vunpack.c.l.b16 %v5813
    %v6014 = vunpack.c.h.b16 %v5813
    %v6015 = vunpack.c.l.b16 %v5814
    %v6016 = vunpack.c.h.b16 %v5814
    %v6017 = vunpack.c.l.b16 %v5815
    %v6018 = vunpack.c.h.b16 %v5815
    %v6019 = vunpack.c.l.b16 %v5816
    %v6020 = vunpack.c.h.b16 %v5816
    %v6021 = vunpack.c.l.b16 %v5817
    %v6022 = vunpack.c.h.b16 %v5817
    %v6023 = vunpack.c.l.b16 %v5818
    %v6024 = vunpack.c.h.b16 %v5818
    %v6025 = vunpack.c.l.b16 %v5819
    %v6026 = vunpack.c.h.b16 %v5819
    %v6027 = vunpack.c.l.b16 %v5820
    %v6028 = vunpack.c.h.b16 %v5820
    %v6029 = vunpack.c.l.b16 %v5821
    %v6030 = vunpack.c.h.b16 %v5821
    %v6031 = vunpack.c.l.b16 %v5822
    %v6032 = vunpack.c.h.b16 %v5822
    %v6033 = vunpack.c.l.b16 %v5823
    %v6034 = vunpack.c.h.b16 %v5823
    %v6035 = vunpack.c.l.b16 %v5824
    %v6036 = vunpack.c.h.b16 %v5824
    %v6037 = vunpack.c.l.b16 %v5825
    %v6038 = vunpack.c.h.b16 %v5825
    %v6039 = vunpack.c.l.b16 %v5826
    %v6040 = vunpack.c.h.b16 %v5826
    %v6041 = vpack.c.b16 %v5917, %v5913
    %v6042 = vpack.c.b16 %v5918, %v5914
    %v6043 = vpack.c.b16 %v5919, %v5915
    %v6044 = vpack.c.b16 %v5920, %v5916
    %v6045 = vpack.c.b16 %v5925, %v5921
    %v6046 = vpack.c.b16 %v5926, %v5922
    %v6047 = vpack.c.b16 %v5927, %v5923
    %v6048 = vpack.c.b16 %v5928, %v5924
    %v6049 = vpack.c.b16 %v5933, %v5929
    %v6050 = vpack.c.b16 %v5934, %v5930
    %v6051 = vpack.c.b16 %v5935, %v5931
    %v6052 = vpack.c.b16 %v5936, %v5932
    %v6053 = vpack.c.b16 %v5941, %v5937
    %v6054 = vpack.c.b16 %v5942, %v5938
    %v6055 = vpack.c.b16 %v5943, %v5939
    %v6056 = vpack.c.b16 %v5944, %v5940
    %v6057 = vpack.c.b16 %v5949, %v5945
    %v6058 = vpack.c.b16 %v5950, %v5946
    %v6059 = vpack.c.b16 %v5951, %v5947
    %v6060 = vpack.c.b16 %v5952, %v5948
    %v6061 = vpack.c.b16 %v5957, %v5953
    %v6062 = vpack.c.b16 %v5958, %v5954
    %v6063 = vpack.c.b16 %v5959, %v5955
    %v6064 = vpack.c.b16 %v5960, %v5956
    %v6065 = vpack.c.b16 %v5965, %v5961
    %v6066 = vpack.c.b16 %v5966, %v5962
    %v6067 = vpack.c.b16 %v5967, %v5963
    %v6068 = vpack.c.b16 %v5968, %v5964
    %v6069 = vpack.c.b16 %v5973, %v5969
    %v6070 = vpack.c.b16 %v5974, %v5970
    %v6071 = vpack.c.b16 %v5975, %v5971
    %v6072 = vpack.c.b16 %v5976, %v5972
    %v6073 = vpack.c.b16 %v5981, %v5977
    %v6074 = vpack.c.b16 %v5982, %v5978
    %v6075 = vpack.c.b16 %v5983, %v5979
    %v6076 = vpack.c.b16 %v5984, %v5980
    %v6077 = vpack.c.b16 %v5989, %v5985
    %v6078 = vpack.c.b16 %v5990, %v5986
    %v6079 = vpack.c.b16 %v5991, %v5987
    %v6080 = vpack.c.b16 %v5992, %v5988
    %v6081 = vpack.c.b16 %v5997, %v5993
    %v6082 = vpack.c.b16 %v5998, %v5994
    %v6083 = vpack.c.b16 %v5999, %v5995
    %v6084 = vpack.c.b16 %v6000, %v5996
    %v6085 = vpack.c.b16 %v6005, %v6001
    %v6086 = vpack.c.b16 %v6006, %v6002
    %v6087 = vpack.c.b16 %v6007, %v6003
    %v6088 = vpack.c.b16 %v6008, %v6004
    %v6089 = vpack.c.b16 %v6013, %v6009
    %v6090 = vpack.c.b16 %v6014, %v6010
    %v6091 = vpack.c.b16 %v6015, %v6011
    %v6092 = vpack.c.b16 %v6016, %v6012
    %v6093 = vpack.c.b16 %v6021, %v6017
    %v6094 = vpack.c.b16 %v6022, %v6018
    %v6095 = vpack.c.b16 %v6023, %v6019
    %v6096 = vpack.c.b16 %v6024, %v6020
    %v6097 = vpack.c.b16 %v6029, %v6025
    %v6098 = vpack.c.b16 %v6030, %v6026
    %v6099 = vpack.c.b16 %v6031, %v6027
    %v6100 = vpack.c.b16 %v6032, %v6028
    %v6101 = vpack.c.b16 %v6037, %v6033
    %v6102 = vpack.c.b16 %v6038, %v6034
    %v6103 = vpack.c.b16 %v6039, %v6035
    %v6104 = vpack.c.b16 %v6040, %v6036
    %6169 = vmatprep.subr.bf16.mxu0 %v6070
    %6170 = vmatpush1.bf16.msra.mxu0 %v6069
    %6171 = vmatprep.subr.bf16.mxu0 %v6066
    %6172 = vmatpush1.bf16.msra.mxu0 %v6065
    %6173 = vmatprep.subr.bf16.mxu0 %v6062
    %6174 = vmatpush1.bf16.msra.mxu0 %v6061
    %6175 = vmatprep.subr.bf16.mxu0 %v6058
    %6176 = vmatpush1.bf16.msra.mxu0 %v6057
    %6177 = vmatprep.subr.bf16.mxu0 %v6054
    %6178 = vmatpush1.bf16.msra.mxu0 %v6053
    %6179 = vmatprep.subr.bf16.mxu0 %v6050
    %6180 = vmatpush1.bf16.msra.mxu0 %v6049
    %6181 = vmatprep.subr.bf16.mxu0 %v6046
    %6182 = vmatpush1.bf16.msra.mxu0 %v6045
    %6183 = vmatprep.subr.bf16.mxu0 %v6042
    %6184 = vmatpush1.bf16.msra.mxu0 %v6041
    %6185 = vmatprep.subr.bf16.mxu0 %v6102
    %6186 = vmatpush2.bf16.msra.mxu0 %v6101
    %6187 = vmatprep.subr.bf16.mxu0 %v6098
    %6188 = vmatpush2.bf16.msra.mxu0 %v6097
    %6189 = vmatprep.subr.bf16.mxu0 %v6094
    %6190 = vmatpush2.bf16.msra.mxu0 %v6093
    %6191 = vmatprep.subr.bf16.mxu0 %v6090
    %6192 = vmatpush2.bf16.msra.mxu0 %v6089
    %6193 = vmatprep.subr.bf16.mxu0 %v6086
    %6194 = vmatpush2.bf16.msra.mxu0 %v6085
    %6195 = vmatprep.subr.bf16.mxu0 %v6082
    %6196 = vmatpush2.bf16.msra.mxu0 %v6081
    %6197 = vmatprep.subr.bf16.mxu0 %v6078
    %6198 = vmatpush2.bf16.msra.mxu0 %v6077
    %6199 = vmatprep.subr.bf16.mxu0 %v6074
    %6200 = vmatpush2.bf16.msra.mxu0 %v6073
    %6201 = vmatprep.mubr.bf16.mxu0 %v5756
    %6202 = vmatmul.mubr.bf16.gmra.mxu0 %v5755
    %v6203 = vpop.f32.mrf.mxu0
    %v6204 = vadd.f32 %v5832, %v6203
    %v6205 = vpop.f32.mrf.mxu0
    %v6206 = vadd.f32 %v5836, %v6205
    %v6207 = vpop.f32.mrf.mxu0
    %v6208 = vadd.f32 %v5832, %v6207
    %v6209 = vpop.f32.mrf.mxu0
    %v6210 = vadd.f32 %v5836, %v6209
    %6211 = vmatprep.mubr.bf16.mxu0 %v5758
    %6212 = vmatmul.mubr.bf16.gmra.mxu0 %v5757
    %v6213 = vpop.f32.mrf.mxu0
    %v6214 = vadd.f32 %v5832, %v6213
    %v6215 = vpop.f32.mrf.mxu0
    %v6216 = vadd.f32 %v5836, %v6215
    %v6217 = vpop.f32.mrf.mxu0
    %v6218 = vadd.f32 %v5832, %v6217
    %v6219 = vpop.f32.mrf.mxu0
    %v6220 = vadd.f32 %v5836, %v6219
    %6221 = vmatprep.mubr.bf16.mxu0 %v5760
    %6222 = vmatmul.mubr.bf16.gmra.mxu0 %v5759
    %v6223 = vpop.f32.mrf.mxu0
    %v6224 = vadd.f32 %v5832, %v6223
    %v6225 = vpop.f32.mrf.mxu0
    %v6226 = vadd.f32 %v5836, %v6225
    %v6227 = vpop.f32.mrf.mxu0
    %v6228 = vadd.f32 %v5832, %v6227
    %v6229 = vpop.f32.mrf.mxu0
    %v6230 = vadd.f32 %v5836, %v6229
    %6231 = vmatprep.mubr.bf16.mxu0 %v5762
    %6232 = vmatmul.mubr.bf16.gmra.mxu0 %v5761
    %v6233 = vpop.f32.mrf.mxu0
    %v6234 = vadd.f32 %v5832, %v6233
    %v6235 = vpop.f32.mrf.mxu0
    %v6236 = vadd.f32 %v5836, %v6235
    %v6237 = vpop.f32.mrf.mxu0
    %v6238 = vadd.f32 %v5832, %v6237
    %v6239 = vpop.f32.mrf.mxu0
    %v6240 = vadd.f32 %v5836, %v6239
    %6241 = vdwg.mxu0
    %6242 = vmatprep.subr.bf16.mxu0 %v6072
    %6243 = vmatpush1.bf16.msra.mxu0 %v6071
    %6244 = vmatprep.subr.bf16.mxu0 %v6068
    %6245 = vmatpush1.bf16.msra.mxu0 %v6067
    %6246 = vmatprep.subr.bf16.mxu0 %v6064
    %6247 = vmatpush1.bf16.msra.mxu0 %v6063
    %6248 = vmatprep.subr.bf16.mxu0 %v6060
    %6249 = vmatpush1.bf16.msra.mxu0 %v6059
    %6250 = vmatprep.subr.bf16.mxu0 %v6056
    %6251 = vmatpush1.bf16.msra.mxu0 %v6055
    %6252 = vmatprep.subr.bf16.mxu0 %v6052
    %6253 = vmatpush1.bf16.msra.mxu0 %v6051
    %6254 = vmatprep.subr.bf16.mxu0 %v6048
    %6255 = vmatpush1.bf16.msra.mxu0 %v6047
    %6256 = vmatprep.subr.bf16.mxu0 %v6044
    %6257 = vmatpush1.bf16.msra.mxu0 %v6043
    %6258 = vmatprep.subr.bf16.mxu0 %v6104
    %6259 = vmatpush2.bf16.msra.mxu0 %v6103
    %6260 = vmatprep.subr.bf16.mxu0 %v6100
    %6261 = vmatpush2.bf16.msra.mxu0 %v6099
    %6262 = vmatprep.subr.bf16.mxu0 %v6096
    %6263 = vmatpush2.bf16.msra.mxu0 %v6095
    %6264 = vmatprep.subr.bf16.mxu0 %v6092
    %6265 = vmatpush2.bf16.msra.mxu0 %v6091
    %6266 = vmatprep.subr.bf16.mxu0 %v6088
    %6267 = vmatpush2.bf16.msra.mxu0 %v6087
    %6268 = vmatprep.subr.bf16.mxu0 %v6084
    %6269 = vmatpush2.bf16.msra.mxu0 %v6083
    %6270 = vmatprep.subr.bf16.mxu0 %v6080
    %6271 = vmatpush2.bf16.msra.mxu0 %v6079
    %6272 = vmatprep.subr.bf16.mxu0 %v6076
    %6273 = vmatpush2.bf16.msra.mxu0 %v6075
    %6274 = vmatprep.mubr.bf16.mxu0 %v5756
    %6275 = vmatmul.mubr.bf16.gmra.mxu0 %v5755
    %v6276 = vpop.f32.mrf.mxu0
    %v6277 = vadd.f32 %v5840, %v6276
    %v6278 = vpop.f32.mrf.mxu0
    %v6279 = vadd.f32 %v5844, %v6278
    %v6280 = vpop.f32.mrf.mxu0
    %v6281 = vadd.f32 %v5840, %v6280
    %v6282 = vpop.f32.mrf.mxu0
    %v6283 = vadd.f32 %v5844, %v6282
    %6284 = vmatprep.mubr.bf16.mxu0 %v5758
    %6285 = vmatmul.mubr.bf16.gmra.mxu0 %v5757
    %v6286 = vpop.f32.mrf.mxu0
    %v6287 = vadd.f32 %v5840, %v6286
    %v6288 = vpop.f32.mrf.mxu0
    %v6289 = vadd.f32 %v5844, %v6288
    %v6290 = vpop.f32.mrf.mxu0
    %v6291 = vadd.f32 %v5840, %v6290
    %v6292 = vpop.f32.mrf.mxu0
    %v6293 = vadd.f32 %v5844, %v6292
    %6294 = vmatprep.mubr.bf16.mxu0 %v5760
    %6295 = vmatmul.mubr.bf16.gmra.mxu0 %v5759
    %v6296 = vpop.f32.mrf.mxu0
    %v6297 = vadd.f32 %v5840, %v6296
    %v6298 = vpop.f32.mrf.mxu0
    %v6299 = vadd.f32 %v5844, %v6298
    %v6300 = vpop.f32.mrf.mxu0
    %v6301 = vadd.f32 %v5840, %v6300
    %v6302 = vpop.f32.mrf.mxu0
    %v6303 = vadd.f32 %v5844, %v6302
    %6304 = vmatprep.mubr.bf16.mxu0 %v5762
    %6305 = vmatmul.mubr.bf16.gmra.mxu0 %v5761
    %v6306 = vpop.f32.mrf.mxu0
    %v6307 = vadd.f32 %v5840, %v6306
    %v6308 = vpop.f32.mrf.mxu0
    %v6309 = vadd.f32 %v5844, %v6308
    %v6310 = vpop.f32.mrf.mxu0
    %v6311 = vadd.f32 %v5840, %v6310
    %v6312 = vpop.f32.mrf.mxu0
    %v6313 = vadd.f32 %v5844, %v6312
    %6314 = vdwg.mxu0
    %6315 = vst [vmem:[#allocation2] sm:$0xff] %v6204
    %6316 = vst [vmem:[#allocation2 + $0x8] sm:$0xff] %v6206
    %6317 = vst [vmem:[#allocation2 + $0x10] sm:$0xff] %v6277
    %6318 = vst [vmem:[#allocation2 + $0x18] sm:$0xff] %v6279
    %6319 = vst [vmem:[#allocation2 + $0x20] sm:$0xff] %v6208
    %6320 = vst [vmem:[#allocation2 + $0x28] sm:$0xff] %v6210
    %6321 = vst [vmem:[#allocation2 + $0x30] sm:$0xff] %v6281
    %6322 = vst [vmem:[#allocation2 + $0x38] sm:$0xff] %v6283
    %6323 = vst [vmem:[#allocation2 + $0x40] sm:$0xff] %v6214
    %6324 = vst [vmem:[#allocation2 + $0x48] sm:$0xff] %v6216
    %6325 = vst [vmem:[#allocation2 + $0x50] sm:$0xff] %v6287
    %6326 = vst [vmem:[#allocation2 + $0x58] sm:$0xff] %v6289
    %6327 = vst [vmem:[#allocation2 + $0x60] sm:$0xff] %v6218
    %6328 = vst [vmem:[#allocation2 + $0x68] sm:$0xff] %v6220
    %6329 = vst [vmem:[#allocation2 + $0x70] sm:$0xff] %v6291
    %6330 = vst [vmem:[#allocation2 + $0x78] sm:$0xff] %v6293
    %6331 = vst [vmem:[#allocation2 + $0x80] sm:$0xff] %v6224
    %6332 = vst [vmem:[#allocation2 + $0x88] sm:$0xff] %v6226
    %6333 = vst [vmem:[#allocation2 + $0x90] sm:$0xff] %v6297
    %6334 = vst [vmem:[#allocation2 + $0x98] sm:$0xff] %v6299
    %6335 = vst [vmem:[#allocation2 + $0xa0] sm:$0xff] %v6228
    %6336 = vst [vmem:[#allocation2 + $0xa8] sm:$0xff] %v6230
    %6337 = vst [vmem:[#allocation2 + $0xb0] sm:$0xff] %v6301
    %6338 = vst [vmem:[#allocation2 + $0xb8] sm:$0xff] %v6303
    %6339 = vst [vmem:[#allocation2 + $0xc0] sm:$0xff] %v6234
    %6340 = vst [vmem:[#allocation2 + $0xc8] sm:$0xff] %v6236
    %6341 = vst [vmem:[#allocation2 + $0xd0] sm:$0xff] %v6307
    %6342 = vst [vmem:[#allocation2 + $0xd8] sm:$0xff] %v6309
    %6343 = vst [vmem:[#allocation2 + $0xe0] sm:$0xff] %v6238
    %6344 = vst [vmem:[#allocation2 + $0xe8] sm:$0xff] %v6240
    %6345 = vst [vmem:[#allocation2 + $0xf0] sm:$0xff] %v6311
    %6346 = vst [vmem:[#allocation2 + $0xf8] sm:$0xff] %v6313
    %v6347 = vld [vmem:[#allocation16] sm:$0xff]
    %v6348 = vld [vmem:[#allocation16 + $0x8] sm:$0xff]
    %v6349 = vld [vmem:[#allocation16 + $0x10] sm:$0xff]
    %v6350 = vld [vmem:[#allocation16 + $0x18] sm:$0xff]
    %v6351 = vld [vmem:[#allocation16 + $0x20] sm:$0xff]
    %v6352 = vld [vmem:[#allocation16 + $0x28] sm:$0xff]
    %v6353 = vld [vmem:[#allocation16 + $0x30] sm:$0xff]
    %v6354 = vld [vmem:[#allocation16 + $0x38] sm:$0xff]
    %v6355 = vld [vmem:[#allocation16 + $0x40] sm:$0xff]
    %v6356 = vld [vmem:[#allocation16 + $0x48] sm:$0xff]
    %v6357 = vld [vmem:[#allocation16 + $0x50] sm:$0xff]
    %v6358 = vld [vmem:[#allocation16 + $0x58] sm:$0xff]
    %v6359 = vld [vmem:[#allocation16 + $0x60] sm:$0xff]
    %v6360 = vld [vmem:[#allocation16 + $0x68] sm:$0xff]
    %v6361 = vld [vmem:[#allocation16 + $0x70] sm:$0xff]
    %v6362 = vld [vmem:[#allocation16 + $0x78] sm:$0xff]
    %v6363 = vld [vmem:[#allocation16 + $0x80] sm:$0xff]
    %v6364 = vld [vmem:[#allocation16 + $0x88] sm:$0xff]
    %v6365 = vld [vmem:[#allocation16 + $0x90] sm:$0xff]
    %v6366 = vld [vmem:[#allocation16 + $0x98] sm:$0xff]
    %v6367 = vld [vmem:[#allocation16 + $0xa0] sm:$0xff]
    %v6368 = vld [vmem:[#allocation16 + $0xa8] sm:$0xff]
    %v6369 = vld [vmem:[#allocation16 + $0xb0] sm:$0xff]
    %v6370 = vld [vmem:[#allocation16 + $0xb8] sm:$0xff]
    %v6371 = vld [vmem:[#allocation16 + $0xc0] sm:$0xff]
    %v6372 = vld [vmem:[#allocation16 + $0xc8] sm:$0xff]
    %v6373 = vld [vmem:[#allocation16 + $0xd0] sm:$0xff]
    %v6374 = vld [vmem:[#allocation16 + $0xd8] sm:$0xff]
    %v6375 = vld [vmem:[#allocation16 + $0xe0] sm:$0xff]
    %v6376 = vld [vmem:[#allocation16 + $0xe8] sm:$0xff]
    %v6377 = vld [vmem:[#allocation16 + $0xf0] sm:$0xff]
    %v6378 = vld [vmem:[#allocation16 + $0xf8] sm:$0xff]
    %v6379 = vld [vmem:[#allocation16 + $0x100] sm:$0xff]
    %v6380 = vld [vmem:[#allocation16 + $0x108] sm:$0xff]
    %v6381 = vld [vmem:[#allocation16 + $0x110] sm:$0xff]
    %v6382 = vld [vmem:[#allocation16 + $0x118] sm:$0xff]
    %v6383 = vld [vmem:[#allocation16 + $0x120] sm:$0xff]
    %v6384 = vld [vmem:[#allocation16 + $0x128] sm:$0xff]
    %v6385 = vld [vmem:[#allocation16 + $0x130] sm:$0xff]
    %v6386 = vld [vmem:[#allocation16 + $0x138] sm:$0xff]
    %v6387 = vld [vmem:[#allocation16 + $0x140] sm:$0xff]
    %v6388 = vld [vmem:[#allocation16 + $0x148] sm:$0xff]
    %v6389 = vld [vmem:[#allocation16 + $0x150] sm:$0xff]
    %v6390 = vld [vmem:[#allocation16 + $0x158] sm:$0xff]
    %v6391 = vld [vmem:[#allocation16 + $0x160] sm:$0xff]
    %v6392 = vld [vmem:[#allocation16 + $0x168] sm:$0xff]
    %v6393 = vld [vmem:[#allocation16 + $0x170] sm:$0xff]
    %v6394 = vld [vmem:[#allocation16 + $0x178] sm:$0xff]
    %v6395 = vld [vmem:[#allocation16 + $0x180] sm:$0xff]
    %v6396 = vld [vmem:[#allocation16 + $0x188] sm:$0xff]
    %v6397 = vld [vmem:[#allocation16 + $0x190] sm:$0xff]
    %v6398 = vld [vmem:[#allocation16 + $0x198] sm:$0xff]
    %v6399 = vld [vmem:[#allocation16 + $0x1a0] sm:$0xff]
    %v6400 = vld [vmem:[#allocation16 + $0x1a8] sm:$0xff]
    %v6401 = vld [vmem:[#allocation16 + $0x1b0] sm:$0xff]
    %v6402 = vld [vmem:[#allocation16 + $0x1b8] sm:$0xff]
    %v6403 = vld [vmem:[#allocation16 + $0x1c0] sm:$0xff]
    %v6404 = vld [vmem:[#allocation16 + $0x1c8] sm:$0xff]
    %v6405 = vld [vmem:[#allocation16 + $0x1d0] sm:$0xff]
    %v6406 = vld [vmem:[#allocation16 + $0x1d8] sm:$0xff]
    %v6407 = vld [vmem:[#allocation16 + $0x1e0] sm:$0xff]
    %v6408 = vld [vmem:[#allocation16 + $0x1e8] sm:$0xff]
    %v6409 = vld [vmem:[#allocation16 + $0x1f0] sm:$0xff]
    %v6410 = vld [vmem:[#allocation16 + $0x1f8] sm:$0xff]
    %v6411 = vld [vmem:[%s13] sm:$0xf]
    %v6413 = vlaneseq
    %v6414 = vshrl.u32 %v6413, 7
    %v6415 = vsub.s32 0, %v6414
    %v6416 = vrot.slane %v6411, %v6415
    %v6417 = vlaneseq
    %v6418 = vshrl.u32 %v6417, 7
    %v6419 = vsub.s32 1, %v6418
    %v6420 = vrot.slane %v6411, %v6419
    %v6421 = vlaneseq
    %v6422 = vshrl.u32 %v6421, 7
    %v6423 = vsub.s32 2, %v6422
    %v6424 = vrot.slane %v6411, %v6423
    %v6425 = vlaneseq
    %v6426 = vshrl.u32 %v6425, 7
    %v6427 = vsub.s32 3, %v6426
    %v6428 = vrot.slane %v6411, %v6427
    %v6497 = vunpack.c.l.b16 %v6347
    %v6498 = vunpack.c.h.b16 %v6347
    %v6499 = vunpack.c.l.b16 %v6348
    %v6500 = vunpack.c.h.b16 %v6348
    %v6501 = vunpack.c.l.b16 %v6349
    %v6502 = vunpack.c.h.b16 %v6349
    %v6503 = vunpack.c.l.b16 %v6350
    %v6504 = vunpack.c.h.b16 %v6350
    %v6505 = vunpack.c.l.b16 %v6351
    %v6506 = vunpack.c.h.b16 %v6351
    %v6507 = vunpack.c.l.b16 %v6352
    %v6508 = vunpack.c.h.b16 %v6352
    %v6509 = vunpack.c.l.b16 %v6353
    %v6510 = vunpack.c.h.b16 %v6353
    %v6511 = vunpack.c.l.b16 %v6354
    %v6512 = vunpack.c.h.b16 %v6354
    %v6513 = vunpack.c.l.b16 %v6355
    %v6514 = vunpack.c.h.b16 %v6355
    %v6515 = vunpack.c.l.b16 %v6356
    %v6516 = vunpack.c.h.b16 %v6356
    %v6517 = vunpack.c.l.b16 %v6357
    %v6518 = vunpack.c.h.b16 %v6357
    %v6519 = vunpack.c.l.b16 %v6358
    %v6520 = vunpack.c.h.b16 %v6358
    %v6521 = vunpack.c.l.b16 %v6359
    %v6522 = vunpack.c.h.b16 %v6359
    %v6523 = vunpack.c.l.b16 %v6360
    %v6524 = vunpack.c.h.b16 %v6360
    %v6525 = vunpack.c.l.b16 %v6361
    %v6526 = vunpack.c.h.b16 %v6361
    %v6527 = vunpack.c.l.b16 %v6362
    %v6528 = vunpack.c.h.b16 %v6362
    %v6529 = vunpack.c.l.b16 %v6363
    %v6530 = vunpack.c.h.b16 %v6363
    %v6531 = vunpack.c.l.b16 %v6364
    %v6532 = vunpack.c.h.b16 %v6364
    %v6533 = vunpack.c.l.b16 %v6365
    %v6534 = vunpack.c.h.b16 %v6365
    %v6535 = vunpack.c.l.b16 %v6366
    %v6536 = vunpack.c.h.b16 %v6366
    %v6537 = vunpack.c.l.b16 %v6367
    %v6538 = vunpack.c.h.b16 %v6367
    %v6539 = vunpack.c.l.b16 %v6368
    %v6540 = vunpack.c.h.b16 %v6368
    %v6541 = vunpack.c.l.b16 %v6369
    %v6542 = vunpack.c.h.b16 %v6369
    %v6543 = vunpack.c.l.b16 %v6370
    %v6544 = vunpack.c.h.b16 %v6370
    %v6545 = vunpack.c.l.b16 %v6371
    %v6546 = vunpack.c.h.b16 %v6371
    %v6547 = vunpack.c.l.b16 %v6372
    %v6548 = vunpack.c.h.b16 %v6372
    %v6549 = vunpack.c.l.b16 %v6373
    %v6550 = vunpack.c.h.b16 %v6373
    %v6551 = vunpack.c.l.b16 %v6374
    %v6552 = vunpack.c.h.b16 %v6374
    %v6553 = vunpack.c.l.b16 %v6375
    %v6554 = vunpack.c.h.b16 %v6375
    %v6555 = vunpack.c.l.b16 %v6376
    %v6556 = vunpack.c.h.b16 %v6376
    %v6557 = vunpack.c.l.b16 %v6377
    %v6558 = vunpack.c.h.b16 %v6377
    %v6559 = vunpack.c.l.b16 %v6378
    %v6560 = vunpack.c.h.b16 %v6378
    %v6561 = vunpack.c.l.b16 %v6379
    %v6562 = vunpack.c.h.b16 %v6379
    %v6563 = vunpack.c.l.b16 %v6380
    %v6564 = vunpack.c.h.b16 %v6380
    %v6565 = vunpack.c.l.b16 %v6381
    %v6566 = vunpack.c.h.b16 %v6381
    %v6567 = vunpack.c.l.b16 %v6382
    %v6568 = vunpack.c.h.b16 %v6382
    %v6569 = vunpack.c.l.b16 %v6383
    %v6570 = vunpack.c.h.b16 %v6383
    %v6571 = vunpack.c.l.b16 %v6384
    %v6572 = vunpack.c.h.b16 %v6384
    %v6573 = vunpack.c.l.b16 %v6385
    %v6574 = vunpack.c.h.b16 %v6385
    %v6575 = vunpack.c.l.b16 %v6386
    %v6576 = vunpack.c.h.b16 %v6386
    %v6577 = vunpack.c.l.b16 %v6387
    %v6578 = vunpack.c.h.b16 %v6387
    %v6579 = vunpack.c.l.b16 %v6388
    %v6580 = vunpack.c.h.b16 %v6388
    %v6581 = vunpack.c.l.b16 %v6389
    %v6582 = vunpack.c.h.b16 %v6389
    %v6583 = vunpack.c.l.b16 %v6390
    %v6584 = vunpack.c.h.b16 %v6390
    %v6585 = vunpack.c.l.b16 %v6391
    %v6586 = vunpack.c.h.b16 %v6391
    %v6587 = vunpack.c.l.b16 %v6392
    %v6588 = vunpack.c.h.b16 %v6392
    %v6589 = vunpack.c.l.b16 %v6393
    %v6590 = vunpack.c.h.b16 %v6393
    %v6591 = vunpack.c.l.b16 %v6394
    %v6592 = vunpack.c.h.b16 %v6394
    %v6593 = vunpack.c.l.b16 %v6395
    %v6594 = vunpack.c.h.b16 %v6395
    %v6595 = vunpack.c.l.b16 %v6396
    %v6596 = vunpack.c.h.b16 %v6396
    %v6597 = vunpack.c.l.b16 %v6397
    %v6598 = vunpack.c.h.b16 %v6397
    %v6599 = vunpack.c.l.b16 %v6398
    %v6600 = vunpack.c.h.b16 %v6398
    %v6601 = vunpack.c.l.b16 %v6399
    %v6602 = vunpack.c.h.b16 %v6399
    %v6603 = vunpack.c.l.b16 %v6400
    %v6604 = vunpack.c.h.b16 %v6400
    %v6605 = vunpack.c.l.b16 %v6401
    %v6606 = vunpack.c.h.b16 %v6401
    %v6607 = vunpack.c.l.b16 %v6402
    %v6608 = vunpack.c.h.b16 %v6402
    %v6609 = vunpack.c.l.b16 %v6403
    %v6610 = vunpack.c.h.b16 %v6403
    %v6611 = vunpack.c.l.b16 %v6404
    %v6612 = vunpack.c.h.b16 %v6404
    %v6613 = vunpack.c.l.b16 %v6405
    %v6614 = vunpack.c.h.b16 %v6405
    %v6615 = vunpack.c.l.b16 %v6406
    %v6616 = vunpack.c.h.b16 %v6406
    %v6617 = vunpack.c.l.b16 %v6407
    %v6618 = vunpack.c.h.b16 %v6407
    %v6619 = vunpack.c.l.b16 %v6408
    %v6620 = vunpack.c.h.b16 %v6408
    %v6621 = vunpack.c.l.b16 %v6409
    %v6622 = vunpack.c.h.b16 %v6409
    %v6623 = vunpack.c.l.b16 %v6410
    %v6624 = vunpack.c.h.b16 %v6410
    %v6625 = vpack.c.b16 %v6501, %v6497
    %v6626 = vpack.c.b16 %v6502, %v6498
    %v6627 = vpack.c.b16 %v6503, %v6499
    %v6628 = vpack.c.b16 %v6504, %v6500
    %v6629 = vpack.c.b16 %v6509, %v6505
    %v6630 = vpack.c.b16 %v6510, %v6506
    %v6631 = vpack.c.b16 %v6511, %v6507
    %v6632 = vpack.c.b16 %v6512, %v6508
    %v6633 = vpack.c.b16 %v6517, %v6513
    %v6634 = vpack.c.b16 %v6518, %v6514
    %v6635 = vpack.c.b16 %v6519, %v6515
    %v6636 = vpack.c.b16 %v6520, %v6516
    %v6637 = vpack.c.b16 %v6525, %v6521
    %v6638 = vpack.c.b16 %v6526, %v6522
    %v6639 = vpack.c.b16 %v6527, %v6523
    %v6640 = vpack.c.b16 %v6528, %v6524
    %v6641 = vpack.c.b16 %v6533, %v6529
    %v6642 = vpack.c.b16 %v6534, %v6530
    %v6643 = vpack.c.b16 %v6535, %v6531
    %v6644 = vpack.c.b16 %v6536, %v6532
    %v6645 = vpack.c.b16 %v6541, %v6537
    %v6646 = vpack.c.b16 %v6542, %v6538
    %v6647 = vpack.c.b16 %v6543, %v6539
    %v6648 = vpack.c.b16 %v6544, %v6540
    %v6649 = vpack.c.b16 %v6549, %v6545
    %v6650 = vpack.c.b16 %v6550, %v6546
    %v6651 = vpack.c.b16 %v6551, %v6547
    %v6652 = vpack.c.b16 %v6552, %v6548
    %v6653 = vpack.c.b16 %v6557, %v6553
    %v6654 = vpack.c.b16 %v6558, %v6554
    %v6655 = vpack.c.b16 %v6559, %v6555
    %v6656 = vpack.c.b16 %v6560, %v6556
    %v6657 = vpack.c.b16 %v6565, %v6561
    %v6658 = vpack.c.b16 %v6566, %v6562
    %v6659 = vpack.c.b16 %v6567, %v6563
    %v6660 = vpack.c.b16 %v6568, %v6564
    %v6661 = vpack.c.b16 %v6573, %v6569
    %v6662 = vpack.c.b16 %v6574, %v6570
    %v6663 = vpack.c.b16 %v6575, %v6571
    %v6664 = vpack.c.b16 %v6576, %v6572
    %v6665 = vpack.c.b16 %v6581, %v6577
    %v6666 = vpack.c.b16 %v6582, %v6578
    %v6667 = vpack.c.b16 %v6583, %v6579
    %v6668 = vpack.c.b16 %v6584, %v6580
    %v6669 = vpack.c.b16 %v6589, %v6585
    %v6670 = vpack.c.b16 %v6590, %v6586
    %v6671 = vpack.c.b16 %v6591, %v6587
    %v6672 = vpack.c.b16 %v6592, %v6588
    %v6673 = vpack.c.b16 %v6597, %v6593
    %v6674 = vpack.c.b16 %v6598, %v6594
    %v6675 = vpack.c.b16 %v6599, %v6595
    %v6676 = vpack.c.b16 %v6600, %v6596
    %v6677 = vpack.c.b16 %v6605, %v6601
    %v6678 = vpack.c.b16 %v6606, %v6602
    %v6679 = vpack.c.b16 %v6607, %v6603
    %v6680 = vpack.c.b16 %v6608, %v6604
    %v6681 = vpack.c.b16 %v6613, %v6609
    %v6682 = vpack.c.b16 %v6614, %v6610
    %v6683 = vpack.c.b16 %v6615, %v6611
    %v6684 = vpack.c.b16 %v6616, %v6612
    %v6685 = vpack.c.b16 %v6621, %v6617
    %v6686 = vpack.c.b16 %v6622, %v6618
    %v6687 = vpack.c.b16 %v6623, %v6619
    %v6688 = vpack.c.b16 %v6624, %v6620
    %6753 = vmatprep.subr.bf16.mxu0 %v6654
    %6754 = vmatpush1.bf16.msra.mxu0 %v6653
    %6755 = vmatprep.subr.bf16.mxu0 %v6650
    %6756 = vmatpush1.bf16.msra.mxu0 %v6649
    %6757 = vmatprep.subr.bf16.mxu0 %v6646
    %6758 = vmatpush1.bf16.msra.mxu0 %v6645
    %6759 = vmatprep.subr.bf16.mxu0 %v6642
    %6760 = vmatpush1.bf16.msra.mxu0 %v6641
    %6761 = vmatprep.subr.bf16.mxu0 %v6638
    %6762 = vmatpush1.bf16.msra.mxu0 %v6637
    %6763 = vmatprep.subr.bf16.mxu0 %v6634
    %6764 = vmatpush1.bf16.msra.mxu0 %v6633
    %6765 = vmatprep.subr.bf16.mxu0 %v6630
    %6766 = vmatpush1.bf16.msra.mxu0 %v6629
    %6767 = vmatprep.subr.bf16.mxu0 %v6626
    %6768 = vmatpush1.bf16.msra.mxu0 %v6625
    %6769 = vmatprep.subr.bf16.mxu0 %v6686
    %6770 = vmatpush2.bf16.msra.mxu0 %v6685
    %6771 = vmatprep.subr.bf16.mxu0 %v6682
    %6772 = vmatpush2.bf16.msra.mxu0 %v6681
    %6773 = vmatprep.subr.bf16.mxu0 %v6678
    %6774 = vmatpush2.bf16.msra.mxu0 %v6677
    %6775 = vmatprep.subr.bf16.mxu0 %v6674
    %6776 = vmatpush2.bf16.msra.mxu0 %v6673
    %6777 = vmatprep.subr.bf16.mxu0 %v6670
    %6778 = vmatpush2.bf16.msra.mxu0 %v6669
    %6779 = vmatprep.subr.bf16.mxu0 %v6666
    %6780 = vmatpush2.bf16.msra.mxu0 %v6665
    %6781 = vmatprep.subr.bf16.mxu0 %v6662
    %6782 = vmatpush2.bf16.msra.mxu0 %v6661
    %6783 = vmatprep.subr.bf16.mxu0 %v6658
    %6784 = vmatpush2.bf16.msra.mxu0 %v6657
    %6785 = vmatprep.mubr.bf16.mxu0 %v5756
    %6786 = vmatmul.mubr.bf16.gmra.mxu0 %v5755
    %v6787 = vpop.f32.mrf.mxu0
    %v6788 = vadd.f32 %v6416, %v6787
    %v6789 = vpop.f32.mrf.mxu0
    %v6790 = vadd.f32 %v6420, %v6789
    %v6791 = vpop.f32.mrf.mxu0
    %v6792 = vadd.f32 %v6416, %v6791
    %v6793 = vpop.f32.mrf.mxu0
    %v6794 = vadd.f32 %v6420, %v6793
    %6795 = vmatprep.mubr.bf16.mxu0 %v5758
    %6796 = vmatmul.mubr.bf16.gmra.mxu0 %v5757
    %v6797 = vpop.f32.mrf.mxu0
    %v6798 = vadd.f32 %v6416, %v6797
    %v6799 = vpop.f32.mrf.mxu0
    %v6800 = vadd.f32 %v6420, %v6799
    %v6801 = vpop.f32.mrf.mxu0
    %v6802 = vadd.f32 %v6416, %v6801
    %v6803 = vpop.f32.mrf.mxu0
    %v6804 = vadd.f32 %v6420, %v6803
    %6805 = vmatprep.mubr.bf16.mxu0 %v5760
    %6806 = vmatmul.mubr.bf16.gmra.mxu0 %v5759
    %v6807 = vpop.f32.mrf.mxu0
    %v6808 = vadd.f32 %v6416, %v6807
    %v6809 = vpop.f32.mrf.mxu0
    %v6810 = vadd.f32 %v6420, %v6809
    %v6811 = vpop.f32.mrf.mxu0
    %v6812 = vadd.f32 %v6416, %v6811
    %v6813 = vpop.f32.mrf.mxu0
    %v6814 = vadd.f32 %v6420, %v6813
    %6815 = vmatprep.mubr.bf16.mxu0 %v5762
    %6816 = vmatmul.mubr.bf16.gmra.mxu0 %v5761
    %v6817 = vpop.f32.mrf.mxu0
    %v6818 = vadd.f32 %v6416, %v6817
    %v6819 = vpop.f32.mrf.mxu0
    %v6820 = vadd.f32 %v6420, %v6819
    %v6821 = vpop.f32.mrf.mxu0
    %v6822 = vadd.f32 %v6416, %v6821
    %v6823 = vpop.f32.mrf.mxu0
    %v6824 = vadd.f32 %v6420, %v6823
    %6825 = vdwg.mxu0
    %6826 = vmatprep.subr.bf16.mxu0 %v6656
    %6827 = vmatpush1.bf16.msra.mxu0 %v6655
    %6828 = vmatprep.subr.bf16.mxu0 %v6652
    %6829 = vmatpush1.bf16.msra.mxu0 %v6651
    %6830 = vmatprep.subr.bf16.mxu0 %v6648
    %6831 = vmatpush1.bf16.msra.mxu0 %v6647
    %6832 = vmatprep.subr.bf16.mxu0 %v6644
    %6833 = vmatpush1.bf16.msra.mxu0 %v6643
    %6834 = vmatprep.subr.bf16.mxu0 %v6640
    %6835 = vmatpush1.bf16.msra.mxu0 %v6639
    %6836 = vmatprep.subr.bf16.mxu0 %v6636
    %6837 = vmatpush1.bf16.msra.mxu0 %v6635
    %6838 = vmatprep.subr.bf16.mxu0 %v6632
    %6839 = vmatpush1.bf16.msra.mxu0 %v6631
    %6840 = vmatprep.subr.bf16.mxu0 %v6628
    %6841 = vmatpush1.bf16.msra.mxu0 %v6627
    %6842 = vmatprep.subr.bf16.mxu0 %v6688
    %6843 = vmatpush2.bf16.msra.mxu0 %v6687
    %6844 = vmatprep.subr.bf16.mxu0 %v6684
    %6845 = vmatpush2.bf16.msra.mxu0 %v6683
    %6846 = vmatprep.subr.bf16.mxu0 %v6680
    %6847 = vmatpush2.bf16.msra.mxu0 %v6679
    %6848 = vmatprep.subr.bf16.mxu0 %v6676
    %6849 = vmatpush2.bf16.msra.mxu0 %v6675
    %6850 = vmatprep.subr.bf16.mxu0 %v6672
    %6851 = vmatpush2.bf16.msra.mxu0 %v6671
    %6852 = vmatprep.subr.bf16.mxu0 %v6668
    %6853 = vmatpush2.bf16.msra.mxu0 %v6667
    %6854 = vmatprep.subr.bf16.mxu0 %v6664
    %6855 = vmatpush2.bf16.msra.mxu0 %v6663
    %6856 = vmatprep.subr.bf16.mxu0 %v6660
    %6857 = vmatpush2.bf16.msra.mxu0 %v6659
    %6858 = vmatprep.mubr.bf16.mxu0 %v5756
    %6859 = vmatmul.mubr.bf16.gmra.mxu0 %v5755
    %v6860 = vpop.f32.mrf.mxu0
    %v6861 = vadd.f32 %v6424, %v6860
    %v6862 = vpop.f32.mrf.mxu0
    %v6863 = vadd.f32 %v6428, %v6862
    %v6864 = vpop.f32.mrf.mxu0
    %v6865 = vadd.f32 %v6424, %v6864
    %v6866 = vpop.f32.mrf.mxu0
    %v6867 = vadd.f32 %v6428, %v6866
    %6868 = vmatprep.mubr.bf16.mxu0 %v5758
    %6869 = vmatmul.mubr.bf16.gmra.mxu0 %v5757
    %v6870 = vpop.f32.mrf.mxu0
    %v6871 = vadd.f32 %v6424, %v6870
    %v6872 = vpop.f32.mrf.mxu0
    %v6873 = vadd.f32 %v6428, %v6872
    %v6874 = vpop.f32.mrf.mxu0
    %v6875 = vadd.f32 %v6424, %v6874
    %v6876 = vpop.f32.mrf.mxu0
    %v6877 = vadd.f32 %v6428, %v6876
    %6878 = vmatprep.mubr.bf16.mxu0 %v5760
    %6879 = vmatmul.mubr.bf16.gmra.mxu0 %v5759
    %v6880 = vpop.f32.mrf.mxu0
    %v6881 = vadd.f32 %v6424, %v6880
    %v6882 = vpop.f32.mrf.mxu0
    %v6883 = vadd.f32 %v6428, %v6882
    %v6884 = vpop.f32.mrf.mxu0
    %v6885 = vadd.f32 %v6424, %v6884
    %v6886 = vpop.f32.mrf.mxu0
    %v6887 = vadd.f32 %v6428, %v6886
    %6888 = vmatprep.mubr.bf16.mxu0 %v5762
    %6889 = vmatmul.mubr.bf16.gmra.mxu0 %v5761
    %v6890 = vpop.f32.mrf.mxu0
    %v6891 = vadd.f32 %v6424, %v6890
    %v6892 = vpop.f32.mrf.mxu0
    %v6893 = vadd.f32 %v6428, %v6892
    %v6894 = vpop.f32.mrf.mxu0
    %v6895 = vadd.f32 %v6424, %v6894
    %v6896 = vpop.f32.mrf.mxu0
    %v6897 = vadd.f32 %v6428, %v6896
    %6898 = vdwg.mxu0
    %6899 = vst [vmem:[#allocation3] sm:$0xff] %v6788
    %6900 = vst [vmem:[#allocation3 + $0x8] sm:$0xff] %v6790
    %6901 = vst [vmem:[#allocation3 + $0x10] sm:$0xff] %v6861
    %6902 = vst [vmem:[#allocation3 + $0x18] sm:$0xff] %v6863
    %6903 = vst [vmem:[#allocation3 + $0x20] sm:$0xff] %v6792
    %6904 = vst [vmem:[#allocation3 + $0x28] sm:$0xff] %v6794
    %6905 = vst [vmem:[#allocation3 + $0x30] sm:$0xff] %v6865
    %6906 = vst [vmem:[#allocation3 + $0x38] sm:$0xff] %v6867
    %6907 = vst [vmem:[#allocation3 + $0x40] sm:$0xff] %v6798
    %6908 = vst [vmem:[#allocation3 + $0x48] sm:$0xff] %v6800
    %6909 = vst [vmem:[#allocation3 + $0x50] sm:$0xff] %v6871
    %6910 = vst [vmem:[#allocation3 + $0x58] sm:$0xff] %v6873
    %6911 = vst [vmem:[#allocation3 + $0x60] sm:$0xff] %v6802
    %6912 = vst [vmem:[#allocation3 + $0x68] sm:$0xff] %v6804
    %6913 = vst [vmem:[#allocation3 + $0x70] sm:$0xff] %v6875
    %6914 = vst [vmem:[#allocation3 + $0x78] sm:$0xff] %v6877
    %6915 = vst [vmem:[#allocation3 + $0x80] sm:$0xff] %v6808
    %6916 = vst [vmem:[#allocation3 + $0x88] sm:$0xff] %v6810
    %6917 = vst [vmem:[#allocation3 + $0x90] sm:$0xff] %v6881
    %6918 = vst [vmem:[#allocation3 + $0x98] sm:$0xff] %v6883
    %6919 = vst [vmem:[#allocation3 + $0xa0] sm:$0xff] %v6812
    %6920 = vst [vmem:[#allocation3 + $0xa8] sm:$0xff] %v6814
    %6921 = vst [vmem:[#allocation3 + $0xb0] sm:$0xff] %v6885
    %6922 = vst [vmem:[#allocation3 + $0xb8] sm:$0xff] %v6887
    %6923 = vst [vmem:[#allocation3 + $0xc0] sm:$0xff] %v6818
    %6924 = vst [vmem:[#allocation3 + $0xc8] sm:$0xff] %v6820
    %6925 = vst [vmem:[#allocation3 + $0xd0] sm:$0xff] %v6891
    %6926 = vst [vmem:[#allocation3 + $0xd8] sm:$0xff] %v6893
    %6927 = vst [vmem:[#allocation3 + $0xe0] sm:$0xff] %v6822
    %6928 = vst [vmem:[#allocation3 + $0xe8] sm:$0xff] %v6824
    %6929 = vst [vmem:[#allocation3 + $0xf0] sm:$0xff] %v6895
    %6930 = vst [vmem:[#allocation3 + $0xf8] sm:$0xff] %v6897
    %v6931 = vld [vmem:[#allocation2] sm:$0xff]
    %v6932 = vld [vmem:[#allocation2 + $0x8] sm:$0xff]
    %v6933 = vld [vmem:[#allocation2 + $0x10] sm:$0xff]
    %v6934 = vld [vmem:[#allocation2 + $0x18] sm:$0xff]
    %v6935 = vld [vmem:[#allocation13] sm:$0xff]
    %v6936 = vld [vmem:[#allocation13 + $0x8] sm:$0xff]
    %v6937 = vld [vmem:[#allocation13 + $0x10] sm:$0xff]
    %v6938 = vld [vmem:[#allocation13 + $0x18] sm:$0xff]
    %v6939 = vld [vmem:[#allocation13 + $0x20] sm:$0xff]
    %v6940 = vld [vmem:[#allocation13 + $0x28] sm:$0xff]
    %v6941 = vld [vmem:[#allocation13 + $0x30] sm:$0xff]
    %v6942 = vld [vmem:[#allocation13 + $0x38] sm:$0xff]
    %v6943 = vld [vmem:[#allocation13 + $0x40] sm:$0xff]
    %v6944 = vld [vmem:[#allocation13 + $0x48] sm:$0xff]
    %v6945 = vld [vmem:[#allocation13 + $0x50] sm:$0xff]
    %v6946 = vld [vmem:[#allocation13 + $0x58] sm:$0xff]
    %v6947 = vld [vmem:[#allocation13 + $0x60] sm:$0xff]
    %v6948 = vld [vmem:[#allocation13 + $0x68] sm:$0xff]
    %v6949 = vld [vmem:[#allocation13 + $0x70] sm:$0xff]
    %v6950 = vld [vmem:[#allocation13 + $0x78] sm:$0xff]
    %v6951 = vld [vmem:[#allocation13 + $0x80] sm:$0xff]
    %v6952 = vld [vmem:[#allocation13 + $0x88] sm:$0xff]
    %v6953 = vld [vmem:[#allocation13 + $0x90] sm:$0xff]
    %v6954 = vld [vmem:[#allocation13 + $0x98] sm:$0xff]
    %v6955 = vld [vmem:[#allocation13 + $0xa0] sm:$0xff]
    %v6956 = vld [vmem:[#allocation13 + $0xa8] sm:$0xff]
    %v6957 = vld [vmem:[#allocation13 + $0xb0] sm:$0xff]
    %v6958 = vld [vmem:[#allocation13 + $0xb8] sm:$0xff]
    %v6959 = vld [vmem:[#allocation13 + $0xc0] sm:$0xff]
    %v6960 = vld [vmem:[#allocation13 + $0xc8] sm:$0xff]
    %v6961 = vld [vmem:[#allocation13 + $0xd0] sm:$0xff]
    %v6962 = vld [vmem:[#allocation13 + $0xd8] sm:$0xff]
    %v6963 = vld [vmem:[#allocation13 + $0xe0] sm:$0xff]
    %v6964 = vld [vmem:[#allocation13 + $0xe8] sm:$0xff]
    %v6965 = vld [vmem:[#allocation13 + $0xf0] sm:$0xff]
    %v6966 = vld [vmem:[#allocation13 + $0xf8] sm:$0xff]
    %v6999 = vunpack.c.l.b16 %v6935
    %v7000 = vunpack.c.h.b16 %v6935
    %v7001 = vunpack.c.l.b16 %v6936
    %v7002 = vunpack.c.h.b16 %v6936
    %v7003 = vunpack.c.l.b16 %v6937
    %v7004 = vunpack.c.h.b16 %v6937
    %v7005 = vunpack.c.l.b16 %v6938
    %v7006 = vunpack.c.h.b16 %v6938
    %v7007 = vunpack.c.l.b16 %v6939
    %v7008 = vunpack.c.h.b16 %v6939
    %v7009 = vunpack.c.l.b16 %v6940
    %v7010 = vunpack.c.h.b16 %v6940
    %v7011 = vunpack.c.l.b16 %v6941
    %v7012 = vunpack.c.h.b16 %v6941
    %v7013 = vunpack.c.l.b16 %v6942
    %v7014 = vunpack.c.h.b16 %v6942
    %v7015 = vunpack.c.l.b16 %v6943
    %v7016 = vunpack.c.h.b16 %v6943
    %v7017 = vunpack.c.l.b16 %v6944
    %v7018 = vunpack.c.h.b16 %v6944
    %v7019 = vunpack.c.l.b16 %v6945
    %v7020 = vunpack.c.h.b16 %v6945
    %v7021 = vunpack.c.l.b16 %v6946
    %v7022 = vunpack.c.h.b16 %v6946
    %v7023 = vunpack.c.l.b16 %v6947
    %v7024 = vunpack.c.h.b16 %v6947
    %v7025 = vunpack.c.l.b16 %v6948
    %v7026 = vunpack.c.h.b16 %v6948
    %v7027 = vunpack.c.l.b16 %v6949
    %v7028 = vunpack.c.h.b16 %v6949
    %v7029 = vunpack.c.l.b16 %v6950
    %v7030 = vunpack.c.h.b16 %v6950
    %v7031 = vunpack.c.l.b16 %v6951
    %v7032 = vunpack.c.h.b16 %v6951
    %v7033 = vunpack.c.l.b16 %v6952
    %v7034 = vunpack.c.h.b16 %v6952
    %v7035 = vunpack.c.l.b16 %v6953
    %v7036 = vunpack.c.h.b16 %v6953
    %v7037 = vunpack.c.l.b16 %v6954
    %v7038 = vunpack.c.h.b16 %v6954
    %v7039 = vunpack.c.l.b16 %v6955
    %v7040 = vunpack.c.h.b16 %v6955
    %v7041 = vunpack.c.l.b16 %v6956
    %v7042 = vunpack.c.h.b16 %v6956
    %v7043 = vunpack.c.l.b16 %v6957
    %v7044 = vunpack.c.h.b16 %v6957
    %v7045 = vunpack.c.l.b16 %v6958
    %v7046 = vunpack.c.h.b16 %v6958
    %v7047 = vunpack.c.l.b16 %v6959
    %v7048 = vunpack.c.h.b16 %v6959
    %v7049 = vunpack.c.l.b16 %v6960
    %v7050 = vunpack.c.h.b16 %v6960
    %v7051 = vunpack.c.l.b16 %v6961
    %v7052 = vunpack.c.h.b16 %v6961
    %v7053 = vunpack.c.l.b16 %v6962
    %v7054 = vunpack.c.h.b16 %v6962
    %v7055 = vunpack.c.l.b16 %v6963
    %v7056 = vunpack.c.h.b16 %v6963
    %v7057 = vunpack.c.l.b16 %v6964
    %v7058 = vunpack.c.h.b16 %v6964
    %v7059 = vunpack.c.l.b16 %v6965
    %v7060 = vunpack.c.h.b16 %v6965
    %v7061 = vunpack.c.l.b16 %v6966
    %v7062 = vunpack.c.h.b16 %v6966
    %v7063 = vpack.c.b16 %v7003, %v6999
    %v7064 = vpack.c.b16 %v7004, %v7000
    %v7065 = vpack.c.b16 %v7005, %v7001
    %v7066 = vpack.c.b16 %v7006, %v7002
    %v7067 = vpack.c.b16 %v7011, %v7007
    %v7068 = vpack.c.b16 %v7012, %v7008
    %v7069 = vpack.c.b16 %v7013, %v7009
    %v7070 = vpack.c.b16 %v7014, %v7010
    %v7071 = vpack.c.b16 %v7019, %v7015
    %v7072 = vpack.c.b16 %v7020, %v7016
    %v7073 = vpack.c.b16 %v7021, %v7017
    %v7074 = vpack.c.b16 %v7022, %v7018
    %v7075 = vpack.c.b16 %v7027, %v7023
    %v7076 = vpack.c.b16 %v7028, %v7024
    %v7077 = vpack.c.b16 %v7029, %v7025
    %v7078 = vpack.c.b16 %v7030, %v7026
    %v7079 = vpack.c.b16 %v7035, %v7031
    %v7080 = vpack.c.b16 %v7036, %v7032
    %v7081 = vpack.c.b16 %v7037, %v7033
    %v7082 = vpack.c.b16 %v7038, %v7034
    %v7083 = vpack.c.b16 %v7043, %v7039
    %v7084 = vpack.c.b16 %v7044, %v7040
    %v7085 = vpack.c.b16 %v7045, %v7041
    %v7086 = vpack.c.b16 %v7046, %v7042
    %v7087 = vpack.c.b16 %v7051, %v7047
    %v7088 = vpack.c.b16 %v7052, %v7048
    %v7089 = vpack.c.b16 %v7053, %v7049
    %v7090 = vpack.c.b16 %v7054, %v7050
    %v7091 = vpack.c.b16 %v7059, %v7055
    %v7092 = vpack.c.b16 %v7060, %v7056
    %v7093 = vpack.c.b16 %v7061, %v7057
    %v7094 = vpack.c.b16 %v7062, %v7058
    %7127 = vmatprep.subr.bf16.mxu0 %v7092
    %7128 = vmatpush1.bf16.msra.mxu0 %v7091
    %7129 = vmatprep.subr.bf16.mxu0 %v7088
    %7130 = vmatpush1.bf16.msra.mxu0 %v7087
    %7131 = vmatprep.subr.bf16.mxu0 %v7084
    %7132 = vmatpush1.bf16.msra.mxu0 %v7083
    %7133 = vmatprep.subr.bf16.mxu0 %v7080
    %7134 = vmatpush1.bf16.msra.mxu0 %v7079
    %7135 = vmatprep.subr.bf16.mxu0 %v7076
    %7136 = vmatpush1.bf16.msra.mxu0 %v7075
    %7137 = vmatprep.subr.bf16.mxu0 %v7072
    %7138 = vmatpush1.bf16.msra.mxu0 %v7071
    %7139 = vmatprep.subr.bf16.mxu0 %v7068
    %7140 = vmatpush1.bf16.msra.mxu0 %v7067
    %7141 = vmatprep.subr.bf16.mxu0 %v7064
    %7142 = vmatpush1.bf16.msra.mxu0 %v7063
    %7143 = vmatprep.subr.bf16.mxu0 0
    %7144 = vmatpush2.bf16.msra.mxu0 0
    %7145 = vmatprep.subr.bf16.mxu0 0
    %7146 = vmatpush2.bf16.msra.mxu0 0
    %7147 = vmatprep.subr.bf16.mxu0 0
    %7148 = vmatpush2.bf16.msra.mxu0 0
    %7149 = vmatprep.subr.bf16.mxu0 0
    %7150 = vmatpush2.bf16.msra.mxu0 0
    %7151 = vmatprep.subr.bf16.mxu0 0
    %7152 = vmatpush2.bf16.msra.mxu0 0
    %7153 = vmatprep.subr.bf16.mxu0 0
    %7154 = vmatpush2.bf16.msra.mxu0 0
    %7155 = vmatprep.subr.bf16.mxu0 0
    %7156 = vmatpush2.bf16.msra.mxu0 0
    %7157 = vmatprep.subr.bf16.mxu0 0
    %7158 = vmatpush2.bf16.msra.mxu0 0
    %7159 = vmatprep.mubr.bf16.mxu0 0
    %7160 = vmatmul.mubr.bf16.gmra.mxu0 0
    %v7161 = vpop.f32.mrf.mxu0
    %v7162 = vadd.f32 0.0, %v7161
    %v7163 = vpop.f32.mrf.mxu0
    %v7164 = vadd.f32 0.0, %v7163
    %v7165 = vpop.f32.mrf.mxu0
    %v7166 = vpop.f32.mrf.mxu0
    %7167 = vdwg.mxu0
    %7168 = vmatprep.subr.bf16.mxu0 %v7094
    %7169 = vmatpush1.bf16.msra.mxu0 %v7093
    %7170 = vmatprep.subr.bf16.mxu0 %v7090
    %7171 = vmatpush1.bf16.msra.mxu0 %v7089
    %7172 = vmatprep.subr.bf16.mxu0 %v7086
    %7173 = vmatpush1.bf16.msra.mxu0 %v7085
    %7174 = vmatprep.subr.bf16.mxu0 %v7082
    %7175 = vmatpush1.bf16.msra.mxu0 %v7081
    %7176 = vmatprep.subr.bf16.mxu0 %v7078
    %7177 = vmatpush1.bf16.msra.mxu0 %v7077
    %7178 = vmatprep.subr.bf16.mxu0 %v7074
    %7179 = vmatpush1.bf16.msra.mxu0 %v7073
    %7180 = vmatprep.subr.bf16.mxu0 %v7070
    %7181 = vmatpush1.bf16.msra.mxu0 %v7069
    %7182 = vmatprep.subr.bf16.mxu0 %v7066
    %7183 = vmatpush1.bf16.msra.mxu0 %v7065
    %7184 = vmatprep.subr.bf16.mxu0 0
    %7185 = vmatpush2.bf16.msra.mxu0 0
    %7186 = vmatprep.subr.bf16.mxu0 0
    %7187 = vmatpush2.bf16.msra.mxu0 0
    %7188 = vmatprep.subr.bf16.mxu0 0
    %7189 = vmatpush2.bf16.msra.mxu0 0
    %7190 = vmatprep.subr.bf16.mxu0 0
    %7191 = vmatpush2.bf16.msra.mxu0 0
    %7192 = vmatprep.subr.bf16.mxu0 0
    %7193 = vmatpush2.bf16.msra.mxu0 0
    %7194 = vmatprep.subr.bf16.mxu0 0
    %7195 = vmatpush2.bf16.msra.mxu0 0
    %7196 = vmatprep.subr.bf16.mxu0 0
    %7197 = vmatpush2.bf16.msra.mxu0 0
    %7198 = vmatprep.subr.bf16.mxu0 0
    %7199 = vmatpush2.bf16.msra.mxu0 0
    %7200 = vmatprep.mubr.bf16.mxu0 0
    %7201 = vmatmul.mubr.bf16.gmra.mxu0 0
    %v7202 = vpop.f32.mrf.mxu0
    %v7203 = vadd.f32 0.0, %v7202
    %v7204 = vpop.f32.mrf.mxu0
    %v7205 = vadd.f32 0.0, %v7204
    %v7206 = vpop.f32.mrf.mxu0
    %v7207 = vpop.f32.mrf.mxu0
    %7208 = vdwg.mxu0
    %v7209 = vadd.f32 %v6931, %v7162
    %v7210 = vadd.f32 %v6932, %v7164
    %v7211 = vadd.f32 %v6933, %v7203
    %v7212 = vadd.f32 %v6934, %v7205
    %v7213 = vxor.u32 %v7209, 2147483648
    %v7214 = vmul.f32 %v7213, 1.442695
    %v7215 = vpow.pop %v7214
    %v7216 = vadd.f32 %v7215, 1.0
    %v7217 = vrcp.pop %v7216
    %v7218 = vmul.f32 1.0, %v7217
    %v7219 = vxor.u32 %v7210, 2147483648
    %v7220 = vmul.f32 %v7219, 1.442695
    %v7221 = vpow.pop %v7220
    %v7222 = vadd.f32 %v7221, 1.0
    %v7223 = vrcp.pop %v7222
    %v7224 = vmul.f32 1.0, %v7223
    %v7225 = vtanh.pop %v7211
    %v7226 = vxor.u32 %v7212, 2147483648
    %v7227 = vmul.f32 %v7226, 1.442695
    %v7228 = vpow.pop %v7227
    %v7229 = vadd.f32 %v7228, 1.0
    %v7230 = vrcp.pop %v7229
    %v7231 = vmul.f32 1.0, %v7230
    %v7232 = vmul.f32 %v7224, 0.0
    %v7233 = vmul.f32 %v7218, %v7225
    %v7234 = vadd.f32 %v7232, %v7233
    %v7235 = vtanh.pop %v7234
    %v7236 = vmul.f32 %v7231, %v7235
    %v7237 = vld [vmem:[#allocation3 + $0xe0] sm:$0xff]
    %v7238 = vld [vmem:[#allocation3 + $0xe8] sm:$0xff]
    %v7239 = vld [vmem:[#allocation3 + $0xf0] sm:$0xff]
    %v7240 = vld [vmem:[#allocation3 + $0xf8] sm:$0xff]
    %v7241 = vld [vmem:[#allocation17] sm:$0xff]
    %v7242 = vld [vmem:[#allocation17 + $0x8] sm:$0xff]
    %v7243 = vld [vmem:[#allocation17 + $0x10] sm:$0xff]
    %v7244 = vld [vmem:[#allocation17 + $0x18] sm:$0xff]
    %v7245 = vld [vmem:[#allocation17 + $0x20] sm:$0xff]
    %v7246 = vld [vmem:[#allocation17 + $0x28] sm:$0xff]
    %v7247 = vld [vmem:[#allocation17 + $0x30] sm:$0xff]
    %v7248 = vld [vmem:[#allocation17 + $0x38] sm:$0xff]
    %v7249 = vld [vmem:[#allocation17 + $0x40] sm:$0xff]
    %v7250 = vld [vmem:[#allocation17 + $0x48] sm:$0xff]
    %v7251 = vld [vmem:[#allocation17 + $0x50] sm:$0xff]
    %v7252 = vld [vmem:[#allocation17 + $0x58] sm:$0xff]
    %v7253 = vld [vmem:[#allocation17 + $0x60] sm:$0xff]
    %v7254 = vld [vmem:[#allocation17 + $0x68] sm:$0xff]
    %v7255 = vld [vmem:[#allocation17 + $0x70] sm:$0xff]
    %v7256 = vld [vmem:[#allocation17 + $0x78] sm:$0xff]
    %v7257 = vld [vmem:[#allocation17 + $0x80] sm:$0xff]
    %v7258 = vld [vmem:[#allocation17 + $0x88] sm:$0xff]
    %v7259 = vld [vmem:[#allocation17 + $0x90] sm:$0xff]
    %v7260 = vld [vmem:[#allocation17 + $0x98] sm:$0xff]
    %v7261 = vld [vmem:[#allocation17 + $0xa0] sm:$0xff]
    %v7262 = vld [vmem:[#allocation17 + $0xa8] sm:$0xff]
    %v7263 = vld [vmem:[#allocation17 + $0xb0] sm:$0xff]
    %v7264 = vld [vmem:[#allocation17 + $0xb8] sm:$0xff]
    %v7265 = vld [vmem:[#allocation17 + $0xc0] sm:$0xff]
    %v7266 = vld [vmem:[#allocation17 + $0xc8] sm:$0xff]
    %v7267 = vld [vmem:[#allocation17 + $0xd0] sm:$0xff]
    %v7268 = vld [vmem:[#allocation17 + $0xd8] sm:$0xff]
    %v7269 = vld [vmem:[#allocation17 + $0xe0] sm:$0xff]
    %v7270 = vld [vmem:[#allocation17 + $0xe8] sm:$0xff]
    %v7271 = vld [vmem:[#allocation17 + $0xf0] sm:$0xff]
    %v7272 = vld [vmem:[#allocation17 + $0xf8] sm:$0xff]
    %v7305 = vunpack.c.l.b16 %v7241
    %v7306 = vunpack.c.h.b16 %v7241
    %v7307 = vunpack.c.l.b16 %v7242
    %v7308 = vunpack.c.h.b16 %v7242
    %v7309 = vunpack.c.l.b16 %v7243
    %v7310 = vunpack.c.h.b16 %v7243
    %v7311 = vunpack.c.l.b16 %v7244
    %v7312 = vunpack.c.h.b16 %v7244
    %v7313 = vunpack.c.l.b16 %v7245
    %v7314 = vunpack.c.h.b16 %v7245
    %v7315 = vunpack.c.l.b16 %v7246
    %v7316 = vunpack.c.h.b16 %v7246
    %v7317 = vunpack.c.l.b16 %v7247
    %v7318 = vunpack.c.h.b16 %v7247
    %v7319 = vunpack.c.l.b16 %v7248
    %v7320 = vunpack.c.h.b16 %v7248
    %v7321 = vunpack.c.l.b16 %v7249
    %v7322 = vunpack.c.h.b16 %v7249
    %v7323 = vunpack.c.l.b16 %v7250
    %v7324 = vunpack.c.h.b16 %v7250
    %v7325 = vunpack.c.l.b16 %v7251
    %v7326 = vunpack.c.h.b16 %v7251
    %v7327 = vunpack.c.l.b16 %v7252
    %v7328 = vunpack.c.h.b16 %v7252
    %v7329 = vunpack.c.l.b16 %v7253
    %v7330 = vunpack.c.h.b16 %v7253
    %v7331 = vunpack.c.l.b16 %v7254
    %v7332 = vunpack.c.h.b16 %v7254
    %v7333 = vunpack.c.l.b16 %v7255
    %v7334 = vunpack.c.h.b16 %v7255
    %v7335 = vunpack.c.l.b16 %v7256
    %v7336 = vunpack.c.h.b16 %v7256
    %v7337 = vunpack.c.l.b16 %v7257
    %v7338 = vunpack.c.h.b16 %v7257
    %v7339 = vunpack.c.l.b16 %v7258
    %v7340 = vunpack.c.h.b16 %v7258
    %v7341 = vunpack.c.l.b16 %v7259
    %v7342 = vunpack.c.h.b16 %v7259
    %v7343 = vunpack.c.l.b16 %v7260
    %v7344 = vunpack.c.h.b16 %v7260
    %v7345 = vunpack.c.l.b16 %v7261
    %v7346 = vunpack.c.h.b16 %v7261
    %v7347 = vunpack.c.l.b16 %v7262
    %v7348 = vunpack.c.h.b16 %v7262
    %v7349 = vunpack.c.l.b16 %v7263
    %v7350 = vunpack.c.h.b16 %v7263
    %v7351 = vunpack.c.l.b16 %v7264
    %v7352 = vunpack.c.h.b16 %v7264
    %v7353 = vunpack.c.l.b16 %v7265
    %v7354 = vunpack.c.h.b16 %v7265
    %v7355 = vunpack.c.l.b16 %v7266
    %v7356 = vunpack.c.h.b16 %v7266
    %v7357 = vunpack.c.l.b16 %v7267
    %v7358 = vunpack.c.h.b16 %v7267
    %v7359 = vunpack.c.l.b16 %v7268
    %v7360 = vunpack.c.h.b16 %v7268
    %v7361 = vunpack.c.l.b16 %v7269
    %v7362 = vunpack.c.h.b16 %v7269
    %v7363 = vunpack.c.l.b16 %v7270
    %v7364 = vunpack.c.h.b16 %v7270
    %v7365 = vunpack.c.l.b16 %v7271
    %v7366 = vunpack.c.h.b16 %v7271
    %v7367 = vunpack.c.l.b16 %v7272
    %v7368 = vunpack.c.h.b16 %v7272
    %v7369 = vpack.c.b16 %v7309, %v7305
    %v7370 = vpack.c.b16 %v7310, %v7306
    %v7371 = vpack.c.b16 %v7311, %v7307
    %v7372 = vpack.c.b16 %v7312, %v7308
    %v7373 = vpack.c.b16 %v7317, %v7313
    %v7374 = vpack.c.b16 %v7318, %v7314
    %v7375 = vpack.c.b16 %v7319, %v7315
    %v7376 = vpack.c.b16 %v7320, %v7316
    %v7377 = vpack.c.b16 %v7325, %v7321
    %v7378 = vpack.c.b16 %v7326, %v7322
    %v7379 = vpack.c.b16 %v7327, %v7323
    %v7380 = vpack.c.b16 %v7328, %v7324
    %v7381 = vpack.c.b16 %v7333, %v7329
    %v7382 = vpack.c.b16 %v7334, %v7330
    %v7383 = vpack.c.b16 %v7335, %v7331
    %v7384 = vpack.c.b16 %v7336, %v7332
    %v7385 = vpack.c.b16 %v7341, %v7337
    %v7386 = vpack.c.b16 %v7342, %v7338
    %v7387 = vpack.c.b16 %v7343, %v7339
    %v7388 = vpack.c.b16 %v7344, %v7340
    %v7389 = vpack.c.b16 %v7349, %v7345
    %v7390 = vpack.c.b16 %v7350, %v7346
    %v7391 = vpack.c.b16 %v7351, %v7347
    %v7392 = vpack.c.b16 %v7352, %v7348
    %v7393 = vpack.c.b16 %v7357, %v7353
    %v7394 = vpack.c.b16 %v7358, %v7354
    %v7395 = vpack.c.b16 %v7359, %v7355
    %v7396 = vpack.c.b16 %v7360, %v7356
    %v7397 = vpack.c.b16 %v7365, %v7361
    %v7398 = vpack.c.b16 %v7366, %v7362
    %v7399 = vpack.c.b16 %v7367, %v7363
    %v7400 = vpack.c.b16 %v7368, %v7364
    %7433 = vmatprep.subr.bf16.mxu0 %v7398
    %7434 = vmatpush1.bf16.msra.mxu0 %v7397
    %7435 = vmatprep.subr.bf16.mxu0 %v7394
    %7436 = vmatpush1.bf16.msra.mxu0 %v7393
    %7437 = vmatprep.subr.bf16.mxu0 %v7390
    %7438 = vmatpush1.bf16.msra.mxu0 %v7389
    %7439 = vmatprep.subr.bf16.mxu0 %v7386
    %7440 = vmatpush1.bf16.msra.mxu0 %v7385
    %7441 = vmatprep.subr.bf16.mxu0 %v7382
    %7442 = vmatpush1.bf16.msra.mxu0 %v7381
    %7443 = vmatprep.subr.bf16.mxu0 %v7378
    %7444 = vmatpush1.bf16.msra.mxu0 %v7377
    %7445 = vmatprep.subr.bf16.mxu0 %v7374
    %7446 = vmatpush1.bf16.msra.mxu0 %v7373
    %7447 = vmatprep.subr.bf16.mxu0 %v7370
    %7448 = vmatpush1.bf16.msra.mxu0 %v7369
    %7449 = vmatprep.subr.bf16.mxu0 0
    %7450 = vmatpush2.bf16.msra.mxu0 0
    %7451 = vmatprep.subr.bf16.mxu0 0
    %7452 = vmatpush2.bf16.msra.mxu0 0
    %7453 = vmatprep.subr.bf16.mxu0 0
    %7454 = vmatpush2.bf16.msra.mxu0 0
    %7455 = vmatprep.subr.bf16.mxu0 0
    %7456 = vmatpush2.bf16.msra.mxu0 0
    %7457 = vmatprep.subr.bf16.mxu0 0
    %7458 = vmatpush2.bf16.msra.mxu0 0
    %7459 = vmatprep.subr.bf16.mxu0 0
    %7460 = vmatpush2.bf16.msra.mxu0 0
    %7461 = vmatprep.subr.bf16.mxu0 0
    %7462 = vmatpush2.bf16.msra.mxu0 0
    %7463 = vmatprep.subr.bf16.mxu0 0
    %7464 = vmatpush2.bf16.msra.mxu0 0
    %7465 = vmatprep.mubr.bf16.mxu0 0
    %7466 = vmatmul.mubr.bf16.gmra.mxu0 0
    %v7467 = vpop.f32.mrf.mxu0
    %v7468 = vadd.f32 0.0, %v7467
    %v7469 = vpop.f32.mrf.mxu0
    %v7470 = vadd.f32 0.0, %v7469
    %v7471 = vpop.f32.mrf.mxu0
    %v7472 = vpop.f32.mrf.mxu0
    %7473 = vdwg.mxu0
    %7474 = vmatprep.subr.bf16.mxu0 %v7400
    %7475 = vmatpush1.bf16.msra.mxu0 %v7399
    %7476 = vmatprep.subr.bf16.mxu0 %v7396
    %7477 = vmatpush1.bf16.msra.mxu0 %v7395
    %7478 = vmatprep.subr.bf16.mxu0 %v7392
    %7479 = vmatpush1.bf16.msra.mxu0 %v7391
    %7480 = vmatprep.subr.bf16.mxu0 %v7388
    %7481 = vmatpush1.bf16.msra.mxu0 %v7387
    %7482 = vmatprep.subr.bf16.mxu0 %v7384
    %7483 = vmatpush1.bf16.msra.mxu0 %v7383
    %7484 = vmatprep.subr.bf16.mxu0 %v7380
    %7485 = vmatpush1.bf16.msra.mxu0 %v7379
    %7486 = vmatprep.subr.bf16.mxu0 %v7376
    %7487 = vmatpush1.bf16.msra.mxu0 %v7375
    %7488 = vmatprep.subr.bf16.mxu0 %v7372
    %7489 = vmatpush1.bf16.msra.mxu0 %v7371
    %7490 = vmatprep.subr.bf16.mxu0 0
    %7491 = vmatpush2.bf16.msra.mxu0 0
    %7492 = vmatprep.subr.bf16.mxu0 0
    %7493 = vmatpush2.bf16.msra.mxu0 0
    %7494 = vmatprep.subr.bf16.mxu0 0
    %7495 = vmatpush2.bf16.msra.mxu0 0
    %7496 = vmatprep.subr.bf16.mxu0 0
    %7497 = vmatpush2.bf16.msra.mxu0 0
    %7498 = vmatprep.subr.bf16.mxu0 0
    %7499 = vmatpush2.bf16.msra.mxu0 0
    %7500 = vmatprep.subr.bf16.mxu0 0
    %7501 = vmatpush2.bf16.msra.mxu0 0
    %7502 = vmatprep.subr.bf16.mxu0 0
    %7503 = vmatpush2.bf16.msra.mxu0 0
    %7504 = vmatprep.subr.bf16.mxu0 0
    %7505 = vmatpush2.bf16.msra.mxu0 0
    %7506 = vmatprep.mubr.bf16.mxu0 0
    %7507 = vmatmul.mubr.bf16.gmra.mxu0 0
    %v7508 = vpop.f32.mrf.mxu0
    %v7509 = vadd.f32 0.0, %v7508
    %v7510 = vpop.f32.mrf.mxu0
    %v7511 = vadd.f32 0.0, %v7510
    %v7512 = vpop.f32.mrf.mxu0
    %v7513 = vpop.f32.mrf.mxu0
    %7514 = vdwg.mxu0
    %v7515 = vadd.f32 %v7237, %v7468
    %v7516 = vadd.f32 %v7238, %v7470
    %v7517 = vadd.f32 %v7239, %v7509
    %v7518 = vadd.f32 %v7240, %v7511
    %v7519 = vxor.u32 %v7515, 2147483648
    %v7520 = vmul.f32 %v7519, 1.442695
    %v7521 = vpow.pop %v7520
    %v7522 = vadd.f32 %v7521, 1.0
    %v7523 = vrcp.pop %v7522
    %v7524 = vmul.f32 1.0, %v7523
    %v7525 = vxor.u32 %v7516, 2147483648
    %v7526 = vmul.f32 %v7525, 1.442695
    %v7527 = vpow.pop %v7526
    %v7528 = vadd.f32 %v7527, 1.0
    %v7529 = vrcp.pop %v7528
    %v7530 = vmul.f32 1.0, %v7529
    %v7531 = vtanh.pop %v7517
    %v7532 = vxor.u32 %v7518, 2147483648
    %v7533 = vmul.f32 %v7532, 1.442695
    %v7534 = vpow.pop %v7533
    %v7535 = vadd.f32 %v7534, 1.0
    %v7536 = vrcp.pop %v7535
    %v7537 = vmul.f32 1.0, %v7536
    %v7538 = vmul.f32 %v7530, 0.0
    %v7539 = vmul.f32 %v7524, %v7531
    %v7540 = vadd.f32 %v7538, %v7539
    %v7541 = vtanh.pop %v7540
    %v7542 = vmul.f32 %v7537, %v7541
    %v7543 = vld [vmem:[#allocation2 + $0x20] sm:$0xff]
    %v7544 = vld [vmem:[#allocation2 + $0x28] sm:$0xff]
    %v7545 = vld [vmem:[#allocation2 + $0x30] sm:$0xff]
    %v7546 = vld [vmem:[#allocation2 + $0x38] sm:$0xff]
    %v7547 = vpack.c.bf16 %v7236, %v7236
    %7548 = vmatprep.subr.bf16.mxu0 %v7092
    %7549 = vmatpush1.bf16.msra.mxu0 %v7091
    %7550 = vmatprep.subr.bf16.mxu0 %v7088
    %7551 = vmatpush1.bf16.msra.mxu0 %v7087
    %7552 = vmatprep.subr.bf16.mxu0 %v7084
    %7553 = vmatpush1.bf16.msra.mxu0 %v7083
    %7554 = vmatprep.subr.bf16.mxu0 %v7080
    %7555 = vmatpush1.bf16.msra.mxu0 %v7079
    %7556 = vmatprep.subr.bf16.mxu0 %v7076
    %7557 = vmatpush1.bf16.msra.mxu0 %v7075
    %7558 = vmatprep.subr.bf16.mxu0 %v7072
    %7559 = vmatpush1.bf16.msra.mxu0 %v7071
    %7560 = vmatprep.subr.bf16.mxu0 %v7068
    %7561 = vmatpush1.bf16.msra.mxu0 %v7067
    %7562 = vmatprep.subr.bf16.mxu0 %v7064
    %7563 = vmatpush1.bf16.msra.mxu0 %v7063
    %7564 = vmatprep.subr.bf16.mxu0 0
    %7565 = vmatpush2.bf16.msra.mxu0 0
    %7566 = vmatprep.subr.bf16.mxu0 0
    %7567 = vmatpush2.bf16.msra.mxu0 0
    %7568 = vmatprep.subr.bf16.mxu0 0
    %7569 = vmatpush2.bf16.msra.mxu0 0
    %7570 = vmatprep.subr.bf16.mxu0 0
    %7571 = vmatpush2.bf16.msra.mxu0 0
    %7572 = vmatprep.subr.bf16.mxu0 0
    %7573 = vmatpush2.bf16.msra.mxu0 0
    %7574 = vmatprep.subr.bf16.mxu0 0
    %7575 = vmatpush2.bf16.msra.mxu0 0
    %7576 = vmatprep.subr.bf16.mxu0 0
    %7577 = vmatpush2.bf16.msra.mxu0 0
    %7578 = vmatprep.subr.bf16.mxu0 0
    %7579 = vmatpush2.bf16.msra.mxu0 0
    %7580 = vmatprep.mubr.bf16.mxu0 0
    %7581 = vmatmul.mubr.bf16.gmra.mxu0 %v7547
    %v7582 = vpop.f32.mrf.mxu0
    %v7583 = vadd.f32 0.0, %v7582
    %v7584 = vpop.f32.mrf.mxu0
    %v7585 = vadd.f32 0.0, %v7584
    %v7586 = vpop.f32.mrf.mxu0
    %v7587 = vpop.f32.mrf.mxu0
    %7588 = vdwg.mxu0
    %7589 = vmatprep.subr.bf16.mxu0 %v7094
    %7590 = vmatpush1.bf16.msra.mxu0 %v7093
    %7591 = vmatprep.subr.bf16.mxu0 %v7090
    %7592 = vmatpush1.bf16.msra.mxu0 %v7089
    %7593 = vmatprep.subr.bf16.mxu0 %v7086
    %7594 = vmatpush1.bf16.msra.mxu0 %v7085
    %7595 = vmatprep.subr.bf16.mxu0 %v7082
    %7596 = vmatpush1.bf16.msra.mxu0 %v7081
    %7597 = vmatprep.subr.bf16.mxu0 %v7078
    %7598 = vmatpush1.bf16.msra.mxu0 %v7077
    %7599 = vmatprep.subr.bf16.mxu0 %v7074
    %7600 = vmatpush1.bf16.msra.mxu0 %v7073
    %7601 = vmatprep.subr.bf16.mxu0 %v7070
    %7602 = vmatpush1.bf16.msra.mxu0 %v7069
    %7603 = vmatprep.subr.bf16.mxu0 %v7066
    %7604 = vmatpush1.bf16.msra.mxu0 %v7065
    %7605 = vmatprep.subr.bf16.mxu0 0
    %7606 = vmatpush2.bf16.msra.mxu0 0
    %7607 = vmatprep.subr.bf16.mxu0 0
    %7608 = vmatpush2.bf16.msra.mxu0 0
    %7609 = vmatprep.subr.bf16.mxu0 0
    %7610 = vmatpush2.bf16.msra.mxu0 0
    %7611 = vmatprep.subr.bf16.mxu0 0
    %7612 = vmatpush2.bf16.msra.mxu0 0
    %7613 = vmatprep.subr.bf16.mxu0 0
    %7614 = vmatpush2.bf16.msra.mxu0 0
    %7615 = vmatprep.subr.bf16.mxu0 0
    %7616 = vmatpush2.bf16.msra.mxu0 0
    %7617 = vmatprep.subr.bf16.mxu0 0
    %7618 = vmatpush2.bf16.msra.mxu0 0
    %7619 = vmatprep.subr.bf16.mxu0 0
    %7620 = vmatpush2.bf16.msra.mxu0 0
    %7621 = vmatprep.mubr.bf16.mxu0 0
    %7622 = vmatmul.mubr.bf16.gmra.mxu0 %v7547
    %v7623 = vpop.f32.mrf.mxu0
    %v7624 = vadd.f32 0.0, %v7623
    %v7625 = vpop.f32.mrf.mxu0
    %v7626 = vadd.f32 0.0, %v7625
    %v7627 = vpop.f32.mrf.mxu0
    %v7628 = vpop.f32.mrf.mxu0
    %7629 = vdwg.mxu0
    %v7630 = vadd.f32 %v7543, %v7583
    %v7631 = vadd.f32 %v7544, %v7585
    %v7632 = vadd.f32 %v7545, %v7624
    %v7633 = vadd.f32 %v7546, %v7626
    %v7634 = vxor.u32 %v7630, 2147483648
    %v7635 = vmul.f32 %v7634, 1.442695
    %v7636 = vpow.pop %v7635
    %v7637 = vadd.f32 %v7636, 1.0
    %v7638 = vrcp.pop %v7637
    %v7639 = vmul.f32 1.0, %v7638
    %v7640 = vxor.u32 %v7631, 2147483648
    %v7641 = vmul.f32 %v7640, 1.442695
    %v7642 = vpow.pop %v7641
    %v7643 = vadd.f32 %v7642, 1.0
    %v7644 = vrcp.pop %v7643
    %v7645 = vmul.f32 1.0, %v7644
    %v7646 = vtanh.pop %v7632
    %v7647 = vxor.u32 %v7633, 2147483648
    %v7648 = vmul.f32 %v7647, 1.442695
    %v7649 = vpow.pop %v7648
    %v7650 = vadd.f32 %v7649, 1.0
    %v7651 = vrcp.pop %v7650
    %v7652 = vmul.f32 1.0, %v7651
    %v7653 = vmul.f32 %v7645, %v7234
    %v7654 = vmul.f32 %v7639, %v7646
    %v7655 = vadd.f32 %v7653, %v7654
    %v7656 = vtanh.pop %v7655
    %v7657 = vmul.f32 %v7652, %v7656
    %v7658 = vld [vmem:[#allocation3 + $0xc0] sm:$0xff]
    %v7659 = vld [vmem:[#allocation3 + $0xc8] sm:$0xff]
    %v7660 = vld [vmem:[#allocation3 + $0xd0] sm:$0xff]
    %v7661 = vld [vmem:[#allocation3 + $0xd8] sm:$0xff]
    %v7662 = vpack.c.bf16 %v7542, %v7542
    %7663 = vmatprep.subr.bf16.mxu0 %v7398
    %7664 = vmatpush1.bf16.msra.mxu0 %v7397
    %7665 = vmatprep.subr.bf16.mxu0 %v7394
    %7666 = vmatpush1.bf16.msra.mxu0 %v7393
    %7667 = vmatprep.subr.bf16.mxu0 %v7390
    %7668 = vmatpush1.bf16.msra.mxu0 %v7389
    %7669 = vmatprep.subr.bf16.mxu0 %v7386
    %7670 = vmatpush1.bf16.msra.mxu0 %v7385
    %7671 = vmatprep.subr.bf16.mxu0 %v7382
    %7672 = vmatpush1.bf16.msra.mxu0 %v7381
    %7673 = vmatprep.subr.bf16.mxu0 %v7378
    %7674 = vmatpush1.bf16.msra.mxu0 %v7377
    %7675 = vmatprep.subr.bf16.mxu0 %v7374
    %7676 = vmatpush1.bf16.msra.mxu0 %v7373
    %7677 = vmatprep.subr.bf16.mxu0 %v7370
    %7678 = vmatpush1.bf16.msra.mxu0 %v7369
    %7679 = vmatprep.subr.bf16.mxu0 0
    %7680 = vmatpush2.bf16.msra.mxu0 0
    %7681 = vmatprep.subr.bf16.mxu0 0
    %7682 = vmatpush2.bf16.msra.mxu0 0
    %7683 = vmatprep.subr.bf16.mxu0 0
    %7684 = vmatpush2.bf16.msra.mxu0 0
    %7685 = vmatprep.subr.bf16.mxu0 0
    %7686 = vmatpush2.bf16.msra.mxu0 0
    %7687 = vmatprep.subr.bf16.mxu0 0
    %7688 = vmatpush2.bf16.msra.mxu0 0
    %7689 = vmatprep.subr.bf16.mxu0 0
    %7690 = vmatpush2.bf16.msra.mxu0 0
    %7691 = vmatprep.subr.bf16.mxu0 0
    %7692 = vmatpush2.bf16.msra.mxu0 0
    %7693 = vmatprep.subr.bf16.mxu0 0
    %7694 = vmatpush2.bf16.msra.mxu0 0
    %7695 = vmatprep.mubr.bf16.mxu0 0
    %7696 = vmatmul.mubr.bf16.gmra.mxu0 %v7662
    %v7697 = vpop.f32.mrf.mxu0
    %v7698 = vadd.f32 0.0, %v7697
    %v7699 = vpop.f32.mrf.mxu0
    %v7700 = vadd.f32 0.0, %v7699
    %v7701 = vpop.f32.mrf.mxu0
    %v7702 = vpop.f32.mrf.mxu0
    %7703 = vdwg.mxu0
    %7704 = vmatprep.subr.bf16.mxu0 %v7400
    %7705 = vmatpush1.bf16.msra.mxu0 %v7399
    %7706 = vmatprep.subr.bf16.mxu0 %v7396
    %7707 = vmatpush1.bf16.msra.mxu0 %v7395
    %7708 = vmatprep.subr.bf16.mxu0 %v7392
    %7709 = vmatpush1.bf16.msra.mxu0 %v7391
    %7710 = vmatprep.subr.bf16.mxu0 %v7388
    %7711 = vmatpush1.bf16.msra.mxu0 %v7387
    %7712 = vmatprep.subr.bf16.mxu0 %v7384
    %7713 = vmatpush1.bf16.msra.mxu0 %v7383
    %7714 = vmatprep.subr.bf16.mxu0 %v7380
    %7715 = vmatpush1.bf16.msra.mxu0 %v7379
    %7716 = vmatprep.subr.bf16.mxu0 %v7376
    %7717 = vmatpush1.bf16.msra.mxu0 %v7375
    %7718 = vmatprep.subr.bf16.mxu0 %v7372
    %7719 = vmatpush1.bf16.msra.mxu0 %v7371
    %7720 = vmatprep.subr.bf16.mxu0 0
    %7721 = vmatpush2.bf16.msra.mxu0 0
    %7722 = vmatprep.subr.bf16.mxu0 0
    %7723 = vmatpush2.bf16.msra.mxu0 0
    %7724 = vmatprep.subr.bf16.mxu0 0
    %7725 = vmatpush2.bf16.msra.mxu0 0
    %7726 = vmatprep.subr.bf16.mxu0 0
    %7727 = vmatpush2.bf16.msra.mxu0 0
    %7728 = vmatprep.subr.bf16.mxu0 0
    %7729 = vmatpush2.bf16.msra.mxu0 0
    %7730 = vmatprep.subr.bf16.mxu0 0
    %7731 = vmatpush2.bf16.msra.mxu0 0
    %7732 = vmatprep.subr.bf16.mxu0 0
    %7733 = vmatpush2.bf16.msra.mxu0 0
    %7734 = vmatprep.subr.bf16.mxu0 0
    %7735 = vmatpush2.bf16.msra.mxu0 0
    %7736 = vmatprep.mubr.bf16.mxu0 0
    %7737 = vmatmul.mubr.bf16.gmra.mxu0 %v7662
    %v7738 = vpop.f32.mrf.mxu0
    %v7739 = vadd.f32 0.0, %v7738
    %v7740 = vpop.f32.mrf.mxu0
    %v7741 = vadd.f32 0.0, %v7740
    %v7742 = vpop.f32.mrf.mxu0
    %v7743 = vpop.f32.mrf.mxu0
    %7744 = vdwg.mxu0
    %v7745 = vadd.f32 %v7658, %v7698
    %v7746 = vadd.f32 %v7659, %v7700
    %v7747 = vadd.f32 %v7660, %v7739
    %v7748 = vadd.f32 %v7661, %v7741
    %v7749 = vxor.u32 %v7745, 2147483648
    %v7750 = vmul.f32 %v7749, 1.442695
    %v7751 = vpow.pop %v7750
    %v7752 = vadd.f32 %v7751, 1.0
    %v7753 = vrcp.pop %v7752
    %v7754 = vmul.f32 1.0, %v7753
    %v7755 = vxor.u32 %v7746, 2147483648
    %v7756 = vmul.f32 %v7755, 1.442695
    %v7757 = vpow.pop %v7756
    %v7758 = vadd.f32 %v7757, 1.0
    %v7759 = vrcp.pop %v7758
    %v7760 = vmul.f32 1.0, %v7759
    %v7761 = vtanh.pop %v7747
    %v7762 = vxor.u32 %v7748, 2147483648
    %v7763 = vmul.f32 %v7762, 1.442695
    %v7764 = vpow.pop %v7763
    %v7765 = vadd.f32 %v7764, 1.0
    %v7766 = vrcp.pop %v7765
    %v7767 = vmul.f32 1.0, %v7766
    %v7768 = vmul.f32 %v7760, %v7540
    %v7769 = vmul.f32 %v7754, %v7761
    %v7770 = vadd.f32 %v7768, %v7769
    %v7771 = vtanh.pop %v7770
    %v7772 = vmul.f32 %v7767, %v7771
    %v7773 = vld [vmem:[#allocation2 + $0x40] sm:$0xff]
    %v7774 = vld [vmem:[#allocation2 + $0x48] sm:$0xff]
    %v7775 = vld [vmem:[#allocation2 + $0x50] sm:$0xff]
    %v7776 = vld [vmem:[#allocation2 + $0x58] sm:$0xff]
    %v7777 = vpack.c.bf16 %v7657, %v7657
    %7778 = vmatprep.subr.bf16.mxu0 %v7092
    %7779 = vmatpush1.bf16.msra.mxu0 %v7091
    %7780 = vmatprep.subr.bf16.mxu0 %v7088
    %7781 = vmatpush1.bf16.msra.mxu0 %v7087
    %7782 = vmatprep.subr.bf16.mxu0 %v7084
    %7783 = vmatpush1.bf16.msra.mxu0 %v7083
    %7784 = vmatprep.subr.bf16.mxu0 %v7080
    %7785 = vmatpush1.bf16.msra.mxu0 %v7079
    %7786 = vmatprep.subr.bf16.mxu0 %v7076
    %7787 = vmatpush1.bf16.msra.mxu0 %v7075
    %7788 = vmatprep.subr.bf16.mxu0 %v7072
    %7789 = vmatpush1.bf16.msra.mxu0 %v7071
    %7790 = vmatprep.subr.bf16.mxu0 %v7068
    %7791 = vmatpush1.bf16.msra.mxu0 %v7067
    %7792 = vmatprep.subr.bf16.mxu0 %v7064
    %7793 = vmatpush1.bf16.msra.mxu0 %v7063
    %7794 = vmatprep.subr.bf16.mxu0 0
    %7795 = vmatpush2.bf16.msra.mxu0 0
    %7796 = vmatprep.subr.bf16.mxu0 0
    %7797 = vmatpush2.bf16.msra.mxu0 0
    %7798 = vmatprep.subr.bf16.mxu0 0
    %7799 = vmatpush2.bf16.msra.mxu0 0
    %7800 = vmatprep.subr.bf16.mxu0 0
    %7801 = vmatpush2.bf16.msra.mxu0 0
    %7802 = vmatprep.subr.bf16.mxu0 0
    %7803 = vmatpush2.bf16.msra.mxu0 0
    %7804 = vmatprep.subr.bf16.mxu0 0
    %7805 = vmatpush2.bf16.msra.mxu0 0
    %7806 = vmatprep.subr.bf16.mxu0 0
    %7807 = vmatpush2.bf16.msra.mxu0 0
    %7808 = vmatprep.subr.bf16.mxu0 0
    %7809 = vmatpush2.bf16.msra.mxu0 0
    %7810 = vmatprep.mubr.bf16.mxu0 0
    %7811 = vmatmul.mubr.bf16.gmra.mxu0 %v7777
    %v7812 = vpop.f32.mrf.mxu0
    %v7813 = vadd.f32 0.0, %v7812
    %v7814 = vpop.f32.mrf.mxu0
    %v7815 = vadd.f32 0.0, %v7814
    %v7816 = vpop.f32.mrf.mxu0
    %v7817 = vpop.f32.mrf.mxu0
    %7818 = vdwg.mxu0
    %7819 = vmatprep.subr.bf16.mxu0 %v7094
    %7820 = vmatpush1.bf16.msra.mxu0 %v7093
    %7821 = vmatprep.subr.bf16.mxu0 %v7090
    %7822 = vmatpush1.bf16.msra.mxu0 %v7089
    %7823 = vmatprep.subr.bf16.mxu0 %v7086
    %7824 = vmatpush1.bf16.msra.mxu0 %v7085
    %7825 = vmatprep.subr.bf16.mxu0 %v7082
    %7826 = vmatpush1.bf16.msra.mxu0 %v7081
    %7827 = vmatprep.subr.bf16.mxu0 %v7078
    %7828 = vmatpush1.bf16.msra.mxu0 %v7077
    %7829 = vmatprep.subr.bf16.mxu0 %v7074
    %7830 = vmatpush1.bf16.msra.mxu0 %v7073
    %7831 = vmatprep.subr.bf16.mxu0 %v7070
    %7832 = vmatpush1.bf16.msra.mxu0 %v7069
    %7833 = vmatprep.subr.bf16.mxu0 %v7066
    %7834 = vmatpush1.bf16.msra.mxu0 %v7065
    %7835 = vmatprep.subr.bf16.mxu0 0
    %7836 = vmatpush2.bf16.msra.mxu0 0
    %7837 = vmatprep.subr.bf16.mxu0 0
    %7838 = vmatpush2.bf16.msra.mxu0 0
    %7839 = vmatprep.subr.bf16.mxu0 0
    %7840 = vmatpush2.bf16.msra.mxu0 0
    %7841 = vmatprep.subr.bf16.mxu0 0
    %7842 = vmatpush2.bf16.msra.mxu0 0
    %7843 = vmatprep.subr.bf16.mxu0 0
    %7844 = vmatpush2.bf16.msra.mxu0 0
    %7845 = vmatprep.subr.bf16.mxu0 0
    %7846 = vmatpush2.bf16.msra.mxu0 0
    %7847 = vmatprep.subr.bf16.mxu0 0
    %7848 = vmatpush2.bf16.msra.mxu0 0
    %7849 = vmatprep.subr.bf16.mxu0 0
    %7850 = vmatpush2.bf16.msra.mxu0 0
    %7851 = vmatprep.mubr.bf16.mxu0 0
    %7852 = vmatmul.mubr.bf16.gmra.mxu0 %v7777
    %v7853 = vpop.f32.mrf.mxu0
    %v7854 = vadd.f32 0.0, %v7853
    %v7855 = vpop.f32.mrf.mxu0
    %v7856 = vadd.f32 0.0, %v7855
    %v7857 = vpop.f32.mrf.mxu0
    %v7858 = vpop.f32.mrf.mxu0
    %7859 = vdwg.mxu0
    %v7860 = vadd.f32 %v7773, %v7813
    %v7861 = vadd.f32 %v7774, %v7815
    %v7862 = vadd.f32 %v7775, %v7854
    %v7863 = vadd.f32 %v7776, %v7856
    %v7864 = vxor.u32 %v7860, 2147483648
    %v7865 = vmul.f32 %v7864, 1.442695
    %v7866 = vpow.pop %v7865
    %v7867 = vadd.f32 %v7866, 1.0
    %v7868 = vrcp.pop %v7867
    %v7869 = vmul.f32 1.0, %v7868
    %v7870 = vxor.u32 %v7861, 2147483648
    %v7871 = vmul.f32 %v7870, 1.442695
    %v7872 = vpow.pop %v7871
    %v7873 = vadd.f32 %v7872, 1.0
    %v7874 = vrcp.pop %v7873
    %v7875 = vmul.f32 1.0, %v7874
    %v7876 = vtanh.pop %v7862
    %v7877 = vxor.u32 %v7863, 2147483648
    %v7878 = vmul.f32 %v7877, 1.442695
    %v7879 = vpow.pop %v7878
    %v7880 = vadd.f32 %v7879, 1.0
    %v7881 = vrcp.pop %v7880
    %v7882 = vmul.f32 1.0, %v7881
    %v7883 = vmul.f32 %v7875, %v7655
    %v7884 = vmul.f32 %v7869, %v7876
    %v7885 = vadd.f32 %v7883, %v7884
    %v7886 = vtanh.pop %v7885
    %v7887 = vmul.f32 %v7882, %v7886
    %v7888 = vld [vmem:[#allocation3 + $0xa0] sm:$0xff]
    %v7889 = vld [vmem:[#allocation3 + $0xa8] sm:$0xff]
    %v7890 = vld [vmem:[#allocation3 + $0xb0] sm:$0xff]
    %v7891 = vld [vmem:[#allocation3 + $0xb8] sm:$0xff]
    %v7892 = vpack.c.bf16 %v7772, %v7772
    %7893 = vmatprep.subr.bf16.mxu0 %v7398
    %7894 = vmatpush1.bf16.msra.mxu0 %v7397
    %7895 = vmatprep.subr.bf16.mxu0 %v7394
    %7896 = vmatpush1.bf16.msra.mxu0 %v7393
    %7897 = vmatprep.subr.bf16.mxu0 %v7390
    %7898 = vmatpush1.bf16.msra.mxu0 %v7389
    %7899 = vmatprep.subr.bf16.mxu0 %v7386
    %7900 = vmatpush1.bf16.msra.mxu0 %v7385
    %7901 = vmatprep.subr.bf16.mxu0 %v7382
    %7902 = vmatpush1.bf16.msra.mxu0 %v7381
    %7903 = vmatprep.subr.bf16.mxu0 %v7378
    %7904 = vmatpush1.bf16.msra.mxu0 %v7377
    %7905 = vmatprep.subr.bf16.mxu0 %v7374
    %7906 = vmatpush1.bf16.msra.mxu0 %v7373
    %7907 = vmatprep.subr.bf16.mxu0 %v7370
    %7908 = vmatpush1.bf16.msra.mxu0 %v7369
    %7909 = vmatprep.subr.bf16.mxu0 0
    %7910 = vmatpush2.bf16.msra.mxu0 0
    %7911 = vmatprep.subr.bf16.mxu0 0
    %7912 = vmatpush2.bf16.msra.mxu0 0
    %7913 = vmatprep.subr.bf16.mxu0 0
    %7914 = vmatpush2.bf16.msra.mxu0 0
    %7915 = vmatprep.subr.bf16.mxu0 0
    %7916 = vmatpush2.bf16.msra.mxu0 0
    %7917 = vmatprep.subr.bf16.mxu0 0
    %7918 = vmatpush2.bf16.msra.mxu0 0
    %7919 = vmatprep.subr.bf16.mxu0 0
    %7920 = vmatpush2.bf16.msra.mxu0 0
    %7921 = vmatprep.subr.bf16.mxu0 0
    %7922 = vmatpush2.bf16.msra.mxu0 0
    %7923 = vmatprep.subr.bf16.mxu0 0
    %7924 = vmatpush2.bf16.msra.mxu0 0
    %7925 = vmatprep.mubr.bf16.mxu0 0
    %7926 = vmatmul.mubr.bf16.gmra.mxu0 %v7892
    %v7927 = vpop.f32.mrf.mxu0
    %v7928 = vadd.f32 0.0, %v7927
    %v7929 = vpop.f32.mrf.mxu0
    %v7930 = vadd.f32 0.0, %v7929
    %v7931 = vpop.f32.mrf.mxu0
    %v7932 = vpop.f32.mrf.mxu0
    %7933 = vdwg.mxu0
    %7934 = vmatprep.subr.bf16.mxu0 %v7400
    %7935 = vmatpush1.bf16.msra.mxu0 %v7399
    %7936 = vmatprep.subr.bf16.mxu0 %v7396
    %7937 = vmatpush1.bf16.msra.mxu0 %v7395
    %7938 = vmatprep.subr.bf16.mxu0 %v7392
    %7939 = vmatpush1.bf16.msra.mxu0 %v7391
    %7940 = vmatprep.subr.bf16.mxu0 %v7388
    %7941 = vmatpush1.bf16.msra.mxu0 %v7387
    %7942 = vmatprep.subr.bf16.mxu0 %v7384
    %7943 = vmatpush1.bf16.msra.mxu0 %v7383
    %7944 = vmatprep.subr.bf16.mxu0 %v7380
    %7945 = vmatpush1.bf16.msra.mxu0 %v7379
    %7946 = vmatprep.subr.bf16.mxu0 %v7376
    %7947 = vmatpush1.bf16.msra.mxu0 %v7375
    %7948 = vmatprep.subr.bf16.mxu0 %v7372
    %7949 = vmatpush1.bf16.msra.mxu0 %v7371
    %7950 = vmatprep.subr.bf16.mxu0 0
    %7951 = vmatpush2.bf16.msra.mxu0 0
    %7952 = vmatprep.subr.bf16.mxu0 0
    %7953 = vmatpush2.bf16.msra.mxu0 0
    %7954 = vmatprep.subr.bf16.mxu0 0
    %7955 = vmatpush2.bf16.msra.mxu0 0
    %7956 = vmatprep.subr.bf16.mxu0 0
    %7957 = vmatpush2.bf16.msra.mxu0 0
    %7958 = vmatprep.subr.bf16.mxu0 0
    %7959 = vmatpush2.bf16.msra.mxu0 0
    %7960 = vmatprep.subr.bf16.mxu0 0
    %7961 = vmatpush2.bf16.msra.mxu0 0
    %7962 = vmatprep.subr.bf16.mxu0 0
    %7963 = vmatpush2.bf16.msra.mxu0 0
    %7964 = vmatprep.subr.bf16.mxu0 0
    %7965 = vmatpush2.bf16.msra.mxu0 0
    %7966 = vmatprep.mubr.bf16.mxu0 0
    %7967 = vmatmul.mubr.bf16.gmra.mxu0 %v7892
    %v7968 = vpop.f32.mrf.mxu0
    %v7969 = vadd.f32 0.0, %v7968
    %v7970 = vpop.f32.mrf.mxu0
    %v7971 = vadd.f32 0.0, %v7970
    %v7972 = vpop.f32.mrf.mxu0
    %v7973 = vpop.f32.mrf.mxu0
    %7974 = vdwg.mxu0
    %v7975 = vadd.f32 %v7888, %v7928
    %v7976 = vadd.f32 %v7889, %v7930
    %v7977 = vadd.f32 %v7890, %v7969
    %v7978 = vadd.f32 %v7891, %v7971
    %v7979 = vxor.u32 %v7975, 2147483648
    %v7980 = vmul.f32 %v7979, 1.442695
    %v7981 = vpow.pop %v7980
    %v7982 = vadd.f32 %v7981, 1.0
    %v7983 = vrcp.pop %v7982
    %v7984 = vmul.f32 1.0, %v7983
    %v7985 = vxor.u32 %v7976, 2147483648
    %v7986 = vmul.f32 %v7985, 1.442695
    %v7987 = vpow.pop %v7986
    %v7988 = vadd.f32 %v7987, 1.0
    %v7989 = vrcp.pop %v7988
    %v7990 = vmul.f32 1.0, %v7989
    %v7991 = vtanh.pop %v7977
    %v7992 = vxor.u32 %v7978, 2147483648
    %v7993 = vmul.f32 %v7992, 1.442695
    %v7994 = vpow.pop %v7993
    %v7995 = vadd.f32 %v7994, 1.0
    %v7996 = vrcp.pop %v7995
    %v7997 = vmul.f32 1.0, %v7996
    %v7998 = vmul.f32 %v7990, %v7770
    %v7999 = vmul.f32 %v7984, %v7991
    %v8000 = vadd.f32 %v7998, %v7999
    %v8001 = vtanh.pop %v8000
    %v8002 = vmul.f32 %v7997, %v8001
    %v8003 = vld [vmem:[#allocation2 + $0x60] sm:$0xff]
    %v8004 = vld [vmem:[#allocation2 + $0x68] sm:$0xff]
    %v8005 = vld [vmem:[#allocation2 + $0x70] sm:$0xff]
    %v8006 = vld [vmem:[#allocation2 + $0x78] sm:$0xff]
    %v8007 = vpack.c.bf16 %v7887, %v7887
    %8008 = vmatprep.subr.bf16.mxu0 %v7092
    %8009 = vmatpush1.bf16.msra.mxu0 %v7091
    %8010 = vmatprep.subr.bf16.mxu0 %v7088
    %8011 = vmatpush1.bf16.msra.mxu0 %v7087
    %8012 = vmatprep.subr.bf16.mxu0 %v7084
    %8013 = vmatpush1.bf16.msra.mxu0 %v7083
    %8014 = vmatprep.subr.bf16.mxu0 %v7080
    %8015 = vmatpush1.bf16.msra.mxu0 %v7079
    %8016 = vmatprep.subr.bf16.mxu0 %v7076
    %8017 = vmatpush1.bf16.msra.mxu0 %v7075
    %8018 = vmatprep.subr.bf16.mxu0 %v7072
    %8019 = vmatpush1.bf16.msra.mxu0 %v7071
    %8020 = vmatprep.subr.bf16.mxu0 %v7068
    %8021 = vmatpush1.bf16.msra.mxu0 %v7067
    %8022 = vmatprep.subr.bf16.mxu0 %v7064
    %8023 = vmatpush1.bf16.msra.mxu0 %v7063
    %8024 = vmatprep.subr.bf16.mxu0 0
    %8025 = vmatpush2.bf16.msra.mxu0 0
    %8026 = vmatprep.subr.bf16.mxu0 0
    %8027 = vmatpush2.bf16.msra.mxu0 0
    %8028 = vmatprep.subr.bf16.mxu0 0
    %8029 = vmatpush2.bf16.msra.mxu0 0
    %8030 = vmatprep.subr.bf16.mxu0 0
    %8031 = vmatpush2.bf16.msra.mxu0 0
    %8032 = vmatprep.subr.bf16.mxu0 0
    %8033 = vmatpush2.bf16.msra.mxu0 0
    %8034 = vmatprep.subr.bf16.mxu0 0
    %8035 = vmatpush2.bf16.msra.mxu0 0
    %8036 = vmatprep.subr.bf16.mxu0 0
    %8037 = vmatpush2.bf16.msra.mxu0 0
    %8038 = vmatprep.subr.bf16.mxu0 0
    %8039 = vmatpush2.bf16.msra.mxu0 0
    %8040 = vmatprep.mubr.bf16.mxu0 0
    %8041 = vmatmul.mubr.bf16.gmra.mxu0 %v8007
    %v8042 = vpop.f32.mrf.mxu0
    %v8043 = vadd.f32 0.0, %v8042
    %v8044 = vpop.f32.mrf.mxu0
    %v8045 = vadd.f32 0.0, %v8044
    %v8046 = vpop.f32.mrf.mxu0
    %v8047 = vpop.f32.mrf.mxu0
    %8048 = vdwg.mxu0
    %8049 = vmatprep.subr.bf16.mxu0 %v7094
    %8050 = vmatpush1.bf16.msra.mxu0 %v7093
    %8051 = vmatprep.subr.bf16.mxu0 %v7090
    %8052 = vmatpush1.bf16.msra.mxu0 %v7089
    %8053 = vmatprep.subr.bf16.mxu0 %v7086
    %8054 = vmatpush1.bf16.msra.mxu0 %v7085
    %8055 = vmatprep.subr.bf16.mxu0 %v7082
    %8056 = vmatpush1.bf16.msra.mxu0 %v7081
    %8057 = vmatprep.subr.bf16.mxu0 %v7078
    %8058 = vmatpush1.bf16.msra.mxu0 %v7077
    %8059 = vmatprep.subr.bf16.mxu0 %v7074
    %8060 = vmatpush1.bf16.msra.mxu0 %v7073
    %8061 = vmatprep.subr.bf16.mxu0 %v7070
    %8062 = vmatpush1.bf16.msra.mxu0 %v7069
    %8063 = vmatprep.subr.bf16.mxu0 %v7066
    %8064 = vmatpush1.bf16.msra.mxu0 %v7065
    %8065 = vmatprep.subr.bf16.mxu0 0
    %8066 = vmatpush2.bf16.msra.mxu0 0
    %8067 = vmatprep.subr.bf16.mxu0 0
    %8068 = vmatpush2.bf16.msra.mxu0 0
    %8069 = vmatprep.subr.bf16.mxu0 0
    %8070 = vmatpush2.bf16.msra.mxu0 0
    %8071 = vmatprep.subr.bf16.mxu0 0
    %8072 = vmatpush2.bf16.msra.mxu0 0
    %8073 = vmatprep.subr.bf16.mxu0 0
    %8074 = vmatpush2.bf16.msra.mxu0 0
    %8075 = vmatprep.subr.bf16.mxu0 0
    %8076 = vmatpush2.bf16.msra.mxu0 0
    %8077 = vmatprep.subr.bf16.mxu0 0
    %8078 = vmatpush2.bf16.msra.mxu0 0
    %8079 = vmatprep.subr.bf16.mxu0 0
    %8080 = vmatpush2.bf16.msra.mxu0 0
    %8081 = vmatprep.mubr.bf16.mxu0 0
    %8082 = vmatmul.mubr.bf16.gmra.mxu0 %v8007
    %v8083 = vpop.f32.mrf.mxu0
    %v8084 = vadd.f32 0.0, %v8083
    %v8085 = vpop.f32.mrf.mxu0
    %v8086 = vadd.f32 0.0, %v8085
    %v8087 = vpop.f32.mrf.mxu0
    %v8088 = vpop.f32.mrf.mxu0
    %8089 = vdwg.mxu0
    %v8090 = vadd.f32 %v8003, %v8043
    %v8091 = vadd.f32 %v8004, %v8045
    %v8092 = vadd.f32 %v8005, %v8084
    %v8093 = vadd.f32 %v8006, %v8086
    %v8094 = vxor.u32 %v8090, 2147483648
    %v8095 = vmul.f32 %v8094, 1.442695
    %v8096 = vpow.pop %v8095
    %v8097 = vadd.f32 %v8096, 1.0
    %v8098 = vrcp.pop %v8097
    %v8099 = vmul.f32 1.0, %v8098
    %v8100 = vxor.u32 %v8091, 2147483648
    %v8101 = vmul.f32 %v8100, 1.442695
    %v8102 = vpow.pop %v8101
    %v8103 = vadd.f32 %v8102, 1.0
    %v8104 = vrcp.pop %v8103
    %v8105 = vmul.f32 1.0, %v8104
    %v8106 = vtanh.pop %v8092
    %v8107 = vxor.u32 %v8093, 2147483648
    %v8108 = vmul.f32 %v8107, 1.442695
    %v8109 = vpow.pop %v8108
    %v8110 = vadd.f32 %v8109, 1.0
    %v8111 = vrcp.pop %v8110
    %v8112 = vmul.f32 1.0, %v8111
    %v8113 = vmul.f32 %v8105, %v7885
    %v8114 = vmul.f32 %v8099, %v8106
    %v8115 = vadd.f32 %v8113, %v8114
    %v8116 = vtanh.pop %v8115
    %v8117 = vmul.f32 %v8112, %v8116
    %v8118 = vld [vmem:[#allocation3 + $0x80] sm:$0xff]
    %v8119 = vld [vmem:[#allocation3 + $0x88] sm:$0xff]
    %v8120 = vld [vmem:[#allocation3 + $0x90] sm:$0xff]
    %v8121 = vld [vmem:[#allocation3 + $0x98] sm:$0xff]
    %v8122 = vpack.c.bf16 %v8002, %v8002
    %8123 = vmatprep.subr.bf16.mxu0 %v7398
    %8124 = vmatpush1.bf16.msra.mxu0 %v7397
    %8125 = vmatprep.subr.bf16.mxu0 %v7394
    %8126 = vmatpush1.bf16.msra.mxu0 %v7393
    %8127 = vmatprep.subr.bf16.mxu0 %v7390
    %8128 = vmatpush1.bf16.msra.mxu0 %v7389
    %8129 = vmatprep.subr.bf16.mxu0 %v7386
    %8130 = vmatpush1.bf16.msra.mxu0 %v7385
    %8131 = vmatprep.subr.bf16.mxu0 %v7382
    %8132 = vmatpush1.bf16.msra.mxu0 %v7381
    %8133 = vmatprep.subr.bf16.mxu0 %v7378
    %8134 = vmatpush1.bf16.msra.mxu0 %v7377
    %8135 = vmatprep.subr.bf16.mxu0 %v7374
    %8136 = vmatpush1.bf16.msra.mxu0 %v7373
    %8137 = vmatprep.subr.bf16.mxu0 %v7370
    %8138 = vmatpush1.bf16.msra.mxu0 %v7369
    %8139 = vmatprep.subr.bf16.mxu0 0
    %8140 = vmatpush2.bf16.msra.mxu0 0
    %8141 = vmatprep.subr.bf16.mxu0 0
    %8142 = vmatpush2.bf16.msra.mxu0 0
    %8143 = vmatprep.subr.bf16.mxu0 0
    %8144 = vmatpush2.bf16.msra.mxu0 0
    %8145 = vmatprep.subr.bf16.mxu0 0
    %8146 = vmatpush2.bf16.msra.mxu0 0
    %8147 = vmatprep.subr.bf16.mxu0 0
    %8148 = vmatpush2.bf16.msra.mxu0 0
    %8149 = vmatprep.subr.bf16.mxu0 0
    %8150 = vmatpush2.bf16.msra.mxu0 0
    %8151 = vmatprep.subr.bf16.mxu0 0
    %8152 = vmatpush2.bf16.msra.mxu0 0
    %8153 = vmatprep.subr.bf16.mxu0 0
    %8154 = vmatpush2.bf16.msra.mxu0 0
    %8155 = vmatprep.mubr.bf16.mxu0 0
    %8156 = vmatmul.mubr.bf16.gmra.mxu0 %v8122
    %v8157 = vpop.f32.mrf.mxu0
    %v8158 = vadd.f32 0.0, %v8157
    %v8159 = vpop.f32.mrf.mxu0
    %v8160 = vadd.f32 0.0, %v8159
    %v8161 = vpop.f32.mrf.mxu0
    %v8162 = vpop.f32.mrf.mxu0
    %8163 = vdwg.mxu0
    %8164 = vmatprep.subr.bf16.mxu0 %v7400
    %8165 = vmatpush1.bf16.msra.mxu0 %v7399
    %8166 = vmatprep.subr.bf16.mxu0 %v7396
    %8167 = vmatpush1.bf16.msra.mxu0 %v7395
    %8168 = vmatprep.subr.bf16.mxu0 %v7392
    %8169 = vmatpush1.bf16.msra.mxu0 %v7391
    %8170 = vmatprep.subr.bf16.mxu0 %v7388
    %8171 = vmatpush1.bf16.msra.mxu0 %v7387
    %8172 = vmatprep.subr.bf16.mxu0 %v7384
    %8173 = vmatpush1.bf16.msra.mxu0 %v7383
    %8174 = vmatprep.subr.bf16.mxu0 %v7380
    %8175 = vmatpush1.bf16.msra.mxu0 %v7379
    %8176 = vmatprep.subr.bf16.mxu0 %v7376
    %8177 = vmatpush1.bf16.msra.mxu0 %v7375
    %8178 = vmatprep.subr.bf16.mxu0 %v7372
    %8179 = vmatpush1.bf16.msra.mxu0 %v7371
    %8180 = vmatprep.subr.bf16.mxu0 0
    %8181 = vmatpush2.bf16.msra.mxu0 0
    %8182 = vmatprep.subr.bf16.mxu0 0
    %8183 = vmatpush2.bf16.msra.mxu0 0
    %8184 = vmatprep.subr.bf16.mxu0 0
    %8185 = vmatpush2.bf16.msra.mxu0 0
    %8186 = vmatprep.subr.bf16.mxu0 0
    %8187 = vmatpush2.bf16.msra.mxu0 0
    %8188 = vmatprep.subr.bf16.mxu0 0
    %8189 = vmatpush2.bf16.msra.mxu0 0
    %8190 = vmatprep.subr.bf16.mxu0 0
    %8191 = vmatpush2.bf16.msra.mxu0 0
    %8192 = vmatprep.subr.bf16.mxu0 0
    %8193 = vmatpush2.bf16.msra.mxu0 0
    %8194 = vmatprep.subr.bf16.mxu0 0
    %8195 = vmatpush2.bf16.msra.mxu0 0
    %8196 = vmatprep.mubr.bf16.mxu0 0
    %8197 = vmatmul.mubr.bf16.gmra.mxu0 %v8122
    %v8198 = vpop.f32.mrf.mxu0
    %v8199 = vadd.f32 0.0, %v8198
    %v8200 = vpop.f32.mrf.mxu0
    %v8201 = vadd.f32 0.0, %v8200
    %v8202 = vpop.f32.mrf.mxu0
    %v8203 = vpop.f32.mrf.mxu0
    %8204 = vdwg.mxu0
    %v8205 = vadd.f32 %v8118, %v8158
    %v8206 = vadd.f32 %v8119, %v8160
    %v8207 = vadd.f32 %v8120, %v8199
    %v8208 = vadd.f32 %v8121, %v8201
    %v8209 = vxor.u32 %v8205, 2147483648
    %v8210 = vmul.f32 %v8209, 1.442695
    %v8211 = vpow.pop %v8210
    %v8212 = vadd.f32 %v8211, 1.0
    %v8213 = vrcp.pop %v8212
    %v8214 = vmul.f32 1.0, %v8213
    %v8215 = vxor.u32 %v8206, 2147483648
    %v8216 = vmul.f32 %v8215, 1.442695
    %v8217 = vpow.pop %v8216
    %v8218 = vadd.f32 %v8217, 1.0
    %v8219 = vrcp.pop %v8218
    %v8220 = vmul.f32 1.0, %v8219
    %v8221 = vtanh.pop %v8207
    %v8222 = vxor.u32 %v8208, 2147483648
    %v8223 = vmul.f32 %v8222, 1.442695
    %v8224 = vpow.pop %v8223
    %v8225 = vadd.f32 %v8224, 1.0
    %v8226 = vrcp.pop %v8225
    %v8227 = vmul.f32 1.0, %v8226
    %v8228 = vmul.f32 %v8220, %v8000
    %v8229 = vmul.f32 %v8214, %v8221
    %v8230 = vadd.f32 %v8228, %v8229
    %v8231 = vtanh.pop %v8230
    %v8232 = vmul.f32 %v8227, %v8231
    %v8233 = vld [vmem:[#allocation2 + $0x80] sm:$0xff]
    %v8234 = vld [vmem:[#allocation2 + $0x88] sm:$0xff]
    %v8235 = vld [vmem:[#allocation2 + $0x90] sm:$0xff]
    %v8236 = vld [vmem:[#allocation2 + $0x98] sm:$0xff]
    %v8237 = vpack.c.bf16 %v8117, %v8117
    %8238 = vmatprep.subr.bf16.mxu0 %v7092
    %8239 = vmatpush1.bf16.msra.mxu0 %v7091
    %8240 = vmatprep.subr.bf16.mxu0 %v7088
    %8241 = vmatpush1.bf16.msra.mxu0 %v7087
    %8242 = vmatprep.subr.bf16.mxu0 %v7084
    %8243 = vmatpush1.bf16.msra.mxu0 %v7083
    %8244 = vmatprep.subr.bf16.mxu0 %v7080
    %8245 = vmatpush1.bf16.msra.mxu0 %v7079
    %8246 = vmatprep.subr.bf16.mxu0 %v7076
    %8247 = vmatpush1.bf16.msra.mxu0 %v7075
    %8248 = vmatprep.subr.bf16.mxu0 %v7072
    %8249 = vmatpush1.bf16.msra.mxu0 %v7071
    %8250 = vmatprep.subr.bf16.mxu0 %v7068
    %8251 = vmatpush1.bf16.msra.mxu0 %v7067
    %8252 = vmatprep.subr.bf16.mxu0 %v7064
    %8253 = vmatpush1.bf16.msra.mxu0 %v7063
    %8254 = vmatprep.subr.bf16.mxu0 0
    %8255 = vmatpush2.bf16.msra.mxu0 0
    %8256 = vmatprep.subr.bf16.mxu0 0
    %8257 = vmatpush2.bf16.msra.mxu0 0
    %8258 = vmatprep.subr.bf16.mxu0 0
    %8259 = vmatpush2.bf16.msra.mxu0 0
    %8260 = vmatprep.subr.bf16.mxu0 0
    %8261 = vmatpush2.bf16.msra.mxu0 0
    %8262 = vmatprep.subr.bf16.mxu0 0
    %8263 = vmatpush2.bf16.msra.mxu0 0
    %8264 = vmatprep.subr.bf16.mxu0 0
    %8265 = vmatpush2.bf16.msra.mxu0 0
    %8266 = vmatprep.subr.bf16.mxu0 0
    %8267 = vmatpush2.bf16.msra.mxu0 0
    %8268 = vmatprep.subr.bf16.mxu0 0
    %8269 = vmatpush2.bf16.msra.mxu0 0
    %8270 = vmatprep.mubr.bf16.mxu0 0
    %8271 = vmatmul.mubr.bf16.gmra.mxu0 %v8237
    %v8272 = vpop.f32.mrf.mxu0
    %v8273 = vadd.f32 0.0, %v8272
    %v8274 = vpop.f32.mrf.mxu0
    %v8275 = vadd.f32 0.0, %v8274
    %v8276 = vpop.f32.mrf.mxu0
    %v8277 = vpop.f32.mrf.mxu0
    %8278 = vdwg.mxu0
    %8279 = vmatprep.subr.bf16.mxu0 %v7094
    %8280 = vmatpush1.bf16.msra.mxu0 %v7093
    %8281 = vmatprep.subr.bf16.mxu0 %v7090
    %8282 = vmatpush1.bf16.msra.mxu0 %v7089
    %8283 = vmatprep.subr.bf16.mxu0 %v7086
    %8284 = vmatpush1.bf16.msra.mxu0 %v7085
    %8285 = vmatprep.subr.bf16.mxu0 %v7082
    %8286 = vmatpush1.bf16.msra.mxu0 %v7081
    %8287 = vmatprep.subr.bf16.mxu0 %v7078
    %8288 = vmatpush1.bf16.msra.mxu0 %v7077
    %8289 = vmatprep.subr.bf16.mxu0 %v7074
    %8290 = vmatpush1.bf16.msra.mxu0 %v7073
    %8291 = vmatprep.subr.bf16.mxu0 %v7070
    %8292 = vmatpush1.bf16.msra.mxu0 %v7069
    %8293 = vmatprep.subr.bf16.mxu0 %v7066
    %8294 = vmatpush1.bf16.msra.mxu0 %v7065
    %8295 = vmatprep.subr.bf16.mxu0 0
    %8296 = vmatpush2.bf16.msra.mxu0 0
    %8297 = vmatprep.subr.bf16.mxu0 0
    %8298 = vmatpush2.bf16.msra.mxu0 0
    %8299 = vmatprep.subr.bf16.mxu0 0
    %8300 = vmatpush2.bf16.msra.mxu0 0
    %8301 = vmatprep.subr.bf16.mxu0 0
    %8302 = vmatpush2.bf16.msra.mxu0 0
    %8303 = vmatprep.subr.bf16.mxu0 0
    %8304 = vmatpush2.bf16.msra.mxu0 0
    %8305 = vmatprep.subr.bf16.mxu0 0
    %8306 = vmatpush2.bf16.msra.mxu0 0
    %8307 = vmatprep.subr.bf16.mxu0 0
    %8308 = vmatpush2.bf16.msra.mxu0 0
    %8309 = vmatprep.subr.bf16.mxu0 0
    %8310 = vmatpush2.bf16.msra.mxu0 0
    %8311 = vmatprep.mubr.bf16.mxu0 0
    %8312 = vmatmul.mubr.bf16.gmra.mxu0 %v8237
    %v8313 = vpop.f32.mrf.mxu0
    %v8314 = vadd.f32 0.0, %v8313
    %v8315 = vpop.f32.mrf.mxu0
    %v8316 = vadd.f32 0.0, %v8315
    %v8317 = vpop.f32.mrf.mxu0
    %v8318 = vpop.f32.mrf.mxu0
    %8319 = vdwg.mxu0
    %v8320 = vadd.f32 %v8233, %v8273
    %v8321 = vadd.f32 %v8234, %v8275
    %v8322 = vadd.f32 %v8235, %v8314
    %v8323 = vadd.f32 %v8236, %v8316
    %v8324 = vxor.u32 %v8320, 2147483648
    %v8325 = vmul.f32 %v8324, 1.442695
    %v8326 = vpow.pop %v8325
    %v8327 = vadd.f32 %v8326, 1.0
    %v8328 = vrcp.pop %v8327
    %v8329 = vmul.f32 1.0, %v8328
    %v8330 = vxor.u32 %v8321, 2147483648
    %v8331 = vmul.f32 %v8330, 1.442695
    %v8332 = vpow.pop %v8331
    %v8333 = vadd.f32 %v8332, 1.0
    %v8334 = vrcp.pop %v8333
    %v8335 = vmul.f32 1.0, %v8334
    %v8336 = vtanh.pop %v8322
    %v8337 = vxor.u32 %v8323, 2147483648
    %v8338 = vmul.f32 %v8337, 1.442695
    %v8339 = vpow.pop %v8338
    %v8340 = vadd.f32 %v8339, 1.0
    %v8341 = vrcp.pop %v8340
    %v8342 = vmul.f32 1.0, %v8341
    %v8343 = vmul.f32 %v8335, %v8115
    %v8344 = vmul.f32 %v8329, %v8336
    %v8345 = vadd.f32 %v8343, %v8344
    %v8346 = vtanh.pop %v8345
    %v8347 = vmul.f32 %v8342, %v8346
    %v8348 = vld [vmem:[#allocation3 + $0x60] sm:$0xff]
    %v8349 = vld [vmem:[#allocation3 + $0x68] sm:$0xff]
    %v8350 = vld [vmem:[#allocation3 + $0x70] sm:$0xff]
    %v8351 = vld [vmem:[#allocation3 + $0x78] sm:$0xff]
    %v8352 = vpack.c.bf16 %v8232, %v8232
    %8353 = vmatprep.subr.bf16.mxu0 %v7398
    %8354 = vmatpush1.bf16.msra.mxu0 %v7397
    %8355 = vmatprep.subr.bf16.mxu0 %v7394
    %8356 = vmatpush1.bf16.msra.mxu0 %v7393
    %8357 = vmatprep.subr.bf16.mxu0 %v7390
    %8358 = vmatpush1.bf16.msra.mxu0 %v7389
    %8359 = vmatprep.subr.bf16.mxu0 %v7386
    %8360 = vmatpush1.bf16.msra.mxu0 %v7385
    %8361 = vmatprep.subr.bf16.mxu0 %v7382
    %8362 = vmatpush1.bf16.msra.mxu0 %v7381
    %8363 = vmatprep.subr.bf16.mxu0 %v7378
    %8364 = vmatpush1.bf16.msra.mxu0 %v7377
    %8365 = vmatprep.subr.bf16.mxu0 %v7374
    %8366 = vmatpush1.bf16.msra.mxu0 %v7373
    %8367 = vmatprep.subr.bf16.mxu0 %v7370
    %8368 = vmatpush1.bf16.msra.mxu0 %v7369
    %8369 = vmatprep.subr.bf16.mxu0 0
    %8370 = vmatpush2.bf16.msra.mxu0 0
    %8371 = vmatprep.subr.bf16.mxu0 0
    %8372 = vmatpush2.bf16.msra.mxu0 0
    %8373 = vmatprep.subr.bf16.mxu0 0
    %8374 = vmatpush2.bf16.msra.mxu0 0
    %8375 = vmatprep.subr.bf16.mxu0 0
    %8376 = vmatpush2.bf16.msra.mxu0 0
    %8377 = vmatprep.subr.bf16.mxu0 0
    %8378 = vmatpush2.bf16.msra.mxu0 0
    %8379 = vmatprep.subr.bf16.mxu0 0
    %8380 = vmatpush2.bf16.msra.mxu0 0
    %8381 = vmatprep.subr.bf16.mxu0 0
    %8382 = vmatpush2.bf16.msra.mxu0 0
    %8383 = vmatprep.subr.bf16.mxu0 0
    %8384 = vmatpush2.bf16.msra.mxu0 0
    %8385 = vmatprep.mubr.bf16.mxu0 0
    %8386 = vmatmul.mubr.bf16.gmra.mxu0 %v8352
    %v8387 = vpop.f32.mrf.mxu0
    %v8388 = vadd.f32 0.0, %v8387
    %v8389 = vpop.f32.mrf.mxu0
    %v8390 = vadd.f32 0.0, %v8389
    %v8391 = vpop.f32.mrf.mxu0
    %v8392 = vpop.f32.mrf.mxu0
    %8393 = vdwg.mxu0
    %8394 = vmatprep.subr.bf16.mxu0 %v7400
    %8395 = vmatpush1.bf16.msra.mxu0 %v7399
    %8396 = vmatprep.subr.bf16.mxu0 %v7396
    %8397 = vmatpush1.bf16.msra.mxu0 %v7395
    %8398 = vmatprep.subr.bf16.mxu0 %v7392
    %8399 = vmatpush1.bf16.msra.mxu0 %v7391
    %8400 = vmatprep.subr.bf16.mxu0 %v7388
    %8401 = vmatpush1.bf16.msra.mxu0 %v7387
    %8402 = vmatprep.subr.bf16.mxu0 %v7384
    %8403 = vmatpush1.bf16.msra.mxu0 %v7383
    %8404 = vmatprep.subr.bf16.mxu0 %v7380
    %8405 = vmatpush1.bf16.msra.mxu0 %v7379
    %8406 = vmatprep.subr.bf16.mxu0 %v7376
    %8407 = vmatpush1.bf16.msra.mxu0 %v7375
    %8408 = vmatprep.subr.bf16.mxu0 %v7372
    %8409 = vmatpush1.bf16.msra.mxu0 %v7371
    %8410 = vmatprep.subr.bf16.mxu0 0
    %8411 = vmatpush2.bf16.msra.mxu0 0
    %8412 = vmatprep.subr.bf16.mxu0 0
    %8413 = vmatpush2.bf16.msra.mxu0 0
    %8414 = vmatprep.subr.bf16.mxu0 0
    %8415 = vmatpush2.bf16.msra.mxu0 0
    %8416 = vmatprep.subr.bf16.mxu0 0
    %8417 = vmatpush2.bf16.msra.mxu0 0
    %8418 = vmatprep.subr.bf16.mxu0 0
    %8419 = vmatpush2.bf16.msra.mxu0 0
    %8420 = vmatprep.subr.bf16.mxu0 0
    %8421 = vmatpush2.bf16.msra.mxu0 0
    %8422 = vmatprep.subr.bf16.mxu0 0
    %8423 = vmatpush2.bf16.msra.mxu0 0
    %8424 = vmatprep.subr.bf16.mxu0 0
    %8425 = vmatpush2.bf16.msra.mxu0 0
    %8426 = vmatprep.mubr.bf16.mxu0 0
    %8427 = vmatmul.mubr.bf16.gmra.mxu0 %v8352
    %v8428 = vpop.f32.mrf.mxu0
    %v8429 = vadd.f32 0.0, %v8428
    %v8430 = vpop.f32.mrf.mxu0
    %v8431 = vadd.f32 0.0, %v8430
    %v8432 = vpop.f32.mrf.mxu0
    %v8433 = vpop.f32.mrf.mxu0
    %8434 = vdwg.mxu0
    %v8435 = vadd.f32 %v8348, %v8388
    %v8436 = vadd.f32 %v8349, %v8390
    %v8437 = vadd.f32 %v8350, %v8429
    %v8438 = vadd.f32 %v8351, %v8431
    %v8439 = vxor.u32 %v8435, 2147483648
    %v8440 = vmul.f32 %v8439, 1.442695
    %v8441 = vpow.pop %v8440
    %v8442 = vadd.f32 %v8441, 1.0
    %v8443 = vrcp.pop %v8442
    %v8444 = vmul.f32 1.0, %v8443
    %v8445 = vxor.u32 %v8436, 2147483648
    %v8446 = vmul.f32 %v8445, 1.442695
    %v8447 = vpow.pop %v8446
    %v8448 = vadd.f32 %v8447, 1.0
    %v8449 = vrcp.pop %v8448
    %v8450 = vmul.f32 1.0, %v8449
    %v8451 = vtanh.pop %v8437
    %v8452 = vxor.u32 %v8438, 2147483648
    %v8453 = vmul.f32 %v8452, 1.442695
    %v8454 = vpow.pop %v8453
    %v8455 = vadd.f32 %v8454, 1.0
    %v8456 = vrcp.pop %v8455
    %v8457 = vmul.f32 1.0, %v8456
    %v8458 = vmul.f32 %v8450, %v8230
    %v8459 = vmul.f32 %v8444, %v8451
    %v8460 = vadd.f32 %v8458, %v8459
    %v8461 = vtanh.pop %v8460
    %v8462 = vmul.f32 %v8457, %v8461
    %v8463 = vld [vmem:[#allocation2 + $0xa0] sm:$0xff]
    %v8464 = vld [vmem:[#allocation2 + $0xa8] sm:$0xff]
    %v8465 = vld [vmem:[#allocation2 + $0xb0] sm:$0xff]
    %v8466 = vld [vmem:[#allocation2 + $0xb8] sm:$0xff]
    %v8467 = vpack.c.bf16 %v8347, %v8347
    %8468 = vmatprep.subr.bf16.mxu0 %v7092
    %8469 = vmatpush1.bf16.msra.mxu0 %v7091
    %8470 = vmatprep.subr.bf16.mxu0 %v7088
    %8471 = vmatpush1.bf16.msra.mxu0 %v7087
    %8472 = vmatprep.subr.bf16.mxu0 %v7084
    %8473 = vmatpush1.bf16.msra.mxu0 %v7083
    %8474 = vmatprep.subr.bf16.mxu0 %v7080
    %8475 = vmatpush1.bf16.msra.mxu0 %v7079
    %8476 = vmatprep.subr.bf16.mxu0 %v7076
    %8477 = vmatpush1.bf16.msra.mxu0 %v7075
    %8478 = vmatprep.subr.bf16.mxu0 %v7072
    %8479 = vmatpush1.bf16.msra.mxu0 %v7071
    %8480 = vmatprep.subr.bf16.mxu0 %v7068
    %8481 = vmatpush1.bf16.msra.mxu0 %v7067
    %8482 = vmatprep.subr.bf16.mxu0 %v7064
    %8483 = vmatpush1.bf16.msra.mxu0 %v7063
    %8484 = vmatprep.subr.bf16.mxu0 0
    %8485 = vmatpush2.bf16.msra.mxu0 0
    %8486 = vmatprep.subr.bf16.mxu0 0
    %8487 = vmatpush2.bf16.msra.mxu0 0
    %8488 = vmatprep.subr.bf16.mxu0 0
    %8489 = vmatpush2.bf16.msra.mxu0 0
    %8490 = vmatprep.subr.bf16.mxu0 0
    %8491 = vmatpush2.bf16.msra.mxu0 0
    %8492 = vmatprep.subr.bf16.mxu0 0
    %8493 = vmatpush2.bf16.msra.mxu0 0
    %8494 = vmatprep.subr.bf16.mxu0 0
    %8495 = vmatpush2.bf16.msra.mxu0 0
    %8496 = vmatprep.subr.bf16.mxu0 0
    %8497 = vmatpush2.bf16.msra.mxu0 0
    %8498 = vmatprep.subr.bf16.mxu0 0
    %8499 = vmatpush2.bf16.msra.mxu0 0
    %8500 = vmatprep.mubr.bf16.mxu0 0
    %8501 = vmatmul.mubr.bf16.gmra.mxu0 %v8467
    %v8502 = vpop.f32.mrf.mxu0
    %v8503 = vadd.f32 0.0, %v8502
    %v8504 = vpop.f32.mrf.mxu0
    %v8505 = vadd.f32 0.0, %v8504
    %v8506 = vpop.f32.mrf.mxu0
    %v8507 = vpop.f32.mrf.mxu0
    %8508 = vdwg.mxu0
    %8509 = vmatprep.subr.bf16.mxu0 %v7094
    %8510 = vmatpush1.bf16.msra.mxu0 %v7093
    %8511 = vmatprep.subr.bf16.mxu0 %v7090
    %8512 = vmatpush1.bf16.msra.mxu0 %v7089
    %8513 = vmatprep.subr.bf16.mxu0 %v7086
    %8514 = vmatpush1.bf16.msra.mxu0 %v7085
    %8515 = vmatprep.subr.bf16.mxu0 %v7082
    %8516 = vmatpush1.bf16.msra.mxu0 %v7081
    %8517 = vmatprep.subr.bf16.mxu0 %v7078
    %8518 = vmatpush1.bf16.msra.mxu0 %v7077
    %8519 = vmatprep.subr.bf16.mxu0 %v7074
    %8520 = vmatpush1.bf16.msra.mxu0 %v7073
    %8521 = vmatprep.subr.bf16.mxu0 %v7070
    %8522 = vmatpush1.bf16.msra.mxu0 %v7069
    %8523 = vmatprep.subr.bf16.mxu0 %v7066
    %8524 = vmatpush1.bf16.msra.mxu0 %v7065
    %8525 = vmatprep.subr.bf16.mxu0 0
    %8526 = vmatpush2.bf16.msra.mxu0 0
    %8527 = vmatprep.subr.bf16.mxu0 0
    %8528 = vmatpush2.bf16.msra.mxu0 0
    %8529 = vmatprep.subr.bf16.mxu0 0
    %8530 = vmatpush2.bf16.msra.mxu0 0
    %8531 = vmatprep.subr.bf16.mxu0 0
    %8532 = vmatpush2.bf16.msra.mxu0 0
    %8533 = vmatprep.subr.bf16.mxu0 0
    %8534 = vmatpush2.bf16.msra.mxu0 0
    %8535 = vmatprep.subr.bf16.mxu0 0
    %8536 = vmatpush2.bf16.msra.mxu0 0
    %8537 = vmatprep.subr.bf16.mxu0 0
    %8538 = vmatpush2.bf16.msra.mxu0 0
    %8539 = vmatprep.subr.bf16.mxu0 0
    %8540 = vmatpush2.bf16.msra.mxu0 0
    %8541 = vmatprep.mubr.bf16.mxu0 0
    %8542 = vmatmul.mubr.bf16.gmra.mxu0 %v8467
    %v8543 = vpop.f32.mrf.mxu0
    %v8544 = vadd.f32 0.0, %v8543
    %v8545 = vpop.f32.mrf.mxu0
    %v8546 = vadd.f32 0.0, %v8545
    %v8547 = vpop.f32.mrf.mxu0
    %v8548 = vpop.f32.mrf.mxu0
    %8549 = vdwg.mxu0
    %v8550 = vadd.f32 %v8463, %v8503
    %v8551 = vadd.f32 %v8464, %v8505
    %v8552 = vadd.f32 %v8465, %v8544
    %v8553 = vadd.f32 %v8466, %v8546
    %v8554 = vxor.u32 %v8550, 2147483648
    %v8555 = vmul.f32 %v8554, 1.442695
    %v8556 = vpow.pop %v8555
    %v8557 = vadd.f32 %v8556, 1.0
    %v8558 = vrcp.pop %v8557
    %v8559 = vmul.f32 1.0, %v8558
    %v8560 = vxor.u32 %v8551, 2147483648
    %v8561 = vmul.f32 %v8560, 1.442695
    %v8562 = vpow.pop %v8561
    %v8563 = vadd.f32 %v8562, 1.0
    %v8564 = vrcp.pop %v8563
    %v8565 = vmul.f32 1.0, %v8564
    %v8566 = vtanh.pop %v8552
    %v8567 = vxor.u32 %v8553, 2147483648
    %v8568 = vmul.f32 %v8567, 1.442695
    %v8569 = vpow.pop %v8568
    %v8570 = vadd.f32 %v8569, 1.0
    %v8571 = vrcp.pop %v8570
    %v8572 = vmul.f32 1.0, %v8571
    %v8573 = vmul.f32 %v8565, %v8345
    %v8574 = vmul.f32 %v8559, %v8566
    %v8575 = vadd.f32 %v8573, %v8574
    %v8576 = vtanh.pop %v8575
    %v8577 = vmul.f32 %v8572, %v8576
    %v8578 = vld [vmem:[#allocation3 + $0x40] sm:$0xff]
    %v8579 = vld [vmem:[#allocation3 + $0x48] sm:$0xff]
    %v8580 = vld [vmem:[#allocation3 + $0x50] sm:$0xff]
    %v8581 = vld [vmem:[#allocation3 + $0x58] sm:$0xff]
    %v8582 = vpack.c.bf16 %v8462, %v8462
    %8583 = vmatprep.subr.bf16.mxu0 %v7398
    %8584 = vmatpush1.bf16.msra.mxu0 %v7397
    %8585 = vmatprep.subr.bf16.mxu0 %v7394
    %8586 = vmatpush1.bf16.msra.mxu0 %v7393
    %8587 = vmatprep.subr.bf16.mxu0 %v7390
    %8588 = vmatpush1.bf16.msra.mxu0 %v7389
    %8589 = vmatprep.subr.bf16.mxu0 %v7386
    %8590 = vmatpush1.bf16.msra.mxu0 %v7385
    %8591 = vmatprep.subr.bf16.mxu0 %v7382
    %8592 = vmatpush1.bf16.msra.mxu0 %v7381
    %8593 = vmatprep.subr.bf16.mxu0 %v7378
    %8594 = vmatpush1.bf16.msra.mxu0 %v7377
    %8595 = vmatprep.subr.bf16.mxu0 %v7374
    %8596 = vmatpush1.bf16.msra.mxu0 %v7373
    %8597 = vmatprep.subr.bf16.mxu0 %v7370
    %8598 = vmatpush1.bf16.msra.mxu0 %v7369
    %8599 = vmatprep.subr.bf16.mxu0 0
    %8600 = vmatpush2.bf16.msra.mxu0 0
    %8601 = vmatprep.subr.bf16.mxu0 0
    %8602 = vmatpush2.bf16.msra.mxu0 0
    %8603 = vmatprep.subr.bf16.mxu0 0
    %8604 = vmatpush2.bf16.msra.mxu0 0
    %8605 = vmatprep.subr.bf16.mxu0 0
    %8606 = vmatpush2.bf16.msra.mxu0 0
    %8607 = vmatprep.subr.bf16.mxu0 0
    %8608 = vmatpush2.bf16.msra.mxu0 0
    %8609 = vmatprep.subr.bf16.mxu0 0
    %8610 = vmatpush2.bf16.msra.mxu0 0
    %8611 = vmatprep.subr.bf16.mxu0 0
    %8612 = vmatpush2.bf16.msra.mxu0 0
    %8613 = vmatprep.subr.bf16.mxu0 0
    %8614 = vmatpush2.bf16.msra.mxu0 0
    %8615 = vmatprep.mubr.bf16.mxu0 0
    %8616 = vmatmul.mubr.bf16.gmra.mxu0 %v8582
    %v8617 = vpop.f32.mrf.mxu0
    %v8618 = vadd.f32 0.0, %v8617
    %v8619 = vpop.f32.mrf.mxu0
    %v8620 = vadd.f32 0.0, %v8619
    %v8621 = vpop.f32.mrf.mxu0
    %v8622 = vpop.f32.mrf.mxu0
    %8623 = vdwg.mxu0
    %8624 = vmatprep.subr.bf16.mxu0 %v7400
    %8625 = vmatpush1.bf16.msra.mxu0 %v7399
    %8626 = vmatprep.subr.bf16.mxu0 %v7396
    %8627 = vmatpush1.bf16.msra.mxu0 %v7395
    %8628 = vmatprep.subr.bf16.mxu0 %v7392
    %8629 = vmatpush1.bf16.msra.mxu0 %v7391
    %8630 = vmatprep.subr.bf16.mxu0 %v7388
    %8631 = vmatpush1.bf16.msra.mxu0 %v7387
    %8632 = vmatprep.subr.bf16.mxu0 %v7384
    %8633 = vmatpush1.bf16.msra.mxu0 %v7383
    %8634 = vmatprep.subr.bf16.mxu0 %v7380
    %8635 = vmatpush1.bf16.msra.mxu0 %v7379
    %8636 = vmatprep.subr.bf16.mxu0 %v7376
    %8637 = vmatpush1.bf16.msra.mxu0 %v7375
    %8638 = vmatprep.subr.bf16.mxu0 %v7372
    %8639 = vmatpush1.bf16.msra.mxu0 %v7371
    %8640 = vmatprep.subr.bf16.mxu0 0
    %8641 = vmatpush2.bf16.msra.mxu0 0
    %8642 = vmatprep.subr.bf16.mxu0 0
    %8643 = vmatpush2.bf16.msra.mxu0 0
    %8644 = vmatprep.subr.bf16.mxu0 0
    %8645 = vmatpush2.bf16.msra.mxu0 0
    %8646 = vmatprep.subr.bf16.mxu0 0
    %8647 = vmatpush2.bf16.msra.mxu0 0
    %8648 = vmatprep.subr.bf16.mxu0 0
    %8649 = vmatpush2.bf16.msra.mxu0 0
    %8650 = vmatprep.subr.bf16.mxu0 0
    %8651 = vmatpush2.bf16.msra.mxu0 0
    %8652 = vmatprep.subr.bf16.mxu0 0
    %8653 = vmatpush2.bf16.msra.mxu0 0
    %8654 = vmatprep.subr.bf16.mxu0 0
    %8655 = vmatpush2.bf16.msra.mxu0 0
    %8656 = vmatprep.mubr.bf16.mxu0 0
    %8657 = vmatmul.mubr.bf16.gmra.mxu0 %v8582
    %v8658 = vpop.f32.mrf.mxu0
    %v8659 = vadd.f32 0.0, %v8658
    %v8660 = vpop.f32.mrf.mxu0
    %v8661 = vadd.f32 0.0, %v8660
    %v8662 = vpop.f32.mrf.mxu0
    %v8663 = vpop.f32.mrf.mxu0
    %8664 = vdwg.mxu0
    %v8665 = vadd.f32 %v8578, %v8618
    %v8666 = vadd.f32 %v8579, %v8620
    %v8667 = vadd.f32 %v8580, %v8659
    %v8668 = vadd.f32 %v8581, %v8661
    %v8669 = vxor.u32 %v8665, 2147483648
    %v8670 = vmul.f32 %v8669, 1.442695
    %v8671 = vpow.pop %v8670
    %v8672 = vadd.f32 %v8671, 1.0
    %v8673 = vrcp.pop %v8672
    %v8674 = vmul.f32 1.0, %v8673
    %v8675 = vxor.u32 %v8666, 2147483648
    %v8676 = vmul.f32 %v8675, 1.442695
    %v8677 = vpow.pop %v8676
    %v8678 = vadd.f32 %v8677, 1.0
    %v8679 = vrcp.pop %v8678
    %v8680 = vmul.f32 1.0, %v8679
    %v8681 = vtanh.pop %v8667
    %v8682 = vxor.u32 %v8668, 2147483648
    %v8683 = vmul.f32 %v8682, 1.442695
    %v8684 = vpow.pop %v8683
    %v8685 = vadd.f32 %v8684, 1.0
    %v8686 = vrcp.pop %v8685
    %v8687 = vmul.f32 1.0, %v8686
    %v8688 = vmul.f32 %v8680, %v8460
    %v8689 = vmul.f32 %v8674, %v8681
    %v8690 = vadd.f32 %v8688, %v8689
    %v8691 = vtanh.pop %v8690
    %v8692 = vmul.f32 %v8687, %v8691
    %v8693 = vld [vmem:[#allocation2 + $0xc0] sm:$0xff]
    %v8694 = vld [vmem:[#allocation2 + $0xc8] sm:$0xff]
    %v8695 = vld [vmem:[#allocation2 + $0xd0] sm:$0xff]
    %v8696 = vld [vmem:[#allocation2 + $0xd8] sm:$0xff]
    %v8697 = vpack.c.bf16 %v8577, %v8577
    %8698 = vmatprep.subr.bf16.mxu0 %v7092
    %8699 = vmatpush1.bf16.msra.mxu0 %v7091
    %8700 = vmatprep.subr.bf16.mxu0 %v7088
    %8701 = vmatpush1.bf16.msra.mxu0 %v7087
    %8702 = vmatprep.subr.bf16.mxu0 %v7084
    %8703 = vmatpush1.bf16.msra.mxu0 %v7083
    %8704 = vmatprep.subr.bf16.mxu0 %v7080
    %8705 = vmatpush1.bf16.msra.mxu0 %v7079
    %8706 = vmatprep.subr.bf16.mxu0 %v7076
    %8707 = vmatpush1.bf16.msra.mxu0 %v7075
    %8708 = vmatprep.subr.bf16.mxu0 %v7072
    %8709 = vmatpush1.bf16.msra.mxu0 %v7071
    %8710 = vmatprep.subr.bf16.mxu0 %v7068
    %8711 = vmatpush1.bf16.msra.mxu0 %v7067
    %8712 = vmatprep.subr.bf16.mxu0 %v7064
    %8713 = vmatpush1.bf16.msra.mxu0 %v7063
    %8714 = vmatprep.subr.bf16.mxu0 0
    %8715 = vmatpush2.bf16.msra.mxu0 0
    %8716 = vmatprep.subr.bf16.mxu0 0
    %8717 = vmatpush2.bf16.msra.mxu0 0
    %8718 = vmatprep.subr.bf16.mxu0 0
    %8719 = vmatpush2.bf16.msra.mxu0 0
    %8720 = vmatprep.subr.bf16.mxu0 0
    %8721 = vmatpush2.bf16.msra.mxu0 0
    %8722 = vmatprep.subr.bf16.mxu0 0
    %8723 = vmatpush2.bf16.msra.mxu0 0
    %8724 = vmatprep.subr.bf16.mxu0 0
    %8725 = vmatpush2.bf16.msra.mxu0 0
    %8726 = vmatprep.subr.bf16.mxu0 0
    %8727 = vmatpush2.bf16.msra.mxu0 0
    %8728 = vmatprep.subr.bf16.mxu0 0
    %8729 = vmatpush2.bf16.msra.mxu0 0
    %8730 = vmatprep.mubr.bf16.mxu0 0
    %8731 = vmatmul.mubr.bf16.gmra.mxu0 %v8697
    %v8732 = vpop.f32.mrf.mxu0
    %v8733 = vadd.f32 0.0, %v8732
    %v8734 = vpop.f32.mrf.mxu0
    %v8735 = vadd.f32 0.0, %v8734
    %v8736 = vpop.f32.mrf.mxu0
    %v8737 = vpop.f32.mrf.mxu0
    %8738 = vdwg.mxu0
    %8739 = vmatprep.subr.bf16.mxu0 %v7094
    %8740 = vmatpush1.bf16.msra.mxu0 %v7093
    %8741 = vmatprep.subr.bf16.mxu0 %v7090
    %8742 = vmatpush1.bf16.msra.mxu0 %v7089
    %8743 = vmatprep.subr.bf16.mxu0 %v7086
    %8744 = vmatpush1.bf16.msra.mxu0 %v7085
    %8745 = vmatprep.subr.bf16.mxu0 %v7082
    %8746 = vmatpush1.bf16.msra.mxu0 %v7081
    %8747 = vmatprep.subr.bf16.mxu0 %v7078
    %8748 = vmatpush1.bf16.msra.mxu0 %v7077
    %8749 = vmatprep.subr.bf16.mxu0 %v7074
    %8750 = vmatpush1.bf16.msra.mxu0 %v7073
    %8751 = vmatprep.subr.bf16.mxu0 %v7070
    %8752 = vmatpush1.bf16.msra.mxu0 %v7069
    %8753 = vmatprep.subr.bf16.mxu0 %v7066
    %8754 = vmatpush1.bf16.msra.mxu0 %v7065
    %8755 = vmatprep.subr.bf16.mxu0 0
    %8756 = vmatpush2.bf16.msra.mxu0 0
    %8757 = vmatprep.subr.bf16.mxu0 0
    %8758 = vmatpush2.bf16.msra.mxu0 0
    %8759 = vmatprep.subr.bf16.mxu0 0
    %8760 = vmatpush2.bf16.msra.mxu0 0
    %8761 = vmatprep.subr.bf16.mxu0 0
    %8762 = vmatpush2.bf16.msra.mxu0 0
    %8763 = vmatprep.subr.bf16.mxu0 0
    %8764 = vmatpush2.bf16.msra.mxu0 0
    %8765 = vmatprep.subr.bf16.mxu0 0
    %8766 = vmatpush2.bf16.msra.mxu0 0
    %8767 = vmatprep.subr.bf16.mxu0 0
    %8768 = vmatpush2.bf16.msra.mxu0 0
    %8769 = vmatprep.subr.bf16.mxu0 0
    %8770 = vmatpush2.bf16.msra.mxu0 0
    %8771 = vmatprep.mubr.bf16.mxu0 0
    %8772 = vmatmul.mubr.bf16.gmra.mxu0 %v8697
    %v8773 = vpop.f32.mrf.mxu0
    %v8774 = vadd.f32 0.0, %v8773
    %v8775 = vpop.f32.mrf.mxu0
    %v8776 = vadd.f32 0.0, %v8775
    %v8777 = vpop.f32.mrf.mxu0
    %v8778 = vpop.f32.mrf.mxu0
    %8779 = vdwg.mxu0
    %v8780 = vadd.f32 %v8693, %v8733
    %v8781 = vadd.f32 %v8694, %v8735
    %v8782 = vadd.f32 %v8695, %v8774
    %v8783 = vadd.f32 %v8696, %v8776
    %v8784 = vxor.u32 %v8780, 2147483648
    %v8785 = vmul.f32 %v8784, 1.442695
    %v8786 = vpow.pop %v8785
    %v8787 = vadd.f32 %v8786, 1.0
    %v8788 = vrcp.pop %v8787
    %v8789 = vmul.f32 1.0, %v8788
    %v8790 = vxor.u32 %v8781, 2147483648
    %v8791 = vmul.f32 %v8790, 1.442695
    %v8792 = vpow.pop %v8791
    %v8793 = vadd.f32 %v8792, 1.0
    %v8794 = vrcp.pop %v8793
    %v8795 = vmul.f32 1.0, %v8794
    %v8796 = vtanh.pop %v8782
    %v8797 = vxor.u32 %v8783, 2147483648
    %v8798 = vmul.f32 %v8797, 1.442695
    %v8799 = vpow.pop %v8798
    %v8800 = vadd.f32 %v8799, 1.0
    %v8801 = vrcp.pop %v8800
    %v8802 = vmul.f32 1.0, %v8801
    %v8803 = vmul.f32 %v8795, %v8575
    %v8804 = vmul.f32 %v8789, %v8796
    %v8805 = vadd.f32 %v8803, %v8804
    %v8806 = vtanh.pop %v8805
    %v8807 = vmul.f32 %v8802, %v8806
    %v8808 = vld [vmem:[#allocation3 + $0x20] sm:$0xff]
    %v8809 = vld [vmem:[#allocation3 + $0x28] sm:$0xff]
    %v8810 = vld [vmem:[#allocation3 + $0x30] sm:$0xff]
    %v8811 = vld [vmem:[#allocation3 + $0x38] sm:$0xff]
    %v8812 = vpack.c.bf16 %v8692, %v8692
    %8813 = vmatprep.subr.bf16.mxu0 %v7398
    %8814 = vmatpush1.bf16.msra.mxu0 %v7397
    %8815 = vmatprep.subr.bf16.mxu0 %v7394
    %8816 = vmatpush1.bf16.msra.mxu0 %v7393
    %8817 = vmatprep.subr.bf16.mxu0 %v7390
    %8818 = vmatpush1.bf16.msra.mxu0 %v7389
    %8819 = vmatprep.subr.bf16.mxu0 %v7386
    %8820 = vmatpush1.bf16.msra.mxu0 %v7385
    %8821 = vmatprep.subr.bf16.mxu0 %v7382
    %8822 = vmatpush1.bf16.msra.mxu0 %v7381
    %8823 = vmatprep.subr.bf16.mxu0 %v7378
    %8824 = vmatpush1.bf16.msra.mxu0 %v7377
    %8825 = vmatprep.subr.bf16.mxu0 %v7374
    %8826 = vmatpush1.bf16.msra.mxu0 %v7373
    %8827 = vmatprep.subr.bf16.mxu0 %v7370
    %8828 = vmatpush1.bf16.msra.mxu0 %v7369
    %8829 = vmatprep.subr.bf16.mxu0 0
    %8830 = vmatpush2.bf16.msra.mxu0 0
    %8831 = vmatprep.subr.bf16.mxu0 0
    %8832 = vmatpush2.bf16.msra.mxu0 0
    %8833 = vmatprep.subr.bf16.mxu0 0
    %8834 = vmatpush2.bf16.msra.mxu0 0
    %8835 = vmatprep.subr.bf16.mxu0 0
    %8836 = vmatpush2.bf16.msra.mxu0 0
    %8837 = vmatprep.subr.bf16.mxu0 0
    %8838 = vmatpush2.bf16.msra.mxu0 0
    %8839 = vmatprep.subr.bf16.mxu0 0
    %8840 = vmatpush2.bf16.msra.mxu0 0
    %8841 = vmatprep.subr.bf16.mxu0 0
    %8842 = vmatpush2.bf16.msra.mxu0 0
    %8843 = vmatprep.subr.bf16.mxu0 0
    %8844 = vmatpush2.bf16.msra.mxu0 0
    %8845 = vmatprep.mubr.bf16.mxu0 0
    %8846 = vmatmul.mubr.bf16.gmra.mxu0 %v8812
    %v8847 = vpop.f32.mrf.mxu0
    %v8848 = vadd.f32 0.0, %v8847
    %v8849 = vpop.f32.mrf.mxu0
    %v8850 = vadd.f32 0.0, %v8849
    %v8851 = vpop.f32.mrf.mxu0
    %v8852 = vpop.f32.mrf.mxu0
    %8853 = vdwg.mxu0
    %8854 = vmatprep.subr.bf16.mxu0 %v7400
    %8855 = vmatpush1.bf16.msra.mxu0 %v7399
    %8856 = vmatprep.subr.bf16.mxu0 %v7396
    %8857 = vmatpush1.bf16.msra.mxu0 %v7395
    %8858 = vmatprep.subr.bf16.mxu0 %v7392
    %8859 = vmatpush1.bf16.msra.mxu0 %v7391
    %8860 = vmatprep.subr.bf16.mxu0 %v7388
    %8861 = vmatpush1.bf16.msra.mxu0 %v7387
    %8862 = vmatprep.subr.bf16.mxu0 %v7384
    %8863 = vmatpush1.bf16.msra.mxu0 %v7383
    %8864 = vmatprep.subr.bf16.mxu0 %v7380
    %8865 = vmatpush1.bf16.msra.mxu0 %v7379
    %8866 = vmatprep.subr.bf16.mxu0 %v7376
    %8867 = vmatpush1.bf16.msra.mxu0 %v7375
    %8868 = vmatprep.subr.bf16.mxu0 %v7372
    %8869 = vmatpush1.bf16.msra.mxu0 %v7371
    %8870 = vmatprep.subr.bf16.mxu0 0
    %8871 = vmatpush2.bf16.msra.mxu0 0
    %8872 = vmatprep.subr.bf16.mxu0 0
    %8873 = vmatpush2.bf16.msra.mxu0 0
    %8874 = vmatprep.subr.bf16.mxu0 0
    %8875 = vmatpush2.bf16.msra.mxu0 0
    %8876 = vmatprep.subr.bf16.mxu0 0
    %8877 = vmatpush2.bf16.msra.mxu0 0
    %8878 = vmatprep.subr.bf16.mxu0 0
    %8879 = vmatpush2.bf16.msra.mxu0 0
    %8880 = vmatprep.subr.bf16.mxu0 0
    %8881 = vmatpush2.bf16.msra.mxu0 0
    %8882 = vmatprep.subr.bf16.mxu0 0
    %8883 = vmatpush2.bf16.msra.mxu0 0
    %8884 = vmatprep.subr.bf16.mxu0 0
    %8885 = vmatpush2.bf16.msra.mxu0 0
    %8886 = vmatprep.mubr.bf16.mxu0 0
    %8887 = vmatmul.mubr.bf16.gmra.mxu0 %v8812
    %v8888 = vpop.f32.mrf.mxu0
    %v8889 = vadd.f32 0.0, %v8888
    %v8890 = vpop.f32.mrf.mxu0
    %v8891 = vadd.f32 0.0, %v8890
    %v8892 = vpop.f32.mrf.mxu0
    %v8893 = vpop.f32.mrf.mxu0
    %8894 = vdwg.mxu0
    %v8895 = vadd.f32 %v8808, %v8848
    %v8896 = vadd.f32 %v8809, %v8850
    %v8897 = vadd.f32 %v8810, %v8889
    %v8898 = vadd.f32 %v8811, %v8891
    %v8899 = vxor.u32 %v8895, 2147483648
    %v8900 = vmul.f32 %v8899, 1.442695
    %v8901 = vpow.pop %v8900
    %v8902 = vadd.f32 %v8901, 1.0
    %v8903 = vrcp.pop %v8902
    %v8904 = vmul.f32 1.0, %v8903
    %v8905 = vxor.u32 %v8896, 2147483648
    %v8906 = vmul.f32 %v8905, 1.442695
    %v8907 = vpow.pop %v8906
    %v8908 = vadd.f32 %v8907, 1.0
    %v8909 = vrcp.pop %v8908
    %v8910 = vmul.f32 1.0, %v8909
    %v8911 = vtanh.pop %v8897
    %v8912 = vxor.u32 %v8898, 2147483648
    %v8913 = vmul.f32 %v8912, 1.442695
    %v8914 = vpow.pop %v8913
    %v8915 = vadd.f32 %v8914, 1.0
    %v8916 = vrcp.pop %v8915
    %v8917 = vmul.f32 1.0, %v8916
    %v8918 = vmul.f32 %v8910, %v8690
    %v8919 = vmul.f32 %v8904, %v8911
    %v8920 = vadd.f32 %v8918, %v8919
    %v8921 = vtanh.pop %v8920
    %v8922 = vmul.f32 %v8917, %v8921
    %v8923 = vld [vmem:[#allocation2 + $0xe0] sm:$0xff]
    %v8924 = vld [vmem:[#allocation2 + $0xe8] sm:$0xff]
    %v8925 = vld [vmem:[#allocation2 + $0xf0] sm:$0xff]
    %v8926 = vld [vmem:[#allocation2 + $0xf8] sm:$0xff]
    %v8927 = vpack.c.bf16 %v8807, %v8807
    %8928 = vmatprep.subr.bf16.mxu0 %v7092
    %8929 = vmatpush1.bf16.msra.mxu0 %v7091
    %8930 = vmatprep.subr.bf16.mxu0 %v7088
    %8931 = vmatpush1.bf16.msra.mxu0 %v7087
    %8932 = vmatprep.subr.bf16.mxu0 %v7084
    %8933 = vmatpush1.bf16.msra.mxu0 %v7083
    %8934 = vmatprep.subr.bf16.mxu0 %v7080
    %8935 = vmatpush1.bf16.msra.mxu0 %v7079
    %8936 = vmatprep.subr.bf16.mxu0 %v7076
    %8937 = vmatpush1.bf16.msra.mxu0 %v7075
    %8938 = vmatprep.subr.bf16.mxu0 %v7072
    %8939 = vmatpush1.bf16.msra.mxu0 %v7071
    %8940 = vmatprep.subr.bf16.mxu0 %v7068
    %8941 = vmatpush1.bf16.msra.mxu0 %v7067
    %8942 = vmatprep.subr.bf16.mxu0 %v7064
    %8943 = vmatpush1.bf16.msra.mxu0 %v7063
    %8944 = vmatprep.subr.bf16.mxu0 0
    %8945 = vmatpush2.bf16.msra.mxu0 0
    %8946 = vmatprep.subr.bf16.mxu0 0
    %8947 = vmatpush2.bf16.msra.mxu0 0
    %8948 = vmatprep.subr.bf16.mxu0 0
    %8949 = vmatpush2.bf16.msra.mxu0 0
    %8950 = vmatprep.subr.bf16.mxu0 0
    %8951 = vmatpush2.bf16.msra.mxu0 0
    %8952 = vmatprep.subr.bf16.mxu0 0
    %8953 = vmatpush2.bf16.msra.mxu0 0
    %8954 = vmatprep.subr.bf16.mxu0 0
    %8955 = vmatpush2.bf16.msra.mxu0 0
    %8956 = vmatprep.subr.bf16.mxu0 0
    %8957 = vmatpush2.bf16.msra.mxu0 0
    %8958 = vmatprep.subr.bf16.mxu0 0
    %8959 = vmatpush2.bf16.msra.mxu0 0
    %8960 = vmatprep.mubr.bf16.mxu0 0
    %8961 = vmatmul.mubr.bf16.gmra.mxu0 %v8927
    %v8962 = vpop.f32.mrf.mxu0
    %v8963 = vadd.f32 0.0, %v8962
    %v8964 = vpop.f32.mrf.mxu0
    %v8965 = vadd.f32 0.0, %v8964
    %v8966 = vpop.f32.mrf.mxu0
    %v8967 = vpop.f32.mrf.mxu0
    %8968 = vdwg.mxu0
    %8969 = vmatprep.subr.bf16.mxu0 %v7094
    %8970 = vmatpush1.bf16.msra.mxu0 %v7093
    %8971 = vmatprep.subr.bf16.mxu0 %v7090
    %8972 = vmatpush1.bf16.msra.mxu0 %v7089
    %8973 = vmatprep.subr.bf16.mxu0 %v7086
    %8974 = vmatpush1.bf16.msra.mxu0 %v7085
    %8975 = vmatprep.subr.bf16.mxu0 %v7082
    %8976 = vmatpush1.bf16.msra.mxu0 %v7081
    %8977 = vmatprep.subr.bf16.mxu0 %v7078
    %8978 = vmatpush1.bf16.msra.mxu0 %v7077
    %8979 = vmatprep.subr.bf16.mxu0 %v7074
    %8980 = vmatpush1.bf16.msra.mxu0 %v7073
    %8981 = vmatprep.subr.bf16.mxu0 %v7070
    %8982 = vmatpush1.bf16.msra.mxu0 %v7069
    %8983 = vmatprep.subr.bf16.mxu0 %v7066
    %8984 = vmatpush1.bf16.msra.mxu0 %v7065
    %8985 = vmatprep.subr.bf16.mxu0 0
    %8986 = vmatpush2.bf16.msra.mxu0 0
    %8987 = vmatprep.subr.bf16.mxu0 0
    %8988 = vmatpush2.bf16.msra.mxu0 0
    %8989 = vmatprep.subr.bf16.mxu0 0
    %8990 = vmatpush2.bf16.msra.mxu0 0
    %8991 = vmatprep.subr.bf16.mxu0 0
    %8992 = vmatpush2.bf16.msra.mxu0 0
    %8993 = vmatprep.subr.bf16.mxu0 0
    %8994 = vmatpush2.bf16.msra.mxu0 0
    %8995 = vmatprep.subr.bf16.mxu0 0
    %8996 = vmatpush2.bf16.msra.mxu0 0
    %8997 = vmatprep.subr.bf16.mxu0 0
    %8998 = vmatpush2.bf16.msra.mxu0 0
    %8999 = vmatprep.subr.bf16.mxu0 0
    %9000 = vmatpush2.bf16.msra.mxu0 0
    %9001 = vmatprep.mubr.bf16.mxu0 0
    %9002 = vmatmul.mubr.bf16.gmra.mxu0 %v8927
    %v9003 = vpop.f32.mrf.mxu0
    %v9004 = vadd.f32 0.0, %v9003
    %v9005 = vpop.f32.mrf.mxu0
    %v9006 = vadd.f32 0.0, %v9005
    %v9007 = vpop.f32.mrf.mxu0
    %v9008 = vpop.f32.mrf.mxu0
    %9009 = vdwg.mxu0
    %v9010 = vadd.f32 %v8923, %v8963
    %v9011 = vadd.f32 %v8924, %v8965
    %v9012 = vadd.f32 %v8925, %v9004
    %v9013 = vadd.f32 %v8926, %v9006
    %v9014 = vxor.u32 %v9010, 2147483648
    %v9015 = vmul.f32 %v9014, 1.442695
    %v9016 = vpow.pop %v9015
    %v9017 = vadd.f32 %v9016, 1.0
    %v9018 = vrcp.pop %v9017
    %v9019 = vmul.f32 1.0, %v9018
    %v9020 = vxor.u32 %v9011, 2147483648
    %v9021 = vmul.f32 %v9020, 1.442695
    %v9022 = vpow.pop %v9021
    %v9023 = vadd.f32 %v9022, 1.0
    %v9024 = vrcp.pop %v9023
    %v9025 = vmul.f32 1.0, %v9024
    %v9026 = vtanh.pop %v9012
    %v9027 = vxor.u32 %v9013, 2147483648
    %v9028 = vmul.f32 %v9027, 1.442695
    %v9029 = vpow.pop %v9028
    %v9030 = vadd.f32 %v9029, 1.0
    %v9031 = vrcp.pop %v9030
    %v9032 = vmul.f32 1.0, %v9031
    %v9033 = vmul.f32 %v9025, %v8805
    %v9034 = vmul.f32 %v9019, %v9026
    %v9035 = vadd.f32 %v9033, %v9034
    %v9036 = vtanh.pop %v9035
    %v9037 = vmul.f32 %v9032, %v9036
    %v9038 = vld [vmem:[#allocation3] sm:$0xff]
    %v9039 = vld [vmem:[#allocation3 + $0x8] sm:$0xff]
    %v9040 = vld [vmem:[#allocation3 + $0x10] sm:$0xff]
    %v9041 = vld [vmem:[#allocation3 + $0x18] sm:$0xff]
    %v9042 = vpack.c.bf16 %v8922, %v8922
    %9043 = vmatprep.subr.bf16.mxu0 %v7398
    %9044 = vmatpush1.bf16.msra.mxu0 %v7397
    %9045 = vmatprep.subr.bf16.mxu0 %v7394
    %9046 = vmatpush1.bf16.msra.mxu0 %v7393
    %9047 = vmatprep.subr.bf16.mxu0 %v7390
    %9048 = vmatpush1.bf16.msra.mxu0 %v7389
    %9049 = vmatprep.subr.bf16.mxu0 %v7386
    %9050 = vmatpush1.bf16.msra.mxu0 %v7385
    %9051 = vmatprep.subr.bf16.mxu0 %v7382
    %9052 = vmatpush1.bf16.msra.mxu0 %v7381
    %9053 = vmatprep.subr.bf16.mxu0 %v7378
    %9054 = vmatpush1.bf16.msra.mxu0 %v7377
    %9055 = vmatprep.subr.bf16.mxu0 %v7374
    %9056 = vmatpush1.bf16.msra.mxu0 %v7373
    %9057 = vmatprep.subr.bf16.mxu0 %v7370
    %9058 = vmatpush1.bf16.msra.mxu0 %v7369
    %9059 = vmatprep.subr.bf16.mxu0 0
    %9060 = vmatpush2.bf16.msra.mxu0 0
    %9061 = vmatprep.subr.bf16.mxu0 0
    %9062 = vmatpush2.bf16.msra.mxu0 0
    %9063 = vmatprep.subr.bf16.mxu0 0
    %9064 = vmatpush2.bf16.msra.mxu0 0
    %9065 = vmatprep.subr.bf16.mxu0 0
    %9066 = vmatpush2.bf16.msra.mxu0 0
    %9067 = vmatprep.subr.bf16.mxu0 0
    %9068 = vmatpush2.bf16.msra.mxu0 0
    %9069 = vmatprep.subr.bf16.mxu0 0
    %9070 = vmatpush2.bf16.msra.mxu0 0
    %9071 = vmatprep.subr.bf16.mxu0 0
    %9072 = vmatpush2.bf16.msra.mxu0 0
    %9073 = vmatprep.subr.bf16.mxu0 0
    %9074 = vmatpush2.bf16.msra.mxu0 0
    %9075 = vmatprep.mubr.bf16.mxu0 0
    %9076 = vmatmul.mubr.bf16.gmra.mxu0 %v9042
    %v9077 = vpop.f32.mrf.mxu0
    %v9078 = vadd.f32 0.0, %v9077
    %v9079 = vpop.f32.mrf.mxu0
    %v9080 = vadd.f32 0.0, %v9079
    %v9081 = vpop.f32.mrf.mxu0
    %v9082 = vpop.f32.mrf.mxu0
    %9083 = vdwg.mxu0
    %9084 = vmatprep.subr.bf16.mxu0 %v7400
    %9085 = vmatpush1.bf16.msra.mxu0 %v7399
    %9086 = vmatprep.subr.bf16.mxu0 %v7396
    %9087 = vmatpush1.bf16.msra.mxu0 %v7395
    %9088 = vmatprep.subr.bf16.mxu0 %v7392
    %9089 = vmatpush1.bf16.msra.mxu0 %v7391
    %9090 = vmatprep.subr.bf16.mxu0 %v7388
    %9091 = vmatpush1.bf16.msra.mxu0 %v7387
    %9092 = vmatprep.subr.bf16.mxu0 %v7384
    %9093 = vmatpush1.bf16.msra.mxu0 %v7383
    %9094 = vmatprep.subr.bf16.mxu0 %v7380
    %9095 = vmatpush1.bf16.msra.mxu0 %v7379
    %9096 = vmatprep.subr.bf16.mxu0 %v7376
    %9097 = vmatpush1.bf16.msra.mxu0 %v7375
    %9098 = vmatprep.subr.bf16.mxu0 %v7372
    %9099 = vmatpush1.bf16.msra.mxu0 %v7371
    %9100 = vmatprep.subr.bf16.mxu0 0
    %9101 = vmatpush2.bf16.msra.mxu0 0
    %9102 = vmatprep.subr.bf16.mxu0 0
    %9103 = vmatpush2.bf16.msra.mxu0 0
    %9104 = vmatprep.subr.bf16.mxu0 0
    %9105 = vmatpush2.bf16.msra.mxu0 0
    %9106 = vmatprep.subr.bf16.mxu0 0
    %9107 = vmatpush2.bf16.msra.mxu0 0
    %9108 = vmatprep.subr.bf16.mxu0 0
    %9109 = vmatpush2.bf16.msra.mxu0 0
    %9110 = vmatprep.subr.bf16.mxu0 0
    %9111 = vmatpush2.bf16.msra.mxu0 0
    %9112 = vmatprep.subr.bf16.mxu0 0
    %9113 = vmatpush2.bf16.msra.mxu0 0
    %9114 = vmatprep.subr.bf16.mxu0 0
    %9115 = vmatpush2.bf16.msra.mxu0 0
    %9116 = vmatprep.mubr.bf16.mxu0 0
    %9117 = vmatmul.mubr.bf16.gmra.mxu0 %v9042
    %v9118 = vpop.f32.mrf.mxu0
    %v9119 = vadd.f32 0.0, %v9118
    %v9120 = vpop.f32.mrf.mxu0
    %v9121 = vadd.f32 0.0, %v9120
    %v9122 = vpop.f32.mrf.mxu0
    %v9123 = vpop.f32.mrf.mxu0
    %9124 = vdwg.mxu0
    %v9125 = vadd.f32 %v9038, %v9078
    %v9126 = vadd.f32 %v9039, %v9080
    %v9127 = vadd.f32 %v9040, %v9119
    %v9128 = vadd.f32 %v9041, %v9121
    %v9129 = vxor.u32 %v9125, 2147483648
    %v9130 = vmul.f32 %v9129, 1.442695
    %v9131 = vpow.pop %v9130
    %v9132 = vadd.f32 %v9131, 1.0
    %v9133 = vrcp.pop %v9132
    %v9134 = vmul.f32 1.0, %v9133
    %v9135 = vxor.u32 %v9126, 2147483648
    %v9136 = vmul.f32 %v9135, 1.442695
    %v9137 = vpow.pop %v9136
    %v9138 = vadd.f32 %v9137, 1.0
    %v9139 = vrcp.pop %v9138
    %v9140 = vmul.f32 1.0, %v9139
    %v9141 = vtanh.pop %v9127
    %v9142 = vxor.u32 %v9128, 2147483648
    %v9143 = vmul.f32 %v9142, 1.442695
    %v9144 = vpow.pop %v9143
    %v9145 = vadd.f32 %v9144, 1.0
    %v9146 = vrcp.pop %v9145
    %v9147 = vmul.f32 1.0, %v9146
    %v9148 = vmul.f32 %v9140, %v8920
    %v9149 = vmul.f32 %v9134, %v9141
    %v9150 = vadd.f32 %v9148, %v9149
    %v9151 = vtanh.pop %v9150
    %v9152 = vmul.f32 %v9147, %v9151
    %v9153 = vld [vmem:[%s1] sm:$0x3]
    %vm9154 = vcmask 64512
    %v9156 = vsel %vm9154, %v9153, 0
    %9158 = vmatprep.subr.mxu0 0.0
    %9159 = vmatpush1.msra.mxu0 0.0
    %9160 = vmatprep.subr.mxu0 0.0
    %9161 = vmatpush1.msra.mxu0 0.0
    %9162 = vmatprep.subr.mxu0 0.0
    %9163 = vmatpush1.msra.mxu0 0.0
    %9164 = vmatprep.subr.mxu0 0.0
    %9165 = vmatpush1.msra.mxu0 0.0
    %9166 = vmatprep.subr.mxu0 0.0
    %9167 = vmatpush1.msra.mxu0 0.0
    %9168 = vmatprep.subr.mxu0 0.0
    %9169 = vmatpush1.msra.mxu0 0.0
    %9170 = vmatprep.subr.mxu0 0.0
    %9171 = vmatpush1.msra.mxu0 0.0
    %9172 = vmatprep.subr.mxu0 0.0
    %9173 = vmatpush1.msra.mxu0 0.0
    %9174 = vmatprep.subr.mxu0 0.0
    %9175 = vmatpush1.msra.mxu0 0.0
    %9176 = vmatprep.subr.mxu0 0.0
    %9177 = vmatpush1.msra.mxu0 0.0
    %9178 = vmatprep.subr.mxu0 0.0
    %9179 = vmatpush1.msra.mxu0 0.0
    %9180 = vmatprep.subr.mxu0 0.0
    %9181 = vmatpush1.msra.mxu0 0.0
    %9182 = vmatprep.subr.mxu0 0.0
    %9183 = vmatpush1.msra.mxu0 0.0
    %9184 = vmatprep.subr.mxu0 0.0
    %9185 = vmatpush1.msra.mxu0 0.0
    %9186 = vmatprep.subr.mxu0 0.0
    %9187 = vmatpush1.msra.mxu0 0.0
    %9188 = vmatprep.subr.mxu0 %v9152
    %9189 = vmatpush1.msra.mxu0 %v9037
    %9190 = vmatprep.subr.mxu0 0.0
    %9191 = vmatpush2.msra.mxu0 0.0
    %9192 = vmatprep.subr.mxu0 0.0
    %9193 = vmatpush2.msra.mxu0 0.0
    %9194 = vmatprep.subr.mxu0 0.0
    %9195 = vmatpush2.msra.mxu0 0.0
    %9196 = vmatprep.subr.mxu0 0.0
    %9197 = vmatpush2.msra.mxu0 0.0
    %9198 = vmatprep.subr.mxu0 0.0
    %9199 = vmatpush2.msra.mxu0 0.0
    %9200 = vmatprep.subr.mxu0 0.0
    %9201 = vmatpush2.msra.mxu0 0.0
    %9202 = vmatprep.subr.mxu0 0.0
    %9203 = vmatpush2.msra.mxu0 0.0
    %9204 = vmatprep.subr.mxu0 0.0
    %9205 = vmatpush2.msra.mxu0 0.0
    %9206 = vmatprep.subr.mxu0 0.0
    %9207 = vmatpush2.msra.mxu0 0.0
    %9208 = vmatprep.subr.mxu0 0.0
    %9209 = vmatpush2.msra.mxu0 0.0
    %9210 = vmatprep.subr.mxu0 0.0
    %9211 = vmatpush2.msra.mxu0 0.0
    %9212 = vmatprep.subr.mxu0 0.0
    %9213 = vmatpush2.msra.mxu0 0.0
    %9214 = vmatprep.subr.mxu0 0.0
    %9215 = vmatpush2.msra.mxu0 0.0
    %9216 = vmatprep.subr.mxu0 0.0
    %9217 = vmatpush2.msra.mxu0 0.0
    %9218 = vmatprep.subr.mxu0 0.0
    %9219 = vmatpush2.msra.mxu0 0.0
    %9220 = vmatprep.subr.mxu0 0.0
    %9221 = vmatpush2.msra.mxu0 0.0
    %9222 = vmatprep.mubr.f32.mxu0 0.0
    %9223 = vmatmul.mubr.f32.gmra.mxu0 %v9156
    %v9224 = vpop.f32.mrf.mxu0
    %v9225 = vadd.f32 0.0, %v9224
    %v9226 = vpop.f32.mrf.mxu0
    %v9227 = vadd.f32 0.0, %v9226
    %9228 = vdwg.mxu0
    %v9229 = vld [vmem:[%s14] sm:$0xff]
    %v9230 = vld [vmem:[%s14 + $0x8] sm:$0xff]
    %v9231 = vld [vmem:[%s14 + $0x10] sm:$0xff]
    %v9232 = vld [vmem:[%s14 + $0x18] sm:$0xff]
    %v9233 = vld [vmem:[%s14 + $0x20] sm:$0xff]
    %v9234 = vld [vmem:[%s14 + $0x28] sm:$0xff]
    %v9235 = vld [vmem:[%s14 + $0x30] sm:$0xff]
    %v9236 = vld [vmem:[%s14 + $0x38] sm:$0xff]
    %v9237 = vld [vmem:[%s14 + $0x40] sm:$0xff]
    %v9238 = vld [vmem:[%s14 + $0x48] sm:$0xff]
    %v9239 = vld [vmem:[%s14 + $0x50] sm:$0xff]
    %v9240 = vld [vmem:[%s14 + $0x58] sm:$0xff]
    %v9241 = vld [vmem:[%s14 + $0x60] sm:$0xff]
    %v9242 = vld [vmem:[%s14 + $0x68] sm:$0xff]
    %v9243 = vld [vmem:[%s14 + $0x70] sm:$0xff]
    %v9244 = vld [vmem:[%s14 + $0x78] sm:$0xff]
    %v9245 = vld [vmem:[%s14 + $0x80] sm:$0xff]
    %v9246 = vld [vmem:[%s14 + $0x88] sm:$0xff]
    %v9247 = vld [vmem:[%s14 + $0x90] sm:$0xff]
    %v9248 = vld [vmem:[%s14 + $0x98] sm:$0xff]
    %v9249 = vld [vmem:[%s14 + $0xa0] sm:$0xff]
    %v9250 = vld [vmem:[%s14 + $0xa8] sm:$0xff]
    %v9251 = vld [vmem:[%s14 + $0xb0] sm:$0xff]
    %v9252 = vld [vmem:[%s14 + $0xb8] sm:$0xff]
    %v9253 = vld [vmem:[%s14 + $0xc0] sm:$0xff]
    %v9254 = vld [vmem:[%s14 + $0xc8] sm:$0xff]
    %v9255 = vld [vmem:[%s14 + $0xd0] sm:$0xff]
    %v9256 = vld [vmem:[%s14 + $0xd8] sm:$0xff]
    %v9257 = vld [vmem:[%s14 + $0xe0] sm:$0xff]
    %v9258 = vld [vmem:[%s14 + $0xe8] sm:$0xff]
    %v9259 = vld [vmem:[%s14 + $0xf0] sm:$0xff]
    %v9260 = vld [vmem:[%s14 + $0xf8] sm:$0xff]
    %v9261 = vld [vmem:[%s15] sm:$0x1]
    %v9263 = vlaneseq
    %v9264 = vshrl.u32 %v9263, 7
    %v9265 = vsub.s32 0, %v9264
    %v9266 = vrot.slane %v9261, %v9265
    %9268 = vmatprep.subr.mxu0 0.0
    %9269 = vmatpush1.msra.mxu0 %v9244
    %9270 = vmatprep.subr.mxu0 0.0
    %9271 = vmatpush1.msra.mxu0 %v9243
    %9272 = vmatprep.subr.mxu0 0.0
    %9273 = vmatpush1.msra.mxu0 %v9242
    %9274 = vmatprep.subr.mxu0 0.0
    %9275 = vmatpush1.msra.mxu0 %v9241
    %9276 = vmatprep.subr.mxu0 0.0
    %9277 = vmatpush1.msra.mxu0 %v9240
    %9278 = vmatprep.subr.mxu0 0.0
    %9279 = vmatpush1.msra.mxu0 %v9239
    %9280 = vmatprep.subr.mxu0 0.0
    %9281 = vmatpush1.msra.mxu0 %v9238
    %9282 = vmatprep.subr.mxu0 0.0
    %9283 = vmatpush1.msra.mxu0 %v9237
    %9284 = vmatprep.subr.mxu0 0.0
    %9285 = vmatpush1.msra.mxu0 %v9236
    %9286 = vmatprep.subr.mxu0 0.0
    %9287 = vmatpush1.msra.mxu0 %v9235
    %9288 = vmatprep.subr.mxu0 0.0
    %9289 = vmatpush1.msra.mxu0 %v9234
    %9290 = vmatprep.subr.mxu0 0.0
    %9291 = vmatpush1.msra.mxu0 %v9233
    %9292 = vmatprep.subr.mxu0 0.0
    %9293 = vmatpush1.msra.mxu0 %v9232
    %9294 = vmatprep.subr.mxu0 0.0
    %9295 = vmatpush1.msra.mxu0 %v9231
    %9296 = vmatprep.subr.mxu0 0.0
    %9297 = vmatpush1.msra.mxu0 %v9230
    %9298 = vmatprep.subr.mxu0 0.0
    %9299 = vmatpush1.msra.mxu0 %v9229
    %9300 = vmatprep.subr.mxu0 0.0
    %9301 = vmatpush2.msra.mxu0 %v9260
    %9302 = vmatprep.subr.mxu0 0.0
    %9303 = vmatpush2.msra.mxu0 %v9259
    %9304 = vmatprep.subr.mxu0 0.0
    %9305 = vmatpush2.msra.mxu0 %v9258
    %9306 = vmatprep.subr.mxu0 0.0
    %9307 = vmatpush2.msra.mxu0 %v9257
    %9308 = vmatprep.subr.mxu0 0.0
    %9309 = vmatpush2.msra.mxu0 %v9256
    %9310 = vmatprep.subr.mxu0 0.0
    %9311 = vmatpush2.msra.mxu0 %v9255
    %9312 = vmatprep.subr.mxu0 0.0
    %9313 = vmatpush2.msra.mxu0 %v9254
    %9314 = vmatprep.subr.mxu0 0.0
    %9315 = vmatpush2.msra.mxu0 %v9253
    %9316 = vmatprep.subr.mxu0 0.0
    %9317 = vmatpush2.msra.mxu0 %v9252
    %9318 = vmatprep.subr.mxu0 0.0
    %9319 = vmatpush2.msra.mxu0 %v9251
    %9320 = vmatprep.subr.mxu0 0.0
    %9321 = vmatpush2.msra.mxu0 %v9250
    %9322 = vmatprep.subr.mxu0 0.0
    %9323 = vmatpush2.msra.mxu0 %v9249
    %9324 = vmatprep.subr.mxu0 0.0
    %9325 = vmatpush2.msra.mxu0 %v9248
    %9326 = vmatprep.subr.mxu0 0.0
    %9327 = vmatpush2.msra.mxu0 %v9247
    %9328 = vmatprep.subr.mxu0 0.0
    %9329 = vmatpush2.msra.mxu0 %v9246
    %9330 = vmatprep.subr.mxu0 0.0
    %9331 = vmatpush2.msra.mxu0 %v9245
    %9332 = vmatprep.mubr.f32.mxu0 %v9227
    %9333 = vmatmul.mubr.f32.gmra.mxu0 %v9225
    %v9334 = vpop.f32.mrf.mxu0
    %v9335 = vadd.f32 %v9266, %v9334
    %v9336 = vpop.f32.mrf.mxu0
    %9337 = vdwg.mxu0
    %v9338 = vmax.f32 %v9335, 0.0
    %v9339 = vld [vmem:[%s16] sm:$0xff]
    %v9340 = vld [vmem:[%s16 + $0x8] sm:$0xff]
    %v9341 = vld [vmem:[%s16 + $0x10] sm:$0xff]
    %v9342 = vld [vmem:[%s16 + $0x18] sm:$0xff]
    %v9343 = vld [vmem:[%s16 + $0x20] sm:$0xff]
    %v9344 = vld [vmem:[%s16 + $0x28] sm:$0xff]
    %v9345 = vld [vmem:[%s16 + $0x30] sm:$0xff]
    %v9346 = vld [vmem:[%s16 + $0x38] sm:$0xff]
    %v9347 = vld [vmem:[#allocation5] sm:$0x1]
    %v9349 = vlaneseq
    %v9350 = vshrl.u32 %v9349, 7
    %v9351 = vsub.s32 0, %v9350
    %v9352 = vrot.slane %v9347, %v9351
    %vm9354 = vcmask 523264
    %v9356 = vsel %vm9354, %v9338, 0
    %9358 = vmatprep.subr.mxu0 0.0
    %9359 = vmatpush1.msra.mxu0 0.0
    %9360 = vmatprep.subr.mxu0 0.0
    %9361 = vmatpush1.msra.mxu0 0.0
    %9362 = vmatprep.subr.mxu0 0.0
    %9363 = vmatpush1.msra.mxu0 0.0
    %9364 = vmatprep.subr.mxu0 0.0
    %9365 = vmatpush1.msra.mxu0 0.0
    %9366 = vmatprep.subr.mxu0 0.0
    %9367 = vmatpush1.msra.mxu0 0.0
    %9368 = vmatprep.subr.mxu0 0.0
    %9369 = vmatpush1.msra.mxu0 0.0
    %9370 = vmatprep.subr.mxu0 0.0
    %9371 = vmatpush1.msra.mxu0 0.0
    %9372 = vmatprep.subr.mxu0 0.0
    %9373 = vmatpush1.msra.mxu0 0.0
    %9374 = vmatprep.subr.mxu0 0.0
    %9375 = vmatpush1.msra.mxu0 %v9346
    %9376 = vmatprep.subr.mxu0 0.0
    %9377 = vmatpush1.msra.mxu0 %v9345
    %9378 = vmatprep.subr.mxu0 0.0
    %9379 = vmatpush1.msra.mxu0 %v9344
    %9380 = vmatprep.subr.mxu0 0.0
    %9381 = vmatpush1.msra.mxu0 %v9343
    %9382 = vmatprep.subr.mxu0 0.0
    %9383 = vmatpush1.msra.mxu0 %v9342
    %9384 = vmatprep.subr.mxu0 0.0
    %9385 = vmatpush1.msra.mxu0 %v9341
    %9386 = vmatprep.subr.mxu0 0.0
    %9387 = vmatpush1.msra.mxu0 %v9340
    %9388 = vmatprep.subr.mxu0 0.0
    %9389 = vmatpush1.msra.mxu0 %v9339
    %9390 = vmatprep.subr.mxu0 0.0
    %9391 = vmatpush2.msra.mxu0 0.0
    %9392 = vmatprep.subr.mxu0 0.0
    %9393 = vmatpush2.msra.mxu0 0.0
    %9394 = vmatprep.subr.mxu0 0.0
    %9395 = vmatpush2.msra.mxu0 0.0
    %9396 = vmatprep.subr.mxu0 0.0
    %9397 = vmatpush2.msra.mxu0 0.0
    %9398 = vmatprep.subr.mxu0 0.0
    %9399 = vmatpush2.msra.mxu0 0.0
    %9400 = vmatprep.subr.mxu0 0.0
    %9401 = vmatpush2.msra.mxu0 0.0
    %9402 = vmatprep.subr.mxu0 0.0
    %9403 = vmatpush2.msra.mxu0 0.0
    %9404 = vmatprep.subr.mxu0 0.0
    %9405 = vmatpush2.msra.mxu0 0.0
    %9406 = vmatprep.subr.mxu0 0.0
    %9407 = vmatpush2.msra.mxu0 0.0
    %9408 = vmatprep.subr.mxu0 0.0
    %9409 = vmatpush2.msra.mxu0 0.0
    %9410 = vmatprep.subr.mxu0 0.0
    %9411 = vmatpush2.msra.mxu0 0.0
    %9412 = vmatprep.subr.mxu0 0.0
    %9413 = vmatpush2.msra.mxu0 0.0
    %9414 = vmatprep.subr.mxu0 0.0
    %9415 = vmatpush2.msra.mxu0 0.0
    %9416 = vmatprep.subr.mxu0 0.0
    %9417 = vmatpush2.msra.mxu0 0.0
    %9418 = vmatprep.subr.mxu0 0.0
    %9419 = vmatpush2.msra.mxu0 0.0
    %9420 = vmatprep.subr.mxu0 0.0
    %9421 = vmatpush2.msra.mxu0 0.0
    %9422 = vmatprep.mubr.f32.mxu0 0.0
    %9423 = vmatmul.mubr.f32.gmra.mxu0 %v9356
    %v9424 = vpop.f32.mrf.mxu0
    %v9425 = vadd.f32 %v9352, %v9424
    %v9426 = vpop.f32.mrf.mxu0
    %9427 = vdwg.mxu0
    %v9428 = vxor.u32 %v9425, 2147483648
    %v9429 = vmul.f32 %v9428, 1.442695
    %v9430 = vpow.pop %v9429
    %v9431 = vadd.f32 %v9430, 1.0
    %v9432 = vrcp.pop %v9431
    %v9433 = vmul.f32 1.0, %v9432
    %vm9434 = vcmask 1024
    %9435 = vst.msk [vmem:[%s18] sm:$0x3] %vm9434, %v9433
    // Predicated region
    $region106: #{tpu_custom_call.1} parent=1 // pred_check
      _
    $region107: #{tpu_custom_call.1} parent=1 // pred_check_branch
      %9437 = sbr.rel (0) target = $region109
    $region108: #{tpu_custom_call.1} parent=1 // pred_region
      _
    $region109: #{tpu_custom_call.1} parent=1 // pred_fallthru
      _
    // Predicated region
    $region110: #{tpu_custom_call.1} parent=1 // pred_check
      _
    $region111: #{tpu_custom_call.1} parent=1 // pred_check_branch
      %9439 = sbr.rel (0) target = $region113
    $region112: #{tpu_custom_call.1} parent=1 // pred_region
      _
    $region113: #{tpu_custom_call.1} parent=1 // pred_fallthru
      _
    %9440 = vsyncpa [#allocation7], 1
    %9441 = vsyncpa [#allocation9], 1
    %9442 = vsyncpa [#allocation12], 1
    %9443 = vsyncpa [#allocation15], 1
    %9444 = vsyncpa [#allocation18], 1

</llo_original>
